<compile_context>
chip_gen: v7x
topology: tpu7x:2x2x1
jax: 0.10.0
libtpu: 0.0.40
codegen_flags: <defaults>
</compile_context>

<pallas_src>
import jax
import jax.numpy as jnp
from jax.experimental import pallas as pl
from jax.experimental.pallas import tpu as pltpu

# Keep f32 at the MXU so numerics match the PyTorch module / f32 reference.
# Switch to jnp.bfloat16 for ~2x MXU throughput on v6e/v7x (looser numerics).
MATMUL_DTYPE = jnp.float32


def _rdb_fused_kernel(x_ref,
                      w1_ref, w2_ref, w3_ref, w4_ref,
                      b1_ref, b2_ref, b3_ref, b4_ref,
                      o_ref,
                      feat, patch):
    # x_ref : (1, C, H*W)  flat-NCHW block for one batch element
    # w*    : (9*Cin_k, Cout_k) packed weights, source-major K layout
    # b*    : (1, Cout_k) f32
    # o_ref : (1, C, H*W)  lane-dense output block
    # feat  : (H+2, W+2, C+3G) f32  dense padded feature scratch
    # patch : (H*W, 9*(C+3G)) MATMUL_DTYPE  im2col scratch (prefix-reused)
    Hp, Wp, Cd = feat.shape
    H, W = Hp - 2, Wp - 2
    M = H * W
    C = x_ref.shape[1]
    G = (Cd - C) // 3

    # ---- re-establish the (never written) zero halo ring: O(perimeter) ------
    zrow = jnp.zeros((1, Wp, Cd), jnp.float32)
    zcol = jnp.zeros((Hp, 1, Cd), jnp.float32)
    feat[0:1, :, :] = zrow
    feat[H + 1:H + 2, :, :] = zrow
    feat[:, 0:1, :] = zcol
    feat[:, W + 1:W + 2, :] = zcol

    # ---- layout conversion on-chip: (C, H*W) -> (H*W, C) --------------------
    x_hwc = x_ref[0].T.astype(jnp.float32)            # (M, C)
    feat[1:H + 1, 1:W + 1, 0:C] = x_hwc.reshape(H, W, C)

    # ---- in-place im2col: write 9 shifted windows of one source's channels --
    # into lane-offset slices of the shared patch scratch (source-major K).
    def write_taps(ch_off, width, col_off):
        t = 0
        for dy in range(3):
            for dx in range(3):
                win = feat[dy:dy + H, dx:dx + W, ch_off:ch_off + width]
                patch[:, col_off + t * width: col_off + (t + 1) * width] = (
                    win.reshape(M, width).astype(patch.dtype))
                t += 1

    write_taps(0, C, 0)                               # taps of x

    def conv(k_cols, w_ref, b_ref):
        # one MXU matmul over the written prefix of the patch scratch
        return jnp.dot(patch[:, 0:k_cols], w_ref[...],
                       preferred_element_type=jnp.float32) + b_ref[...]

    # conv1 + ReLU
    y1 = jnp.maximum(conv(9 * C, w1_ref, b1_ref), 0.0)
    feat[1:H + 1, 1:W + 1, C:C + G] = y1.reshape(H, W, G)
    write_taps(C, G, 9 * C)                           # taps of x1

    # conv2 + ReLU   (cat[x, x1] == contiguous prefix of patch)
    y2 = jnp.maximum(conv(9 * (C + G), w2_ref, b2_ref), 0.0)
    feat[1:H + 1, 1:W + 1, C + G:C + 2 * G] = y2.reshape(H, W, G)
    write_taps(C + G, G, 9 * (C + G))                 # taps of x2

    # conv3 + ReLU
    y3 = jnp.maximum(conv(9 * (C + 2 * G), w3_ref, b3_ref), 0.0)
    feat[1:H + 1, 1:W + 1, C + 2 * G:C + 3 * G] = y3.reshape(H, W, G)
    write_taps(C + 2 * G, G, 9 * (C + 2 * G))         # taps of x3

    # conv4 (no ReLU), scale + residual, all in VMEM / f32
    y4 = conv(9 * Cd, w4_ref, b4_ref)
    out = y4 * 0.2 + x_hwc                            # (M, C)

    # ---- lane-dense store: (C, H*W) with H*W on the lane axis ---------------
    o_ref[0] = out.T.astype(o_ref.dtype)


def residual_dense_block(x_nchw, params):
    """Forward pass matching the PyTorch ResidualDenseBlock (NCHW in/out)."""
    N, C, H, W = x_nchw.shape
    G = params["w1"].shape[0]
    HW = H * W
    Cd = C + 3 * G

    # (Cout, Cin, 3, 3) torch weight -> (sum_s 9*Cs, Cout) with source-major K:
    # rows ordered [src0: (kh*3+kw)*Cs0 + c | src1: ... | ...], matching the
    # in-kernel patch layout.  Cast to MATMUL_DTYPE once, here.
    def pack_w(w, sections):
        cout = w.shape[0]
        parts, off = [], 0
        for cs in sections:
            parts.append(
                jnp.transpose(w[:, off:off + cs], (2, 3, 1, 0)).reshape(9 * cs, cout))
            off += cs
        return jnp.concatenate(parts, axis=0).astype(MATMUL_DTYPE)

    w1 = pack_w(params["w1"], [C])
    w2 = pack_w(params["w2"], [C, G])
    w3 = pack_w(params["w3"], [C, G, G])
    w4 = pack_w(params["w4"], [C, G, G, G])
    weights = [w1, w2, w3, w4]
    biases = [params["b1"].reshape(1, -1).astype(jnp.float32),
              params["b2"].reshape(1, -1).astype(jnp.float32),
              params["b3"].reshape(1, -1).astype(jnp.float32),
              params["b4"].reshape(1, -1).astype(jnp.float32)]

    x_flat = x_nchw.reshape(N, C, HW)       # free reshape, no transpose needed

    def const2d(a):                          # whole (constant-index) block
        return pl.BlockSpec(a.shape, lambda n: (0, 0))

    in_specs = ([pl.BlockSpec((1, C, HW), lambda n: (n, 0, 0))]
                + [const2d(w) for w in weights]
                + [const2d(b) for b in biases])

    out_flat = pl.pallas_call(
        _rdb_fused_kernel,
        out_shape=jax.ShapeDtypeStruct((N, C, HW), x_nchw.dtype),
        grid=(N,),
        in_specs=in_specs,
        out_specs=pl.BlockSpec((1, C, HW), lambda n: (n, 0, 0)),
        scratch_shapes=[
            pltpu.VMEM((H + 2, W + 2, Cd), jnp.float32),     # dense padded feats
            pltpu.VMEM((HW, 9 * Cd), MATMUL_DTYPE),          # shared im2col patch
        ],
        compiler_params=pltpu.CompilerParams(
            dimension_semantics=("parallel",),
            # explicit scoped-VMEM limit: > v5e/v6e defaults, < v7x's 64 MiB
            vmem_limit_bytes=48 * 1024 * 1024),
    )(x_flat, *weights, *biases)

    return out_flat.reshape(N, C, H, W)


# ----------------------------------------------------------------------------
# Pure-JAX reference (lax.conv) for a correctness check.
# ----------------------------------------------------------------------------
def _ref_conv(x, w, b):
    y = jax.lax.conv_general_dilated(
        x, w, window_strides=(1, 1), padding=((1, 1), (1, 1)),
        dimension_numbers=("NCHW", "OIHW", "NCHW"))
    return y + b.reshape(1, -1, 1, 1)


def residual_dense_block_ref(x, p):
    x1 = jax.nn.relu(_ref_conv(x, p["w1"], p["b1"]))
    x2 = jax.nn.relu(_ref_conv(jnp.concatenate([x, x1], 1), p["w2"], p["b2"]))
    x3 = jax.nn.relu(_ref_conv(jnp.concatenate([x, x1, x2], 1), p["w3"], p["b3"]))
    x4 = _ref_conv(jnp.concatenate([x, x1, x2, x3], 1), p["w4"], p["b4"])
    return x4 * 0.2 + x


# ----------------------------------------------------------------------------
# Deterministic parameter init + run
# ----------------------------------------------------------------------------
def init_params(key, channels, growth_rate):
    shapes = {
        "w1": (growth_rate, channels, 3, 3),
        "w2": (growth_rate, channels + growth_rate, 3, 3),
        "w3": (growth_rate, channels + 2 * growth_rate, 3, 3),
        "w4": (channels, channels + 3 * growth_rate, 3, 3),
    }
    params = {}
    keys = jax.random.split(key, 8)
    for i, name in enumerate(["w1", "w2", "w3", "w4"]):
        fan_in = shapes[name][1] * 9
        scale = (1.0 / fan_in) ** 0.5
        params[name] = scale * jax.random.normal(keys[2 * i], shapes[name],
                                                 dtype=jnp.float32)
        params["b" + name[1]] = scale * jax.random.normal(
            keys[2 * i + 1], (shapes[name][0],), dtype=jnp.float32)
    return params


if __name__ == "__main__":
    channels, growth_rate = 4, 8
    N, H, W = 2, 16, 16

    key = jax.random.PRNGKey(0)
    k_x, k_p = jax.random.split(key)
    x = jax.random.normal(k_x, (N, channels, H, W), dtype=jnp.float32)
    params = init_params(k_p, channels, growth_rate)

    out = jax.block_until_ready(residual_dense_block(x, params))

    ref = residual_dense_block_ref(x, params)
    assert out.shape == ref.shape == (N, channels, H, W)
    assert jnp.allclose(out, ref, atol=1e-4, rtol=1e-4), "mismatch vs reference"

    print("KERNEL_OK")
</pallas_src>

<mosaic_0001>
module attributes {stable_mosaic.version = 11 : i64} {
  func.func @_rdb_fused_kernel(%arg0: i32, %arg1: memref<1x4x256xf32, #tpu.memory_space<vmem>>, %arg2: memref<36x8xf32, #tpu.memory_space<vmem>>, %arg3: memref<108x8xf32, #tpu.memory_space<vmem>>, %arg4: memref<180x8xf32, #tpu.memory_space<vmem>>, %arg5: memref<252x4xf32, #tpu.memory_space<vmem>>, %arg6: memref<1x8xf32, #tpu.memory_space<vmem>>, %arg7: memref<1x8xf32, #tpu.memory_space<vmem>>, %arg8: memref<1x8xf32, #tpu.memory_space<vmem>>, %arg9: memref<1x4xf32, #tpu.memory_space<vmem>>, %arg10: memref<1x4x256xf32, #tpu.memory_space<vmem>>, %arg11: memref<18x18x28xf32, #tpu.memory_space<vmem>>, %arg12: memref<256x252xf32, #tpu.memory_space<vmem>>) attributes {dimension_semantics = [#tpu.dimension_semantics<parallel>], iteration_bounds = array<i64: 2>, scalar_prefetch = 0 : i64, scratch_operands = 2 : i64, tpu.core_type = #tpu.core_type<tc>, window_params = [{transform_indices = @transform_0, window_bounds = array<i64: 1, 4, 256>}, {pipeline_mode = #tpu.pipeline_mode<synchronous>, transform_indices = @transform_1, window_bounds = array<i64: 36, 8>}, {pipeline_mode = #tpu.pipeline_mode<synchronous>, transform_indices = @transform_2, window_bounds = array<i64: 108, 8>}, {pipeline_mode = #tpu.pipeline_mode<synchronous>, transform_indices = @transform_3, window_bounds = array<i64: 180, 8>}, {pipeline_mode = #tpu.pipeline_mode<synchronous>, transform_indices = @transform_4, window_bounds = array<i64: 252, 4>}, {pipeline_mode = #tpu.pipeline_mode<synchronous>, transform_indices = @transform_5, window_bounds = array<i64: 1, 8>}, {pipeline_mode = #tpu.pipeline_mode<synchronous>, transform_indices = @transform_6, window_bounds = array<i64: 1, 8>}, {pipeline_mode = #tpu.pipeline_mode<synchronous>, transform_indices = @transform_7, window_bounds = array<i64: 1, 8>}, {pipeline_mode = #tpu.pipeline_mode<synchronous>, transform_indices = @transform_8, window_bounds = array<i64: 1, 4>}, {transform_indices = @transform_9, window_bounds = array<i64: 1, 4, 256>}]} {
    %cst = arith.constant 0.000000e+00 : f32
    %0 = vector.broadcast %cst : f32 to vector<1x18x28xf32>
    %cst_0 = arith.constant 0.000000e+00 : f32
    %1 = vector.broadcast %cst_0 : f32 to vector<18x1x28xf32>
    %c0 = arith.constant 0 : index
    %c0_1 = arith.constant 0 : index
    %c0_2 = arith.constant 0 : index
    %2 = vector.load %arg11[%c0, %c0_1, %c0_2] : memref<18x18x28xf32, #tpu.memory_space<vmem>>, vector<1x18x28xf32>
    tpu.vector_store %arg11[%c0, %c0_1, %c0_2], %0 {strides = array<i32>} : memref<18x18x28xf32, #tpu.memory_space<vmem>>, vector<1x18x28xf32>,
    %c17 = arith.constant 17 : index
    %c0_3 = arith.constant 0 : index
    %c0_4 = arith.constant 0 : index
    %3 = vector.load %arg11[%c17, %c0_3, %c0_4] : memref<18x18x28xf32, #tpu.memory_space<vmem>>, vector<1x18x28xf32>
    tpu.vector_store %arg11[%c17, %c0_3, %c0_4], %0 {strides = array<i32>} : memref<18x18x28xf32, #tpu.memory_space<vmem>>, vector<1x18x28xf32>,
    %c0_5 = arith.constant 0 : index
    %c0_6 = arith.constant 0 : index
    %c0_7 = arith.constant 0 : index
    %4 = vector.load %arg11[%c0_5, %c0_6, %c0_7] : memref<18x18x28xf32, #tpu.memory_space<vmem>>, vector<18x1x28xf32>
    tpu.vector_store %arg11[%c0_5, %c0_6, %c0_7], %1 {strides = array<i32>} : memref<18x18x28xf32, #tpu.memory_space<vmem>>, vector<18x1x28xf32>,
    %c0_8 = arith.constant 0 : index
    %c17_9 = arith.constant 17 : index
    %c0_10 = arith.constant 0 : index
    %5 = vector.load %arg11[%c0_8, %c17_9, %c0_10] : memref<18x18x28xf32, #tpu.memory_space<vmem>>, vector<18x1x28xf32>
    tpu.vector_store %arg11[%c0_8, %c17_9, %c0_10], %1 {strides = array<i32>} : memref<18x18x28xf32, #tpu.memory_space<vmem>>, vector<18x1x28xf32>,
    %c0_11 = arith.constant 0 : index
    %c0_12 = arith.constant 0 : index
    %c0_13 = arith.constant 0 : index
    %6 = vector.load %arg1[%c0_11, %c0_12, %c0_13] : memref<1x4x256xf32, #tpu.memory_space<vmem>>, vector<1x4x256xf32>
    %7 = vector.shape_cast %6 : vector<1x4x256xf32> to vector<4x256xf32>
    %8 = tpu.transpose %7, [1, 0] : vector<4x256xf32> -> vector<256x4xf32>
    %9 = vector.shape_cast %8 : vector<256x4xf32> to vector<16x16x4xf32>
    %c1 = arith.constant 1 : index
    %c1_14 = arith.constant 1 : index
    %c0_15 = arith.constant 0 : index
    %10 = vector.load %arg11[%c1, %c1_14, %c0_15] : memref<18x18x28xf32, #tpu.memory_space<vmem>>, vector<16x16x4xf32>
    tpu.vector_store %arg11[%c1, %c1_14, %c0_15], %9 {strides = array<i32>} : memref<18x18x28xf32, #tpu.memory_space<vmem>>, vector<16x16x4xf32>,
    %c0_16 = arith.constant 0 : index
    %c0_17 = arith.constant 0 : index
    %c0_18 = arith.constant 0 : index
    %11 = vector.load %arg11[%c0_16, %c0_17, %c0_18] : memref<18x18x28xf32, #tpu.memory_space<vmem>>, vector<16x16x4xf32>
    %12 = vector.shape_cast %11 : vector<16x16x4xf32> to vector<256x4xf32>
    %c0_19 = arith.constant 0 : index
    %c0_20 = arith.constant 0 : index
    %13 = vector.load %arg12[%c0_19, %c0_20] : memref<256x252xf32, #tpu.memory_space<vmem>>, vector<256x4xf32>
    tpu.vector_store %arg12[%c0_19, %c0_20], %12 {strides = array<i32>} : memref<256x252xf32, #tpu.memory_space<vmem>>, vector<256x4xf32>,
    %c0_21 = arith.constant 0 : index
    %c1_22 = arith.constant 1 : index
    %c0_23 = arith.constant 0 : index
    %14 = vector.load %arg11[%c0_21, %c1_22, %c0_23] : memref<18x18x28xf32, #tpu.memory_space<vmem>>, vector<16x16x4xf32>
    %15 = vector.shape_cast %14 : vector<16x16x4xf32> to vector<256x4xf32>
    %c0_24 = arith.constant 0 : index
    %c4 = arith.constant 4 : index
    %16 = vector.load %arg12[%c0_24, %c4] : memref<256x252xf32, #tpu.memory_space<vmem>>, vector<256x4xf32>
    tpu.vector_store %arg12[%c0_24, %c4], %15 {strides = array<i32>} : memref<256x252xf32, #tpu.memory_space<vmem>>, vector<256x4xf32>,
    %c0_25 = arith.constant 0 : index
    %c2 = arith.constant 2 : index
    %c0_26 = arith.constant 0 : index
    %17 = vector.load %arg11[%c0_25, %c2, %c0_26] : memref<18x18x28xf32, #tpu.memory_space<vmem>>, vector<16x16x4xf32>
    %18 = vector.shape_cast %17 : vector<16x16x4xf32> to vector<256x4xf32>
    %c0_27 = arith.constant 0 : index
    %c8 = arith.constant 8 : index
    %19 = vector.load %arg12[%c0_27, %c8] : memref<256x252xf32, #tpu.memory_space<vmem>>, vector<256x4xf32>
    tpu.vector_store %arg12[%c0_27, %c8], %18 {strides = array<i32>} : memref<256x252xf32, #tpu.memory_space<vmem>>, vector<256x4xf32>,
    %c1_28 = arith.constant 1 : index
    %c0_29 = arith.constant 0 : index
    %c0_30 = arith.constant 0 : index
    %20 = vector.load %arg11[%c1_28, %c0_29, %c0_30] : memref<18x18x28xf32, #tpu.memory_space<vmem>>, vector<16x16x4xf32>
    %21 = vector.shape_cast %20 : vector<16x16x4xf32> to vector<256x4xf32>
    %c0_31 = arith.constant 0 : index
    %c12 = arith.constant 12 : index
    %22 = vector.load %arg12[%c0_31, %c12] : memref<256x252xf32, #tpu.memory_space<vmem>>, vector<256x4xf32>
    tpu.vector_store %arg12[%c0_31, %c12], %21 {strides = array<i32>} : memref<256x252xf32, #tpu.memory_space<vmem>>, vector<256x4xf32>,
    %c1_32 = arith.constant 1 : index
    %c1_33 = arith.constant 1 : index
    %c0_34 = arith.constant 0 : index
    %23 = vector.load %arg11[%c1_32, %c1_33, %c0_34] : memref<18x18x28xf32, #tpu.memory_space<vmem>>, vector<16x16x4xf32>
    %24 = vector.shape_cast %23 : vector<16x16x4xf32> to vector<256x4xf32>
    %c0_35 = arith.constant 0 : index
    %c16 = arith.constant 16 : index
    %25 = vector.load %arg12[%c0_35, %c16] : memref<256x252xf32, #tpu.memory_space<vmem>>, vector<256x4xf32>
    tpu.vector_store %arg12[%c0_35, %c16], %24 {strides = array<i32>} : memref<256x252xf32, #tpu.memory_space<vmem>>, vector<256x4xf32>,
    %c1_36 = arith.constant 1 : index
    %c2_37 = arith.constant 2 : index
    %c0_38 = arith.constant 0 : index
    %26 = vector.load %arg11[%c1_36, %c2_37, %c0_38] : memref<18x18x28xf32, #tpu.memory_space<vmem>>, vector<16x16x4xf32>
    %27 = vector.shape_cast %26 : vector<16x16x4xf32> to vector<256x4xf32>
    %c0_39 = arith.constant 0 : index
    %c20 = arith.constant 20 : index
    %28 = vector.load %arg12[%c0_39, %c20] : memref<256x252xf32, #tpu.memory_space<vmem>>, vector<256x4xf32>
    tpu.vector_store %arg12[%c0_39, %c20], %27 {strides = array<i32>} : memref<256x252xf32, #tpu.memory_space<vmem>>, vector<256x4xf32>,
    %c2_40 = arith.constant 2 : index
    %c0_41 = arith.constant 0 : index
    %c0_42 = arith.constant 0 : index
    %29 = vector.load %arg11[%c2_40, %c0_41, %c0_42] : memref<18x18x28xf32, #tpu.memory_space<vmem>>, vector<16x16x4xf32>
    %30 = vector.shape_cast %29 : vector<16x16x4xf32> to vector<256x4xf32>
    %c0_43 = arith.constant 0 : index
    %c24 = arith.constant 24 : index
    %31 = vector.load %arg12[%c0_43, %c24] : memref<256x252xf32, #tpu.memory_space<vmem>>, vector<256x4xf32>
    tpu.vector_store %arg12[%c0_43, %c24], %30 {strides = array<i32>} : memref<256x252xf32, #tpu.memory_space<vmem>>, vector<256x4xf32>,
    %c2_44 = arith.constant 2 : index
    %c1_45 = arith.constant 1 : index
    %c0_46 = arith.constant 0 : index
    %32 = vector.load %arg11[%c2_44, %c1_45, %c0_46] : memref<18x18x28xf32, #tpu.memory_space<vmem>>, vector<16x16x4xf32>
    %33 = vector.shape_cast %32 : vector<16x16x4xf32> to vector<256x4xf32>
    %c0_47 = arith.constant 0 : index
    %c28 = arith.constant 28 : index
    %34 = vector.load %arg12[%c0_47, %c28] : memref<256x252xf32, #tpu.memory_space<vmem>>, vector<256x4xf32>
    tpu.vector_store %arg12[%c0_47, %c28], %33 {strides = array<i32>} : memref<256x252xf32, #tpu.memory_space<vmem>>, vector<256x4xf32>,
    %c2_48 = arith.constant 2 : index
    %c2_49 = arith.constant 2 : index
    %c0_50 = arith.constant 0 : index
    %35 = vector.load %arg11[%c2_48, %c2_49, %c0_50] : memref<18x18x28xf32, #tpu.memory_space<vmem>>, vector<16x16x4xf32>
    %36 = vector.shape_cast %35 : vector<16x16x4xf32> to vector<256x4xf32>
    %c0_51 = arith.constant 0 : index
    %c32 = arith.constant 32 : index
    %37 = vector.load %arg12[%c0_51, %c32] : memref<256x252xf32, #tpu.memory_space<vmem>>, vector<256x4xf32>
    tpu.vector_store %arg12[%c0_51, %c32], %36 {strides = array<i32>} : memref<256x252xf32, #tpu.memory_space<vmem>>, vector<256x4xf32>,
    %c0_52 = arith.constant 0 : index
    %c0_53 = arith.constant 0 : index
    %38 = vector.load %arg12[%c0_52, %c0_53] : memref<256x252xf32, #tpu.memory_space<vmem>>, vector<256x36xf32>
    %c0_54 = arith.constant 0 : index
    %c0_55 = arith.constant 0 : index
    %39 = vector.load %arg2[%c0_54, %c0_55] : memref<36x8xf32, #tpu.memory_space<vmem>>, vector<36x8xf32>
    %cst_56 = arith.constant dense<0.000000e+00> : vector<256x8xf32>
    %40 = tpu.matmul %38, %39, %cst_56 {dimension_numbers = #tpu.dot_dimension_numbers<[1], [0], [0], [1], [0, 0, 1, 1], [], []>} : vector<256x36xf32>, vector<36x8xf32>, vector<256x8xf32> -> vector<256x8xf32>
    %c0_57 = arith.constant 0 : index
    %c0_58 = arith.constant 0 : index
    %41 = vector.load %arg6[%c0_57, %c0_58] : memref<1x8xf32, #tpu.memory_space<vmem>>, vector<1x8xf32>
    %42 = vector.broadcast %41 : vector<1x8xf32> to vector<256x8xf32>
    %43 = arith.addf %40, %42 : vector<256x8xf32>
    %cst_59 = arith.constant 0.000000e+00 : f32
    %44 = vector.broadcast %cst_59 : f32 to vector<256x8xf32>
    %45 = arith.maximumf %43, %44 : vector<256x8xf32>
    %46 = vector.shape_cast %45 : vector<256x8xf32> to vector<16x16x8xf32>
    %c1_60 = arith.constant 1 : index
    %c1_61 = arith.constant 1 : index
    %c4_62 = arith.constant 4 : index
    %47 = vector.load %arg11[%c1_60, %c1_61, %c4_62] : memref<18x18x28xf32, #tpu.memory_space<vmem>>, vector<16x16x8xf32>
    tpu.vector_store %arg11[%c1_60, %c1_61, %c4_62], %46 {strides = array<i32>} : memref<18x18x28xf32, #tpu.memory_space<vmem>>, vector<16x16x8xf32>,
    %c0_63 = arith.constant 0 : index
    %c0_64 = arith.constant 0 : index
    %c4_65 = arith.constant 4 : index
    %48 = vector.load %arg11[%c0_63, %c0_64, %c4_65] : memref<18x18x28xf32, #tpu.memory_space<vmem>>, vector<16x16x8xf32>
    %49 = vector.shape_cast %48 : vector<16x16x8xf32> to vector<256x8xf32>
    %c0_66 = arith.constant 0 : index
    %c36 = arith.constant 36 : index
    %50 = vector.load %arg12[%c0_66, %c36] : memref<256x252xf32, #tpu.memory_space<vmem>>, vector<256x8xf32>
    tpu.vector_store %arg12[%c0_66, %c36], %49 {strides = array<i32>} : memref<256x252xf32, #tpu.memory_space<vmem>>, vector<256x8xf32>,
    %c0_67 = arith.constant 0 : index
    %c1_68 = arith.constant 1 : index
    %c4_69 = arith.constant 4 : index
    %51 = vector.load %arg11[%c0_67, %c1_68, %c4_69] : memref<18x18x28xf32, #tpu.memory_space<vmem>>, vector<16x16x8xf32>
    %52 = vector.shape_cast %51 : vector<16x16x8xf32> to vector<256x8xf32>
    %c0_70 = arith.constant 0 : index
    %c44 = arith.constant 44 : index
    %53 = vector.load %arg12[%c0_70, %c44] : memref<256x252xf32, #tpu.memory_space<vmem>>, vector<256x8xf32>
    tpu.vector_store %arg12[%c0_70, %c44], %52 {strides = array<i32>} : memref<256x252xf32, #tpu.memory_space<vmem>>, vector<256x8xf32>,
    %c0_71 = arith.constant 0 : index
    %c2_72 = arith.constant 2 : index
    %c4_73 = arith.constant 4 : index
    %54 = vector.load %arg11[%c0_71, %c2_72, %c4_73] : memref<18x18x28xf32, #tpu.memory_space<vmem>>, vector<16x16x8xf32>
    %55 = vector.shape_cast %54 : vector<16x16x8xf32> to vector<256x8xf32>
    %c0_74 = arith.constant 0 : index
    %c52 = arith.constant 52 : index
    %56 = vector.load %arg12[%c0_74, %c52] : memref<256x252xf32, #tpu.memory_space<vmem>>, vector<256x8xf32>
    tpu.vector_store %arg12[%c0_74, %c52], %55 {strides = array<i32>} : memref<256x252xf32, #tpu.memory_space<vmem>>, vector<256x8xf32>,
    %c1_75 = arith.constant 1 : index
    %c0_76 = arith.constant 0 : index
    %c4_77 = arith.constant 4 : index
    %57 = vector.load %arg11[%c1_75, %c0_76, %c4_77] : memref<18x18x28xf32, #tpu.memory_space<vmem>>, vector<16x16x8xf32>
    %58 = vector.shape_cast %57 : vector<16x16x8xf32> to vector<256x8xf32>
    %c0_78 = arith.constant 0 : index
    %c60 = arith.constant 60 : index
    %59 = vector.load %arg12[%c0_78, %c60] : memref<256x252xf32, #tpu.memory_space<vmem>>, vector<256x8xf32>
    tpu.vector_store %arg12[%c0_78, %c60], %58 {strides = array<i32>} : memref<256x252xf32, #tpu.memory_space<vmem>>, vector<256x8xf32>,
    %c1_79 = arith.constant 1 : index
    %c1_80 = arith.constant 1 : index
    %c4_81 = arith.constant 4 : index
    %60 = vector.load %arg11[%c1_79, %c1_80, %c4_81] : memref<18x18x28xf32, #tpu.memory_space<vmem>>, vector<16x16x8xf32>
    %61 = vector.shape_cast %60 : vector<16x16x8xf32> to vector<256x8xf32>
    %c0_82 = arith.constant 0 : index
    %c68 = arith.constant 68 : index
    %62 = vector.load %arg12[%c0_82, %c68] : memref<256x252xf32, #tpu.memory_space<vmem>>, vector<256x8xf32>
    tpu.vector_store %arg12[%c0_82, %c68], %61 {strides = array<i32>} : memref<256x252xf32, #tpu.memory_space<vmem>>, vector<256x8xf32>,
    %c1_83 = arith.constant 1 : index
    %c2_84 = arith.constant 2 : index
    %c4_85 = arith.constant 4 : index
    %63 = vector.load %arg11[%c1_83, %c2_84, %c4_85] : memref<18x18x28xf32, #tpu.memory_space<vmem>>, vector<16x16x8xf32>
    %64 = vector.shape_cast %63 : vector<16x16x8xf32> to vector<256x8xf32>
    %c0_86 = arith.constant 0 : index
    %c76 = arith.constant 76 : index
    %65 = vector.load %arg12[%c0_86, %c76] : memref<256x252xf32, #tpu.memory_space<vmem>>, vector<256x8xf32>
    tpu.vector_store %arg12[%c0_86, %c76], %64 {strides = array<i32>} : memref<256x252xf32, #tpu.memory_space<vmem>>, vector<256x8xf32>,
    %c2_87 = arith.constant 2 : index
    %c0_88 = arith.constant 0 : index
    %c4_89 = arith.constant 4 : index
    %66 = vector.load %arg11[%c2_87, %c0_88, %c4_89] : memref<18x18x28xf32, #tpu.memory_space<vmem>>, vector<16x16x8xf32>
    %67 = vector.shape_cast %66 : vector<16x16x8xf32> to vector<256x8xf32>
    %c0_90 = arith.constant 0 : index
    %c84 = arith.constant 84 : index
    %68 = vector.load %arg12[%c0_90, %c84] : memref<256x252xf32, #tpu.memory_space<vmem>>, vector<256x8xf32>
    tpu.vector_store %arg12[%c0_90, %c84], %67 {strides = array<i32>} : memref<256x252xf32, #tpu.memory_space<vmem>>, vector<256x8xf32>,
    %c2_91 = arith.constant 2 : index
    %c1_92 = arith.constant 1 : index
    %c4_93 = arith.constant 4 : index
    %69 = vector.load %arg11[%c2_91, %c1_92, %c4_93] : memref<18x18x28xf32, #tpu.memory_space<vmem>>, vector<16x16x8xf32>
    %70 = vector.shape_cast %69 : vector<16x16x8xf32> to vector<256x8xf32>
    %c0_94 = arith.constant 0 : index
    %c92 = arith.constant 92 : index
    %71 = vector.load %arg12[%c0_94, %c92] : memref<256x252xf32, #tpu.memory_space<vmem>>, vector<256x8xf32>
    tpu.vector_store %arg12[%c0_94, %c92], %70 {strides = array<i32>} : memref<256x252xf32, #tpu.memory_space<vmem>>, vector<256x8xf32>,
    %c2_95 = arith.constant 2 : index
    %c2_96 = arith.constant 2 : index
    %c4_97 = arith.constant 4 : index
    %72 = vector.load %arg11[%c2_95, %c2_96, %c4_97] : memref<18x18x28xf32, #tpu.memory_space<vmem>>, vector<16x16x8xf32>
    %73 = vector.shape_cast %72 : vector<16x16x8xf32> to vector<256x8xf32>
    %c0_98 = arith.constant 0 : index
    %c100 = arith.constant 100 : index
    %74 = vector.load %arg12[%c0_98, %c100] : memref<256x252xf32, #tpu.memory_space<vmem>>, vector<256x8xf32>
    tpu.vector_store %arg12[%c0_98, %c100], %73 {strides = array<i32>} : memref<256x252xf32, #tpu.memory_space<vmem>>, vector<256x8xf32>,
    %c0_99 = arith.constant 0 : index
    %c0_100 = arith.constant 0 : index
    %75 = vector.load %arg12[%c0_99, %c0_100] : memref<256x252xf32, #tpu.memory_space<vmem>>, vector<256x108xf32>
    %c0_101 = arith.constant 0 : index
    %c0_102 = arith.constant 0 : index
    %76 = vector.load %arg3[%c0_101, %c0_102] : memref<108x8xf32, #tpu.memory_space<vmem>>, vector<108x8xf32>
    %cst_103 = arith.constant dense<0.000000e+00> : vector<256x8xf32>
    %77 = tpu.matmul %75, %76, %cst_103 {dimension_numbers = #tpu.dot_dimension_numbers<[1], [0], [0], [1], [0, 0, 1, 1], [], []>} : vector<256x108xf32>, vector<108x8xf32>, vector<256x8xf32> -> vector<256x8xf32>
    %c0_104 = arith.constant 0 : index
    %c0_105 = arith.constant 0 : index
    %78 = vector.load %arg7[%c0_104, %c0_105] : memref<1x8xf32, #tpu.memory_space<vmem>>, vector<1x8xf32>
    %79 = vector.broadcast %78 : vector<1x8xf32> to vector<256x8xf32>
    %80 = arith.addf %77, %79 : vector<256x8xf32>
    %cst_106 = arith.constant 0.000000e+00 : f32
    %81 = vector.broadcast %cst_106 : f32 to vector<256x8xf32>
    %82 = arith.maximumf %80, %81 : vector<256x8xf32>
    %83 = vector.shape_cast %82 : vector<256x8xf32> to vector<16x16x8xf32>
    %c1_107 = arith.constant 1 : index
    %c1_108 = arith.constant 1 : index
    %c12_109 = arith.constant 12 : index
    %84 = vector.load %arg11[%c1_107, %c1_108, %c12_109] : memref<18x18x28xf32, #tpu.memory_space<vmem>>, vector<16x16x8xf32>
    tpu.vector_store %arg11[%c1_107, %c1_108, %c12_109], %83 {strides = array<i32>} : memref<18x18x28xf32, #tpu.memory_space<vmem>>, vector<16x16x8xf32>,
    %c0_110 = arith.constant 0 : index
    %c0_111 = arith.constant 0 : index
    %c12_112 = arith.constant 12 : index
    %85 = vector.load %arg11[%c0_110, %c0_111, %c12_112] : memref<18x18x28xf32, #tpu.memory_space<vmem>>, vector<16x16x8xf32>
    %86 = vector.shape_cast %85 : vector<16x16x8xf32> to vector<256x8xf32>
    %c0_113 = arith.constant 0 : index
    %c108 = arith.constant 108 : index
    %87 = vector.load %arg12[%c0_113, %c108] : memref<256x252xf32, #tpu.memory_space<vmem>>, vector<256x8xf32>
    tpu.vector_store %arg12[%c0_113, %c108], %86 {strides = array<i32>} : memref<256x252xf32, #tpu.memory_space<vmem>>, vector<256x8xf32>,
    %c0_114 = arith.constant 0 : index
    %c1_115 = arith.constant 1 : index
    %c12_116 = arith.constant 12 : index
    %88 = vector.load %arg11[%c0_114, %c1_115, %c12_116] : memref<18x18x28xf32, #tpu.memory_space<vmem>>, vector<16x16x8xf32>
    %89 = vector.shape_cast %88 : vector<16x16x8xf32> to vector<256x8xf32>
    %c0_117 = arith.constant 0 : index
    %c116 = arith.constant 116 : index
    %90 = vector.load %arg12[%c0_117, %c116] : memref<256x252xf32, #tpu.memory_space<vmem>>, vector<256x8xf32>
    tpu.vector_store %arg12[%c0_117, %c116], %89 {strides = array<i32>} : memref<256x252xf32, #tpu.memory_space<vmem>>, vector<256x8xf32>,
    %c0_118 = arith.constant 0 : index
    %c2_119 = arith.constant 2 : index
    %c12_120 = arith.constant 12 : index
    %91 = vector.load %arg11[%c0_118, %c2_119, %c12_120] : memref<18x18x28xf32, #tpu.memory_space<vmem>>, vector<16x16x8xf32>
    %92 = vector.shape_cast %91 : vector<16x16x8xf32> to vector<256x8xf32>
    %c0_121 = arith.constant 0 : index
    %c124 = arith.constant 124 : index
    %93 = vector.load %arg12[%c0_121, %c124] : memref<256x252xf32, #tpu.memory_space<vmem>>, vector<256x8xf32>
    tpu.vector_store %arg12[%c0_121, %c124], %92 {strides = array<i32>} : memref<256x252xf32, #tpu.memory_space<vmem>>, vector<256x8xf32>,
    %c1_122 = arith.constant 1 : index
    %c0_123 = arith.constant 0 : index
    %c12_124 = arith.constant 12 : index
    %94 = vector.load %arg11[%c1_122, %c0_123, %c12_124] : memref<18x18x28xf32, #tpu.memory_space<vmem>>, vector<16x16x8xf32>
    %95 = vector.shape_cast %94 : vector<16x16x8xf32> to vector<256x8xf32>
    %c0_125 = arith.constant 0 : index
    %c132 = arith.constant 132 : index
    %96 = vector.load %arg12[%c0_125, %c132] : memref<256x252xf32, #tpu.memory_space<vmem>>, vector<256x8xf32>
    tpu.vector_store %arg12[%c0_125, %c132], %95 {strides = array<i32>} : memref<256x252xf32, #tpu.memory_space<vmem>>, vector<256x8xf32>,
    %c1_126 = arith.constant 1 : index
    %c1_127 = arith.constant 1 : index
    %c12_128 = arith.constant 12 : index
    %97 = vector.load %arg11[%c1_126, %c1_127, %c12_128] : memref<18x18x28xf32, #tpu.memory_space<vmem>>, vector<16x16x8xf32>
    %98 = vector.shape_cast %97 : vector<16x16x8xf32> to vector<256x8xf32>
    %c0_129 = arith.constant 0 : index
    %c140 = arith.constant 140 : index
    %99 = vector.load %arg12[%c0_129, %c140] : memref<256x252xf32, #tpu.memory_space<vmem>>, vector<256x8xf32>
    tpu.vector_store %arg12[%c0_129, %c140], %98 {strides = array<i32>} : memref<256x252xf32, #tpu.memory_space<vmem>>, vector<256x8xf32>,
    %c1_130 = arith.constant 1 : index
    %c2_131 = arith.constant 2 : index
    %c12_132 = arith.constant 12 : index
    %100 = vector.load %arg11[%c1_130, %c2_131, %c12_132] : memref<18x18x28xf32, #tpu.memory_space<vmem>>, vector<16x16x8xf32>
    %101 = vector.shape_cast %100 : vector<16x16x8xf32> to vector<256x8xf32>
    %c0_133 = arith.constant 0 : index
    %c148 = arith.constant 148 : index
    %102 = vector.load %arg12[%c0_133, %c148] : memref<256x252xf32, #tpu.memory_space<vmem>>, vector<256x8xf32>
    tpu.vector_store %arg12[%c0_133, %c148], %101 {strides = array<i32>} : memref<256x252xf32, #tpu.memory_space<vmem>>, vector<256x8xf32>,
    %c2_134 = arith.constant 2 : index
    %c0_135 = arith.constant 0 : index
    %c12_136 = arith.constant 12 : index
    %103 = vector.load %arg11[%c2_134, %c0_135, %c12_136] : memref<18x18x28xf32, #tpu.memory_space<vmem>>, vector<16x16x8xf32>
    %104 = vector.shape_cast %103 : vector<16x16x8xf32> to vector<256x8xf32>
    %c0_137 = arith.constant 0 : index
    %c156 = arith.constant 156 : index
    %105 = vector.load %arg12[%c0_137, %c156] : memref<256x252xf32, #tpu.memory_space<vmem>>, vector<256x8xf32>
    tpu.vector_store %arg12[%c0_137, %c156], %104 {strides = array<i32>} : memref<256x252xf32, #tpu.memory_space<vmem>>, vector<256x8xf32>,
    %c2_138 = arith.constant 2 : index
    %c1_139 = arith.constant 1 : index
    %c12_140 = arith.constant 12 : index
    %106 = vector.load %arg11[%c2_138, %c1_139, %c12_140] : memref<18x18x28xf32, #tpu.memory_space<vmem>>, vector<16x16x8xf32>
    %107 = vector.shape_cast %106 : vector<16x16x8xf32> to vector<256x8xf32>
    %c0_141 = arith.constant 0 : index
    %c164 = arith.constant 164 : index
    %108 = vector.load %arg12[%c0_141, %c164] : memref<256x252xf32, #tpu.memory_space<vmem>>, vector<256x8xf32>
    tpu.vector_store %arg12[%c0_141, %c164], %107 {strides = array<i32>} : memref<256x252xf32, #tpu.memory_space<vmem>>, vector<256x8xf32>,
    %c2_142 = arith.constant 2 : index
    %c2_143 = arith.constant 2 : index
    %c12_144 = arith.constant 12 : index
    %109 = vector.load %arg11[%c2_142, %c2_143, %c12_144] : memref<18x18x28xf32, #tpu.memory_space<vmem>>, vector<16x16x8xf32>
    %110 = vector.shape_cast %109 : vector<16x16x8xf32> to vector<256x8xf32>
    %c0_145 = arith.constant 0 : index
    %c172 = arith.constant 172 : index
    %111 = vector.load %arg12[%c0_145, %c172] : memref<256x252xf32, #tpu.memory_space<vmem>>, vector<256x8xf32>
    tpu.vector_store %arg12[%c0_145, %c172], %110 {strides = array<i32>} : memref<256x252xf32, #tpu.memory_space<vmem>>, vector<256x8xf32>,
    %c0_146 = arith.constant 0 : index
    %c0_147 = arith.constant 0 : index
    %112 = vector.load %arg12[%c0_146, %c0_147] : memref<256x252xf32, #tpu.memory_space<vmem>>, vector<256x180xf32>
    %c0_148 = arith.constant 0 : index
    %c0_149 = arith.constant 0 : index
    %113 = vector.load %arg4[%c0_148, %c0_149] : memref<180x8xf32, #tpu.memory_space<vmem>>, vector<180x8xf32>
    %cst_150 = arith.constant dense<0.000000e+00> : vector<256x8xf32>
    %114 = tpu.matmul %112, %113, %cst_150 {dimension_numbers = #tpu.dot_dimension_numbers<[1], [0], [0], [1], [0, 0, 1, 1], [], []>} : vector<256x180xf32>, vector<180x8xf32>, vector<256x8xf32> -> vector<256x8xf32>
    %c0_151 = arith.constant 0 : index
    %c0_152 = arith.constant 0 : index
    %115 = vector.load %arg8[%c0_151, %c0_152] : memref<1x8xf32, #tpu.memory_space<vmem>>, vector<1x8xf32>
    %116 = vector.broadcast %115 : vector<1x8xf32> to vector<256x8xf32>
    %117 = arith.addf %114, %116 : vector<256x8xf32>
    %cst_153 = arith.constant 0.000000e+00 : f32
    %118 = vector.broadcast %cst_153 : f32 to vector<256x8xf32>
    %119 = arith.maximumf %117, %118 : vector<256x8xf32>
    %120 = vector.shape_cast %119 : vector<256x8xf32> to vector<16x16x8xf32>
    %c1_154 = arith.constant 1 : index
    %c1_155 = arith.constant 1 : index
    %c20_156 = arith.constant 20 : index
    %121 = vector.load %arg11[%c1_154, %c1_155, %c20_156] : memref<18x18x28xf32, #tpu.memory_space<vmem>>, vector<16x16x8xf32>
    tpu.vector_store %arg11[%c1_154, %c1_155, %c20_156], %120 {strides = array<i32>} : memref<18x18x28xf32, #tpu.memory_space<vmem>>, vector<16x16x8xf32>,
    %c0_157 = arith.constant 0 : index
    %c0_158 = arith.constant 0 : index
    %c20_159 = arith.constant 20 : index
    %122 = vector.load %arg11[%c0_157, %c0_158, %c20_159] : memref<18x18x28xf32, #tpu.memory_space<vmem>>, vector<16x16x8xf32>
    %123 = vector.shape_cast %122 : vector<16x16x8xf32> to vector<256x8xf32>
    %c0_160 = arith.constant 0 : index
    %c180 = arith.constant 180 : index
    %124 = vector.load %arg12[%c0_160, %c180] : memref<256x252xf32, #tpu.memory_space<vmem>>, vector<256x8xf32>
    tpu.vector_store %arg12[%c0_160, %c180], %123 {strides = array<i32>} : memref<256x252xf32, #tpu.memory_space<vmem>>, vector<256x8xf32>,
    %c0_161 = arith.constant 0 : index
    %c1_162 = arith.constant 1 : index
    %c20_163 = arith.constant 20 : index
    %125 = vector.load %arg11[%c0_161, %c1_162, %c20_163] : memref<18x18x28xf32, #tpu.memory_space<vmem>>, vector<16x16x8xf32>
    %126 = vector.shape_cast %125 : vector<16x16x8xf32> to vector<256x8xf32>
    %c0_164 = arith.constant 0 : index
    %c188 = arith.constant 188 : index
    %127 = vector.load %arg12[%c0_164, %c188] : memref<256x252xf32, #tpu.memory_space<vmem>>, vector<256x8xf32>
    tpu.vector_store %arg12[%c0_164, %c188], %126 {strides = array<i32>} : memref<256x252xf32, #tpu.memory_space<vmem>>, vector<256x8xf32>,
    %c0_165 = arith.constant 0 : index
    %c2_166 = arith.constant 2 : index
    %c20_167 = arith.constant 20 : index
    %128 = vector.load %arg11[%c0_165, %c2_166, %c20_167] : memref<18x18x28xf32, #tpu.memory_space<vmem>>, vector<16x16x8xf32>
    %129 = vector.shape_cast %128 : vector<16x16x8xf32> to vector<256x8xf32>
    %c0_168 = arith.constant 0 : index
    %c196 = arith.constant 196 : index
    %130 = vector.load %arg12[%c0_168, %c196] : memref<256x252xf32, #tpu.memory_space<vmem>>, vector<256x8xf32>
    tpu.vector_store %arg12[%c0_168, %c196], %129 {strides = array<i32>} : memref<256x252xf32, #tpu.memory_space<vmem>>, vector<256x8xf32>,
    %c1_169 = arith.constant 1 : index
    %c0_170 = arith.constant 0 : index
    %c20_171 = arith.constant 20 : index
    %131 = vector.load %arg11[%c1_169, %c0_170, %c20_171] : memref<18x18x28xf32, #tpu.memory_space<vmem>>, vector<16x16x8xf32>
    %132 = vector.shape_cast %131 : vector<16x16x8xf32> to vector<256x8xf32>
    %c0_172 = arith.constant 0 : index
    %c204 = arith.constant 204 : index
    %133 = vector.load %arg12[%c0_172, %c204] : memref<256x252xf32, #tpu.memory_space<vmem>>, vector<256x8xf32>
    tpu.vector_store %arg12[%c0_172, %c204], %132 {strides = array<i32>} : memref<256x252xf32, #tpu.memory_space<vmem>>, vector<256x8xf32>,
    %c1_173 = arith.constant 1 : index
    %c1_174 = arith.constant 1 : index
    %c20_175 = arith.constant 20 : index
    %134 = vector.load %arg11[%c1_173, %c1_174, %c20_175] : memref<18x18x28xf32, #tpu.memory_space<vmem>>, vector<16x16x8xf32>
    %135 = vector.shape_cast %134 : vector<16x16x8xf32> to vector<256x8xf32>
    %c0_176 = arith.constant 0 : index
    %c212 = arith.constant 212 : index
    %136 = vector.load %arg12[%c0_176, %c212] : memref<256x252xf32, #tpu.memory_space<vmem>>, vector<256x8xf32>
    tpu.vector_store %arg12[%c0_176, %c212], %135 {strides = array<i32>} : memref<256x252xf32, #tpu.memory_space<vmem>>, vector<256x8xf32>,
    %c1_177 = arith.constant 1 : index
    %c2_178 = arith.constant 2 : index
    %c20_179 = arith.constant 20 : index
    %137 = vector.load %arg11[%c1_177, %c2_178, %c20_179] : memref<18x18x28xf32, #tpu.memory_space<vmem>>, vector<16x16x8xf32>
    %138 = vector.shape_cast %137 : vector<16x16x8xf32> to vector<256x8xf32>
    %c0_180 = arith.constant 0 : index
    %c220 = arith.constant 220 : index
    %139 = vector.load %arg12[%c0_180, %c220] : memref<256x252xf32, #tpu.memory_space<vmem>>, vector<256x8xf32>
    tpu.vector_store %arg12[%c0_180, %c220], %138 {strides = array<i32>} : memref<256x252xf32, #tpu.memory_space<vmem>>, vector<256x8xf32>,
    %c2_181 = arith.constant 2 : index
    %c0_182 = arith.constant 0 : index
    %c20_183 = arith.constant 20 : index
    %140 = vector.load %arg11[%c2_181, %c0_182, %c20_183] : memref<18x18x28xf32, #tpu.memory_space<vmem>>, vector<16x16x8xf32>
    %141 = vector.shape_cast %140 : vector<16x16x8xf32> to vector<256x8xf32>
    %c0_184 = arith.constant 0 : index
    %c228 = arith.constant 228 : index
    %142 = vector.load %arg12[%c0_184, %c228] : memref<256x252xf32, #tpu.memory_space<vmem>>, vector<256x8xf32>
    tpu.vector_store %arg12[%c0_184, %c228], %141 {strides = array<i32>} : memref<256x252xf32, #tpu.memory_space<vmem>>, vector<256x8xf32>,
    %c2_185 = arith.constant 2 : index
    %c1_186 = arith.constant 1 : index
    %c20_187 = arith.constant 20 : index
    %143 = vector.load %arg11[%c2_185, %c1_186, %c20_187] : memref<18x18x28xf32, #tpu.memory_space<vmem>>, vector<16x16x8xf32>
    %144 = vector.shape_cast %143 : vector<16x16x8xf32> to vector<256x8xf32>
    %c0_188 = arith.constant 0 : index
    %c236 = arith.constant 236 : index
    %145 = vector.load %arg12[%c0_188, %c236] : memref<256x252xf32, #tpu.memory_space<vmem>>, vector<256x8xf32>
    tpu.vector_store %arg12[%c0_188, %c236], %144 {strides = array<i32>} : memref<256x252xf32, #tpu.memory_space<vmem>>, vector<256x8xf32>,
    %c2_189 = arith.constant 2 : index
    %c2_190 = arith.constant 2 : index
    %c20_191 = arith.constant 20 : index
    %146 = vector.load %arg11[%c2_189, %c2_190, %c20_191] : memref<18x18x28xf32, #tpu.memory_space<vmem>>, vector<16x16x8xf32>
    %147 = vector.shape_cast %146 : vector<16x16x8xf32> to vector<256x8xf32>
    %c0_192 = arith.constant 0 : index
    %c244 = arith.constant 244 : index
    %148 = vector.load %arg12[%c0_192, %c244] : memref<256x252xf32, #tpu.memory_space<vmem>>, vector<256x8xf32>
    tpu.vector_store %arg12[%c0_192, %c244], %147 {strides = array<i32>} : memref<256x252xf32, #tpu.memory_space<vmem>>, vector<256x8xf32>,
    %c0_193 = arith.constant 0 : index
    %c0_194 = arith.constant 0 : index
    %149 = vector.load %arg12[%c0_193, %c0_194] : memref<256x252xf32, #tpu.memory_space<vmem>>, vector<256x252xf32>
    %c0_195 = arith.constant 0 : index
    %c0_196 = arith.constant 0 : index
    %150 = vector.load %arg5[%c0_195, %c0_196] : memref<252x4xf32, #tpu.memory_space<vmem>>, vector<252x4xf32>
    %cst_197 = arith.constant dense<0.000000e+00> : vector<256x4xf32>
    %151 = tpu.matmul %149, %150, %cst_197 {dimension_numbers = #tpu.dot_dimension_numbers<[1], [0], [0], [1], [0, 0, 1, 1], [], []>} : vector<256x252xf32>, vector<252x4xf32>, vector<256x4xf32> -> vector<256x4xf32>
    %c0_198 = arith.constant 0 : index
    %c0_199 = arith.constant 0 : index
    %152 = vector.load %arg9[%c0_198, %c0_199] : memref<1x4xf32, #tpu.memory_space<vmem>>, vector<1x4xf32>
    %153 = vector.broadcast %152 : vector<1x4xf32> to vector<256x4xf32>
    %154 = arith.addf %151, %153 : vector<256x4xf32>
    %cst_200 = arith.constant 2.000000e-01 : f32
    %155 = vector.broadcast %cst_200 : f32 to vector<256x4xf32>
    %156 = arith.mulf %154, %155 : vector<256x4xf32>
    %157 = arith.addf %156, %8 : vector<256x4xf32>
    %158 = tpu.transpose %157, [1, 0] : vector<256x4xf32> -> vector<4x256xf32>
    %c0_201 = arith.constant 0 : index
    %c0_202 = arith.constant 0 : index
    %c0_203 = arith.constant 0 : index
    %159 = vector.load %arg10[%c0_201, %c0_202, %c0_203] : memref<1x4x256xf32, #tpu.memory_space<vmem>>, vector<1x4x256xf32>
    %160 = vector.shape_cast %159 : vector<1x4x256xf32> to vector<4x256xf32>
    %161 = vector.shape_cast %158 : vector<4x256xf32> to vector<1x4x256xf32>
    tpu.vector_store %arg10[%c0_201, %c0_202, %c0_203], %161 {strides = array<i32>} : memref<1x4x256xf32, #tpu.memory_space<vmem>>, vector<1x4x256xf32>,
    return
  }
  func.func @transform_0(%arg0: i32) -> (i32, i32, i32) {
    %c0_i32 = arith.constant 0 : i32
    %c0_i32_0 = arith.constant 0 : i32
    %c0_i32_1 = arith.constant 0 : i32
    return %arg0, %c0_i32, %c0_i32_0 : i32, i32, i32
  }
  func.func @transform_1(%arg0: i32) -> (i32, i32) {
    %c0_i32 = arith.constant 0 : i32
    %c0_i32_0 = arith.constant 0 : i32
    %c0_i32_1 = arith.constant 0 : i32
    return %c0_i32, %c0_i32_0 : i32, i32
  }
  func.func @transform_2(%arg0: i32) -> (i32, i32) {
    %c0_i32 = arith.constant 0 : i32
    %c0_i32_0 = arith.constant 0 : i32
    %c0_i32_1 = arith.constant 0 : i32
    return %c0_i32, %c0_i32_0 : i32, i32
  }
  func.func @transform_3(%arg0: i32) -> (i32, i32) {
    %c0_i32 = arith.constant 0 : i32
    %c0_i32_0 = arith.constant 0 : i32
    %c0_i32_1 = arith.constant 0 : i32
    return %c0_i32, %c0_i32_0 : i32, i32
  }
  func.func @transform_4(%arg0: i32) -> (i32, i32) {
    %c0_i32 = arith.constant 0 : i32
    %c0_i32_0 = arith.constant 0 : i32
    %c0_i32_1 = arith.constant 0 : i32
    return %c0_i32, %c0_i32_0 : i32, i32
  }
  func.func @transform_5(%arg0: i32) -> (i32, i32) {
    %c0_i32 = arith.constant 0 : i32
    %c0_i32_0 = arith.constant 0 : i32
    %c0_i32_1 = arith.constant 0 : i32
    return %c0_i32, %c0_i32_0 : i32, i32
  }
  func.func @transform_6(%arg0: i32) -> (i32, i32) {
    %c0_i32 = arith.constant 0 : i32
    %c0_i32_0 = arith.constant 0 : i32
    %c0_i32_1 = arith.constant 0 : i32
    return %c0_i32, %c0_i32_0 : i32, i32
  }
  func.func @transform_7(%arg0: i32) -> (i32, i32) {
    %c0_i32 = arith.constant 0 : i32
    %c0_i32_0 = arith.constant 0 : i32
    %c0_i32_1 = arith.constant 0 : i32
    return %c0_i32, %c0_i32_0 : i32, i32
  }
  func.func @transform_8(%arg0: i32) -> (i32, i32) {
    %c0_i32 = arith.constant 0 : i32
    %c0_i32_0 = arith.constant 0 : i32
    %c0_i32_1 = arith.constant 0 : i32
    return %c0_i32, %c0_i32_0 : i32, i32
  }
  func.func @transform_9(%arg0: i32) -> (i32, i32, i32) {
    %c0_i32 = arith.constant 0 : i32
    %c0_i32_0 = arith.constant 0 : i32
    %c0_i32_1 = arith.constant 0 : i32
    return %arg0, %c0_i32, %c0_i32_0 : i32, i32, i32
  }
}

</mosaic_0001>

<llo_original>
// kernel: tpu_custom_call.1
$region0: #{tpu_custom_call.1}
  #allocation0 [shape = 'u32[]', space=smem, size = 0x4, offset = 0x4, fixed_abs, tag = 'smem constant byte address 0x4 - core index']
  #allocation1 [shape = 'u32[144,128]{1,0:T(1,128)}', space=vmem, size = 0x12000, scoped, tag = 'internal scratch']
  #allocation2 [shape = 'f32[18,18,28]{2,1,0:T(8,128)}', space=vmem, size = 0x36000, scoped, tag = 'scratch operand']
  #allocation3 [shape = 'f32[256,252]{1,0:T(8,128)}', space=vmem, size = 0x40000, scoped, tag = 'scratch operand']
  %s0 = inlined_call_operand.vmem [shape: f32[2,4,256], index: 0, kind: input, shape index: {}]
  %s1 = inlined_call_operand.vmem [shape: f32[36,8], index: 1, kind: input, shape index: {}]
  %s2 = inlined_call_operand.vmem [shape: f32[108,8], index: 2, kind: input, shape index: {}]
  %s3 = inlined_call_operand.vmem [shape: f32[180,8], index: 3, kind: input, shape index: {}]
  %s4 = inlined_call_operand.vmem [shape: f32[252,4], index: 4, kind: input, shape index: {}]
  %s5 = inlined_call_operand.vmem [shape: f32[1,8], index: 5, kind: input, shape index: {}]
  %s6 = inlined_call_operand.vmem [shape: f32[1,8], index: 6, kind: input, shape index: {}]
  %s7 = inlined_call_operand.vmem [shape: f32[1,8], index: 7, kind: input, shape index: {}]
  %s8 = inlined_call_operand.vmem [shape: f32[1,4], index: 8, kind: input, shape index: {}]
  %s9 = inlined_call_operand.hbm [shape: f32[2,4,256], index: 9, kind: output, shape index: {}]
  %s10 = sld [smem:[#allocation0]]
  $region69: #{tpu_custom_call.1} parent=0
    _
  %s12 = ssub.s32 1, %s10
  %s13 = scalar_select 0, %s12, %s10
  $region1: #{tpu_custom_call.1} parent=0
    #allocation4 [shape = 'u8[8192]{0}', space=vmem, size = 0x2000, scoped, tag = 'output window, operand 0']
    #allocation5 [shape = 's32[2]{0}', space=sflag, size = 0x8, scoped, tag = 'scoped memory for tpu_custom_call.1']
    %14 = vsyncpa [#allocation5], 0
    %s15 = scalar_lea.sflag [#allocation5], 1
    %16 = vsyncpa %s15, 0
    loop: start=0, step=1, limit=4
    $region2: #{tpu_custom_call.1} parent=1 // loop_pre_header
      _
    $region3: #{tpu_custom_call.1} parent=1 // loop_header
      %s18 = sphi 0, %s22
      %p19 = scmp.ge.s32.totalorder %s18, 4
      %s28 = sphi 0, %s30
      %s31 = sphi 0, %s28
      %s32 = sphi 0, %s31
      %s48 = sphi 0, %s32
      %s52 = sphi 0, %s52
      %s54 = sphi 0, %s52
      %s55 = sphi 0, %s54
      %s69 = sphi 0, %s55
      %s73 = sphi 0, %s73
      %s75 = sphi 0, %s73
      %s76 = sphi 0, %s75
      %s90 = sphi 0, %s76
      %s94 = sphi 0, %s94
      %s96 = sphi 0, %s94
      %s97 = sphi 0, %s96
      %s111 = sphi 0, %s97
      %s115 = sphi 0, %s115
      %s117 = sphi 0, %s115
      %s118 = sphi 0, %s117
      %s132 = sphi 0, %s118
      %s136 = sphi 0, %s136
      %s138 = sphi 0, %s136
      %s139 = sphi 0, %s138
      %s153 = sphi 0, %s139
      %s157 = sphi 0, %s157
      %s159 = sphi 0, %s157
      %s160 = sphi 0, %s159
      %s174 = sphi 0, %s160
      %s178 = sphi 0, %s178
      %s180 = sphi 0, %s178
      %s181 = sphi 0, %s180
      %s195 = sphi 0, %s181
      %s199 = sphi 0, %s199
      %s201 = sphi 0, %s199
      %s202 = sphi 0, %s201
      %s216 = sphi 0, %s202
      %s222 = sphi 0, %s224
      %s225 = sphi 0, %s222
      %s226 = sphi 0, %s225
      %s242 = sphi 0, %s226
    $region4: #{tpu_custom_call.1} parent=1 // loop_header_branch
      %21 = sbr.rel (%p19) target = $region8
    $region5: #{tpu_custom_call.1} parent=1 // loop_body
      %s23 = ssub.s32 %s18, 1
      %s24 = ssub.s32 %s18, 2
      %s25 = sadd.s32 %s18, 1
      %s26 = ssub.s32 %s18, %s25
      %p27 = scmp.eq.s32.totalorder %s26, 0
      %s29 = sadd.s32 %s28, 1
      %s30 = scalar_select %p27, %s28, %s29
      %p33 = pneg %p27
      %p34 = scmp.eq.s32.totalorder %s18, 1
      %p35 = por %p33, %p34
      %p36 = scmp.ne.s32.totalorder %s28, %s31
      %p37 = scmp.eq.s32.totalorder %s18, 0
      %p38 = por %p36, %p37
      %p39 = scmp.ne.s32.totalorder %s28, %s31
      %p40 = scmp.eq.s32.totalorder %s23, 1
      %p41 = por %p39, %p40
      %p42 = scmp.ne.s32.totalorder %s31, %s32
      %p43 = scmp.eq.s32.totalorder %s23, 0
      %p44 = por %p42, %p43
      %p45 = scmp.ne.s32.totalorder %s31, %s32
      %p46 = scmp.eq.s32.totalorder %s24, 1
      %p47 = por %p45, %p46
      %p49 = scmp.ne.s32.totalorder %s32, %s48
      %p50 = scmp.eq.s32.totalorder %s24, 0
      %p51 = por %p49, %p50
      %s53 = sadd.s32 %s52, 1
      %p56 = scmp.eq.s32.totalorder %s18, 1
      %p57 = scmp.ne.s32.totalorder %s52, %s54
      %p58 = scmp.eq.s32.totalorder %s18, 0
      %p59 = por %p57, %p58
      %p60 = scmp.ne.s32.totalorder %s52, %s54
      %p61 = scmp.eq.s32.totalorder %s23, 1
      %p62 = por %p60, %p61
      %p63 = scmp.ne.s32.totalorder %s54, %s55
      %p64 = scmp.eq.s32.totalorder %s23, 0
      %p65 = por %p63, %p64
      %p66 = scmp.ne.s32.totalorder %s54, %s55
      %p67 = scmp.eq.s32.totalorder %s24, 1
      %p68 = por %p66, %p67
      %p70 = scmp.ne.s32.totalorder %s55, %s69
      %p71 = scmp.eq.s32.totalorder %s24, 0
      %p72 = por %p70, %p71
      %s74 = sadd.s32 %s73, 1
      %p77 = scmp.eq.s32.totalorder %s18, 1
      %p78 = scmp.ne.s32.totalorder %s73, %s75
      %p79 = scmp.eq.s32.totalorder %s18, 0
      %p80 = por %p78, %p79
      %p81 = scmp.ne.s32.totalorder %s73, %s75
      %p82 = scmp.eq.s32.totalorder %s23, 1
      %p83 = por %p81, %p82
      %p84 = scmp.ne.s32.totalorder %s75, %s76
      %p85 = scmp.eq.s32.totalorder %s23, 0
      %p86 = por %p84, %p85
      %p87 = scmp.ne.s32.totalorder %s75, %s76
      %p88 = scmp.eq.s32.totalorder %s24, 1
      %p89 = por %p87, %p88
      %p91 = scmp.ne.s32.totalorder %s76, %s90
      %p92 = scmp.eq.s32.totalorder %s24, 0
      %p93 = por %p91, %p92
      %s95 = sadd.s32 %s94, 1
      %p98 = scmp.eq.s32.totalorder %s18, 1
      %p99 = scmp.ne.s32.totalorder %s94, %s96
      %p100 = scmp.eq.s32.totalorder %s18, 0
      %p101 = por %p99, %p100
      %p102 = scmp.ne.s32.totalorder %s94, %s96
      %p103 = scmp.eq.s32.totalorder %s23, 1
      %p104 = por %p102, %p103
      %p105 = scmp.ne.s32.totalorder %s96, %s97
      %p106 = scmp.eq.s32.totalorder %s23, 0
      %p107 = por %p105, %p106
      %p108 = scmp.ne.s32.totalorder %s96, %s97
      %p109 = scmp.eq.s32.totalorder %s24, 1
      %p110 = por %p108, %p109
      %p112 = scmp.ne.s32.totalorder %s97, %s111
      %p113 = scmp.eq.s32.totalorder %s24, 0
      %p114 = por %p112, %p113
      %s116 = sadd.s32 %s115, 1
      %p119 = scmp.eq.s32.totalorder %s18, 1
      %p120 = scmp.ne.s32.totalorder %s115, %s117
      %p121 = scmp.eq.s32.totalorder %s18, 0
      %p122 = por %p120, %p121
      %p123 = scmp.ne.s32.totalorder %s115, %s117
      %p124 = scmp.eq.s32.totalorder %s23, 1
      %p125 = por %p123, %p124
      %p126 = scmp.ne.s32.totalorder %s117, %s118
      %p127 = scmp.eq.s32.totalorder %s23, 0
      %p128 = por %p126, %p127
      %p129 = scmp.ne.s32.totalorder %s117, %s118
      %p130 = scmp.eq.s32.totalorder %s24, 1
      %p131 = por %p129, %p130
      %p133 = scmp.ne.s32.totalorder %s118, %s132
      %p134 = scmp.eq.s32.totalorder %s24, 0
      %p135 = por %p133, %p134
      %s137 = sadd.s32 %s136, 1
      %p140 = scmp.eq.s32.totalorder %s18, 1
      %p141 = scmp.ne.s32.totalorder %s136, %s138
      %p142 = scmp.eq.s32.totalorder %s18, 0
      %p143 = por %p141, %p142
      %p144 = scmp.ne.s32.totalorder %s136, %s138
      %p145 = scmp.eq.s32.totalorder %s23, 1
      %p146 = por %p144, %p145
      %p147 = scmp.ne.s32.totalorder %s138, %s139
      %p148 = scmp.eq.s32.totalorder %s23, 0
      %p149 = por %p147, %p148
      %p150 = scmp.ne.s32.totalorder %s138, %s139
      %p151 = scmp.eq.s32.totalorder %s24, 1
      %p152 = por %p150, %p151
      %p154 = scmp.ne.s32.totalorder %s139, %s153
      %p155 = scmp.eq.s32.totalorder %s24, 0
      %p156 = por %p154, %p155
      %s158 = sadd.s32 %s157, 1
      %p161 = scmp.eq.s32.totalorder %s18, 1
      %p162 = scmp.ne.s32.totalorder %s157, %s159
      %p163 = scmp.eq.s32.totalorder %s18, 0
      %p164 = por %p162, %p163
      %p165 = scmp.ne.s32.totalorder %s157, %s159
      %p166 = scmp.eq.s32.totalorder %s23, 1
      %p167 = por %p165, %p166
      %p168 = scmp.ne.s32.totalorder %s159, %s160
      %p169 = scmp.eq.s32.totalorder %s23, 0
      %p170 = por %p168, %p169
      %p171 = scmp.ne.s32.totalorder %s159, %s160
      %p172 = scmp.eq.s32.totalorder %s24, 1
      %p173 = por %p171, %p172
      %p175 = scmp.ne.s32.totalorder %s160, %s174
      %p176 = scmp.eq.s32.totalorder %s24, 0
      %p177 = por %p175, %p176
      %s179 = sadd.s32 %s178, 1
      %p182 = scmp.eq.s32.totalorder %s18, 1
      %p183 = scmp.ne.s32.totalorder %s178, %s180
      %p184 = scmp.eq.s32.totalorder %s18, 0
      %p185 = por %p183, %p184
      %p186 = scmp.ne.s32.totalorder %s178, %s180
      %p187 = scmp.eq.s32.totalorder %s23, 1
      %p188 = por %p186, %p187
      %p189 = scmp.ne.s32.totalorder %s180, %s181
      %p190 = scmp.eq.s32.totalorder %s23, 0
      %p191 = por %p189, %p190
      %p192 = scmp.ne.s32.totalorder %s180, %s181
      %p193 = scmp.eq.s32.totalorder %s24, 1
      %p194 = por %p192, %p193
      %p196 = scmp.ne.s32.totalorder %s181, %s195
      %p197 = scmp.eq.s32.totalorder %s24, 0
      %p198 = por %p196, %p197
      %s200 = sadd.s32 %s199, 1
      %p203 = scmp.eq.s32.totalorder %s18, 1
      %p204 = scmp.ne.s32.totalorder %s199, %s201
      %p205 = scmp.eq.s32.totalorder %s18, 0
      %p206 = por %p204, %p205
      %p207 = scmp.ne.s32.totalorder %s199, %s201
      %p208 = scmp.eq.s32.totalorder %s23, 1
      %p209 = por %p207, %p208
      %p210 = scmp.ne.s32.totalorder %s201, %s202
      %p211 = scmp.eq.s32.totalorder %s23, 0
      %p212 = por %p210, %p211
      %p213 = scmp.ne.s32.totalorder %s201, %s202
      %p214 = scmp.eq.s32.totalorder %s24, 1
      %p215 = por %p213, %p214
      %p217 = scmp.ne.s32.totalorder %s202, %s216
      %p218 = scmp.eq.s32.totalorder %s24, 0
      %p219 = por %p217, %p218
      %s220 = ssub.s32 %s18, %s25
      %p221 = scmp.eq.s32.totalorder %s220, 0
      %s223 = sadd.s32 %s222, 1
      %s224 = scalar_select %p221, %s222, %s223
      %p227 = pneg %p221
      %p228 = scmp.eq.s32.totalorder %s18, 1
      %p229 = por %p227, %p228
      %p230 = scmp.ne.s32.totalorder %s222, %s225
      %p231 = scmp.eq.s32.totalorder %s18, 0
      %p232 = por %p230, %p231
      %p233 = scmp.ne.s32.totalorder %s222, %s225
      %p234 = scmp.eq.s32.totalorder %s23, 1
      %p235 = por %p233, %p234
      %p236 = scmp.ne.s32.totalorder %s225, %s226
      %p237 = scmp.eq.s32.totalorder %s23, 0
      %p238 = por %p236, %p237
      %p239 = scmp.ne.s32.totalorder %s225, %s226
      %p240 = scmp.eq.s32.totalorder %s24, 1
      %p241 = por %p239, %p240
      %p243 = scmp.ne.s32.totalorder %s226, %s242
      %p244 = scmp.eq.s32.totalorder %s24, 0
      %p245 = por %p243, %p244
      %p246 = scmp.le.s32.totalorder 1, %s18
      %p247 = scmp.lt.s32.totalorder %s18, 3
      %p248 = pnand %p246, %p247
      %p249 = pneg %p248
      // Predicated region
      $region9: #{tpu_custom_call.1} parent=5 // pred_check
        _
      $region10: #{tpu_custom_call.1} parent=5 // pred_check_branch
        %251 = sbr.rel (%p248) target = $region12
      $region11: #{tpu_custom_call.1} parent=5 // pred_region
        %s252 = ssub.s32 %s18, 1
        // Predicated region
        $region13: #{tpu_custom_call.1} parent=11 // pred_check
          %p253 = pneg %p65
        $region14: #{tpu_custom_call.1} parent=11 // pred_check_branch
          %255 = sbr.rel (%p253) target = $region16
        $region15: #{tpu_custom_call.1} parent=11 // pred_region
          _
        $region16: #{tpu_custom_call.1} parent=11 // pred_fallthru
          _
        // Predicated region
        $region17: #{tpu_custom_call.1} parent=11 // pred_check
          %p256 = pneg %p86
        $region18: #{tpu_custom_call.1} parent=11 // pred_check_branch
          %258 = sbr.rel (%p256) target = $region20
        $region19: #{tpu_custom_call.1} parent=11 // pred_region
          _
        $region20: #{tpu_custom_call.1} parent=11 // pred_fallthru
          _
        // Predicated region
        $region21: #{tpu_custom_call.1} parent=11 // pred_check
          %p259 = pneg %p107
        $region22: #{tpu_custom_call.1} parent=11 // pred_check_branch
          %261 = sbr.rel (%p259) target = $region24
        $region23: #{tpu_custom_call.1} parent=11 // pred_region
          _
        $region24: #{tpu_custom_call.1} parent=11 // pred_fallthru
          _
        // Predicated region
        $region25: #{tpu_custom_call.1} parent=11 // pred_check
          %p262 = pneg %p128
        $region26: #{tpu_custom_call.1} parent=11 // pred_check_branch
          %264 = sbr.rel (%p262) target = $region28
        $region27: #{tpu_custom_call.1} parent=11 // pred_region
          _
        $region28: #{tpu_custom_call.1} parent=11 // pred_fallthru
          _
        // Predicated region
        $region29: #{tpu_custom_call.1} parent=11 // pred_check
          %p265 = pneg %p149
        $region30: #{tpu_custom_call.1} parent=11 // pred_check_branch
          %267 = sbr.rel (%p265) target = $region32
        $region31: #{tpu_custom_call.1} parent=11 // pred_region
          _
        $region32: #{tpu_custom_call.1} parent=11 // pred_fallthru
          _
        // Predicated region
        $region33: #{tpu_custom_call.1} parent=11 // pred_check
          %p268 = pneg %p170
        $region34: #{tpu_custom_call.1} parent=11 // pred_check_branch
          %270 = sbr.rel (%p268) target = $region36
        $region35: #{tpu_custom_call.1} parent=11 // pred_region
          _
        $region36: #{tpu_custom_call.1} parent=11 // pred_fallthru
          _
        // Predicated region
        $region37: #{tpu_custom_call.1} parent=11 // pred_check
          %p271 = pneg %p191
        $region38: #{tpu_custom_call.1} parent=11 // pred_check_branch
          %273 = sbr.rel (%p271) target = $region40
        $region39: #{tpu_custom_call.1} parent=11 // pred_region
          _
        $region40: #{tpu_custom_call.1} parent=11 // pred_fallthru
          _
        // Predicated region
        $region41: #{tpu_custom_call.1} parent=11 // pred_check
          %p274 = pneg %p212
        $region42: #{tpu_custom_call.1} parent=11 // pred_check_branch
          %276 = sbr.rel (%p274) target = $region44
        $region43: #{tpu_custom_call.1} parent=11 // pred_region
          _
        $region44: #{tpu_custom_call.1} parent=11 // pred_fallthru
          _
      $region12: #{tpu_custom_call.1} parent=5 // pred_fallthru
        _
      %p277 = scmp.lt.s32.totalorder %s18, 2
      // Predicated region
      $region45: #{tpu_custom_call.1} parent=5 // pred_check
        %p278 = pneg %p277
      $region46: #{tpu_custom_call.1} parent=5 // pred_check_branch
        %280 = sbr.rel (%p278) target = $region48
      $region47: #{tpu_custom_call.1} parent=5 // pred_region
        // Predicated region
        $region49: #{tpu_custom_call.1} parent=47 // pred_check
          %p281 = pneg %p38
        $region50: #{tpu_custom_call.1} parent=47 // pred_check_branch
          %283 = sbr.rel (%p281) target = $region52
        $region51: #{tpu_custom_call.1} parent=47 // pred_region
          %p284 = scmp.lt.s32.totalorder %s18, 1
          %s285 = scalar_select %p284, %s18, 1
          %s286 = smul.addr %s285, 2
          %s287 = smul.addr %s286, 4
          %s288 = scalar_lea.vmem %s0, %s287
        $region52: #{tpu_custom_call.1} parent=47 // pred_fallthru
          _
      $region48: #{tpu_custom_call.1} parent=5 // pred_fallthru
        _
      %p289 = scmp.le.s32.totalorder 1, %s18
      %p290 = scmp.lt.s32.totalorder %s18, 3
      %p291 = pnand %p289, %p290
      %p292 = pneg %p291
      // Predicated region
      $region53: #{tpu_custom_call.1} parent=5 // pred_check
        _
      $region54: #{tpu_custom_call.1} parent=5 // pred_check_branch
        %294 = sbr.rel (%p291) target = $region56
      $region55: #{tpu_custom_call.1} parent=5 // pred_region
        %s295 = ssub.s32 %s18, 1
        %p296 = scmp.lt.s32.totalorder %s23, 1
        %s297 = scalar_select %p296, %s23, 1
        %s298 = smul.addr %s297, 2
        %s299 = smul.addr %s298, 4
        %s300 = scalar_lea.vmem %s0, %s299
        %p301 = pneg %p44
        %p302 = pneg %p41
        %p303 = pneg %p65
        %p304 = pneg %p62
        %p305 = pneg %p86
        %p306 = pneg %p83
        %p307 = pneg %p107
        %p308 = pneg %p104
        %p309 = pneg %p128
        %p310 = pneg %p125
        %p311 = pneg %p149
        %p312 = pneg %p146
        %p313 = pneg %p170
        %p314 = pneg %p167
        %p315 = pneg %p191
        %p316 = pneg %p188
        %p317 = pneg %p212
        %p318 = pneg %p209
        %p319 = pneg %p238
        %p320 = pneg %p235
        %s321 = sand.u32 %s225, 1
        %s322 = scalar_lea.sflag [#allocation5], %s321
        %s323 = sand.u32 %s225, 1
        %s324 = smul.addr %s323, 8
        %s325 = scalar_lea.vmem [#allocation4], %s324
        %p326 = scmp.lt.s32.totalorder %s23, 1
        %s327 = scalar_select %p326, %s23, 1
        %s328 = smul.addr %s327, 2
        %s329 = smul.addr %s328, 4
        %s330 = scalar_lea.vmem %s0, %s329
        %vm331 = vcmask 228352
        %332 = vst.msk [vmem:[#allocation2] sm:$0xff] %vm331, 0.0
        %333 = vst.msk [vmem:[#allocation2 + $0x8] sm:$0xff] %vm331, 0.0
        %vm334 = vcmask 222208
        %335 = vst.msk [vmem:[#allocation2 + $0x10] sm:$0x3] %vm334, 0.0
        %s336 = scalar_lea.vmem [#allocation2], 408
        %337 = vst.msk [vmem:[%s336] sm:$0xff] %vm331, 0.0
        %338 = vst.msk [vmem:[%s336 + $0x8] sm:$0xff] %vm331, 0.0
        %339 = vst.msk [vmem:[%s336 + $0x10] sm:$0x3] %vm334, 0.0
        %vm340 = vcmask 221184
        %341 = vst.msk [vmem:[#allocation2] sm:$0x1] %vm340, 0.0
        %342 = vst.msk [vmem:[#allocation2 + $0x18] sm:$0x1] %vm340, 0.0
        %343 = vst.msk [vmem:[#allocation2 + $0x30] sm:$0x1] %vm340, 0.0
        %344 = vst.msk [vmem:[#allocation2 + $0x48] sm:$0x1] %vm340, 0.0
        %345 = vst.msk [vmem:[#allocation2 + $0x60] sm:$0x1] %vm340, 0.0
        %346 = vst.msk [vmem:[#allocation2 + $0x78] sm:$0x1] %vm340, 0.0
        %347 = vst.msk [vmem:[#allocation2 + $0x90] sm:$0x1] %vm340, 0.0
        %348 = vst.msk [vmem:[#allocation2 + $0xa8] sm:$0x1] %vm340, 0.0
        %349 = vst.msk [vmem:[#allocation2 + $0xc0] sm:$0x1] %vm340, 0.0
        %350 = vst.msk [vmem:[#allocation2 + $0xd8] sm:$0x1] %vm340, 0.0
        %351 = vst.msk [vmem:[#allocation2 + $0xf0] sm:$0x1] %vm340, 0.0
        %352 = vst.msk [vmem:[#allocation2 + $0x108] sm:$0x1] %vm340, 0.0
        %353 = vst.msk [vmem:[#allocation2 + $0x120] sm:$0x1] %vm340, 0.0
        %354 = vst.msk [vmem:[#allocation2 + $0x138] sm:$0x1] %vm340, 0.0
        %355 = vst.msk [vmem:[#allocation2 + $0x150] sm:$0x1] %vm340, 0.0
        %356 = vst.msk [vmem:[#allocation2 + $0x168] sm:$0x1] %vm340, 0.0
        %357 = vst.msk [vmem:[#allocation2 + $0x180] sm:$0x1] %vm340, 0.0
        %358 = vst.msk [vmem:[#allocation2 + $0x198] sm:$0x1] %vm340, 0.0
        %359 = vst.msk [vmem:[#allocation2 + $0x11] sm:$0x1] %vm340, 0.0
        %360 = vst.msk [vmem:[#allocation2 + $0x29] sm:$0x1] %vm340, 0.0
        %361 = vst.msk [vmem:[#allocation2 + $0x41] sm:$0x1] %vm340, 0.0
        %362 = vst.msk [vmem:[#allocation2 + $0x59] sm:$0x1] %vm340, 0.0
        %363 = vst.msk [vmem:[#allocation2 + $0x71] sm:$0x1] %vm340, 0.0
        %364 = vst.msk [vmem:[#allocation2 + $0x89] sm:$0x1] %vm340, 0.0
        %365 = vst.msk [vmem:[#allocation2 + $0xa1] sm:$0x1] %vm340, 0.0
        %366 = vst.msk [vmem:[#allocation2 + $0xb9] sm:$0x1] %vm340, 0.0
        %367 = vst.msk [vmem:[#allocation2 + $0xd1] sm:$0x1] %vm340, 0.0
        %368 = vst.msk [vmem:[#allocation2 + $0xe9] sm:$0x1] %vm340, 0.0
        %369 = vst.msk [vmem:[#allocation2 + $0x101] sm:$0x1] %vm340, 0.0
        %370 = vst.msk [vmem:[#allocation2 + $0x119] sm:$0x1] %vm340, 0.0
        %371 = vst.msk [vmem:[#allocation2 + $0x131] sm:$0x1] %vm340, 0.0
        %372 = vst.msk [vmem:[#allocation2 + $0x149] sm:$0x1] %vm340, 0.0
        %373 = vst.msk [vmem:[#allocation2 + $0x161] sm:$0x1] %vm340, 0.0
        %374 = vst.msk [vmem:[#allocation2 + $0x179] sm:$0x1] %vm340, 0.0
        %375 = vst.msk [vmem:[#allocation2 + $0x191] sm:$0x1] %vm340, 0.0
        %376 = vst.msk [vmem:[#allocation2 + $0x1a9] sm:$0x1] %vm340, 0.0
        %v377 = vld [vmem:[%s330] sm:$0xff]
        %v379 = vcombine.high %v377, %v377
        %381 = vxpose.xlu0.b32.start [1/16] %v377, 128
        %382 = vxpose.xlu0.b32.cont [2/16] 0.0, 128
        %383 = vxpose.xlu0.b32.cont [3/16] 0.0, 128
        %384 = vxpose.xlu0.b32.cont [4/16] 0.0, 128
        %385 = vxpose.xlu0.b32.cont [5/16] 0.0, 128
        %386 = vxpose.xlu0.b32.cont [6/16] 0.0, 128
        %387 = vxpose.xlu0.b32.cont [7/16] 0.0, 128
        %388 = vxpose.xlu0.b32.cont [8/16] 0.0, 128
        %389 = vxpose.xlu0.b32.cont [9/16] 0.0, 128
        %390 = vxpose.xlu0.b32.cont [10/16] 0.0, 128
        %391 = vxpose.xlu0.b32.cont [11/16] 0.0, 128
        %392 = vxpose.xlu0.b32.cont [12/16] 0.0, 128
        %393 = vxpose.xlu0.b32.cont [13/16] 0.0, 128
        %394 = vxpose.xlu0.b32.cont [14/16] 0.0, 128
        %395 = vxpose.xlu0.b32.cont [15/16] 0.0, 128
        %396 = vxpose.xlu0.b32.end [16/16] 0.0, 128
        %v397 = vpop.trf.xlu0
        %v398 = vpop.trf.xlu0
        %v399 = vpop.trf.xlu0
        %v400 = vpop.trf.xlu0
        %v401 = vpop.trf.xlu0
        %v402 = vpop.trf.xlu0
        %v403 = vpop.trf.xlu0
        %v404 = vpop.trf.xlu0
        %v405 = vpop.trf.xlu0
        %v406 = vpop.trf.xlu0
        %v407 = vpop.trf.xlu0
        %v408 = vpop.trf.xlu0
        %v409 = vpop.trf.xlu0
        %v410 = vpop.trf.xlu0
        %v411 = vpop.trf.xlu0
        %v412 = vpop.trf.xlu0
        %413 = vxpose.xlu0.b32.start [1/16] %v379, 128
        %414 = vxpose.xlu0.b32.cont [2/16] 0.0, 128
        %415 = vxpose.xlu0.b32.cont [3/16] 0.0, 128
        %416 = vxpose.xlu0.b32.cont [4/16] 0.0, 128
        %417 = vxpose.xlu0.b32.cont [5/16] 0.0, 128
        %418 = vxpose.xlu0.b32.cont [6/16] 0.0, 128
        %419 = vxpose.xlu0.b32.cont [7/16] 0.0, 128
        %420 = vxpose.xlu0.b32.cont [8/16] 0.0, 128
        %421 = vxpose.xlu0.b32.cont [9/16] 0.0, 128
        %422 = vxpose.xlu0.b32.cont [10/16] 0.0, 128
        %423 = vxpose.xlu0.b32.cont [11/16] 0.0, 128
        %424 = vxpose.xlu0.b32.cont [12/16] 0.0, 128
        %425 = vxpose.xlu0.b32.cont [13/16] 0.0, 128
        %426 = vxpose.xlu0.b32.cont [14/16] 0.0, 128
        %427 = vxpose.xlu0.b32.cont [15/16] 0.0, 128
        %428 = vxpose.xlu0.b32.end [16/16] 0.0, 128
        %v429 = vpop.trf.xlu0
        %v430 = vpop.trf.xlu0
        %v431 = vpop.trf.xlu0
        %v432 = vpop.trf.xlu0
        %v433 = vpop.trf.xlu0
        %v434 = vpop.trf.xlu0
        %v435 = vpop.trf.xlu0
        %v436 = vpop.trf.xlu0
        %v437 = vpop.trf.xlu0
        %v438 = vpop.trf.xlu0
        %v439 = vpop.trf.xlu0
        %v440 = vpop.trf.xlu0
        %v441 = vpop.trf.xlu0
        %v442 = vpop.trf.xlu0
        %v443 = vpop.trf.xlu0
        %v444 = vpop.trf.xlu0
        %s445 = scalar_lea.vmem [#allocation2], 24
        %vm446 = vcmask 31744
        %447 = vst.msk [vmem:[%s445 + $0x1] sm:$0xff] %vm446, %v397
        %448 = vst.msk [vmem:[%s445 + $0x9] sm:$0xff] %vm446, %v398
        %449 = vst.msk [vmem:[%s445 + $0x19] sm:$0xff] %vm446, %v399
        %450 = vst.msk [vmem:[%s445 + $0x21] sm:$0xff] %vm446, %v400
        %451 = vst.msk [vmem:[%s445 + $0x31] sm:$0xff] %vm446, %v401
        %452 = vst.msk [vmem:[%s445 + $0x39] sm:$0xff] %vm446, %v402
        %453 = vst.msk [vmem:[%s445 + $0x49] sm:$0xff] %vm446, %v403
        %454 = vst.msk [vmem:[%s445 + $0x51] sm:$0xff] %vm446, %v404
        %455 = vst.msk [vmem:[%s445 + $0x61] sm:$0xff] %vm446, %v405
        %456 = vst.msk [vmem:[%s445 + $0x69] sm:$0xff] %vm446, %v406
        %457 = vst.msk [vmem:[%s445 + $0x79] sm:$0xff] %vm446, %v407
        %458 = vst.msk [vmem:[%s445 + $0x81] sm:$0xff] %vm446, %v408
        %459 = vst.msk [vmem:[%s445 + $0x91] sm:$0xff] %vm446, %v409
        %460 = vst.msk [vmem:[%s445 + $0x99] sm:$0xff] %vm446, %v410
        %461 = vst.msk [vmem:[%s445 + $0xa9] sm:$0xff] %vm446, %v411
        %462 = vst.msk [vmem:[%s445 + $0xb1] sm:$0xff] %vm446, %v412
        %463 = vst.msk [vmem:[%s445 + $0xc1] sm:$0xff] %vm446, %v429
        %464 = vst.msk [vmem:[%s445 + $0xc9] sm:$0xff] %vm446, %v430
        %465 = vst.msk [vmem:[%s445 + $0xd9] sm:$0xff] %vm446, %v431
        %466 = vst.msk [vmem:[%s445 + $0xe1] sm:$0xff] %vm446, %v432
        %467 = vst.msk [vmem:[%s445 + $0xf1] sm:$0xff] %vm446, %v433
        %468 = vst.msk [vmem:[%s445 + $0xf9] sm:$0xff] %vm446, %v434
        %469 = vst.msk [vmem:[%s445 + $0x109] sm:$0xff] %vm446, %v435
        %470 = vst.msk [vmem:[%s445 + $0x111] sm:$0xff] %vm446, %v436
        %471 = vst.msk [vmem:[%s445 + $0x121] sm:$0xff] %vm446, %v437
        %472 = vst.msk [vmem:[%s445 + $0x129] sm:$0xff] %vm446, %v438
        %473 = vst.msk [vmem:[%s445 + $0x139] sm:$0xff] %vm446, %v439
        %474 = vst.msk [vmem:[%s445 + $0x141] sm:$0xff] %vm446, %v440
        %475 = vst.msk [vmem:[%s445 + $0x151] sm:$0xff] %vm446, %v441
        %476 = vst.msk [vmem:[%s445 + $0x159] sm:$0xff] %vm446, %v442
        %477 = vst.msk [vmem:[%s445 + $0x169] sm:$0xff] %vm446, %v443
        %478 = vst.msk [vmem:[%s445 + $0x171] sm:$0xff] %vm446, %v444
        %v479 = vld [vmem:[#allocation2] sm:$0xff]
        %v480 = vld [vmem:[#allocation2 + $0x8] sm:$0xff]
        %v481 = vld [vmem:[#allocation2 + $0x18] sm:$0xff]
        %v482 = vld [vmem:[#allocation2 + $0x20] sm:$0xff]
        %v483 = vld [vmem:[#allocation2 + $0x30] sm:$0xff]
        %v484 = vld [vmem:[#allocation2 + $0x38] sm:$0xff]
        %v485 = vld [vmem:[#allocation2 + $0x48] sm:$0xff]
        %v486 = vld [vmem:[#allocation2 + $0x50] sm:$0xff]
        %v487 = vld [vmem:[#allocation2 + $0x60] sm:$0xff]
        %v488 = vld [vmem:[#allocation2 + $0x68] sm:$0xff]
        %v489 = vld [vmem:[#allocation2 + $0x78] sm:$0xff]
        %v490 = vld [vmem:[#allocation2 + $0x80] sm:$0xff]
        %v491 = vld [vmem:[#allocation2 + $0x90] sm:$0xff]
        %v492 = vld [vmem:[#allocation2 + $0x98] sm:$0xff]
        %v493 = vld [vmem:[#allocation2 + $0xa8] sm:$0xff]
        %v494 = vld [vmem:[#allocation2 + $0xb0] sm:$0xff]
        %v495 = vld [vmem:[#allocation2 + $0xc0] sm:$0xff]
        %v496 = vld [vmem:[#allocation2 + $0xc8] sm:$0xff]
        %v497 = vld [vmem:[#allocation2 + $0xd8] sm:$0xff]
        %v498 = vld [vmem:[#allocation2 + $0xe0] sm:$0xff]
        %v499 = vld [vmem:[#allocation2 + $0xf0] sm:$0xff]
        %v500 = vld [vmem:[#allocation2 + $0xf8] sm:$0xff]
        %v501 = vld [vmem:[#allocation2 + $0x108] sm:$0xff]
        %v502 = vld [vmem:[#allocation2 + $0x110] sm:$0xff]
        %v503 = vld [vmem:[#allocation2 + $0x120] sm:$0xff]
        %v504 = vld [vmem:[#allocation2 + $0x128] sm:$0xff]
        %v505 = vld [vmem:[#allocation2 + $0x138] sm:$0xff]
        %v506 = vld [vmem:[#allocation2 + $0x140] sm:$0xff]
        %v507 = vld [vmem:[#allocation2 + $0x150] sm:$0xff]
        %v508 = vld [vmem:[#allocation2 + $0x158] sm:$0xff]
        %v509 = vld [vmem:[#allocation2 + $0x168] sm:$0xff]
        %v510 = vld [vmem:[#allocation2 + $0x170] sm:$0xff]
        %511 = vst.msk [vmem:[#allocation3] sm:$0xff] %vm446, %v479
        %512 = vst.msk [vmem:[#allocation3 + $0x10] sm:$0xff] %vm446, %v480
        %513 = vst.msk [vmem:[#allocation3 + $0x20] sm:$0xff] %vm446, %v481
        %514 = vst.msk [vmem:[#allocation3 + $0x30] sm:$0xff] %vm446, %v482
        %515 = vst.msk [vmem:[#allocation3 + $0x40] sm:$0xff] %vm446, %v483
        %516 = vst.msk [vmem:[#allocation3 + $0x50] sm:$0xff] %vm446, %v484
        %517 = vst.msk [vmem:[#allocation3 + $0x60] sm:$0xff] %vm446, %v485
        %518 = vst.msk [vmem:[#allocation3 + $0x70] sm:$0xff] %vm446, %v486
        %519 = vst.msk [vmem:[#allocation3 + $0x80] sm:$0xff] %vm446, %v487
        %520 = vst.msk [vmem:[#allocation3 + $0x90] sm:$0xff] %vm446, %v488
        %521 = vst.msk [vmem:[#allocation3 + $0xa0] sm:$0xff] %vm446, %v489
        %522 = vst.msk [vmem:[#allocation3 + $0xb0] sm:$0xff] %vm446, %v490
        %523 = vst.msk [vmem:[#allocation3 + $0xc0] sm:$0xff] %vm446, %v491
        %524 = vst.msk [vmem:[#allocation3 + $0xd0] sm:$0xff] %vm446, %v492
        %525 = vst.msk [vmem:[#allocation3 + $0xe0] sm:$0xff] %vm446, %v493
        %526 = vst.msk [vmem:[#allocation3 + $0xf0] sm:$0xff] %vm446, %v494
        %527 = vst.msk [vmem:[#allocation3 + $0x100] sm:$0xff] %vm446, %v495
        %528 = vst.msk [vmem:[#allocation3 + $0x110] sm:$0xff] %vm446, %v496
        %529 = vst.msk [vmem:[#allocation3 + $0x120] sm:$0xff] %vm446, %v497
        %530 = vst.msk [vmem:[#allocation3 + $0x130] sm:$0xff] %vm446, %v498
        %531 = vst.msk [vmem:[#allocation3 + $0x140] sm:$0xff] %vm446, %v499
        %532 = vst.msk [vmem:[#allocation3 + $0x150] sm:$0xff] %vm446, %v500
        %533 = vst.msk [vmem:[#allocation3 + $0x160] sm:$0xff] %vm446, %v501
        %534 = vst.msk [vmem:[#allocation3 + $0x170] sm:$0xff] %vm446, %v502
        %535 = vst.msk [vmem:[#allocation3 + $0x180] sm:$0xff] %vm446, %v503
        %536 = vst.msk [vmem:[#allocation3 + $0x190] sm:$0xff] %vm446, %v504
        %537 = vst.msk [vmem:[#allocation3 + $0x1a0] sm:$0xff] %vm446, %v505
        %538 = vst.msk [vmem:[#allocation3 + $0x1b0] sm:$0xff] %vm446, %v506
        %539 = vst.msk [vmem:[#allocation3 + $0x1c0] sm:$0xff] %vm446, %v507
        %540 = vst.msk [vmem:[#allocation3 + $0x1d0] sm:$0xff] %vm446, %v508
        %541 = vst.msk [vmem:[#allocation3 + $0x1e0] sm:$0xff] %vm446, %v509
        %542 = vst.msk [vmem:[#allocation3 + $0x1f0] sm:$0xff] %vm446, %v510
        %v543 = vld [vmem:[#allocation2 + $0x1] sm:$0xff]
        %v544 = vld [vmem:[#allocation2 + $0x9] sm:$0xff]
        %v545 = vld [vmem:[#allocation2 + $0x19] sm:$0xff]
        %v546 = vld [vmem:[#allocation2 + $0x21] sm:$0xff]
        %v547 = vld [vmem:[#allocation2 + $0x31] sm:$0xff]
        %v548 = vld [vmem:[#allocation2 + $0x39] sm:$0xff]
        %v549 = vld [vmem:[#allocation2 + $0x49] sm:$0xff]
        %v550 = vld [vmem:[#allocation2 + $0x51] sm:$0xff]
        %v551 = vld [vmem:[#allocation2 + $0x61] sm:$0xff]
        %v552 = vld [vmem:[#allocation2 + $0x69] sm:$0xff]
        %v553 = vld [vmem:[#allocation2 + $0x79] sm:$0xff]
        %v554 = vld [vmem:[#allocation2 + $0x81] sm:$0xff]
        %v555 = vld [vmem:[#allocation2 + $0x91] sm:$0xff]
        %v556 = vld [vmem:[#allocation2 + $0x99] sm:$0xff]
        %v557 = vld [vmem:[#allocation2 + $0xa9] sm:$0xff]
        %v558 = vld [vmem:[#allocation2 + $0xb1] sm:$0xff]
        %v559 = vld [vmem:[#allocation2 + $0xc1] sm:$0xff]
        %v560 = vld [vmem:[#allocation2 + $0xc9] sm:$0xff]
        %v561 = vld [vmem:[#allocation2 + $0xd9] sm:$0xff]
        %v562 = vld [vmem:[#allocation2 + $0xe1] sm:$0xff]
        %v563 = vld [vmem:[#allocation2 + $0xf1] sm:$0xff]
        %v564 = vld [vmem:[#allocation2 + $0xf9] sm:$0xff]
        %v565 = vld [vmem:[#allocation2 + $0x109] sm:$0xff]
        %v566 = vld [vmem:[#allocation2 + $0x111] sm:$0xff]
        %v567 = vld [vmem:[#allocation2 + $0x121] sm:$0xff]
        %v568 = vld [vmem:[#allocation2 + $0x129] sm:$0xff]
        %v569 = vld [vmem:[#allocation2 + $0x139] sm:$0xff]
        %v570 = vld [vmem:[#allocation2 + $0x141] sm:$0xff]
        %v571 = vld [vmem:[#allocation2 + $0x151] sm:$0xff]
        %v572 = vld [vmem:[#allocation2 + $0x159] sm:$0xff]
        %v573 = vld [vmem:[#allocation2 + $0x169] sm:$0xff]
        %v574 = vld [vmem:[#allocation2 + $0x171] sm:$0xff]
        %607 = vrot.lane.b32.xlu0 %v543, 4
        %v608 = vpop.permute.xlu0 %607
        %609 = vrot.lane.b32.xlu0 %v544, 4
        %v610 = vpop.permute.xlu0 %609
        %611 = vrot.lane.b32.xlu0 %v545, 4
        %v612 = vpop.permute.xlu0 %611
        %613 = vrot.lane.b32.xlu0 %v546, 4
        %v614 = vpop.permute.xlu0 %613
        %615 = vrot.lane.b32.xlu0 %v547, 4
        %v616 = vpop.permute.xlu0 %615
        %617 = vrot.lane.b32.xlu0 %v548, 4
        %v618 = vpop.permute.xlu0 %617
        %619 = vrot.lane.b32.xlu0 %v549, 4
        %v620 = vpop.permute.xlu0 %619
        %621 = vrot.lane.b32.xlu0 %v550, 4
        %v622 = vpop.permute.xlu0 %621
        %623 = vrot.lane.b32.xlu0 %v551, 4
        %v624 = vpop.permute.xlu0 %623
        %625 = vrot.lane.b32.xlu0 %v552, 4
        %v626 = vpop.permute.xlu0 %625
        %627 = vrot.lane.b32.xlu0 %v553, 4
        %v628 = vpop.permute.xlu0 %627
        %629 = vrot.lane.b32.xlu0 %v554, 4
        %v630 = vpop.permute.xlu0 %629
        %631 = vrot.lane.b32.xlu0 %v555, 4
        %v632 = vpop.permute.xlu0 %631
        %633 = vrot.lane.b32.xlu0 %v556, 4
        %v634 = vpop.permute.xlu0 %633
        %635 = vrot.lane.b32.xlu0 %v557, 4
        %v636 = vpop.permute.xlu0 %635
        %637 = vrot.lane.b32.xlu0 %v558, 4
        %v638 = vpop.permute.xlu0 %637
        %639 = vrot.lane.b32.xlu0 %v559, 4
        %v640 = vpop.permute.xlu0 %639
        %641 = vrot.lane.b32.xlu0 %v560, 4
        %v642 = vpop.permute.xlu0 %641
        %643 = vrot.lane.b32.xlu0 %v561, 4
        %v644 = vpop.permute.xlu0 %643
        %645 = vrot.lane.b32.xlu0 %v562, 4
        %v646 = vpop.permute.xlu0 %645
        %647 = vrot.lane.b32.xlu0 %v563, 4
        %v648 = vpop.permute.xlu0 %647
        %649 = vrot.lane.b32.xlu0 %v564, 4
        %v650 = vpop.permute.xlu0 %649
        %651 = vrot.lane.b32.xlu0 %v565, 4
        %v652 = vpop.permute.xlu0 %651
        %653 = vrot.lane.b32.xlu0 %v566, 4
        %v654 = vpop.permute.xlu0 %653
        %655 = vrot.lane.b32.xlu0 %v567, 4
        %v656 = vpop.permute.xlu0 %655
        %657 = vrot.lane.b32.xlu0 %v568, 4
        %v658 = vpop.permute.xlu0 %657
        %659 = vrot.lane.b32.xlu0 %v569, 4
        %v660 = vpop.permute.xlu0 %659
        %661 = vrot.lane.b32.xlu0 %v570, 4
        %v662 = vpop.permute.xlu0 %661
        %663 = vrot.lane.b32.xlu0 %v571, 4
        %v664 = vpop.permute.xlu0 %663
        %665 = vrot.lane.b32.xlu0 %v572, 4
        %v666 = vpop.permute.xlu0 %665
        %667 = vrot.lane.b32.xlu0 %v573, 4
        %v668 = vpop.permute.xlu0 %667
        %669 = vrot.lane.b32.xlu0 %v574, 4
        %v670 = vpop.permute.xlu0 %669
        %vm703 = vcmask 64544
        %704 = vst.msk [vmem:[#allocation3] sm:$0xff] %vm703, %v608
        %705 = vst.msk [vmem:[#allocation3 + $0x10] sm:$0xff] %vm703, %v610
        %706 = vst.msk [vmem:[#allocation3 + $0x20] sm:$0xff] %vm703, %v612
        %707 = vst.msk [vmem:[#allocation3 + $0x30] sm:$0xff] %vm703, %v614
        %708 = vst.msk [vmem:[#allocation3 + $0x40] sm:$0xff] %vm703, %v616
        %709 = vst.msk [vmem:[#allocation3 + $0x50] sm:$0xff] %vm703, %v618
        %710 = vst.msk [vmem:[#allocation3 + $0x60] sm:$0xff] %vm703, %v620
        %711 = vst.msk [vmem:[#allocation3 + $0x70] sm:$0xff] %vm703, %v622
        %712 = vst.msk [vmem:[#allocation3 + $0x80] sm:$0xff] %vm703, %v624
        %713 = vst.msk [vmem:[#allocation3 + $0x90] sm:$0xff] %vm703, %v626
        %714 = vst.msk [vmem:[#allocation3 + $0xa0] sm:$0xff] %vm703, %v628
        %715 = vst.msk [vmem:[#allocation3 + $0xb0] sm:$0xff] %vm703, %v630
        %716 = vst.msk [vmem:[#allocation3 + $0xc0] sm:$0xff] %vm703, %v632
        %717 = vst.msk [vmem:[#allocation3 + $0xd0] sm:$0xff] %vm703, %v634
        %718 = vst.msk [vmem:[#allocation3 + $0xe0] sm:$0xff] %vm703, %v636
        %719 = vst.msk [vmem:[#allocation3 + $0xf0] sm:$0xff] %vm703, %v638
        %720 = vst.msk [vmem:[#allocation3 + $0x100] sm:$0xff] %vm703, %v640
        %721 = vst.msk [vmem:[#allocation3 + $0x110] sm:$0xff] %vm703, %v642
        %722 = vst.msk [vmem:[#allocation3 + $0x120] sm:$0xff] %vm703, %v644
        %723 = vst.msk [vmem:[#allocation3 + $0x130] sm:$0xff] %vm703, %v646
        %724 = vst.msk [vmem:[#allocation3 + $0x140] sm:$0xff] %vm703, %v648
        %725 = vst.msk [vmem:[#allocation3 + $0x150] sm:$0xff] %vm703, %v650
        %726 = vst.msk [vmem:[#allocation3 + $0x160] sm:$0xff] %vm703, %v652
        %727 = vst.msk [vmem:[#allocation3 + $0x170] sm:$0xff] %vm703, %v654
        %728 = vst.msk [vmem:[#allocation3 + $0x180] sm:$0xff] %vm703, %v656
        %729 = vst.msk [vmem:[#allocation3 + $0x190] sm:$0xff] %vm703, %v658
        %730 = vst.msk [vmem:[#allocation3 + $0x1a0] sm:$0xff] %vm703, %v660
        %731 = vst.msk [vmem:[#allocation3 + $0x1b0] sm:$0xff] %vm703, %v662
        %732 = vst.msk [vmem:[#allocation3 + $0x1c0] sm:$0xff] %vm703, %v664
        %733 = vst.msk [vmem:[#allocation3 + $0x1d0] sm:$0xff] %vm703, %v666
        %734 = vst.msk [vmem:[#allocation3 + $0x1e0] sm:$0xff] %vm703, %v668
        %735 = vst.msk [vmem:[#allocation3 + $0x1f0] sm:$0xff] %vm703, %v670
        %v736 = vld [vmem:[#allocation2 + $0x2] sm:$0xff]
        %v737 = vld [vmem:[#allocation2 + $0xa] sm:$0xff]
        %v738 = vld [vmem:[#allocation2 + $0x1a] sm:$0xff]
        %v739 = vld [vmem:[#allocation2 + $0x22] sm:$0xff]
        %v740 = vld [vmem:[#allocation2 + $0x32] sm:$0xff]
        %v741 = vld [vmem:[#allocation2 + $0x3a] sm:$0xff]
        %v742 = vld [vmem:[#allocation2 + $0x4a] sm:$0xff]
        %v743 = vld [vmem:[#allocation2 + $0x52] sm:$0xff]
        %v744 = vld [vmem:[#allocation2 + $0x62] sm:$0xff]
        %v745 = vld [vmem:[#allocation2 + $0x6a] sm:$0xff]
        %v746 = vld [vmem:[#allocation2 + $0x7a] sm:$0xff]
        %v747 = vld [vmem:[#allocation2 + $0x82] sm:$0xff]
        %v748 = vld [vmem:[#allocation2 + $0x92] sm:$0xff]
        %v749 = vld [vmem:[#allocation2 + $0x9a] sm:$0xff]
        %v750 = vld [vmem:[#allocation2 + $0xaa] sm:$0xff]
        %v751 = vld [vmem:[#allocation2 + $0xb2] sm:$0xff]
        %v752 = vld [vmem:[#allocation2 + $0xc2] sm:$0xff]
        %v753 = vld [vmem:[#allocation2 + $0xca] sm:$0xff]
        %v754 = vld [vmem:[#allocation2 + $0xda] sm:$0xff]
        %v755 = vld [vmem:[#allocation2 + $0xe2] sm:$0xff]
        %v756 = vld [vmem:[#allocation2 + $0xf2] sm:$0xff]
        %v757 = vld [vmem:[#allocation2 + $0xfa] sm:$0xff]
        %v758 = vld [vmem:[#allocation2 + $0x10a] sm:$0xff]
        %v759 = vld [vmem:[#allocation2 + $0x112] sm:$0xff]
        %v760 = vld [vmem:[#allocation2 + $0x122] sm:$0xff]
        %v761 = vld [vmem:[#allocation2 + $0x12a] sm:$0xff]
        %v762 = vld [vmem:[#allocation2 + $0x13a] sm:$0xff]
        %v763 = vld [vmem:[#allocation2 + $0x142] sm:$0xff]
        %v764 = vld [vmem:[#allocation2 + $0x152] sm:$0xff]
        %v765 = vld [vmem:[#allocation2 + $0x15a] sm:$0xff]
        %v766 = vld [vmem:[#allocation2 + $0x16a] sm:$0xff]
        %v767 = vld [vmem:[#allocation2 + $0x172] sm:$0xff]
        %800 = vrot.lane.b32.xlu0 %v736, 8
        %v801 = vpop.permute.xlu0 %800
        %802 = vrot.lane.b32.xlu0 %v737, 8
        %v803 = vpop.permute.xlu0 %802
        %804 = vrot.lane.b32.xlu0 %v738, 8
        %v805 = vpop.permute.xlu0 %804
        %806 = vrot.lane.b32.xlu0 %v739, 8
        %v807 = vpop.permute.xlu0 %806
        %808 = vrot.lane.b32.xlu0 %v740, 8
        %v809 = vpop.permute.xlu0 %808
        %810 = vrot.lane.b32.xlu0 %v741, 8
        %v811 = vpop.permute.xlu0 %810
        %812 = vrot.lane.b32.xlu0 %v742, 8
        %v813 = vpop.permute.xlu0 %812
        %814 = vrot.lane.b32.xlu0 %v743, 8
        %v815 = vpop.permute.xlu0 %814
        %816 = vrot.lane.b32.xlu0 %v744, 8
        %v817 = vpop.permute.xlu0 %816
        %818 = vrot.lane.b32.xlu0 %v745, 8
        %v819 = vpop.permute.xlu0 %818
        %820 = vrot.lane.b32.xlu0 %v746, 8
        %v821 = vpop.permute.xlu0 %820
        %822 = vrot.lane.b32.xlu0 %v747, 8
        %v823 = vpop.permute.xlu0 %822
        %824 = vrot.lane.b32.xlu0 %v748, 8
        %v825 = vpop.permute.xlu0 %824
        %826 = vrot.lane.b32.xlu0 %v749, 8
        %v827 = vpop.permute.xlu0 %826
        %828 = vrot.lane.b32.xlu0 %v750, 8
        %v829 = vpop.permute.xlu0 %828
        %830 = vrot.lane.b32.xlu0 %v751, 8
        %v831 = vpop.permute.xlu0 %830
        %832 = vrot.lane.b32.xlu0 %v752, 8
        %v833 = vpop.permute.xlu0 %832
        %834 = vrot.lane.b32.xlu0 %v753, 8
        %v835 = vpop.permute.xlu0 %834
        %836 = vrot.lane.b32.xlu0 %v754, 8
        %v837 = vpop.permute.xlu0 %836
        %838 = vrot.lane.b32.xlu0 %v755, 8
        %v839 = vpop.permute.xlu0 %838
        %840 = vrot.lane.b32.xlu0 %v756, 8
        %v841 = vpop.permute.xlu0 %840
        %842 = vrot.lane.b32.xlu0 %v757, 8
        %v843 = vpop.permute.xlu0 %842
        %844 = vrot.lane.b32.xlu0 %v758, 8
        %v845 = vpop.permute.xlu0 %844
        %846 = vrot.lane.b32.xlu0 %v759, 8
        %v847 = vpop.permute.xlu0 %846
        %848 = vrot.lane.b32.xlu0 %v760, 8
        %v849 = vpop.permute.xlu0 %848
        %850 = vrot.lane.b32.xlu0 %v761, 8
        %v851 = vpop.permute.xlu0 %850
        %852 = vrot.lane.b32.xlu0 %v762, 8
        %v853 = vpop.permute.xlu0 %852
        %854 = vrot.lane.b32.xlu0 %v763, 8
        %v855 = vpop.permute.xlu0 %854
        %856 = vrot.lane.b32.xlu0 %v764, 8
        %v857 = vpop.permute.xlu0 %856
        %858 = vrot.lane.b32.xlu0 %v765, 8
        %v859 = vpop.permute.xlu0 %858
        %860 = vrot.lane.b32.xlu0 %v766, 8
        %v861 = vpop.permute.xlu0 %860
        %862 = vrot.lane.b32.xlu0 %v767, 8
        %v863 = vpop.permute.xlu0 %862
        %vm896 = vcmask 97344
        %897 = vst.msk [vmem:[#allocation3] sm:$0xff] %vm896, %v801
        %898 = vst.msk [vmem:[#allocation3 + $0x10] sm:$0xff] %vm896, %v803
        %899 = vst.msk [vmem:[#allocation3 + $0x20] sm:$0xff] %vm896, %v805
        %900 = vst.msk [vmem:[#allocation3 + $0x30] sm:$0xff] %vm896, %v807
        %901 = vst.msk [vmem:[#allocation3 + $0x40] sm:$0xff] %vm896, %v809
        %902 = vst.msk [vmem:[#allocation3 + $0x50] sm:$0xff] %vm896, %v811
        %903 = vst.msk [vmem:[#allocation3 + $0x60] sm:$0xff] %vm896, %v813
        %904 = vst.msk [vmem:[#allocation3 + $0x70] sm:$0xff] %vm896, %v815
        %905 = vst.msk [vmem:[#allocation3 + $0x80] sm:$0xff] %vm896, %v817
        %906 = vst.msk [vmem:[#allocation3 + $0x90] sm:$0xff] %vm896, %v819
        %907 = vst.msk [vmem:[#allocation3 + $0xa0] sm:$0xff] %vm896, %v821
        %908 = vst.msk [vmem:[#allocation3 + $0xb0] sm:$0xff] %vm896, %v823
        %909 = vst.msk [vmem:[#allocation3 + $0xc0] sm:$0xff] %vm896, %v825
        %910 = vst.msk [vmem:[#allocation3 + $0xd0] sm:$0xff] %vm896, %v827
        %911 = vst.msk [vmem:[#allocation3 + $0xe0] sm:$0xff] %vm896, %v829
        %912 = vst.msk [vmem:[#allocation3 + $0xf0] sm:$0xff] %vm896, %v831
        %913 = vst.msk [vmem:[#allocation3 + $0x100] sm:$0xff] %vm896, %v833
        %914 = vst.msk [vmem:[#allocation3 + $0x110] sm:$0xff] %vm896, %v835
        %915 = vst.msk [vmem:[#allocation3 + $0x120] sm:$0xff] %vm896, %v837
        %916 = vst.msk [vmem:[#allocation3 + $0x130] sm:$0xff] %vm896, %v839
        %917 = vst.msk [vmem:[#allocation3 + $0x140] sm:$0xff] %vm896, %v841
        %918 = vst.msk [vmem:[#allocation3 + $0x150] sm:$0xff] %vm896, %v843
        %919 = vst.msk [vmem:[#allocation3 + $0x160] sm:$0xff] %vm896, %v845
        %920 = vst.msk [vmem:[#allocation3 + $0x170] sm:$0xff] %vm896, %v847
        %921 = vst.msk [vmem:[#allocation3 + $0x180] sm:$0xff] %vm896, %v849
        %922 = vst.msk [vmem:[#allocation3 + $0x190] sm:$0xff] %vm896, %v851
        %923 = vst.msk [vmem:[#allocation3 + $0x1a0] sm:$0xff] %vm896, %v853
        %924 = vst.msk [vmem:[#allocation3 + $0x1b0] sm:$0xff] %vm896, %v855
        %925 = vst.msk [vmem:[#allocation3 + $0x1c0] sm:$0xff] %vm896, %v857
        %926 = vst.msk [vmem:[#allocation3 + $0x1d0] sm:$0xff] %vm896, %v859
        %927 = vst.msk [vmem:[#allocation3 + $0x1e0] sm:$0xff] %vm896, %v861
        %928 = vst.msk [vmem:[#allocation3 + $0x1f0] sm:$0xff] %vm896, %v863
        %v929 = vld [vmem:[%s445] sm:$0xff]
        %v930 = vld [vmem:[%s445 + $0x8] sm:$0xff]
        %v931 = vld [vmem:[%s445 + $0x18] sm:$0xff]
        %v932 = vld [vmem:[%s445 + $0x20] sm:$0xff]
        %v933 = vld [vmem:[%s445 + $0x30] sm:$0xff]
        %v934 = vld [vmem:[%s445 + $0x38] sm:$0xff]
        %v935 = vld [vmem:[%s445 + $0x48] sm:$0xff]
        %v936 = vld [vmem:[%s445 + $0x50] sm:$0xff]
        %v937 = vld [vmem:[%s445 + $0x60] sm:$0xff]
        %v938 = vld [vmem:[%s445 + $0x68] sm:$0xff]
        %v939 = vld [vmem:[%s445 + $0x78] sm:$0xff]
        %v940 = vld [vmem:[%s445 + $0x80] sm:$0xff]
        %v941 = vld [vmem:[%s445 + $0x90] sm:$0xff]
        %v942 = vld [vmem:[%s445 + $0x98] sm:$0xff]
        %v943 = vld [vmem:[%s445 + $0xa8] sm:$0xff]
        %v944 = vld [vmem:[%s445 + $0xb0] sm:$0xff]
        %v945 = vld [vmem:[%s445 + $0xc0] sm:$0xff]
        %v946 = vld [vmem:[%s445 + $0xc8] sm:$0xff]
        %v947 = vld [vmem:[%s445 + $0xd8] sm:$0xff]
        %v948 = vld [vmem:[%s445 + $0xe0] sm:$0xff]
        %v949 = vld [vmem:[%s445 + $0xf0] sm:$0xff]
        %v950 = vld [vmem:[%s445 + $0xf8] sm:$0xff]
        %v951 = vld [vmem:[%s445 + $0x108] sm:$0xff]
        %v952 = vld [vmem:[%s445 + $0x110] sm:$0xff]
        %v953 = vld [vmem:[%s445 + $0x120] sm:$0xff]
        %v954 = vld [vmem:[%s445 + $0x128] sm:$0xff]
        %v955 = vld [vmem:[%s445 + $0x138] sm:$0xff]
        %v956 = vld [vmem:[%s445 + $0x140] sm:$0xff]
        %v957 = vld [vmem:[%s445 + $0x150] sm:$0xff]
        %v958 = vld [vmem:[%s445 + $0x158] sm:$0xff]
        %v959 = vld [vmem:[%s445 + $0x168] sm:$0xff]
        %v960 = vld [vmem:[%s445 + $0x170] sm:$0xff]
        %993 = vrot.lane.b32.xlu0 %v929, 12
        %v994 = vpop.permute.xlu0 %993
        %995 = vrot.lane.b32.xlu0 %v930, 12
        %v996 = vpop.permute.xlu0 %995
        %997 = vrot.lane.b32.xlu0 %v931, 12
        %v998 = vpop.permute.xlu0 %997
        %999 = vrot.lane.b32.xlu0 %v932, 12
        %v1000 = vpop.permute.xlu0 %999
        %1001 = vrot.lane.b32.xlu0 %v933, 12
        %v1002 = vpop.permute.xlu0 %1001
        %1003 = vrot.lane.b32.xlu0 %v934, 12
        %v1004 = vpop.permute.xlu0 %1003
        %1005 = vrot.lane.b32.xlu0 %v935, 12
        %v1006 = vpop.permute.xlu0 %1005
        %1007 = vrot.lane.b32.xlu0 %v936, 12
        %v1008 = vpop.permute.xlu0 %1007
        %1009 = vrot.lane.b32.xlu0 %v937, 12
        %v1010 = vpop.permute.xlu0 %1009
        %1011 = vrot.lane.b32.xlu0 %v938, 12
        %v1012 = vpop.permute.xlu0 %1011
        %1013 = vrot.lane.b32.xlu0 %v939, 12
        %v1014 = vpop.permute.xlu0 %1013
        %1015 = vrot.lane.b32.xlu0 %v940, 12
        %v1016 = vpop.permute.xlu0 %1015
        %1017 = vrot.lane.b32.xlu0 %v941, 12
        %v1018 = vpop.permute.xlu0 %1017
        %1019 = vrot.lane.b32.xlu0 %v942, 12
        %v1020 = vpop.permute.xlu0 %1019
        %1021 = vrot.lane.b32.xlu0 %v943, 12
        %v1022 = vpop.permute.xlu0 %1021
        %1023 = vrot.lane.b32.xlu0 %v944, 12
        %v1024 = vpop.permute.xlu0 %1023
        %1025 = vrot.lane.b32.xlu0 %v945, 12
        %v1026 = vpop.permute.xlu0 %1025
        %1027 = vrot.lane.b32.xlu0 %v946, 12
        %v1028 = vpop.permute.xlu0 %1027
        %1029 = vrot.lane.b32.xlu0 %v947, 12
        %v1030 = vpop.permute.xlu0 %1029
        %1031 = vrot.lane.b32.xlu0 %v948, 12
        %v1032 = vpop.permute.xlu0 %1031
        %1033 = vrot.lane.b32.xlu0 %v949, 12
        %v1034 = vpop.permute.xlu0 %1033
        %1035 = vrot.lane.b32.xlu0 %v950, 12
        %v1036 = vpop.permute.xlu0 %1035
        %1037 = vrot.lane.b32.xlu0 %v951, 12
        %v1038 = vpop.permute.xlu0 %1037
        %1039 = vrot.lane.b32.xlu0 %v952, 12
        %v1040 = vpop.permute.xlu0 %1039
        %1041 = vrot.lane.b32.xlu0 %v953, 12
        %v1042 = vpop.permute.xlu0 %1041
        %1043 = vrot.lane.b32.xlu0 %v954, 12
        %v1044 = vpop.permute.xlu0 %1043
        %1045 = vrot.lane.b32.xlu0 %v955, 12
        %v1046 = vpop.permute.xlu0 %1045
        %1047 = vrot.lane.b32.xlu0 %v956, 12
        %v1048 = vpop.permute.xlu0 %1047
        %1049 = vrot.lane.b32.xlu0 %v957, 12
        %v1050 = vpop.permute.xlu0 %1049
        %1051 = vrot.lane.b32.xlu0 %v958, 12
        %v1052 = vpop.permute.xlu0 %1051
        %1053 = vrot.lane.b32.xlu0 %v959, 12
        %v1054 = vpop.permute.xlu0 %1053
        %1055 = vrot.lane.b32.xlu0 %v960, 12
        %v1056 = vpop.permute.xlu0 %1055
        %vm1089 = vcmask 130144
        %1090 = vst.msk [vmem:[#allocation3] sm:$0xff] %vm1089, %v994
        %1091 = vst.msk [vmem:[#allocation3 + $0x10] sm:$0xff] %vm1089, %v996
        %1092 = vst.msk [vmem:[#allocation3 + $0x20] sm:$0xff] %vm1089, %v998
        %1093 = vst.msk [vmem:[#allocation3 + $0x30] sm:$0xff] %vm1089, %v1000
        %1094 = vst.msk [vmem:[#allocation3 + $0x40] sm:$0xff] %vm1089, %v1002
        %1095 = vst.msk [vmem:[#allocation3 + $0x50] sm:$0xff] %vm1089, %v1004
        %1096 = vst.msk [vmem:[#allocation3 + $0x60] sm:$0xff] %vm1089, %v1006
        %1097 = vst.msk [vmem:[#allocation3 + $0x70] sm:$0xff] %vm1089, %v1008
        %1098 = vst.msk [vmem:[#allocation3 + $0x80] sm:$0xff] %vm1089, %v1010
        %1099 = vst.msk [vmem:[#allocation3 + $0x90] sm:$0xff] %vm1089, %v1012
        %1100 = vst.msk [vmem:[#allocation3 + $0xa0] sm:$0xff] %vm1089, %v1014
        %1101 = vst.msk [vmem:[#allocation3 + $0xb0] sm:$0xff] %vm1089, %v1016
        %1102 = vst.msk [vmem:[#allocation3 + $0xc0] sm:$0xff] %vm1089, %v1018
        %1103 = vst.msk [vmem:[#allocation3 + $0xd0] sm:$0xff] %vm1089, %v1020
        %1104 = vst.msk [vmem:[#allocation3 + $0xe0] sm:$0xff] %vm1089, %v1022
        %1105 = vst.msk [vmem:[#allocation3 + $0xf0] sm:$0xff] %vm1089, %v1024
        %1106 = vst.msk [vmem:[#allocation3 + $0x100] sm:$0xff] %vm1089, %v1026
        %1107 = vst.msk [vmem:[#allocation3 + $0x110] sm:$0xff] %vm1089, %v1028
        %1108 = vst.msk [vmem:[#allocation3 + $0x120] sm:$0xff] %vm1089, %v1030
        %1109 = vst.msk [vmem:[#allocation3 + $0x130] sm:$0xff] %vm1089, %v1032
        %1110 = vst.msk [vmem:[#allocation3 + $0x140] sm:$0xff] %vm1089, %v1034
        %1111 = vst.msk [vmem:[#allocation3 + $0x150] sm:$0xff] %vm1089, %v1036
        %1112 = vst.msk [vmem:[#allocation3 + $0x160] sm:$0xff] %vm1089, %v1038
        %1113 = vst.msk [vmem:[#allocation3 + $0x170] sm:$0xff] %vm1089, %v1040
        %1114 = vst.msk [vmem:[#allocation3 + $0x180] sm:$0xff] %vm1089, %v1042
        %1115 = vst.msk [vmem:[#allocation3 + $0x190] sm:$0xff] %vm1089, %v1044
        %1116 = vst.msk [vmem:[#allocation3 + $0x1a0] sm:$0xff] %vm1089, %v1046
        %1117 = vst.msk [vmem:[#allocation3 + $0x1b0] sm:$0xff] %vm1089, %v1048
        %1118 = vst.msk [vmem:[#allocation3 + $0x1c0] sm:$0xff] %vm1089, %v1050
        %1119 = vst.msk [vmem:[#allocation3 + $0x1d0] sm:$0xff] %vm1089, %v1052
        %1120 = vst.msk [vmem:[#allocation3 + $0x1e0] sm:$0xff] %vm1089, %v1054
        %1121 = vst.msk [vmem:[#allocation3 + $0x1f0] sm:$0xff] %vm1089, %v1056
        %v1122 = vld [vmem:[%s445 + $0x1] sm:$0xff]
        %v1123 = vld [vmem:[%s445 + $0x9] sm:$0xff]
        %v1124 = vld [vmem:[%s445 + $0x19] sm:$0xff]
        %v1125 = vld [vmem:[%s445 + $0x21] sm:$0xff]
        %v1126 = vld [vmem:[%s445 + $0x31] sm:$0xff]
        %v1127 = vld [vmem:[%s445 + $0x39] sm:$0xff]
        %v1128 = vld [vmem:[%s445 + $0x49] sm:$0xff]
        %v1129 = vld [vmem:[%s445 + $0x51] sm:$0xff]
        %v1130 = vld [vmem:[%s445 + $0x61] sm:$0xff]
        %v1131 = vld [vmem:[%s445 + $0x69] sm:$0xff]
        %v1132 = vld [vmem:[%s445 + $0x79] sm:$0xff]
        %v1133 = vld [vmem:[%s445 + $0x81] sm:$0xff]
        %v1134 = vld [vmem:[%s445 + $0x91] sm:$0xff]
        %v1135 = vld [vmem:[%s445 + $0x99] sm:$0xff]
        %v1136 = vld [vmem:[%s445 + $0xa9] sm:$0xff]
        %v1137 = vld [vmem:[%s445 + $0xb1] sm:$0xff]
        %v1138 = vld [vmem:[%s445 + $0xc1] sm:$0xff]
        %v1139 = vld [vmem:[%s445 + $0xc9] sm:$0xff]
        %v1140 = vld [vmem:[%s445 + $0xd9] sm:$0xff]
        %v1141 = vld [vmem:[%s445 + $0xe1] sm:$0xff]
        %v1142 = vld [vmem:[%s445 + $0xf1] sm:$0xff]
        %v1143 = vld [vmem:[%s445 + $0xf9] sm:$0xff]
        %v1144 = vld [vmem:[%s445 + $0x109] sm:$0xff]
        %v1145 = vld [vmem:[%s445 + $0x111] sm:$0xff]
        %v1146 = vld [vmem:[%s445 + $0x121] sm:$0xff]
        %v1147 = vld [vmem:[%s445 + $0x129] sm:$0xff]
        %v1148 = vld [vmem:[%s445 + $0x139] sm:$0xff]
        %v1149 = vld [vmem:[%s445 + $0x141] sm:$0xff]
        %v1150 = vld [vmem:[%s445 + $0x151] sm:$0xff]
        %v1151 = vld [vmem:[%s445 + $0x159] sm:$0xff]
        %v1152 = vld [vmem:[%s445 + $0x169] sm:$0xff]
        %v1153 = vld [vmem:[%s445 + $0x171] sm:$0xff]
        %1186 = vrot.lane.b32.xlu0 %v1122, 16
        %v1187 = vpop.permute.xlu0 %1186
        %1188 = vrot.lane.b32.xlu0 %v1123, 16
        %v1189 = vpop.permute.xlu0 %1188
        %1190 = vrot.lane.b32.xlu0 %v1124, 16
        %v1191 = vpop.permute.xlu0 %1190
        %1192 = vrot.lane.b32.xlu0 %v1125, 16
        %v1193 = vpop.permute.xlu0 %1192
        %1194 = vrot.lane.b32.xlu0 %v1126, 16
        %v1195 = vpop.permute.xlu0 %1194
        %1196 = vrot.lane.b32.xlu0 %v1127, 16
        %v1197 = vpop.permute.xlu0 %1196
        %1198 = vrot.lane.b32.xlu0 %v1128, 16
        %v1199 = vpop.permute.xlu0 %1198
        %1200 = vrot.lane.b32.xlu0 %v1129, 16
        %v1201 = vpop.permute.xlu0 %1200
        %1202 = vrot.lane.b32.xlu0 %v1130, 16
        %v1203 = vpop.permute.xlu0 %1202
        %1204 = vrot.lane.b32.xlu0 %v1131, 16
        %v1205 = vpop.permute.xlu0 %1204
        %1206 = vrot.lane.b32.xlu0 %v1132, 16
        %v1207 = vpop.permute.xlu0 %1206
        %1208 = vrot.lane.b32.xlu0 %v1133, 16
        %v1209 = vpop.permute.xlu0 %1208
        %1210 = vrot.lane.b32.xlu0 %v1134, 16
        %v1211 = vpop.permute.xlu0 %1210
        %1212 = vrot.lane.b32.xlu0 %v1135, 16
        %v1213 = vpop.permute.xlu0 %1212
        %1214 = vrot.lane.b32.xlu0 %v1136, 16
        %v1215 = vpop.permute.xlu0 %1214
        %1216 = vrot.lane.b32.xlu0 %v1137, 16
        %v1217 = vpop.permute.xlu0 %1216
        %1218 = vrot.lane.b32.xlu0 %v1138, 16
        %v1219 = vpop.permute.xlu0 %1218
        %1220 = vrot.lane.b32.xlu0 %v1139, 16
        %v1221 = vpop.permute.xlu0 %1220
        %1222 = vrot.lane.b32.xlu0 %v1140, 16
        %v1223 = vpop.permute.xlu0 %1222
        %1224 = vrot.lane.b32.xlu0 %v1141, 16
        %v1225 = vpop.permute.xlu0 %1224
        %1226 = vrot.lane.b32.xlu0 %v1142, 16
        %v1227 = vpop.permute.xlu0 %1226
        %1228 = vrot.lane.b32.xlu0 %v1143, 16
        %v1229 = vpop.permute.xlu0 %1228
        %1230 = vrot.lane.b32.xlu0 %v1144, 16
        %v1231 = vpop.permute.xlu0 %1230
        %1232 = vrot.lane.b32.xlu0 %v1145, 16
        %v1233 = vpop.permute.xlu0 %1232
        %1234 = vrot.lane.b32.xlu0 %v1146, 16
        %v1235 = vpop.permute.xlu0 %1234
        %1236 = vrot.lane.b32.xlu0 %v1147, 16
        %v1237 = vpop.permute.xlu0 %1236
        %1238 = vrot.lane.b32.xlu0 %v1148, 16
        %v1239 = vpop.permute.xlu0 %1238
        %1240 = vrot.lane.b32.xlu0 %v1149, 16
        %v1241 = vpop.permute.xlu0 %1240
        %1242 = vrot.lane.b32.xlu0 %v1150, 16
        %v1243 = vpop.permute.xlu0 %1242
        %1244 = vrot.lane.b32.xlu0 %v1151, 16
        %v1245 = vpop.permute.xlu0 %1244
        %1246 = vrot.lane.b32.xlu0 %v1152, 16
        %v1247 = vpop.permute.xlu0 %1246
        %1248 = vrot.lane.b32.xlu0 %v1153, 16
        %v1249 = vpop.permute.xlu0 %1248
        %vm1282 = vcmask 162944
        %1283 = vst.msk [vmem:[#allocation3] sm:$0xff] %vm1282, %v1187
        %1284 = vst.msk [vmem:[#allocation3 + $0x10] sm:$0xff] %vm1282, %v1189
        %1285 = vst.msk [vmem:[#allocation3 + $0x20] sm:$0xff] %vm1282, %v1191
        %1286 = vst.msk [vmem:[#allocation3 + $0x30] sm:$0xff] %vm1282, %v1193
        %1287 = vst.msk [vmem:[#allocation3 + $0x40] sm:$0xff] %vm1282, %v1195
        %1288 = vst.msk [vmem:[#allocation3 + $0x50] sm:$0xff] %vm1282, %v1197
        %1289 = vst.msk [vmem:[#allocation3 + $0x60] sm:$0xff] %vm1282, %v1199
        %1290 = vst.msk [vmem:[#allocation3 + $0x70] sm:$0xff] %vm1282, %v1201
        %1291 = vst.msk [vmem:[#allocation3 + $0x80] sm:$0xff] %vm1282, %v1203
        %1292 = vst.msk [vmem:[#allocation3 + $0x90] sm:$0xff] %vm1282, %v1205
        %1293 = vst.msk [vmem:[#allocation3 + $0xa0] sm:$0xff] %vm1282, %v1207
        %1294 = vst.msk [vmem:[#allocation3 + $0xb0] sm:$0xff] %vm1282, %v1209
        %1295 = vst.msk [vmem:[#allocation3 + $0xc0] sm:$0xff] %vm1282, %v1211
        %1296 = vst.msk [vmem:[#allocation3 + $0xd0] sm:$0xff] %vm1282, %v1213
        %1297 = vst.msk [vmem:[#allocation3 + $0xe0] sm:$0xff] %vm1282, %v1215
        %1298 = vst.msk [vmem:[#allocation3 + $0xf0] sm:$0xff] %vm1282, %v1217
        %1299 = vst.msk [vmem:[#allocation3 + $0x100] sm:$0xff] %vm1282, %v1219
        %1300 = vst.msk [vmem:[#allocation3 + $0x110] sm:$0xff] %vm1282, %v1221
        %1301 = vst.msk [vmem:[#allocation3 + $0x120] sm:$0xff] %vm1282, %v1223
        %1302 = vst.msk [vmem:[#allocation3 + $0x130] sm:$0xff] %vm1282, %v1225
        %1303 = vst.msk [vmem:[#allocation3 + $0x140] sm:$0xff] %vm1282, %v1227
        %1304 = vst.msk [vmem:[#allocation3 + $0x150] sm:$0xff] %vm1282, %v1229
        %1305 = vst.msk [vmem:[#allocation3 + $0x160] sm:$0xff] %vm1282, %v1231
        %1306 = vst.msk [vmem:[#allocation3 + $0x170] sm:$0xff] %vm1282, %v1233
        %1307 = vst.msk [vmem:[#allocation3 + $0x180] sm:$0xff] %vm1282, %v1235
        %1308 = vst.msk [vmem:[#allocation3 + $0x190] sm:$0xff] %vm1282, %v1237
        %1309 = vst.msk [vmem:[#allocation3 + $0x1a0] sm:$0xff] %vm1282, %v1239
        %1310 = vst.msk [vmem:[#allocation3 + $0x1b0] sm:$0xff] %vm1282, %v1241
        %1311 = vst.msk [vmem:[#allocation3 + $0x1c0] sm:$0xff] %vm1282, %v1243
        %1312 = vst.msk [vmem:[#allocation3 + $0x1d0] sm:$0xff] %vm1282, %v1245
        %1313 = vst.msk [vmem:[#allocation3 + $0x1e0] sm:$0xff] %vm1282, %v1247
        %1314 = vst.msk [vmem:[#allocation3 + $0x1f0] sm:$0xff] %vm1282, %v1249
        %v1315 = vld [vmem:[%s445 + $0x2] sm:$0xff]
        %v1316 = vld [vmem:[%s445 + $0xa] sm:$0xff]
        %v1317 = vld [vmem:[%s445 + $0x1a] sm:$0xff]
        %v1318 = vld [vmem:[%s445 + $0x22] sm:$0xff]
        %v1319 = vld [vmem:[%s445 + $0x32] sm:$0xff]
        %v1320 = vld [vmem:[%s445 + $0x3a] sm:$0xff]
        %v1321 = vld [vmem:[%s445 + $0x4a] sm:$0xff]
        %v1322 = vld [vmem:[%s445 + $0x52] sm:$0xff]
        %v1323 = vld [vmem:[%s445 + $0x62] sm:$0xff]
        %v1324 = vld [vmem:[%s445 + $0x6a] sm:$0xff]
        %v1325 = vld [vmem:[%s445 + $0x7a] sm:$0xff]
        %v1326 = vld [vmem:[%s445 + $0x82] sm:$0xff]
        %v1327 = vld [vmem:[%s445 + $0x92] sm:$0xff]
        %v1328 = vld [vmem:[%s445 + $0x9a] sm:$0xff]
        %v1329 = vld [vmem:[%s445 + $0xaa] sm:$0xff]
        %v1330 = vld [vmem:[%s445 + $0xb2] sm:$0xff]
        %v1331 = vld [vmem:[%s445 + $0xc2] sm:$0xff]
        %v1332 = vld [vmem:[%s445 + $0xca] sm:$0xff]
        %v1333 = vld [vmem:[%s445 + $0xda] sm:$0xff]
        %v1334 = vld [vmem:[%s445 + $0xe2] sm:$0xff]
        %v1335 = vld [vmem:[%s445 + $0xf2] sm:$0xff]
        %v1336 = vld [vmem:[%s445 + $0xfa] sm:$0xff]
        %v1337 = vld [vmem:[%s445 + $0x10a] sm:$0xff]
        %v1338 = vld [vmem:[%s445 + $0x112] sm:$0xff]
        %v1339 = vld [vmem:[%s445 + $0x122] sm:$0xff]
        %v1340 = vld [vmem:[%s445 + $0x12a] sm:$0xff]
        %v1341 = vld [vmem:[%s445 + $0x13a] sm:$0xff]
        %v1342 = vld [vmem:[%s445 + $0x142] sm:$0xff]
        %v1343 = vld [vmem:[%s445 + $0x152] sm:$0xff]
        %v1344 = vld [vmem:[%s445 + $0x15a] sm:$0xff]
        %v1345 = vld [vmem:[%s445 + $0x16a] sm:$0xff]
        %v1346 = vld [vmem:[%s445 + $0x172] sm:$0xff]
        %1379 = vrot.lane.b32.xlu0 %v1315, 20
        %v1380 = vpop.permute.xlu0 %1379
        %1381 = vrot.lane.b32.xlu0 %v1316, 20
        %v1382 = vpop.permute.xlu0 %1381
        %1383 = vrot.lane.b32.xlu0 %v1317, 20
        %v1384 = vpop.permute.xlu0 %1383
        %1385 = vrot.lane.b32.xlu0 %v1318, 20
        %v1386 = vpop.permute.xlu0 %1385
        %1387 = vrot.lane.b32.xlu0 %v1319, 20
        %v1388 = vpop.permute.xlu0 %1387
        %1389 = vrot.lane.b32.xlu0 %v1320, 20
        %v1390 = vpop.permute.xlu0 %1389
        %1391 = vrot.lane.b32.xlu0 %v1321, 20
        %v1392 = vpop.permute.xlu0 %1391
        %1393 = vrot.lane.b32.xlu0 %v1322, 20
        %v1394 = vpop.permute.xlu0 %1393
        %1395 = vrot.lane.b32.xlu0 %v1323, 20
        %v1396 = vpop.permute.xlu0 %1395
        %1397 = vrot.lane.b32.xlu0 %v1324, 20
        %v1398 = vpop.permute.xlu0 %1397
        %1399 = vrot.lane.b32.xlu0 %v1325, 20
        %v1400 = vpop.permute.xlu0 %1399
        %1401 = vrot.lane.b32.xlu0 %v1326, 20
        %v1402 = vpop.permute.xlu0 %1401
        %1403 = vrot.lane.b32.xlu0 %v1327, 20
        %v1404 = vpop.permute.xlu0 %1403
        %1405 = vrot.lane.b32.xlu0 %v1328, 20
        %v1406 = vpop.permute.xlu0 %1405
        %1407 = vrot.lane.b32.xlu0 %v1329, 20
        %v1408 = vpop.permute.xlu0 %1407
        %1409 = vrot.lane.b32.xlu0 %v1330, 20
        %v1410 = vpop.permute.xlu0 %1409
        %1411 = vrot.lane.b32.xlu0 %v1331, 20
        %v1412 = vpop.permute.xlu0 %1411
        %1413 = vrot.lane.b32.xlu0 %v1332, 20
        %v1414 = vpop.permute.xlu0 %1413
        %1415 = vrot.lane.b32.xlu0 %v1333, 20
        %v1416 = vpop.permute.xlu0 %1415
        %1417 = vrot.lane.b32.xlu0 %v1334, 20
        %v1418 = vpop.permute.xlu0 %1417
        %1419 = vrot.lane.b32.xlu0 %v1335, 20
        %v1420 = vpop.permute.xlu0 %1419
        %1421 = vrot.lane.b32.xlu0 %v1336, 20
        %v1422 = vpop.permute.xlu0 %1421
        %1423 = vrot.lane.b32.xlu0 %v1337, 20
        %v1424 = vpop.permute.xlu0 %1423
        %1425 = vrot.lane.b32.xlu0 %v1338, 20
        %v1426 = vpop.permute.xlu0 %1425
        %1427 = vrot.lane.b32.xlu0 %v1339, 20
        %v1428 = vpop.permute.xlu0 %1427
        %1429 = vrot.lane.b32.xlu0 %v1340, 20
        %v1430 = vpop.permute.xlu0 %1429
        %1431 = vrot.lane.b32.xlu0 %v1341, 20
        %v1432 = vpop.permute.xlu0 %1431
        %1433 = vrot.lane.b32.xlu0 %v1342, 20
        %v1434 = vpop.permute.xlu0 %1433
        %1435 = vrot.lane.b32.xlu0 %v1343, 20
        %v1436 = vpop.permute.xlu0 %1435
        %1437 = vrot.lane.b32.xlu0 %v1344, 20
        %v1438 = vpop.permute.xlu0 %1437
        %1439 = vrot.lane.b32.xlu0 %v1345, 20
        %v1440 = vpop.permute.xlu0 %1439
        %1441 = vrot.lane.b32.xlu0 %v1346, 20
        %v1442 = vpop.permute.xlu0 %1441
        %vm1475 = vcmask 195744
        %1476 = vst.msk [vmem:[#allocation3] sm:$0xff] %vm1475, %v1380
        %1477 = vst.msk [vmem:[#allocation3 + $0x10] sm:$0xff] %vm1475, %v1382
        %1478 = vst.msk [vmem:[#allocation3 + $0x20] sm:$0xff] %vm1475, %v1384
        %1479 = vst.msk [vmem:[#allocation3 + $0x30] sm:$0xff] %vm1475, %v1386
        %1480 = vst.msk [vmem:[#allocation3 + $0x40] sm:$0xff] %vm1475, %v1388
        %1481 = vst.msk [vmem:[#allocation3 + $0x50] sm:$0xff] %vm1475, %v1390
        %1482 = vst.msk [vmem:[#allocation3 + $0x60] sm:$0xff] %vm1475, %v1392
        %1483 = vst.msk [vmem:[#allocation3 + $0x70] sm:$0xff] %vm1475, %v1394
        %1484 = vst.msk [vmem:[#allocation3 + $0x80] sm:$0xff] %vm1475, %v1396
        %1485 = vst.msk [vmem:[#allocation3 + $0x90] sm:$0xff] %vm1475, %v1398
        %1486 = vst.msk [vmem:[#allocation3 + $0xa0] sm:$0xff] %vm1475, %v1400
        %1487 = vst.msk [vmem:[#allocation3 + $0xb0] sm:$0xff] %vm1475, %v1402
        %1488 = vst.msk [vmem:[#allocation3 + $0xc0] sm:$0xff] %vm1475, %v1404
        %1489 = vst.msk [vmem:[#allocation3 + $0xd0] sm:$0xff] %vm1475, %v1406
        %1490 = vst.msk [vmem:[#allocation3 + $0xe0] sm:$0xff] %vm1475, %v1408
        %1491 = vst.msk [vmem:[#allocation3 + $0xf0] sm:$0xff] %vm1475, %v1410
        %1492 = vst.msk [vmem:[#allocation3 + $0x100] sm:$0xff] %vm1475, %v1412
        %1493 = vst.msk [vmem:[#allocation3 + $0x110] sm:$0xff] %vm1475, %v1414
        %1494 = vst.msk [vmem:[#allocation3 + $0x120] sm:$0xff] %vm1475, %v1416
        %1495 = vst.msk [vmem:[#allocation3 + $0x130] sm:$0xff] %vm1475, %v1418
        %1496 = vst.msk [vmem:[#allocation3 + $0x140] sm:$0xff] %vm1475, %v1420
        %1497 = vst.msk [vmem:[#allocation3 + $0x150] sm:$0xff] %vm1475, %v1422
        %1498 = vst.msk [vmem:[#allocation3 + $0x160] sm:$0xff] %vm1475, %v1424
        %1499 = vst.msk [vmem:[#allocation3 + $0x170] sm:$0xff] %vm1475, %v1426
        %1500 = vst.msk [vmem:[#allocation3 + $0x180] sm:$0xff] %vm1475, %v1428
        %1501 = vst.msk [vmem:[#allocation3 + $0x190] sm:$0xff] %vm1475, %v1430
        %1502 = vst.msk [vmem:[#allocation3 + $0x1a0] sm:$0xff] %vm1475, %v1432
        %1503 = vst.msk [vmem:[#allocation3 + $0x1b0] sm:$0xff] %vm1475, %v1434
        %1504 = vst.msk [vmem:[#allocation3 + $0x1c0] sm:$0xff] %vm1475, %v1436
        %1505 = vst.msk [vmem:[#allocation3 + $0x1d0] sm:$0xff] %vm1475, %v1438
        %1506 = vst.msk [vmem:[#allocation3 + $0x1e0] sm:$0xff] %vm1475, %v1440
        %1507 = vst.msk [vmem:[#allocation3 + $0x1f0] sm:$0xff] %vm1475, %v1442
        %s1508 = scalar_lea.vmem [#allocation2], 48
        %v1509 = vld [vmem:[%s1508] sm:$0xff]
        %v1510 = vld [vmem:[%s1508 + $0x8] sm:$0xff]
        %v1511 = vld [vmem:[%s1508 + $0x18] sm:$0xff]
        %v1512 = vld [vmem:[%s1508 + $0x20] sm:$0xff]
        %v1513 = vld [vmem:[%s1508 + $0x30] sm:$0xff]
        %v1514 = vld [vmem:[%s1508 + $0x38] sm:$0xff]
        %v1515 = vld [vmem:[%s1508 + $0x48] sm:$0xff]
        %v1516 = vld [vmem:[%s1508 + $0x50] sm:$0xff]
        %v1517 = vld [vmem:[%s1508 + $0x60] sm:$0xff]
        %v1518 = vld [vmem:[%s1508 + $0x68] sm:$0xff]
        %v1519 = vld [vmem:[%s1508 + $0x78] sm:$0xff]
        %v1520 = vld [vmem:[%s1508 + $0x80] sm:$0xff]
        %v1521 = vld [vmem:[%s1508 + $0x90] sm:$0xff]
        %v1522 = vld [vmem:[%s1508 + $0x98] sm:$0xff]
        %v1523 = vld [vmem:[%s1508 + $0xa8] sm:$0xff]
        %v1524 = vld [vmem:[%s1508 + $0xb0] sm:$0xff]
        %v1525 = vld [vmem:[%s1508 + $0xc0] sm:$0xff]
        %v1526 = vld [vmem:[%s1508 + $0xc8] sm:$0xff]
        %v1527 = vld [vmem:[%s1508 + $0xd8] sm:$0xff]
        %v1528 = vld [vmem:[%s1508 + $0xe0] sm:$0xff]
        %v1529 = vld [vmem:[%s1508 + $0xf0] sm:$0xff]
        %v1530 = vld [vmem:[%s1508 + $0xf8] sm:$0xff]
        %v1531 = vld [vmem:[%s1508 + $0x108] sm:$0xff]
        %v1532 = vld [vmem:[%s1508 + $0x110] sm:$0xff]
        %v1533 = vld [vmem:[%s1508 + $0x120] sm:$0xff]
        %v1534 = vld [vmem:[%s1508 + $0x128] sm:$0xff]
        %v1535 = vld [vmem:[%s1508 + $0x138] sm:$0xff]
        %v1536 = vld [vmem:[%s1508 + $0x140] sm:$0xff]
        %v1537 = vld [vmem:[%s1508 + $0x150] sm:$0xff]
        %v1538 = vld [vmem:[%s1508 + $0x158] sm:$0xff]
        %v1539 = vld [vmem:[%s1508 + $0x168] sm:$0xff]
        %v1540 = vld [vmem:[%s1508 + $0x170] sm:$0xff]
        %1573 = vrot.lane.b32.xlu0 %v1509, 24
        %v1574 = vpop.permute.xlu0 %1573
        %1575 = vrot.lane.b32.xlu0 %v1510, 24
        %v1576 = vpop.permute.xlu0 %1575
        %1577 = vrot.lane.b32.xlu0 %v1511, 24
        %v1578 = vpop.permute.xlu0 %1577
        %1579 = vrot.lane.b32.xlu0 %v1512, 24
        %v1580 = vpop.permute.xlu0 %1579
        %1581 = vrot.lane.b32.xlu0 %v1513, 24
        %v1582 = vpop.permute.xlu0 %1581
        %1583 = vrot.lane.b32.xlu0 %v1514, 24
        %v1584 = vpop.permute.xlu0 %1583
        %1585 = vrot.lane.b32.xlu0 %v1515, 24
        %v1586 = vpop.permute.xlu0 %1585
        %1587 = vrot.lane.b32.xlu0 %v1516, 24
        %v1588 = vpop.permute.xlu0 %1587
        %1589 = vrot.lane.b32.xlu0 %v1517, 24
        %v1590 = vpop.permute.xlu0 %1589
        %1591 = vrot.lane.b32.xlu0 %v1518, 24
        %v1592 = vpop.permute.xlu0 %1591
        %1593 = vrot.lane.b32.xlu0 %v1519, 24
        %v1594 = vpop.permute.xlu0 %1593
        %1595 = vrot.lane.b32.xlu0 %v1520, 24
        %v1596 = vpop.permute.xlu0 %1595
        %1597 = vrot.lane.b32.xlu0 %v1521, 24
        %v1598 = vpop.permute.xlu0 %1597
        %1599 = vrot.lane.b32.xlu0 %v1522, 24
        %v1600 = vpop.permute.xlu0 %1599
        %1601 = vrot.lane.b32.xlu0 %v1523, 24
        %v1602 = vpop.permute.xlu0 %1601
        %1603 = vrot.lane.b32.xlu0 %v1524, 24
        %v1604 = vpop.permute.xlu0 %1603
        %1605 = vrot.lane.b32.xlu0 %v1525, 24
        %v1606 = vpop.permute.xlu0 %1605
        %1607 = vrot.lane.b32.xlu0 %v1526, 24
        %v1608 = vpop.permute.xlu0 %1607
        %1609 = vrot.lane.b32.xlu0 %v1527, 24
        %v1610 = vpop.permute.xlu0 %1609
        %1611 = vrot.lane.b32.xlu0 %v1528, 24
        %v1612 = vpop.permute.xlu0 %1611
        %1613 = vrot.lane.b32.xlu0 %v1529, 24
        %v1614 = vpop.permute.xlu0 %1613
        %1615 = vrot.lane.b32.xlu0 %v1530, 24
        %v1616 = vpop.permute.xlu0 %1615
        %1617 = vrot.lane.b32.xlu0 %v1531, 24
        %v1618 = vpop.permute.xlu0 %1617
        %1619 = vrot.lane.b32.xlu0 %v1532, 24
        %v1620 = vpop.permute.xlu0 %1619
        %1621 = vrot.lane.b32.xlu0 %v1533, 24
        %v1622 = vpop.permute.xlu0 %1621
        %1623 = vrot.lane.b32.xlu0 %v1534, 24
        %v1624 = vpop.permute.xlu0 %1623
        %1625 = vrot.lane.b32.xlu0 %v1535, 24
        %v1626 = vpop.permute.xlu0 %1625
        %1627 = vrot.lane.b32.xlu0 %v1536, 24
        %v1628 = vpop.permute.xlu0 %1627
        %1629 = vrot.lane.b32.xlu0 %v1537, 24
        %v1630 = vpop.permute.xlu0 %1629
        %1631 = vrot.lane.b32.xlu0 %v1538, 24
        %v1632 = vpop.permute.xlu0 %1631
        %1633 = vrot.lane.b32.xlu0 %v1539, 24
        %v1634 = vpop.permute.xlu0 %1633
        %1635 = vrot.lane.b32.xlu0 %v1540, 24
        %v1636 = vpop.permute.xlu0 %1635
        %vm1669 = vcmask 228544
        %1670 = vst.msk [vmem:[#allocation3] sm:$0xff] %vm1669, %v1574
        %1671 = vst.msk [vmem:[#allocation3 + $0x10] sm:$0xff] %vm1669, %v1576
        %1672 = vst.msk [vmem:[#allocation3 + $0x20] sm:$0xff] %vm1669, %v1578
        %1673 = vst.msk [vmem:[#allocation3 + $0x30] sm:$0xff] %vm1669, %v1580
        %1674 = vst.msk [vmem:[#allocation3 + $0x40] sm:$0xff] %vm1669, %v1582
        %1675 = vst.msk [vmem:[#allocation3 + $0x50] sm:$0xff] %vm1669, %v1584
        %1676 = vst.msk [vmem:[#allocation3 + $0x60] sm:$0xff] %vm1669, %v1586
        %1677 = vst.msk [vmem:[#allocation3 + $0x70] sm:$0xff] %vm1669, %v1588
        %1678 = vst.msk [vmem:[#allocation3 + $0x80] sm:$0xff] %vm1669, %v1590
        %1679 = vst.msk [vmem:[#allocation3 + $0x90] sm:$0xff] %vm1669, %v1592
        %1680 = vst.msk [vmem:[#allocation3 + $0xa0] sm:$0xff] %vm1669, %v1594
        %1681 = vst.msk [vmem:[#allocation3 + $0xb0] sm:$0xff] %vm1669, %v1596
        %1682 = vst.msk [vmem:[#allocation3 + $0xc0] sm:$0xff] %vm1669, %v1598
        %1683 = vst.msk [vmem:[#allocation3 + $0xd0] sm:$0xff] %vm1669, %v1600
        %1684 = vst.msk [vmem:[#allocation3 + $0xe0] sm:$0xff] %vm1669, %v1602
        %1685 = vst.msk [vmem:[#allocation3 + $0xf0] sm:$0xff] %vm1669, %v1604
        %1686 = vst.msk [vmem:[#allocation3 + $0x100] sm:$0xff] %vm1669, %v1606
        %1687 = vst.msk [vmem:[#allocation3 + $0x110] sm:$0xff] %vm1669, %v1608
        %1688 = vst.msk [vmem:[#allocation3 + $0x120] sm:$0xff] %vm1669, %v1610
        %1689 = vst.msk [vmem:[#allocation3 + $0x130] sm:$0xff] %vm1669, %v1612
        %1690 = vst.msk [vmem:[#allocation3 + $0x140] sm:$0xff] %vm1669, %v1614
        %1691 = vst.msk [vmem:[#allocation3 + $0x150] sm:$0xff] %vm1669, %v1616
        %1692 = vst.msk [vmem:[#allocation3 + $0x160] sm:$0xff] %vm1669, %v1618
        %1693 = vst.msk [vmem:[#allocation3 + $0x170] sm:$0xff] %vm1669, %v1620
        %1694 = vst.msk [vmem:[#allocation3 + $0x180] sm:$0xff] %vm1669, %v1622
        %1695 = vst.msk [vmem:[#allocation3 + $0x190] sm:$0xff] %vm1669, %v1624
        %1696 = vst.msk [vmem:[#allocation3 + $0x1a0] sm:$0xff] %vm1669, %v1626
        %1697 = vst.msk [vmem:[#allocation3 + $0x1b0] sm:$0xff] %vm1669, %v1628
        %1698 = vst.msk [vmem:[#allocation3 + $0x1c0] sm:$0xff] %vm1669, %v1630
        %1699 = vst.msk [vmem:[#allocation3 + $0x1d0] sm:$0xff] %vm1669, %v1632
        %1700 = vst.msk [vmem:[#allocation3 + $0x1e0] sm:$0xff] %vm1669, %v1634
        %1701 = vst.msk [vmem:[#allocation3 + $0x1f0] sm:$0xff] %vm1669, %v1636
        %v1702 = vld [vmem:[%s1508 + $0x1] sm:$0xff]
        %v1703 = vld [vmem:[%s1508 + $0x9] sm:$0xff]
        %v1704 = vld [vmem:[%s1508 + $0x19] sm:$0xff]
        %v1705 = vld [vmem:[%s1508 + $0x21] sm:$0xff]
        %v1706 = vld [vmem:[%s1508 + $0x31] sm:$0xff]
        %v1707 = vld [vmem:[%s1508 + $0x39] sm:$0xff]
        %v1708 = vld [vmem:[%s1508 + $0x49] sm:$0xff]
        %v1709 = vld [vmem:[%s1508 + $0x51] sm:$0xff]
        %v1710 = vld [vmem:[%s1508 + $0x61] sm:$0xff]
        %v1711 = vld [vmem:[%s1508 + $0x69] sm:$0xff]
        %v1712 = vld [vmem:[%s1508 + $0x79] sm:$0xff]
        %v1713 = vld [vmem:[%s1508 + $0x81] sm:$0xff]
        %v1714 = vld [vmem:[%s1508 + $0x91] sm:$0xff]
        %v1715 = vld [vmem:[%s1508 + $0x99] sm:$0xff]
        %v1716 = vld [vmem:[%s1508 + $0xa9] sm:$0xff]
        %v1717 = vld [vmem:[%s1508 + $0xb1] sm:$0xff]
        %v1718 = vld [vmem:[%s1508 + $0xc1] sm:$0xff]
        %v1719 = vld [vmem:[%s1508 + $0xc9] sm:$0xff]
        %v1720 = vld [vmem:[%s1508 + $0xd9] sm:$0xff]
        %v1721 = vld [vmem:[%s1508 + $0xe1] sm:$0xff]
        %v1722 = vld [vmem:[%s1508 + $0xf1] sm:$0xff]
        %v1723 = vld [vmem:[%s1508 + $0xf9] sm:$0xff]
        %v1724 = vld [vmem:[%s1508 + $0x109] sm:$0xff]
        %v1725 = vld [vmem:[%s1508 + $0x111] sm:$0xff]
        %v1726 = vld [vmem:[%s1508 + $0x121] sm:$0xff]
        %v1727 = vld [vmem:[%s1508 + $0x129] sm:$0xff]
        %v1728 = vld [vmem:[%s1508 + $0x139] sm:$0xff]
        %v1729 = vld [vmem:[%s1508 + $0x141] sm:$0xff]
        %v1730 = vld [vmem:[%s1508 + $0x151] sm:$0xff]
        %v1731 = vld [vmem:[%s1508 + $0x159] sm:$0xff]
        %v1732 = vld [vmem:[%s1508 + $0x169] sm:$0xff]
        %v1733 = vld [vmem:[%s1508 + $0x171] sm:$0xff]
        %1766 = vrot.lane.b32.xlu0 %v1702, 28
        %v1767 = vpop.permute.xlu0 %1766
        %1768 = vrot.lane.b32.xlu0 %v1703, 28
        %v1769 = vpop.permute.xlu0 %1768
        %1770 = vrot.lane.b32.xlu0 %v1704, 28
        %v1771 = vpop.permute.xlu0 %1770
        %1772 = vrot.lane.b32.xlu0 %v1705, 28
        %v1773 = vpop.permute.xlu0 %1772
        %1774 = vrot.lane.b32.xlu0 %v1706, 28
        %v1775 = vpop.permute.xlu0 %1774
        %1776 = vrot.lane.b32.xlu0 %v1707, 28
        %v1777 = vpop.permute.xlu0 %1776
        %1778 = vrot.lane.b32.xlu0 %v1708, 28
        %v1779 = vpop.permute.xlu0 %1778
        %1780 = vrot.lane.b32.xlu0 %v1709, 28
        %v1781 = vpop.permute.xlu0 %1780
        %1782 = vrot.lane.b32.xlu0 %v1710, 28
        %v1783 = vpop.permute.xlu0 %1782
        %1784 = vrot.lane.b32.xlu0 %v1711, 28
        %v1785 = vpop.permute.xlu0 %1784
        %1786 = vrot.lane.b32.xlu0 %v1712, 28
        %v1787 = vpop.permute.xlu0 %1786
        %1788 = vrot.lane.b32.xlu0 %v1713, 28
        %v1789 = vpop.permute.xlu0 %1788
        %1790 = vrot.lane.b32.xlu0 %v1714, 28
        %v1791 = vpop.permute.xlu0 %1790
        %1792 = vrot.lane.b32.xlu0 %v1715, 28
        %v1793 = vpop.permute.xlu0 %1792
        %1794 = vrot.lane.b32.xlu0 %v1716, 28
        %v1795 = vpop.permute.xlu0 %1794
        %1796 = vrot.lane.b32.xlu0 %v1717, 28
        %v1797 = vpop.permute.xlu0 %1796
        %1798 = vrot.lane.b32.xlu0 %v1718, 28
        %v1799 = vpop.permute.xlu0 %1798
        %1800 = vrot.lane.b32.xlu0 %v1719, 28
        %v1801 = vpop.permute.xlu0 %1800
        %1802 = vrot.lane.b32.xlu0 %v1720, 28
        %v1803 = vpop.permute.xlu0 %1802
        %1804 = vrot.lane.b32.xlu0 %v1721, 28
        %v1805 = vpop.permute.xlu0 %1804
        %1806 = vrot.lane.b32.xlu0 %v1722, 28
        %v1807 = vpop.permute.xlu0 %1806
        %1808 = vrot.lane.b32.xlu0 %v1723, 28
        %v1809 = vpop.permute.xlu0 %1808
        %1810 = vrot.lane.b32.xlu0 %v1724, 28
        %v1811 = vpop.permute.xlu0 %1810
        %1812 = vrot.lane.b32.xlu0 %v1725, 28
        %v1813 = vpop.permute.xlu0 %1812
        %1814 = vrot.lane.b32.xlu0 %v1726, 28
        %v1815 = vpop.permute.xlu0 %1814
        %1816 = vrot.lane.b32.xlu0 %v1727, 28
        %v1817 = vpop.permute.xlu0 %1816
        %1818 = vrot.lane.b32.xlu0 %v1728, 28
        %v1819 = vpop.permute.xlu0 %1818
        %1820 = vrot.lane.b32.xlu0 %v1729, 28
        %v1821 = vpop.permute.xlu0 %1820
        %1822 = vrot.lane.b32.xlu0 %v1730, 28
        %v1823 = vpop.permute.xlu0 %1822
        %1824 = vrot.lane.b32.xlu0 %v1731, 28
        %v1825 = vpop.permute.xlu0 %1824
        %1826 = vrot.lane.b32.xlu0 %v1732, 28
        %v1827 = vpop.permute.xlu0 %1826
        %1828 = vrot.lane.b32.xlu0 %v1733, 28
        %v1829 = vpop.permute.xlu0 %1828
        %vm1862 = vcmask 261344
        %1863 = vst.msk [vmem:[#allocation3] sm:$0xff] %vm1862, %v1767
        %1864 = vst.msk [vmem:[#allocation3 + $0x10] sm:$0xff] %vm1862, %v1769
        %1865 = vst.msk [vmem:[#allocation3 + $0x20] sm:$0xff] %vm1862, %v1771
        %1866 = vst.msk [vmem:[#allocation3 + $0x30] sm:$0xff] %vm1862, %v1773
        %1867 = vst.msk [vmem:[#allocation3 + $0x40] sm:$0xff] %vm1862, %v1775
        %1868 = vst.msk [vmem:[#allocation3 + $0x50] sm:$0xff] %vm1862, %v1777
        %1869 = vst.msk [vmem:[#allocation3 + $0x60] sm:$0xff] %vm1862, %v1779
        %1870 = vst.msk [vmem:[#allocation3 + $0x70] sm:$0xff] %vm1862, %v1781
        %1871 = vst.msk [vmem:[#allocation3 + $0x80] sm:$0xff] %vm1862, %v1783
        %1872 = vst.msk [vmem:[#allocation3 + $0x90] sm:$0xff] %vm1862, %v1785
        %1873 = vst.msk [vmem:[#allocation3 + $0xa0] sm:$0xff] %vm1862, %v1787
        %1874 = vst.msk [vmem:[#allocation3 + $0xb0] sm:$0xff] %vm1862, %v1789
        %1875 = vst.msk [vmem:[#allocation3 + $0xc0] sm:$0xff] %vm1862, %v1791
        %1876 = vst.msk [vmem:[#allocation3 + $0xd0] sm:$0xff] %vm1862, %v1793
        %1877 = vst.msk [vmem:[#allocation3 + $0xe0] sm:$0xff] %vm1862, %v1795
        %1878 = vst.msk [vmem:[#allocation3 + $0xf0] sm:$0xff] %vm1862, %v1797
        %1879 = vst.msk [vmem:[#allocation3 + $0x100] sm:$0xff] %vm1862, %v1799
        %1880 = vst.msk [vmem:[#allocation3 + $0x110] sm:$0xff] %vm1862, %v1801
        %1881 = vst.msk [vmem:[#allocation3 + $0x120] sm:$0xff] %vm1862, %v1803
        %1882 = vst.msk [vmem:[#allocation3 + $0x130] sm:$0xff] %vm1862, %v1805
        %1883 = vst.msk [vmem:[#allocation3 + $0x140] sm:$0xff] %vm1862, %v1807
        %1884 = vst.msk [vmem:[#allocation3 + $0x150] sm:$0xff] %vm1862, %v1809
        %1885 = vst.msk [vmem:[#allocation3 + $0x160] sm:$0xff] %vm1862, %v1811
        %1886 = vst.msk [vmem:[#allocation3 + $0x170] sm:$0xff] %vm1862, %v1813
        %1887 = vst.msk [vmem:[#allocation3 + $0x180] sm:$0xff] %vm1862, %v1815
        %1888 = vst.msk [vmem:[#allocation3 + $0x190] sm:$0xff] %vm1862, %v1817
        %1889 = vst.msk [vmem:[#allocation3 + $0x1a0] sm:$0xff] %vm1862, %v1819
        %1890 = vst.msk [vmem:[#allocation3 + $0x1b0] sm:$0xff] %vm1862, %v1821
        %1891 = vst.msk [vmem:[#allocation3 + $0x1c0] sm:$0xff] %vm1862, %v1823
        %1892 = vst.msk [vmem:[#allocation3 + $0x1d0] sm:$0xff] %vm1862, %v1825
        %1893 = vst.msk [vmem:[#allocation3 + $0x1e0] sm:$0xff] %vm1862, %v1827
        %1894 = vst.msk [vmem:[#allocation3 + $0x1f0] sm:$0xff] %vm1862, %v1829
        %v1895 = vld [vmem:[%s1508 + $0x2] sm:$0xff]
        %v1896 = vld [vmem:[%s1508 + $0xa] sm:$0xff]
        %v1897 = vld [vmem:[%s1508 + $0x1a] sm:$0xff]
        %v1898 = vld [vmem:[%s1508 + $0x22] sm:$0xff]
        %v1899 = vld [vmem:[%s1508 + $0x32] sm:$0xff]
        %v1900 = vld [vmem:[%s1508 + $0x3a] sm:$0xff]
        %v1901 = vld [vmem:[%s1508 + $0x4a] sm:$0xff]
        %v1902 = vld [vmem:[%s1508 + $0x52] sm:$0xff]
        %v1903 = vld [vmem:[%s1508 + $0x62] sm:$0xff]
        %v1904 = vld [vmem:[%s1508 + $0x6a] sm:$0xff]
        %v1905 = vld [vmem:[%s1508 + $0x7a] sm:$0xff]
        %v1906 = vld [vmem:[%s1508 + $0x82] sm:$0xff]
        %v1907 = vld [vmem:[%s1508 + $0x92] sm:$0xff]
        %v1908 = vld [vmem:[%s1508 + $0x9a] sm:$0xff]
        %v1909 = vld [vmem:[%s1508 + $0xaa] sm:$0xff]
        %v1910 = vld [vmem:[%s1508 + $0xb2] sm:$0xff]
        %v1911 = vld [vmem:[%s1508 + $0xc2] sm:$0xff]
        %v1912 = vld [vmem:[%s1508 + $0xca] sm:$0xff]
        %v1913 = vld [vmem:[%s1508 + $0xda] sm:$0xff]
        %v1914 = vld [vmem:[%s1508 + $0xe2] sm:$0xff]
        %v1915 = vld [vmem:[%s1508 + $0xf2] sm:$0xff]
        %v1916 = vld [vmem:[%s1508 + $0xfa] sm:$0xff]
        %v1917 = vld [vmem:[%s1508 + $0x10a] sm:$0xff]
        %v1918 = vld [vmem:[%s1508 + $0x112] sm:$0xff]
        %v1919 = vld [vmem:[%s1508 + $0x122] sm:$0xff]
        %v1920 = vld [vmem:[%s1508 + $0x12a] sm:$0xff]
        %v1921 = vld [vmem:[%s1508 + $0x13a] sm:$0xff]
        %v1922 = vld [vmem:[%s1508 + $0x142] sm:$0xff]
        %v1923 = vld [vmem:[%s1508 + $0x152] sm:$0xff]
        %v1924 = vld [vmem:[%s1508 + $0x15a] sm:$0xff]
        %v1925 = vld [vmem:[%s1508 + $0x16a] sm:$0xff]
        %v1926 = vld [vmem:[%s1508 + $0x172] sm:$0xff]
        %1959 = vrot.lane.b32.xlu0 %v1895, 32
        %v1960 = vpop.permute.xlu0 %1959
        %1961 = vrot.lane.b32.xlu0 %v1896, 32
        %v1962 = vpop.permute.xlu0 %1961
        %1963 = vrot.lane.b32.xlu0 %v1897, 32
        %v1964 = vpop.permute.xlu0 %1963
        %1965 = vrot.lane.b32.xlu0 %v1898, 32
        %v1966 = vpop.permute.xlu0 %1965
        %1967 = vrot.lane.b32.xlu0 %v1899, 32
        %v1968 = vpop.permute.xlu0 %1967
        %1969 = vrot.lane.b32.xlu0 %v1900, 32
        %v1970 = vpop.permute.xlu0 %1969
        %1971 = vrot.lane.b32.xlu0 %v1901, 32
        %v1972 = vpop.permute.xlu0 %1971
        %1973 = vrot.lane.b32.xlu0 %v1902, 32
        %v1974 = vpop.permute.xlu0 %1973
        %1975 = vrot.lane.b32.xlu0 %v1903, 32
        %v1976 = vpop.permute.xlu0 %1975
        %1977 = vrot.lane.b32.xlu0 %v1904, 32
        %v1978 = vpop.permute.xlu0 %1977
        %1979 = vrot.lane.b32.xlu0 %v1905, 32
        %v1980 = vpop.permute.xlu0 %1979
        %1981 = vrot.lane.b32.xlu0 %v1906, 32
        %v1982 = vpop.permute.xlu0 %1981
        %1983 = vrot.lane.b32.xlu0 %v1907, 32
        %v1984 = vpop.permute.xlu0 %1983
        %1985 = vrot.lane.b32.xlu0 %v1908, 32
        %v1986 = vpop.permute.xlu0 %1985
        %1987 = vrot.lane.b32.xlu0 %v1909, 32
        %v1988 = vpop.permute.xlu0 %1987
        %1989 = vrot.lane.b32.xlu0 %v1910, 32
        %v1990 = vpop.permute.xlu0 %1989
        %1991 = vrot.lane.b32.xlu0 %v1911, 32
        %v1992 = vpop.permute.xlu0 %1991
        %1993 = vrot.lane.b32.xlu0 %v1912, 32
        %v1994 = vpop.permute.xlu0 %1993
        %1995 = vrot.lane.b32.xlu0 %v1913, 32
        %v1996 = vpop.permute.xlu0 %1995
        %1997 = vrot.lane.b32.xlu0 %v1914, 32
        %v1998 = vpop.permute.xlu0 %1997
        %1999 = vrot.lane.b32.xlu0 %v1915, 32
        %v2000 = vpop.permute.xlu0 %1999
        %2001 = vrot.lane.b32.xlu0 %v1916, 32
        %v2002 = vpop.permute.xlu0 %2001
        %2003 = vrot.lane.b32.xlu0 %v1917, 32
        %v2004 = vpop.permute.xlu0 %2003
        %2005 = vrot.lane.b32.xlu0 %v1918, 32
        %v2006 = vpop.permute.xlu0 %2005
        %2007 = vrot.lane.b32.xlu0 %v1919, 32
        %v2008 = vpop.permute.xlu0 %2007
        %2009 = vrot.lane.b32.xlu0 %v1920, 32
        %v2010 = vpop.permute.xlu0 %2009
        %2011 = vrot.lane.b32.xlu0 %v1921, 32
        %v2012 = vpop.permute.xlu0 %2011
        %2013 = vrot.lane.b32.xlu0 %v1922, 32
        %v2014 = vpop.permute.xlu0 %2013
        %2015 = vrot.lane.b32.xlu0 %v1923, 32
        %v2016 = vpop.permute.xlu0 %2015
        %2017 = vrot.lane.b32.xlu0 %v1924, 32
        %v2018 = vpop.permute.xlu0 %2017
        %2019 = vrot.lane.b32.xlu0 %v1925, 32
        %v2020 = vpop.permute.xlu0 %2019
        %2021 = vrot.lane.b32.xlu0 %v1926, 32
        %v2022 = vpop.permute.xlu0 %2021
        %vm2055 = vcmask 294144
        %2056 = vst.msk [vmem:[#allocation3] sm:$0xff] %vm2055, %v1960
        %2057 = vst.msk [vmem:[#allocation3 + $0x10] sm:$0xff] %vm2055, %v1962
        %2058 = vst.msk [vmem:[#allocation3 + $0x20] sm:$0xff] %vm2055, %v1964
        %2059 = vst.msk [vmem:[#allocation3 + $0x30] sm:$0xff] %vm2055, %v1966
        %2060 = vst.msk [vmem:[#allocation3 + $0x40] sm:$0xff] %vm2055, %v1968
        %2061 = vst.msk [vmem:[#allocation3 + $0x50] sm:$0xff] %vm2055, %v1970
        %2062 = vst.msk [vmem:[#allocation3 + $0x60] sm:$0xff] %vm2055, %v1972
        %2063 = vst.msk [vmem:[#allocation3 + $0x70] sm:$0xff] %vm2055, %v1974
        %2064 = vst.msk [vmem:[#allocation3 + $0x80] sm:$0xff] %vm2055, %v1976
        %2065 = vst.msk [vmem:[#allocation3 + $0x90] sm:$0xff] %vm2055, %v1978
        %2066 = vst.msk [vmem:[#allocation3 + $0xa0] sm:$0xff] %vm2055, %v1980
        %2067 = vst.msk [vmem:[#allocation3 + $0xb0] sm:$0xff] %vm2055, %v1982
        %2068 = vst.msk [vmem:[#allocation3 + $0xc0] sm:$0xff] %vm2055, %v1984
        %2069 = vst.msk [vmem:[#allocation3 + $0xd0] sm:$0xff] %vm2055, %v1986
        %2070 = vst.msk [vmem:[#allocation3 + $0xe0] sm:$0xff] %vm2055, %v1988
        %2071 = vst.msk [vmem:[#allocation3 + $0xf0] sm:$0xff] %vm2055, %v1990
        %2072 = vst.msk [vmem:[#allocation3 + $0x100] sm:$0xff] %vm2055, %v1992
        %2073 = vst.msk [vmem:[#allocation3 + $0x110] sm:$0xff] %vm2055, %v1994
        %2074 = vst.msk [vmem:[#allocation3 + $0x120] sm:$0xff] %vm2055, %v1996
        %2075 = vst.msk [vmem:[#allocation3 + $0x130] sm:$0xff] %vm2055, %v1998
        %2076 = vst.msk [vmem:[#allocation3 + $0x140] sm:$0xff] %vm2055, %v2000
        %2077 = vst.msk [vmem:[#allocation3 + $0x150] sm:$0xff] %vm2055, %v2002
        %2078 = vst.msk [vmem:[#allocation3 + $0x160] sm:$0xff] %vm2055, %v2004
        %2079 = vst.msk [vmem:[#allocation3 + $0x170] sm:$0xff] %vm2055, %v2006
        %2080 = vst.msk [vmem:[#allocation3 + $0x180] sm:$0xff] %vm2055, %v2008
        %2081 = vst.msk [vmem:[#allocation3 + $0x190] sm:$0xff] %vm2055, %v2010
        %2082 = vst.msk [vmem:[#allocation3 + $0x1a0] sm:$0xff] %vm2055, %v2012
        %2083 = vst.msk [vmem:[#allocation3 + $0x1b0] sm:$0xff] %vm2055, %v2014
        %2084 = vst.msk [vmem:[#allocation3 + $0x1c0] sm:$0xff] %vm2055, %v2016
        %2085 = vst.msk [vmem:[#allocation3 + $0x1d0] sm:$0xff] %vm2055, %v2018
        %2086 = vst.msk [vmem:[#allocation3 + $0x1e0] sm:$0xff] %vm2055, %v2020
        %2087 = vst.msk [vmem:[#allocation3 + $0x1f0] sm:$0xff] %vm2055, %v2022
        %v2088 = vld [vmem:[#allocation3] sm:$0xff]
        %v2089 = vld [vmem:[#allocation3 + $0x10] sm:$0xff]
        %v2090 = vld [vmem:[#allocation3 + $0x20] sm:$0xff]
        %v2091 = vld [vmem:[#allocation3 + $0x30] sm:$0xff]
        %v2092 = vld [vmem:[#allocation3 + $0x40] sm:$0xff]
        %v2093 = vld [vmem:[#allocation3 + $0x50] sm:$0xff]
        %v2094 = vld [vmem:[#allocation3 + $0x60] sm:$0xff]
        %v2095 = vld [vmem:[#allocation3 + $0x70] sm:$0xff]
        %v2096 = vld [vmem:[#allocation3 + $0x80] sm:$0xff]
        %v2097 = vld [vmem:[#allocation3 + $0x90] sm:$0xff]
        %v2098 = vld [vmem:[#allocation3 + $0xa0] sm:$0xff]
        %v2099 = vld [vmem:[#allocation3 + $0xb0] sm:$0xff]
        %v2100 = vld [vmem:[#allocation3 + $0xc0] sm:$0xff]
        %v2101 = vld [vmem:[#allocation3 + $0xd0] sm:$0xff]
        %v2102 = vld [vmem:[#allocation3 + $0xe0] sm:$0xff]
        %v2103 = vld [vmem:[#allocation3 + $0xf0] sm:$0xff]
        %v2104 = vld [vmem:[#allocation3 + $0x100] sm:$0xff]
        %v2105 = vld [vmem:[#allocation3 + $0x110] sm:$0xff]
        %v2106 = vld [vmem:[#allocation3 + $0x120] sm:$0xff]
        %v2107 = vld [vmem:[#allocation3 + $0x130] sm:$0xff]
        %v2108 = vld [vmem:[#allocation3 + $0x140] sm:$0xff]
        %v2109 = vld [vmem:[#allocation3 + $0x150] sm:$0xff]
        %v2110 = vld [vmem:[#allocation3 + $0x160] sm:$0xff]
        %v2111 = vld [vmem:[#allocation3 + $0x170] sm:$0xff]
        %v2112 = vld [vmem:[#allocation3 + $0x180] sm:$0xff]
        %v2113 = vld [vmem:[#allocation3 + $0x190] sm:$0xff]
        %v2114 = vld [vmem:[#allocation3 + $0x1a0] sm:$0xff]
        %v2115 = vld [vmem:[#allocation3 + $0x1b0] sm:$0xff]
        %v2116 = vld [vmem:[#allocation3 + $0x1c0] sm:$0xff]
        %v2117 = vld [vmem:[#allocation3 + $0x1d0] sm:$0xff]
        %v2118 = vld [vmem:[#allocation3 + $0x1e0] sm:$0xff]
        %v2119 = vld [vmem:[#allocation3 + $0x1f0] sm:$0xff]
        %v2120 = vld [vmem:[%s1] sm:$0xff]
        %v2121 = vld [vmem:[%s1 + $0x8] sm:$0xff]
        %v2122 = vld [vmem:[%s1 + $0x10] sm:$0xff]
        %v2123 = vld [vmem:[%s1 + $0x18] sm:$0xff]
        %v2124 = vld [vmem:[%s1 + $0x20] sm:$0xf]
        %v2125 = vld [vmem:[%s5] sm:$0x1]
        %v2127 = vlaneseq
        %v2128 = vshrl.u32 %v2127, 7
        %v2129 = vsub.s32 0, %v2128
        %v2130 = vrot.slane %v2125, %v2129
        %vm2132 = vcmask 293888
        %v2134 = vsel %vm2132, %v2088, 0
        %v2137 = vsel %vm2132, %v2089, 0
        %v2140 = vsel %vm2132, %v2090, 0
        %v2143 = vsel %vm2132, %v2091, 0
        %v2146 = vsel %vm2132, %v2092, 0
        %v2149 = vsel %vm2132, %v2093, 0
        %v2152 = vsel %vm2132, %v2094, 0
        %v2155 = vsel %vm2132, %v2095, 0
        %v2158 = vsel %vm2132, %v2096, 0
        %v2161 = vsel %vm2132, %v2097, 0
        %v2164 = vsel %vm2132, %v2098, 0
        %v2167 = vsel %vm2132, %v2099, 0
        %v2170 = vsel %vm2132, %v2100, 0
        %v2173 = vsel %vm2132, %v2101, 0
        %v2176 = vsel %vm2132, %v2102, 0
        %v2179 = vsel %vm2132, %v2103, 0
        %v2182 = vsel %vm2132, %v2104, 0
        %v2185 = vsel %vm2132, %v2105, 0
        %v2188 = vsel %vm2132, %v2106, 0
        %v2191 = vsel %vm2132, %v2107, 0
        %v2194 = vsel %vm2132, %v2108, 0
        %v2197 = vsel %vm2132, %v2109, 0
        %v2200 = vsel %vm2132, %v2110, 0
        %v2203 = vsel %vm2132, %v2111, 0
        %v2206 = vsel %vm2132, %v2112, 0
        %v2209 = vsel %vm2132, %v2113, 0
        %v2212 = vsel %vm2132, %v2114, 0
        %v2215 = vsel %vm2132, %v2115, 0
        %v2218 = vsel %vm2132, %v2116, 0
        %v2221 = vsel %vm2132, %v2117, 0
        %v2224 = vsel %vm2132, %v2118, 0
        %v2227 = vsel %vm2132, %v2119, 0
        %vm2229 = vcmask 1043456
        %v2231 = vsel %vm2229, %v2124, 0
        %2233 = vmatprep.subr.mxu0 0.0
        %2234 = vmatpush1.msra.mxu0 %v2120
        %2235 = vmatprep.subr.mxu0 0.0
        %2236 = vmatpush1.msra.mxu0 %v2121
        %2237 = vmatprep.subr.mxu0 0.0
        %2238 = vmatpush1.msra.mxu0 %v2122
        %2239 = vmatprep.subr.mxu0 0.0
        %2240 = vmatpush1.msra.mxu0 %v2123
        %2241 = vmatprep.subr.mxu0 0.0
        %2242 = vmatpush1.msra.mxu0 %v2231
        %2243 = vmatprep.subr.mxu0 0.0
        %2244 = vmatpush1.msra.mxu0 0.0
        %2245 = vmatprep.subr.mxu0 0.0
        %2246 = vmatpush1.msra.mxu0 0.0
        %2247 = vmatprep.subr.mxu0 0.0
        %2248 = vmatpush1.msra.mxu0 0.0
        %2249 = vmatprep.subr.mxu0 0.0
        %2250 = vmatpush1.msra.mxu0 0.0
        %2251 = vmatprep.subr.mxu0 0.0
        %2252 = vmatpush1.msra.mxu0 0.0
        %2253 = vmatprep.subr.mxu0 0.0
        %2254 = vmatpush1.msra.mxu0 0.0
        %2255 = vmatprep.subr.mxu0 0.0
        %2256 = vmatpush1.msra.mxu0 0.0
        %2257 = vmatprep.subr.mxu0 0.0
        %2258 = vmatpush1.msra.mxu0 0.0
        %2259 = vmatprep.subr.mxu0 0.0
        %2260 = vmatpush1.msra.mxu0 0.0
        %2261 = vmatprep.subr.mxu0 0.0
        %2262 = vmatpush1.msra.mxu0 0.0
        %2263 = vmatprep.subr.mxu0 0.0
        %2264 = vmatpush1.msra.mxu0 0.0
        %2265 = vmatprep.subr.mxu0 0.0
        %2266 = vmatpush1.msra.mxu0 0.0
        %2267 = vmatprep.subr.mxu0 0.0
        %2268 = vmatpush1.msra.mxu0 0.0
        %2269 = vmatprep.subr.mxu0 0.0
        %2270 = vmatpush1.msra.mxu0 0.0
        %2271 = vmatprep.subr.mxu0 0.0
        %2272 = vmatpush1.msra.mxu0 0.0
        %2273 = vmatprep.subr.mxu0 0.0
        %2274 = vmatpush1.msra.mxu0 0.0
        %2275 = vmatprep.subr.mxu0 0.0
        %2276 = vmatpush1.msra.mxu0 0.0
        %2277 = vmatprep.subr.mxu0 0.0
        %2278 = vmatpush1.msra.mxu0 0.0
        %2279 = vmatprep.subr.mxu0 0.0
        %2280 = vmatpush1.msra.mxu0 0.0
        %2281 = vmatprep.subr.mxu0 0.0
        %2282 = vmatpush1.msra.mxu0 0.0
        %2283 = vmatprep.subr.mxu0 0.0
        %2284 = vmatpush1.msra.mxu0 0.0
        %2285 = vmatprep.subr.mxu0 0.0
        %2286 = vmatpush1.msra.mxu0 0.0
        %2287 = vmatprep.subr.mxu0 0.0
        %2288 = vmatpush1.msra.mxu0 0.0
        %2289 = vmatprep.subr.mxu0 0.0
        %2290 = vmatpush1.msra.mxu0 0.0
        %2291 = vmatprep.subr.mxu0 0.0
        %2292 = vmatpush1.msra.mxu0 0.0
        %2293 = vmatprep.subr.mxu0 0.0
        %2294 = vmatpush1.msra.mxu0 0.0
        %2295 = vmatprep.subr.mxu0 0.0
        %2296 = vmatpush1.msra.mxu0 0.0
        %2297 = vmatprep.mubr.f32.mxu0 0.0
        %2298 = vmatmul.mubr.f32.gmra.mrb[0].mxu0 %v2134
        %v2299 = vpop.f32.mrb[0].mxu0
        %v2300 = vadd.f32 %v2130, %v2299
        %v2301 = vpop.f32.mrb[0].mxu0
        %2302 = vmatprep.mubr.f32.mxu0 0.0
        %2303 = vmatmul.mubr.f32.gmra.mrb[0].mxu0 %v2137
        %v2304 = vpop.f32.mrb[0].mxu0
        %v2305 = vadd.f32 %v2130, %v2304
        %v2306 = vpop.f32.mrb[0].mxu0
        %2307 = vmatprep.mubr.f32.mxu0 0.0
        %2308 = vmatmul.mubr.f32.gmra.mrb[0].mxu0 %v2140
        %v2309 = vpop.f32.mrb[0].mxu0
        %v2310 = vadd.f32 %v2130, %v2309
        %v2311 = vpop.f32.mrb[0].mxu0
        %2312 = vmatprep.mubr.f32.mxu0 0.0
        %2313 = vmatmul.mubr.f32.gmra.mrb[0].mxu0 %v2143
        %v2314 = vpop.f32.mrb[0].mxu0
        %v2315 = vadd.f32 %v2130, %v2314
        %v2316 = vpop.f32.mrb[0].mxu0
        %2317 = vmatprep.mubr.f32.mxu0 0.0
        %2318 = vmatmul.mubr.f32.gmra.mrb[0].mxu0 %v2146
        %v2319 = vpop.f32.mrb[0].mxu0
        %v2320 = vadd.f32 %v2130, %v2319
        %v2321 = vpop.f32.mrb[0].mxu0
        %2322 = vmatprep.mubr.f32.mxu0 0.0
        %2323 = vmatmul.mubr.f32.gmra.mrb[0].mxu0 %v2149
        %v2324 = vpop.f32.mrb[0].mxu0
        %v2325 = vadd.f32 %v2130, %v2324
        %v2326 = vpop.f32.mrb[0].mxu0
        %2327 = vmatprep.mubr.f32.mxu0 0.0
        %2328 = vmatmul.mubr.f32.gmra.mrb[0].mxu0 %v2152
        %v2329 = vpop.f32.mrb[0].mxu0
        %v2330 = vadd.f32 %v2130, %v2329
        %v2331 = vpop.f32.mrb[0].mxu0
        %2332 = vmatprep.mubr.f32.mxu0 0.0
        %2333 = vmatmul.mubr.f32.gmra.mrb[0].mxu0 %v2155
        %v2334 = vpop.f32.mrb[0].mxu0
        %v2335 = vadd.f32 %v2130, %v2334
        %v2336 = vpop.f32.mrb[0].mxu0
        %2337 = vmatprep.mubr.f32.mxu0 0.0
        %2338 = vmatmul.mubr.f32.gmra.mrb[0].mxu0 %v2158
        %v2339 = vpop.f32.mrb[0].mxu0
        %v2340 = vadd.f32 %v2130, %v2339
        %v2341 = vpop.f32.mrb[0].mxu0
        %2342 = vmatprep.mubr.f32.mxu0 0.0
        %2343 = vmatmul.mubr.f32.gmra.mrb[0].mxu0 %v2161
        %v2344 = vpop.f32.mrb[0].mxu0
        %v2345 = vadd.f32 %v2130, %v2344
        %v2346 = vpop.f32.mrb[0].mxu0
        %2347 = vmatprep.mubr.f32.mxu0 0.0
        %2348 = vmatmul.mubr.f32.gmra.mrb[0].mxu0 %v2164
        %v2349 = vpop.f32.mrb[0].mxu0
        %v2350 = vadd.f32 %v2130, %v2349
        %v2351 = vpop.f32.mrb[0].mxu0
        %2352 = vmatprep.mubr.f32.mxu0 0.0
        %2353 = vmatmul.mubr.f32.gmra.mrb[0].mxu0 %v2167
        %v2354 = vpop.f32.mrb[0].mxu0
        %v2355 = vadd.f32 %v2130, %v2354
        %v2356 = vpop.f32.mrb[0].mxu0
        %2357 = vmatprep.mubr.f32.mxu0 0.0
        %2358 = vmatmul.mubr.f32.gmra.mrb[0].mxu0 %v2170
        %v2359 = vpop.f32.mrb[0].mxu0
        %v2360 = vadd.f32 %v2130, %v2359
        %v2361 = vpop.f32.mrb[0].mxu0
        %2362 = vmatprep.mubr.f32.mxu0 0.0
        %2363 = vmatmul.mubr.f32.gmra.mrb[0].mxu0 %v2173
        %v2364 = vpop.f32.mrb[0].mxu0
        %v2365 = vadd.f32 %v2130, %v2364
        %v2366 = vpop.f32.mrb[0].mxu0
        %2367 = vmatprep.mubr.f32.mxu0 0.0
        %2368 = vmatmul.mubr.f32.gmra.mrb[0].mxu0 %v2176
        %v2369 = vpop.f32.mrb[0].mxu0
        %v2370 = vadd.f32 %v2130, %v2369
        %v2371 = vpop.f32.mrb[0].mxu0
        %2372 = vmatprep.mubr.f32.mxu0 0.0
        %2373 = vmatmul.mubr.f32.gmra.mrb[0].mxu0 %v2179
        %v2374 = vpop.f32.mrb[0].mxu0
        %v2375 = vadd.f32 %v2130, %v2374
        %v2376 = vpop.f32.mrb[0].mxu0
        %2377 = vmatprep.mubr.f32.mxu0 0.0
        %2378 = vmatmul.mubr.f32.gmra.mrb[0].mxu0 %v2182
        %v2379 = vpop.f32.mrb[0].mxu0
        %v2380 = vadd.f32 %v2130, %v2379
        %v2381 = vpop.f32.mrb[0].mxu0
        %2382 = vmatprep.mubr.f32.mxu0 0.0
        %2383 = vmatmul.mubr.f32.gmra.mrb[0].mxu0 %v2185
        %v2384 = vpop.f32.mrb[0].mxu0
        %v2385 = vadd.f32 %v2130, %v2384
        %v2386 = vpop.f32.mrb[0].mxu0
        %2387 = vmatprep.mubr.f32.mxu0 0.0
        %2388 = vmatmul.mubr.f32.gmra.mrb[0].mxu0 %v2188
        %v2389 = vpop.f32.mrb[0].mxu0
        %v2390 = vadd.f32 %v2130, %v2389
        %v2391 = vpop.f32.mrb[0].mxu0
        %2392 = vmatprep.mubr.f32.mxu0 0.0
        %2393 = vmatmul.mubr.f32.gmra.mrb[0].mxu0 %v2191
        %v2394 = vpop.f32.mrb[0].mxu0
        %v2395 = vadd.f32 %v2130, %v2394
        %v2396 = vpop.f32.mrb[0].mxu0
        %2397 = vmatprep.mubr.f32.mxu0 0.0
        %2398 = vmatmul.mubr.f32.gmra.mrb[0].mxu0 %v2194
        %v2399 = vpop.f32.mrb[0].mxu0
        %v2400 = vadd.f32 %v2130, %v2399
        %v2401 = vpop.f32.mrb[0].mxu0
        %2402 = vmatprep.mubr.f32.mxu0 0.0
        %2403 = vmatmul.mubr.f32.gmra.mrb[0].mxu0 %v2197
        %v2404 = vpop.f32.mrb[0].mxu0
        %v2405 = vadd.f32 %v2130, %v2404
        %v2406 = vpop.f32.mrb[0].mxu0
        %2407 = vmatprep.mubr.f32.mxu0 0.0
        %2408 = vmatmul.mubr.f32.gmra.mrb[0].mxu0 %v2200
        %v2409 = vpop.f32.mrb[0].mxu0
        %v2410 = vadd.f32 %v2130, %v2409
        %v2411 = vpop.f32.mrb[0].mxu0
        %2412 = vmatprep.mubr.f32.mxu0 0.0
        %2413 = vmatmul.mubr.f32.gmra.mrb[0].mxu0 %v2203
        %v2414 = vpop.f32.mrb[0].mxu0
        %v2415 = vadd.f32 %v2130, %v2414
        %v2416 = vpop.f32.mrb[0].mxu0
        %2417 = vmatprep.mubr.f32.mxu0 0.0
        %2418 = vmatmul.mubr.f32.gmra.mrb[0].mxu0 %v2206
        %v2419 = vpop.f32.mrb[0].mxu0
        %v2420 = vadd.f32 %v2130, %v2419
        %v2421 = vpop.f32.mrb[0].mxu0
        %2422 = vmatprep.mubr.f32.mxu0 0.0
        %2423 = vmatmul.mubr.f32.gmra.mrb[0].mxu0 %v2209
        %v2424 = vpop.f32.mrb[0].mxu0
        %v2425 = vadd.f32 %v2130, %v2424
        %v2426 = vpop.f32.mrb[0].mxu0
        %2427 = vmatprep.mubr.f32.mxu0 0.0
        %2428 = vmatmul.mubr.f32.gmra.mrb[0].mxu0 %v2212
        %v2429 = vpop.f32.mrb[0].mxu0
        %v2430 = vadd.f32 %v2130, %v2429
        %v2431 = vpop.f32.mrb[0].mxu0
        %2432 = vmatprep.mubr.f32.mxu0 0.0
        %2433 = vmatmul.mubr.f32.gmra.mrb[0].mxu0 %v2215
        %v2434 = vpop.f32.mrb[0].mxu0
        %v2435 = vadd.f32 %v2130, %v2434
        %v2436 = vpop.f32.mrb[0].mxu0
        %2437 = vmatprep.mubr.f32.mxu0 0.0
        %2438 = vmatmul.mubr.f32.gmra.mrb[0].mxu0 %v2218
        %v2439 = vpop.f32.mrb[0].mxu0
        %v2440 = vadd.f32 %v2130, %v2439
        %v2441 = vpop.f32.mrb[0].mxu0
        %2442 = vmatprep.mubr.f32.mxu0 0.0
        %2443 = vmatmul.mubr.f32.gmra.mrb[0].mxu0 %v2221
        %v2444 = vpop.f32.mrb[0].mxu0
        %v2445 = vadd.f32 %v2130, %v2444
        %v2446 = vpop.f32.mrb[0].mxu0
        %2447 = vmatprep.mubr.f32.mxu0 0.0
        %2448 = vmatmul.mubr.f32.gmra.mrb[0].mxu0 %v2224
        %v2449 = vpop.f32.mrb[0].mxu0
        %v2450 = vadd.f32 %v2130, %v2449
        %v2451 = vpop.f32.mrb[0].mxu0
        %2452 = vmatprep.mubr.f32.mxu0 0.0
        %2453 = vmatmul.mubr.f32.gmra.mrb[0].mxu0 %v2227
        %v2454 = vpop.f32.mrb[0].mxu0
        %v2455 = vadd.f32 %v2130, %v2454
        %v2456 = vpop.f32.mrb[0].mxu0
        %2457 = vdwg.mxu0
        %v2458 = vmax.f32 %v2300, 0.0
        %v2459 = vmax.f32 %v2305, 0.0
        %v2460 = vmax.f32 %v2310, 0.0
        %v2461 = vmax.f32 %v2315, 0.0
        %v2462 = vmax.f32 %v2320, 0.0
        %v2463 = vmax.f32 %v2325, 0.0
        %v2464 = vmax.f32 %v2330, 0.0
        %v2465 = vmax.f32 %v2335, 0.0
        %v2466 = vmax.f32 %v2340, 0.0
        %v2467 = vmax.f32 %v2345, 0.0
        %v2468 = vmax.f32 %v2350, 0.0
        %v2469 = vmax.f32 %v2355, 0.0
        %v2470 = vmax.f32 %v2360, 0.0
        %v2471 = vmax.f32 %v2365, 0.0
        %v2472 = vmax.f32 %v2370, 0.0
        %v2473 = vmax.f32 %v2375, 0.0
        %v2474 = vmax.f32 %v2380, 0.0
        %v2475 = vmax.f32 %v2385, 0.0
        %v2476 = vmax.f32 %v2390, 0.0
        %v2477 = vmax.f32 %v2395, 0.0
        %v2478 = vmax.f32 %v2400, 0.0
        %v2479 = vmax.f32 %v2405, 0.0
        %v2480 = vmax.f32 %v2410, 0.0
        %v2481 = vmax.f32 %v2415, 0.0
        %v2482 = vmax.f32 %v2420, 0.0
        %v2483 = vmax.f32 %v2425, 0.0
        %v2484 = vmax.f32 %v2430, 0.0
        %v2485 = vmax.f32 %v2435, 0.0
        %v2486 = vmax.f32 %v2440, 0.0
        %v2487 = vmax.f32 %v2445, 0.0
        %v2488 = vmax.f32 %v2450, 0.0
        %v2489 = vmax.f32 %v2455, 0.0
        %2522 = vrot.lane.b32.xlu0 %v2458, 4
        %v2523 = vpop.permute.xlu0 %2522
        %2524 = vrot.lane.b32.xlu0 %v2459, 4
        %v2525 = vpop.permute.xlu0 %2524
        %2526 = vrot.lane.b32.xlu0 %v2460, 4
        %v2527 = vpop.permute.xlu0 %2526
        %2528 = vrot.lane.b32.xlu0 %v2461, 4
        %v2529 = vpop.permute.xlu0 %2528
        %2530 = vrot.lane.b32.xlu0 %v2462, 4
        %v2531 = vpop.permute.xlu0 %2530
        %2532 = vrot.lane.b32.xlu0 %v2463, 4
        %v2533 = vpop.permute.xlu0 %2532
        %2534 = vrot.lane.b32.xlu0 %v2464, 4
        %v2535 = vpop.permute.xlu0 %2534
        %2536 = vrot.lane.b32.xlu0 %v2465, 4
        %v2537 = vpop.permute.xlu0 %2536
        %2538 = vrot.lane.b32.xlu0 %v2466, 4
        %v2539 = vpop.permute.xlu0 %2538
        %2540 = vrot.lane.b32.xlu0 %v2467, 4
        %v2541 = vpop.permute.xlu0 %2540
        %2542 = vrot.lane.b32.xlu0 %v2468, 4
        %v2543 = vpop.permute.xlu0 %2542
        %2544 = vrot.lane.b32.xlu0 %v2469, 4
        %v2545 = vpop.permute.xlu0 %2544
        %2546 = vrot.lane.b32.xlu0 %v2470, 4
        %v2547 = vpop.permute.xlu0 %2546
        %2548 = vrot.lane.b32.xlu0 %v2471, 4
        %v2549 = vpop.permute.xlu0 %2548
        %2550 = vrot.lane.b32.xlu0 %v2472, 4
        %v2551 = vpop.permute.xlu0 %2550
        %2552 = vrot.lane.b32.xlu0 %v2473, 4
        %v2553 = vpop.permute.xlu0 %2552
        %2554 = vrot.lane.b32.xlu0 %v2474, 4
        %v2555 = vpop.permute.xlu0 %2554
        %2556 = vrot.lane.b32.xlu0 %v2475, 4
        %v2557 = vpop.permute.xlu0 %2556
        %2558 = vrot.lane.b32.xlu0 %v2476, 4
        %v2559 = vpop.permute.xlu0 %2558
        %2560 = vrot.lane.b32.xlu0 %v2477, 4
        %v2561 = vpop.permute.xlu0 %2560
        %2562 = vrot.lane.b32.xlu0 %v2478, 4
        %v2563 = vpop.permute.xlu0 %2562
        %2564 = vrot.lane.b32.xlu0 %v2479, 4
        %v2565 = vpop.permute.xlu0 %2564
        %2566 = vrot.lane.b32.xlu0 %v2480, 4
        %v2567 = vpop.permute.xlu0 %2566
        %2568 = vrot.lane.b32.xlu0 %v2481, 4
        %v2569 = vpop.permute.xlu0 %2568
        %2570 = vrot.lane.b32.xlu0 %v2482, 4
        %v2571 = vpop.permute.xlu0 %2570
        %2572 = vrot.lane.b32.xlu0 %v2483, 4
        %v2573 = vpop.permute.xlu0 %2572
        %2574 = vrot.lane.b32.xlu0 %v2484, 4
        %v2575 = vpop.permute.xlu0 %2574
        %2576 = vrot.lane.b32.xlu0 %v2485, 4
        %v2577 = vpop.permute.xlu0 %2576
        %2578 = vrot.lane.b32.xlu0 %v2486, 4
        %v2579 = vpop.permute.xlu0 %2578
        %2580 = vrot.lane.b32.xlu0 %v2487, 4
        %v2581 = vpop.permute.xlu0 %2580
        %2582 = vrot.lane.b32.xlu0 %v2488, 4
        %v2583 = vpop.permute.xlu0 %2582
        %2584 = vrot.lane.b32.xlu0 %v2489, 4
        %v2585 = vpop.permute.xlu0 %2584
        %vm2618 = vcmask 97312
        %2619 = vst.msk [vmem:[%s445 + $0x1] sm:$0xff] %vm2618, %v2523
        %2620 = vst.msk [vmem:[%s445 + $0x9] sm:$0xff] %vm2618, %v2525
        %2621 = vst.msk [vmem:[%s445 + $0x19] sm:$0xff] %vm2618, %v2527
        %2622 = vst.msk [vmem:[%s445 + $0x21] sm:$0xff] %vm2618, %v2529
        %2623 = vst.msk [vmem:[%s445 + $0x31] sm:$0xff] %vm2618, %v2531
        %2624 = vst.msk [vmem:[%s445 + $0x39] sm:$0xff] %vm2618, %v2533
        %2625 = vst.msk [vmem:[%s445 + $0x49] sm:$0xff] %vm2618, %v2535
        %2626 = vst.msk [vmem:[%s445 + $0x51] sm:$0xff] %vm2618, %v2537
        %2627 = vst.msk [vmem:[%s445 + $0x61] sm:$0xff] %vm2618, %v2539
        %2628 = vst.msk [vmem:[%s445 + $0x69] sm:$0xff] %vm2618, %v2541
        %2629 = vst.msk [vmem:[%s445 + $0x79] sm:$0xff] %vm2618, %v2543
        %2630 = vst.msk [vmem:[%s445 + $0x81] sm:$0xff] %vm2618, %v2545
        %2631 = vst.msk [vmem:[%s445 + $0x91] sm:$0xff] %vm2618, %v2547
        %2632 = vst.msk [vmem:[%s445 + $0x99] sm:$0xff] %vm2618, %v2549
        %2633 = vst.msk [vmem:[%s445 + $0xa9] sm:$0xff] %vm2618, %v2551
        %2634 = vst.msk [vmem:[%s445 + $0xb1] sm:$0xff] %vm2618, %v2553
        %2635 = vst.msk [vmem:[%s445 + $0xc1] sm:$0xff] %vm2618, %v2555
        %2636 = vst.msk [vmem:[%s445 + $0xc9] sm:$0xff] %vm2618, %v2557
        %2637 = vst.msk [vmem:[%s445 + $0xd9] sm:$0xff] %vm2618, %v2559
        %2638 = vst.msk [vmem:[%s445 + $0xe1] sm:$0xff] %vm2618, %v2561
        %2639 = vst.msk [vmem:[%s445 + $0xf1] sm:$0xff] %vm2618, %v2563
        %2640 = vst.msk [vmem:[%s445 + $0xf9] sm:$0xff] %vm2618, %v2565
        %2641 = vst.msk [vmem:[%s445 + $0x109] sm:$0xff] %vm2618, %v2567
        %2642 = vst.msk [vmem:[%s445 + $0x111] sm:$0xff] %vm2618, %v2569
        %2643 = vst.msk [vmem:[%s445 + $0x121] sm:$0xff] %vm2618, %v2571
        %2644 = vst.msk [vmem:[%s445 + $0x129] sm:$0xff] %vm2618, %v2573
        %2645 = vst.msk [vmem:[%s445 + $0x139] sm:$0xff] %vm2618, %v2575
        %2646 = vst.msk [vmem:[%s445 + $0x141] sm:$0xff] %vm2618, %v2577
        %2647 = vst.msk [vmem:[%s445 + $0x151] sm:$0xff] %vm2618, %v2579
        %2648 = vst.msk [vmem:[%s445 + $0x159] sm:$0xff] %vm2618, %v2581
        %2649 = vst.msk [vmem:[%s445 + $0x169] sm:$0xff] %vm2618, %v2583
        %2650 = vst.msk [vmem:[%s445 + $0x171] sm:$0xff] %vm2618, %v2585
        %v2651 = vld [vmem:[#allocation2] sm:$0xff]
        %v2652 = vld [vmem:[#allocation2 + $0x8] sm:$0xff]
        %v2653 = vld [vmem:[#allocation2 + $0x18] sm:$0xff]
        %v2654 = vld [vmem:[#allocation2 + $0x20] sm:$0xff]
        %v2655 = vld [vmem:[#allocation2 + $0x30] sm:$0xff]
        %v2656 = vld [vmem:[#allocation2 + $0x38] sm:$0xff]
        %v2657 = vld [vmem:[#allocation2 + $0x48] sm:$0xff]
        %v2658 = vld [vmem:[#allocation2 + $0x50] sm:$0xff]
        %v2659 = vld [vmem:[#allocation2 + $0x60] sm:$0xff]
        %v2660 = vld [vmem:[#allocation2 + $0x68] sm:$0xff]
        %v2661 = vld [vmem:[#allocation2 + $0x78] sm:$0xff]
        %v2662 = vld [vmem:[#allocation2 + $0x80] sm:$0xff]
        %v2663 = vld [vmem:[#allocation2 + $0x90] sm:$0xff]
        %v2664 = vld [vmem:[#allocation2 + $0x98] sm:$0xff]
        %v2665 = vld [vmem:[#allocation2 + $0xa8] sm:$0xff]
        %v2666 = vld [vmem:[#allocation2 + $0xb0] sm:$0xff]
        %v2667 = vld [vmem:[#allocation2 + $0xc0] sm:$0xff]
        %v2668 = vld [vmem:[#allocation2 + $0xc8] sm:$0xff]
        %v2669 = vld [vmem:[#allocation2 + $0xd8] sm:$0xff]
        %v2670 = vld [vmem:[#allocation2 + $0xe0] sm:$0xff]
        %v2671 = vld [vmem:[#allocation2 + $0xf0] sm:$0xff]
        %v2672 = vld [vmem:[#allocation2 + $0xf8] sm:$0xff]
        %v2673 = vld [vmem:[#allocation2 + $0x108] sm:$0xff]
        %v2674 = vld [vmem:[#allocation2 + $0x110] sm:$0xff]
        %v2675 = vld [vmem:[#allocation2 + $0x120] sm:$0xff]
        %v2676 = vld [vmem:[#allocation2 + $0x128] sm:$0xff]
        %v2677 = vld [vmem:[#allocation2 + $0x138] sm:$0xff]
        %v2678 = vld [vmem:[#allocation2 + $0x140] sm:$0xff]
        %v2679 = vld [vmem:[#allocation2 + $0x150] sm:$0xff]
        %v2680 = vld [vmem:[#allocation2 + $0x158] sm:$0xff]
        %v2681 = vld [vmem:[#allocation2 + $0x168] sm:$0xff]
        %v2682 = vld [vmem:[#allocation2 + $0x170] sm:$0xff]
        %2715 = vrot.lane.b32.xlu0 %v2651, 32
        %v2716 = vpop.permute.xlu0 %2715
        %2717 = vrot.lane.b32.xlu0 %v2652, 32
        %v2718 = vpop.permute.xlu0 %2717
        %2719 = vrot.lane.b32.xlu0 %v2653, 32
        %v2720 = vpop.permute.xlu0 %2719
        %2721 = vrot.lane.b32.xlu0 %v2654, 32
        %v2722 = vpop.permute.xlu0 %2721
        %2723 = vrot.lane.b32.xlu0 %v2655, 32
        %v2724 = vpop.permute.xlu0 %2723
        %2725 = vrot.lane.b32.xlu0 %v2656, 32
        %v2726 = vpop.permute.xlu0 %2725
        %2727 = vrot.lane.b32.xlu0 %v2657, 32
        %v2728 = vpop.permute.xlu0 %2727
        %2729 = vrot.lane.b32.xlu0 %v2658, 32
        %v2730 = vpop.permute.xlu0 %2729
        %2731 = vrot.lane.b32.xlu0 %v2659, 32
        %v2732 = vpop.permute.xlu0 %2731
        %2733 = vrot.lane.b32.xlu0 %v2660, 32
        %v2734 = vpop.permute.xlu0 %2733
        %2735 = vrot.lane.b32.xlu0 %v2661, 32
        %v2736 = vpop.permute.xlu0 %2735
        %2737 = vrot.lane.b32.xlu0 %v2662, 32
        %v2738 = vpop.permute.xlu0 %2737
        %2739 = vrot.lane.b32.xlu0 %v2663, 32
        %v2740 = vpop.permute.xlu0 %2739
        %2741 = vrot.lane.b32.xlu0 %v2664, 32
        %v2742 = vpop.permute.xlu0 %2741
        %2743 = vrot.lane.b32.xlu0 %v2665, 32
        %v2744 = vpop.permute.xlu0 %2743
        %2745 = vrot.lane.b32.xlu0 %v2666, 32
        %v2746 = vpop.permute.xlu0 %2745
        %2747 = vrot.lane.b32.xlu0 %v2667, 32
        %v2748 = vpop.permute.xlu0 %2747
        %2749 = vrot.lane.b32.xlu0 %v2668, 32
        %v2750 = vpop.permute.xlu0 %2749
        %2751 = vrot.lane.b32.xlu0 %v2669, 32
        %v2752 = vpop.permute.xlu0 %2751
        %2753 = vrot.lane.b32.xlu0 %v2670, 32
        %v2754 = vpop.permute.xlu0 %2753
        %2755 = vrot.lane.b32.xlu0 %v2671, 32
        %v2756 = vpop.permute.xlu0 %2755
        %2757 = vrot.lane.b32.xlu0 %v2672, 32
        %v2758 = vpop.permute.xlu0 %2757
        %2759 = vrot.lane.b32.xlu0 %v2673, 32
        %v2760 = vpop.permute.xlu0 %2759
        %2761 = vrot.lane.b32.xlu0 %v2674, 32
        %v2762 = vpop.permute.xlu0 %2761
        %2763 = vrot.lane.b32.xlu0 %v2675, 32
        %v2764 = vpop.permute.xlu0 %2763
        %2765 = vrot.lane.b32.xlu0 %v2676, 32
        %v2766 = vpop.permute.xlu0 %2765
        %2767 = vrot.lane.b32.xlu0 %v2677, 32
        %v2768 = vpop.permute.xlu0 %2767
        %2769 = vrot.lane.b32.xlu0 %v2678, 32
        %v2770 = vpop.permute.xlu0 %2769
        %2771 = vrot.lane.b32.xlu0 %v2679, 32
        %v2772 = vpop.permute.xlu0 %2771
        %2773 = vrot.lane.b32.xlu0 %v2680, 32
        %v2774 = vpop.permute.xlu0 %2773
        %2775 = vrot.lane.b32.xlu0 %v2681, 32
        %v2776 = vpop.permute.xlu0 %2775
        %2777 = vrot.lane.b32.xlu0 %v2682, 32
        %v2778 = vpop.permute.xlu0 %2777
        %vm2811 = vcmask 359712
        %2812 = vst.msk [vmem:[#allocation3] sm:$0xff] %vm2811, %v2716
        %2813 = vst.msk [vmem:[#allocation3 + $0x10] sm:$0xff] %vm2811, %v2718
        %2814 = vst.msk [vmem:[#allocation3 + $0x20] sm:$0xff] %vm2811, %v2720
        %2815 = vst.msk [vmem:[#allocation3 + $0x30] sm:$0xff] %vm2811, %v2722
        %2816 = vst.msk [vmem:[#allocation3 + $0x40] sm:$0xff] %vm2811, %v2724
        %2817 = vst.msk [vmem:[#allocation3 + $0x50] sm:$0xff] %vm2811, %v2726
        %2818 = vst.msk [vmem:[#allocation3 + $0x60] sm:$0xff] %vm2811, %v2728
        %2819 = vst.msk [vmem:[#allocation3 + $0x70] sm:$0xff] %vm2811, %v2730
        %2820 = vst.msk [vmem:[#allocation3 + $0x80] sm:$0xff] %vm2811, %v2732
        %2821 = vst.msk [vmem:[#allocation3 + $0x90] sm:$0xff] %vm2811, %v2734
        %2822 = vst.msk [vmem:[#allocation3 + $0xa0] sm:$0xff] %vm2811, %v2736
        %2823 = vst.msk [vmem:[#allocation3 + $0xb0] sm:$0xff] %vm2811, %v2738
        %2824 = vst.msk [vmem:[#allocation3 + $0xc0] sm:$0xff] %vm2811, %v2740
        %2825 = vst.msk [vmem:[#allocation3 + $0xd0] sm:$0xff] %vm2811, %v2742
        %2826 = vst.msk [vmem:[#allocation3 + $0xe0] sm:$0xff] %vm2811, %v2744
        %2827 = vst.msk [vmem:[#allocation3 + $0xf0] sm:$0xff] %vm2811, %v2746
        %2828 = vst.msk [vmem:[#allocation3 + $0x100] sm:$0xff] %vm2811, %v2748
        %2829 = vst.msk [vmem:[#allocation3 + $0x110] sm:$0xff] %vm2811, %v2750
        %2830 = vst.msk [vmem:[#allocation3 + $0x120] sm:$0xff] %vm2811, %v2752
        %2831 = vst.msk [vmem:[#allocation3 + $0x130] sm:$0xff] %vm2811, %v2754
        %2832 = vst.msk [vmem:[#allocation3 + $0x140] sm:$0xff] %vm2811, %v2756
        %2833 = vst.msk [vmem:[#allocation3 + $0x150] sm:$0xff] %vm2811, %v2758
        %2834 = vst.msk [vmem:[#allocation3 + $0x160] sm:$0xff] %vm2811, %v2760
        %2835 = vst.msk [vmem:[#allocation3 + $0x170] sm:$0xff] %vm2811, %v2762
        %2836 = vst.msk [vmem:[#allocation3 + $0x180] sm:$0xff] %vm2811, %v2764
        %2837 = vst.msk [vmem:[#allocation3 + $0x190] sm:$0xff] %vm2811, %v2766
        %2838 = vst.msk [vmem:[#allocation3 + $0x1a0] sm:$0xff] %vm2811, %v2768
        %2839 = vst.msk [vmem:[#allocation3 + $0x1b0] sm:$0xff] %vm2811, %v2770
        %2840 = vst.msk [vmem:[#allocation3 + $0x1c0] sm:$0xff] %vm2811, %v2772
        %2841 = vst.msk [vmem:[#allocation3 + $0x1d0] sm:$0xff] %vm2811, %v2774
        %2842 = vst.msk [vmem:[#allocation3 + $0x1e0] sm:$0xff] %vm2811, %v2776
        %2843 = vst.msk [vmem:[#allocation3 + $0x1f0] sm:$0xff] %vm2811, %v2778
        %v2844 = vld [vmem:[#allocation2 + $0x1] sm:$0xff]
        %v2845 = vld [vmem:[#allocation2 + $0x9] sm:$0xff]
        %v2846 = vld [vmem:[#allocation2 + $0x19] sm:$0xff]
        %v2847 = vld [vmem:[#allocation2 + $0x21] sm:$0xff]
        %v2848 = vld [vmem:[#allocation2 + $0x31] sm:$0xff]
        %v2849 = vld [vmem:[#allocation2 + $0x39] sm:$0xff]
        %v2850 = vld [vmem:[#allocation2 + $0x49] sm:$0xff]
        %v2851 = vld [vmem:[#allocation2 + $0x51] sm:$0xff]
        %v2852 = vld [vmem:[#allocation2 + $0x61] sm:$0xff]
        %v2853 = vld [vmem:[#allocation2 + $0x69] sm:$0xff]
        %v2854 = vld [vmem:[#allocation2 + $0x79] sm:$0xff]
        %v2855 = vld [vmem:[#allocation2 + $0x81] sm:$0xff]
        %v2856 = vld [vmem:[#allocation2 + $0x91] sm:$0xff]
        %v2857 = vld [vmem:[#allocation2 + $0x99] sm:$0xff]
        %v2858 = vld [vmem:[#allocation2 + $0xa9] sm:$0xff]
        %v2859 = vld [vmem:[#allocation2 + $0xb1] sm:$0xff]
        %v2860 = vld [vmem:[#allocation2 + $0xc1] sm:$0xff]
        %v2861 = vld [vmem:[#allocation2 + $0xc9] sm:$0xff]
        %v2862 = vld [vmem:[#allocation2 + $0xd9] sm:$0xff]
        %v2863 = vld [vmem:[#allocation2 + $0xe1] sm:$0xff]
        %v2864 = vld [vmem:[#allocation2 + $0xf1] sm:$0xff]
        %v2865 = vld [vmem:[#allocation2 + $0xf9] sm:$0xff]
        %v2866 = vld [vmem:[#allocation2 + $0x109] sm:$0xff]
        %v2867 = vld [vmem:[#allocation2 + $0x111] sm:$0xff]
        %v2868 = vld [vmem:[#allocation2 + $0x121] sm:$0xff]
        %v2869 = vld [vmem:[#allocation2 + $0x129] sm:$0xff]
        %v2870 = vld [vmem:[#allocation2 + $0x139] sm:$0xff]
        %v2871 = vld [vmem:[#allocation2 + $0x141] sm:$0xff]
        %v2872 = vld [vmem:[#allocation2 + $0x151] sm:$0xff]
        %v2873 = vld [vmem:[#allocation2 + $0x159] sm:$0xff]
        %v2874 = vld [vmem:[#allocation2 + $0x169] sm:$0xff]
        %v2875 = vld [vmem:[#allocation2 + $0x171] sm:$0xff]
        %2908 = vrot.lane.b32.xlu0 %v2844, 40
        %v2909 = vpop.permute.xlu0 %2908
        %2910 = vrot.lane.b32.xlu0 %v2845, 40
        %v2911 = vpop.permute.xlu0 %2910
        %2912 = vrot.lane.b32.xlu0 %v2846, 40
        %v2913 = vpop.permute.xlu0 %2912
        %2914 = vrot.lane.b32.xlu0 %v2847, 40
        %v2915 = vpop.permute.xlu0 %2914
        %2916 = vrot.lane.b32.xlu0 %v2848, 40
        %v2917 = vpop.permute.xlu0 %2916
        %2918 = vrot.lane.b32.xlu0 %v2849, 40
        %v2919 = vpop.permute.xlu0 %2918
        %2920 = vrot.lane.b32.xlu0 %v2850, 40
        %v2921 = vpop.permute.xlu0 %2920
        %2922 = vrot.lane.b32.xlu0 %v2851, 40
        %v2923 = vpop.permute.xlu0 %2922
        %2924 = vrot.lane.b32.xlu0 %v2852, 40
        %v2925 = vpop.permute.xlu0 %2924
        %2926 = vrot.lane.b32.xlu0 %v2853, 40
        %v2927 = vpop.permute.xlu0 %2926
        %2928 = vrot.lane.b32.xlu0 %v2854, 40
        %v2929 = vpop.permute.xlu0 %2928
        %2930 = vrot.lane.b32.xlu0 %v2855, 40
        %v2931 = vpop.permute.xlu0 %2930
        %2932 = vrot.lane.b32.xlu0 %v2856, 40
        %v2933 = vpop.permute.xlu0 %2932
        %2934 = vrot.lane.b32.xlu0 %v2857, 40
        %v2935 = vpop.permute.xlu0 %2934
        %2936 = vrot.lane.b32.xlu0 %v2858, 40
        %v2937 = vpop.permute.xlu0 %2936
        %2938 = vrot.lane.b32.xlu0 %v2859, 40
        %v2939 = vpop.permute.xlu0 %2938
        %2940 = vrot.lane.b32.xlu0 %v2860, 40
        %v2941 = vpop.permute.xlu0 %2940
        %2942 = vrot.lane.b32.xlu0 %v2861, 40
        %v2943 = vpop.permute.xlu0 %2942
        %2944 = vrot.lane.b32.xlu0 %v2862, 40
        %v2945 = vpop.permute.xlu0 %2944
        %2946 = vrot.lane.b32.xlu0 %v2863, 40
        %v2947 = vpop.permute.xlu0 %2946
        %2948 = vrot.lane.b32.xlu0 %v2864, 40
        %v2949 = vpop.permute.xlu0 %2948
        %2950 = vrot.lane.b32.xlu0 %v2865, 40
        %v2951 = vpop.permute.xlu0 %2950
        %2952 = vrot.lane.b32.xlu0 %v2866, 40
        %v2953 = vpop.permute.xlu0 %2952
        %2954 = vrot.lane.b32.xlu0 %v2867, 40
        %v2955 = vpop.permute.xlu0 %2954
        %2956 = vrot.lane.b32.xlu0 %v2868, 40
        %v2957 = vpop.permute.xlu0 %2956
        %2958 = vrot.lane.b32.xlu0 %v2869, 40
        %v2959 = vpop.permute.xlu0 %2958
        %2960 = vrot.lane.b32.xlu0 %v2870, 40
        %v2961 = vpop.permute.xlu0 %2960
        %2962 = vrot.lane.b32.xlu0 %v2871, 40
        %v2963 = vpop.permute.xlu0 %2962
        %2964 = vrot.lane.b32.xlu0 %v2872, 40
        %v2965 = vpop.permute.xlu0 %2964
        %2966 = vrot.lane.b32.xlu0 %v2873, 40
        %v2967 = vpop.permute.xlu0 %2966
        %2968 = vrot.lane.b32.xlu0 %v2874, 40
        %v2969 = vpop.permute.xlu0 %2968
        %2970 = vrot.lane.b32.xlu0 %v2875, 40
        %v2971 = vpop.permute.xlu0 %2970
        %vm3004 = vcmask 425312
        %3005 = vst.msk [vmem:[#allocation3] sm:$0xff] %vm3004, %v2909
        %3006 = vst.msk [vmem:[#allocation3 + $0x10] sm:$0xff] %vm3004, %v2911
        %3007 = vst.msk [vmem:[#allocation3 + $0x20] sm:$0xff] %vm3004, %v2913
        %3008 = vst.msk [vmem:[#allocation3 + $0x30] sm:$0xff] %vm3004, %v2915
        %3009 = vst.msk [vmem:[#allocation3 + $0x40] sm:$0xff] %vm3004, %v2917
        %3010 = vst.msk [vmem:[#allocation3 + $0x50] sm:$0xff] %vm3004, %v2919
        %3011 = vst.msk [vmem:[#allocation3 + $0x60] sm:$0xff] %vm3004, %v2921
        %3012 = vst.msk [vmem:[#allocation3 + $0x70] sm:$0xff] %vm3004, %v2923
        %3013 = vst.msk [vmem:[#allocation3 + $0x80] sm:$0xff] %vm3004, %v2925
        %3014 = vst.msk [vmem:[#allocation3 + $0x90] sm:$0xff] %vm3004, %v2927
        %3015 = vst.msk [vmem:[#allocation3 + $0xa0] sm:$0xff] %vm3004, %v2929
        %3016 = vst.msk [vmem:[#allocation3 + $0xb0] sm:$0xff] %vm3004, %v2931
        %3017 = vst.msk [vmem:[#allocation3 + $0xc0] sm:$0xff] %vm3004, %v2933
        %3018 = vst.msk [vmem:[#allocation3 + $0xd0] sm:$0xff] %vm3004, %v2935
        %3019 = vst.msk [vmem:[#allocation3 + $0xe0] sm:$0xff] %vm3004, %v2937
        %3020 = vst.msk [vmem:[#allocation3 + $0xf0] sm:$0xff] %vm3004, %v2939
        %3021 = vst.msk [vmem:[#allocation3 + $0x100] sm:$0xff] %vm3004, %v2941
        %3022 = vst.msk [vmem:[#allocation3 + $0x110] sm:$0xff] %vm3004, %v2943
        %3023 = vst.msk [vmem:[#allocation3 + $0x120] sm:$0xff] %vm3004, %v2945
        %3024 = vst.msk [vmem:[#allocation3 + $0x130] sm:$0xff] %vm3004, %v2947
        %3025 = vst.msk [vmem:[#allocation3 + $0x140] sm:$0xff] %vm3004, %v2949
        %3026 = vst.msk [vmem:[#allocation3 + $0x150] sm:$0xff] %vm3004, %v2951
        %3027 = vst.msk [vmem:[#allocation3 + $0x160] sm:$0xff] %vm3004, %v2953
        %3028 = vst.msk [vmem:[#allocation3 + $0x170] sm:$0xff] %vm3004, %v2955
        %3029 = vst.msk [vmem:[#allocation3 + $0x180] sm:$0xff] %vm3004, %v2957
        %3030 = vst.msk [vmem:[#allocation3 + $0x190] sm:$0xff] %vm3004, %v2959
        %3031 = vst.msk [vmem:[#allocation3 + $0x1a0] sm:$0xff] %vm3004, %v2961
        %3032 = vst.msk [vmem:[#allocation3 + $0x1b0] sm:$0xff] %vm3004, %v2963
        %3033 = vst.msk [vmem:[#allocation3 + $0x1c0] sm:$0xff] %vm3004, %v2965
        %3034 = vst.msk [vmem:[#allocation3 + $0x1d0] sm:$0xff] %vm3004, %v2967
        %3035 = vst.msk [vmem:[#allocation3 + $0x1e0] sm:$0xff] %vm3004, %v2969
        %3036 = vst.msk [vmem:[#allocation3 + $0x1f0] sm:$0xff] %vm3004, %v2971
        %v3037 = vld [vmem:[#allocation2 + $0x2] sm:$0xff]
        %v3038 = vld [vmem:[#allocation2 + $0xa] sm:$0xff]
        %v3039 = vld [vmem:[#allocation2 + $0x1a] sm:$0xff]
        %v3040 = vld [vmem:[#allocation2 + $0x22] sm:$0xff]
        %v3041 = vld [vmem:[#allocation2 + $0x32] sm:$0xff]
        %v3042 = vld [vmem:[#allocation2 + $0x3a] sm:$0xff]
        %v3043 = vld [vmem:[#allocation2 + $0x4a] sm:$0xff]
        %v3044 = vld [vmem:[#allocation2 + $0x52] sm:$0xff]
        %v3045 = vld [vmem:[#allocation2 + $0x62] sm:$0xff]
        %v3046 = vld [vmem:[#allocation2 + $0x6a] sm:$0xff]
        %v3047 = vld [vmem:[#allocation2 + $0x7a] sm:$0xff]
        %v3048 = vld [vmem:[#allocation2 + $0x82] sm:$0xff]
        %v3049 = vld [vmem:[#allocation2 + $0x92] sm:$0xff]
        %v3050 = vld [vmem:[#allocation2 + $0x9a] sm:$0xff]
        %v3051 = vld [vmem:[#allocation2 + $0xaa] sm:$0xff]
        %v3052 = vld [vmem:[#allocation2 + $0xb2] sm:$0xff]
        %v3053 = vld [vmem:[#allocation2 + $0xc2] sm:$0xff]
        %v3054 = vld [vmem:[#allocation2 + $0xca] sm:$0xff]
        %v3055 = vld [vmem:[#allocation2 + $0xda] sm:$0xff]
        %v3056 = vld [vmem:[#allocation2 + $0xe2] sm:$0xff]
        %v3057 = vld [vmem:[#allocation2 + $0xf2] sm:$0xff]
        %v3058 = vld [vmem:[#allocation2 + $0xfa] sm:$0xff]
        %v3059 = vld [vmem:[#allocation2 + $0x10a] sm:$0xff]
        %v3060 = vld [vmem:[#allocation2 + $0x112] sm:$0xff]
        %v3061 = vld [vmem:[#allocation2 + $0x122] sm:$0xff]
        %v3062 = vld [vmem:[#allocation2 + $0x12a] sm:$0xff]
        %v3063 = vld [vmem:[#allocation2 + $0x13a] sm:$0xff]
        %v3064 = vld [vmem:[#allocation2 + $0x142] sm:$0xff]
        %v3065 = vld [vmem:[#allocation2 + $0x152] sm:$0xff]
        %v3066 = vld [vmem:[#allocation2 + $0x15a] sm:$0xff]
        %v3067 = vld [vmem:[#allocation2 + $0x16a] sm:$0xff]
        %v3068 = vld [vmem:[#allocation2 + $0x172] sm:$0xff]
        %3101 = vrot.lane.b32.xlu0 %v3037, 48
        %v3102 = vpop.permute.xlu0 %3101
        %3103 = vrot.lane.b32.xlu0 %v3038, 48
        %v3104 = vpop.permute.xlu0 %3103
        %3105 = vrot.lane.b32.xlu0 %v3039, 48
        %v3106 = vpop.permute.xlu0 %3105
        %3107 = vrot.lane.b32.xlu0 %v3040, 48
        %v3108 = vpop.permute.xlu0 %3107
        %3109 = vrot.lane.b32.xlu0 %v3041, 48
        %v3110 = vpop.permute.xlu0 %3109
        %3111 = vrot.lane.b32.xlu0 %v3042, 48
        %v3112 = vpop.permute.xlu0 %3111
        %3113 = vrot.lane.b32.xlu0 %v3043, 48
        %v3114 = vpop.permute.xlu0 %3113
        %3115 = vrot.lane.b32.xlu0 %v3044, 48
        %v3116 = vpop.permute.xlu0 %3115
        %3117 = vrot.lane.b32.xlu0 %v3045, 48
        %v3118 = vpop.permute.xlu0 %3117
        %3119 = vrot.lane.b32.xlu0 %v3046, 48
        %v3120 = vpop.permute.xlu0 %3119
        %3121 = vrot.lane.b32.xlu0 %v3047, 48
        %v3122 = vpop.permute.xlu0 %3121
        %3123 = vrot.lane.b32.xlu0 %v3048, 48
        %v3124 = vpop.permute.xlu0 %3123
        %3125 = vrot.lane.b32.xlu0 %v3049, 48
        %v3126 = vpop.permute.xlu0 %3125
        %3127 = vrot.lane.b32.xlu0 %v3050, 48
        %v3128 = vpop.permute.xlu0 %3127
        %3129 = vrot.lane.b32.xlu0 %v3051, 48
        %v3130 = vpop.permute.xlu0 %3129
        %3131 = vrot.lane.b32.xlu0 %v3052, 48
        %v3132 = vpop.permute.xlu0 %3131
        %3133 = vrot.lane.b32.xlu0 %v3053, 48
        %v3134 = vpop.permute.xlu0 %3133
        %3135 = vrot.lane.b32.xlu0 %v3054, 48
        %v3136 = vpop.permute.xlu0 %3135
        %3137 = vrot.lane.b32.xlu0 %v3055, 48
        %v3138 = vpop.permute.xlu0 %3137
        %3139 = vrot.lane.b32.xlu0 %v3056, 48
        %v3140 = vpop.permute.xlu0 %3139
        %3141 = vrot.lane.b32.xlu0 %v3057, 48
        %v3142 = vpop.permute.xlu0 %3141
        %3143 = vrot.lane.b32.xlu0 %v3058, 48
        %v3144 = vpop.permute.xlu0 %3143
        %3145 = vrot.lane.b32.xlu0 %v3059, 48
        %v3146 = vpop.permute.xlu0 %3145
        %3147 = vrot.lane.b32.xlu0 %v3060, 48
        %v3148 = vpop.permute.xlu0 %3147
        %3149 = vrot.lane.b32.xlu0 %v3061, 48
        %v3150 = vpop.permute.xlu0 %3149
        %3151 = vrot.lane.b32.xlu0 %v3062, 48
        %v3152 = vpop.permute.xlu0 %3151
        %3153 = vrot.lane.b32.xlu0 %v3063, 48
        %v3154 = vpop.permute.xlu0 %3153
        %3155 = vrot.lane.b32.xlu0 %v3064, 48
        %v3156 = vpop.permute.xlu0 %3155
        %3157 = vrot.lane.b32.xlu0 %v3065, 48
        %v3158 = vpop.permute.xlu0 %3157
        %3159 = vrot.lane.b32.xlu0 %v3066, 48
        %v3160 = vpop.permute.xlu0 %3159
        %3161 = vrot.lane.b32.xlu0 %v3067, 48
        %v3162 = vpop.permute.xlu0 %3161
        %3163 = vrot.lane.b32.xlu0 %v3068, 48
        %v3164 = vpop.permute.xlu0 %3163
        %vm3197 = vcmask 490912
        %3198 = vst.msk [vmem:[#allocation3] sm:$0xff] %vm3197, %v3102
        %3199 = vst.msk [vmem:[#allocation3 + $0x10] sm:$0xff] %vm3197, %v3104
        %3200 = vst.msk [vmem:[#allocation3 + $0x20] sm:$0xff] %vm3197, %v3106
        %3201 = vst.msk [vmem:[#allocation3 + $0x30] sm:$0xff] %vm3197, %v3108
        %3202 = vst.msk [vmem:[#allocation3 + $0x40] sm:$0xff] %vm3197, %v3110
        %3203 = vst.msk [vmem:[#allocation3 + $0x50] sm:$0xff] %vm3197, %v3112
        %3204 = vst.msk [vmem:[#allocation3 + $0x60] sm:$0xff] %vm3197, %v3114
        %3205 = vst.msk [vmem:[#allocation3 + $0x70] sm:$0xff] %vm3197, %v3116
        %3206 = vst.msk [vmem:[#allocation3 + $0x80] sm:$0xff] %vm3197, %v3118
        %3207 = vst.msk [vmem:[#allocation3 + $0x90] sm:$0xff] %vm3197, %v3120
        %3208 = vst.msk [vmem:[#allocation3 + $0xa0] sm:$0xff] %vm3197, %v3122
        %3209 = vst.msk [vmem:[#allocation3 + $0xb0] sm:$0xff] %vm3197, %v3124
        %3210 = vst.msk [vmem:[#allocation3 + $0xc0] sm:$0xff] %vm3197, %v3126
        %3211 = vst.msk [vmem:[#allocation3 + $0xd0] sm:$0xff] %vm3197, %v3128
        %3212 = vst.msk [vmem:[#allocation3 + $0xe0] sm:$0xff] %vm3197, %v3130
        %3213 = vst.msk [vmem:[#allocation3 + $0xf0] sm:$0xff] %vm3197, %v3132
        %3214 = vst.msk [vmem:[#allocation3 + $0x100] sm:$0xff] %vm3197, %v3134
        %3215 = vst.msk [vmem:[#allocation3 + $0x110] sm:$0xff] %vm3197, %v3136
        %3216 = vst.msk [vmem:[#allocation3 + $0x120] sm:$0xff] %vm3197, %v3138
        %3217 = vst.msk [vmem:[#allocation3 + $0x130] sm:$0xff] %vm3197, %v3140
        %3218 = vst.msk [vmem:[#allocation3 + $0x140] sm:$0xff] %vm3197, %v3142
        %3219 = vst.msk [vmem:[#allocation3 + $0x150] sm:$0xff] %vm3197, %v3144
        %3220 = vst.msk [vmem:[#allocation3 + $0x160] sm:$0xff] %vm3197, %v3146
        %3221 = vst.msk [vmem:[#allocation3 + $0x170] sm:$0xff] %vm3197, %v3148
        %3222 = vst.msk [vmem:[#allocation3 + $0x180] sm:$0xff] %vm3197, %v3150
        %3223 = vst.msk [vmem:[#allocation3 + $0x190] sm:$0xff] %vm3197, %v3152
        %3224 = vst.msk [vmem:[#allocation3 + $0x1a0] sm:$0xff] %vm3197, %v3154
        %3225 = vst.msk [vmem:[#allocation3 + $0x1b0] sm:$0xff] %vm3197, %v3156
        %3226 = vst.msk [vmem:[#allocation3 + $0x1c0] sm:$0xff] %vm3197, %v3158
        %3227 = vst.msk [vmem:[#allocation3 + $0x1d0] sm:$0xff] %vm3197, %v3160
        %3228 = vst.msk [vmem:[#allocation3 + $0x1e0] sm:$0xff] %vm3197, %v3162
        %3229 = vst.msk [vmem:[#allocation3 + $0x1f0] sm:$0xff] %vm3197, %v3164
        %v3230 = vld [vmem:[%s445] sm:$0xff]
        %v3231 = vld [vmem:[%s445 + $0x8] sm:$0xff]
        %v3232 = vld [vmem:[%s445 + $0x18] sm:$0xff]
        %v3233 = vld [vmem:[%s445 + $0x20] sm:$0xff]
        %v3234 = vld [vmem:[%s445 + $0x30] sm:$0xff]
        %v3235 = vld [vmem:[%s445 + $0x38] sm:$0xff]
        %v3236 = vld [vmem:[%s445 + $0x48] sm:$0xff]
        %v3237 = vld [vmem:[%s445 + $0x50] sm:$0xff]
        %v3238 = vld [vmem:[%s445 + $0x60] sm:$0xff]
        %v3239 = vld [vmem:[%s445 + $0x68] sm:$0xff]
        %v3240 = vld [vmem:[%s445 + $0x78] sm:$0xff]
        %v3241 = vld [vmem:[%s445 + $0x80] sm:$0xff]
        %v3242 = vld [vmem:[%s445 + $0x90] sm:$0xff]
        %v3243 = vld [vmem:[%s445 + $0x98] sm:$0xff]
        %v3244 = vld [vmem:[%s445 + $0xa8] sm:$0xff]
        %v3245 = vld [vmem:[%s445 + $0xb0] sm:$0xff]
        %v3246 = vld [vmem:[%s445 + $0xc0] sm:$0xff]
        %v3247 = vld [vmem:[%s445 + $0xc8] sm:$0xff]
        %v3248 = vld [vmem:[%s445 + $0xd8] sm:$0xff]
        %v3249 = vld [vmem:[%s445 + $0xe0] sm:$0xff]
        %v3250 = vld [vmem:[%s445 + $0xf0] sm:$0xff]
        %v3251 = vld [vmem:[%s445 + $0xf8] sm:$0xff]
        %v3252 = vld [vmem:[%s445 + $0x108] sm:$0xff]
        %v3253 = vld [vmem:[%s445 + $0x110] sm:$0xff]
        %v3254 = vld [vmem:[%s445 + $0x120] sm:$0xff]
        %v3255 = vld [vmem:[%s445 + $0x128] sm:$0xff]
        %v3256 = vld [vmem:[%s445 + $0x138] sm:$0xff]
        %v3257 = vld [vmem:[%s445 + $0x140] sm:$0xff]
        %v3258 = vld [vmem:[%s445 + $0x150] sm:$0xff]
        %v3259 = vld [vmem:[%s445 + $0x158] sm:$0xff]
        %v3260 = vld [vmem:[%s445 + $0x168] sm:$0xff]
        %v3261 = vld [vmem:[%s445 + $0x170] sm:$0xff]
        %3294 = vrot.lane.b32.xlu0 %v3230, 56
        %v3295 = vpop.permute.xlu0 %3294
        %3296 = vrot.lane.b32.xlu0 %v3231, 56
        %v3297 = vpop.permute.xlu0 %3296
        %3298 = vrot.lane.b32.xlu0 %v3232, 56
        %v3299 = vpop.permute.xlu0 %3298
        %3300 = vrot.lane.b32.xlu0 %v3233, 56
        %v3301 = vpop.permute.xlu0 %3300
        %3302 = vrot.lane.b32.xlu0 %v3234, 56
        %v3303 = vpop.permute.xlu0 %3302
        %3304 = vrot.lane.b32.xlu0 %v3235, 56
        %v3305 = vpop.permute.xlu0 %3304
        %3306 = vrot.lane.b32.xlu0 %v3236, 56
        %v3307 = vpop.permute.xlu0 %3306
        %3308 = vrot.lane.b32.xlu0 %v3237, 56
        %v3309 = vpop.permute.xlu0 %3308
        %3310 = vrot.lane.b32.xlu0 %v3238, 56
        %v3311 = vpop.permute.xlu0 %3310
        %3312 = vrot.lane.b32.xlu0 %v3239, 56
        %v3313 = vpop.permute.xlu0 %3312
        %3314 = vrot.lane.b32.xlu0 %v3240, 56
        %v3315 = vpop.permute.xlu0 %3314
        %3316 = vrot.lane.b32.xlu0 %v3241, 56
        %v3317 = vpop.permute.xlu0 %3316
        %3318 = vrot.lane.b32.xlu0 %v3242, 56
        %v3319 = vpop.permute.xlu0 %3318
        %3320 = vrot.lane.b32.xlu0 %v3243, 56
        %v3321 = vpop.permute.xlu0 %3320
        %3322 = vrot.lane.b32.xlu0 %v3244, 56
        %v3323 = vpop.permute.xlu0 %3322
        %3324 = vrot.lane.b32.xlu0 %v3245, 56
        %v3325 = vpop.permute.xlu0 %3324
        %3326 = vrot.lane.b32.xlu0 %v3246, 56
        %v3327 = vpop.permute.xlu0 %3326
        %3328 = vrot.lane.b32.xlu0 %v3247, 56
        %v3329 = vpop.permute.xlu0 %3328
        %3330 = vrot.lane.b32.xlu0 %v3248, 56
        %v3331 = vpop.permute.xlu0 %3330
        %3332 = vrot.lane.b32.xlu0 %v3249, 56
        %v3333 = vpop.permute.xlu0 %3332
        %3334 = vrot.lane.b32.xlu0 %v3250, 56
        %v3335 = vpop.permute.xlu0 %3334
        %3336 = vrot.lane.b32.xlu0 %v3251, 56
        %v3337 = vpop.permute.xlu0 %3336
        %3338 = vrot.lane.b32.xlu0 %v3252, 56
        %v3339 = vpop.permute.xlu0 %3338
        %3340 = vrot.lane.b32.xlu0 %v3253, 56
        %v3341 = vpop.permute.xlu0 %3340
        %3342 = vrot.lane.b32.xlu0 %v3254, 56
        %v3343 = vpop.permute.xlu0 %3342
        %3344 = vrot.lane.b32.xlu0 %v3255, 56
        %v3345 = vpop.permute.xlu0 %3344
        %3346 = vrot.lane.b32.xlu0 %v3256, 56
        %v3347 = vpop.permute.xlu0 %3346
        %3348 = vrot.lane.b32.xlu0 %v3257, 56
        %v3349 = vpop.permute.xlu0 %3348
        %3350 = vrot.lane.b32.xlu0 %v3258, 56
        %v3351 = vpop.permute.xlu0 %3350
        %3352 = vrot.lane.b32.xlu0 %v3259, 56
        %v3353 = vpop.permute.xlu0 %3352
        %3354 = vrot.lane.b32.xlu0 %v3260, 56
        %v3355 = vpop.permute.xlu0 %3354
        %3356 = vrot.lane.b32.xlu0 %v3261, 56
        %v3357 = vpop.permute.xlu0 %3356
        %vm3390 = vcmask 556512
        %3391 = vst.msk [vmem:[#allocation3] sm:$0xff] %vm3390, %v3295
        %3392 = vst.msk [vmem:[#allocation3 + $0x10] sm:$0xff] %vm3390, %v3297
        %3393 = vst.msk [vmem:[#allocation3 + $0x20] sm:$0xff] %vm3390, %v3299
        %3394 = vst.msk [vmem:[#allocation3 + $0x30] sm:$0xff] %vm3390, %v3301
        %3395 = vst.msk [vmem:[#allocation3 + $0x40] sm:$0xff] %vm3390, %v3303
        %3396 = vst.msk [vmem:[#allocation3 + $0x50] sm:$0xff] %vm3390, %v3305
        %3397 = vst.msk [vmem:[#allocation3 + $0x60] sm:$0xff] %vm3390, %v3307
        %3398 = vst.msk [vmem:[#allocation3 + $0x70] sm:$0xff] %vm3390, %v3309
        %3399 = vst.msk [vmem:[#allocation3 + $0x80] sm:$0xff] %vm3390, %v3311
        %3400 = vst.msk [vmem:[#allocation3 + $0x90] sm:$0xff] %vm3390, %v3313
        %3401 = vst.msk [vmem:[#allocation3 + $0xa0] sm:$0xff] %vm3390, %v3315
        %3402 = vst.msk [vmem:[#allocation3 + $0xb0] sm:$0xff] %vm3390, %v3317
        %3403 = vst.msk [vmem:[#allocation3 + $0xc0] sm:$0xff] %vm3390, %v3319
        %3404 = vst.msk [vmem:[#allocation3 + $0xd0] sm:$0xff] %vm3390, %v3321
        %3405 = vst.msk [vmem:[#allocation3 + $0xe0] sm:$0xff] %vm3390, %v3323
        %3406 = vst.msk [vmem:[#allocation3 + $0xf0] sm:$0xff] %vm3390, %v3325
        %3407 = vst.msk [vmem:[#allocation3 + $0x100] sm:$0xff] %vm3390, %v3327
        %3408 = vst.msk [vmem:[#allocation3 + $0x110] sm:$0xff] %vm3390, %v3329
        %3409 = vst.msk [vmem:[#allocation3 + $0x120] sm:$0xff] %vm3390, %v3331
        %3410 = vst.msk [vmem:[#allocation3 + $0x130] sm:$0xff] %vm3390, %v3333
        %3411 = vst.msk [vmem:[#allocation3 + $0x140] sm:$0xff] %vm3390, %v3335
        %3412 = vst.msk [vmem:[#allocation3 + $0x150] sm:$0xff] %vm3390, %v3337
        %3413 = vst.msk [vmem:[#allocation3 + $0x160] sm:$0xff] %vm3390, %v3339
        %3414 = vst.msk [vmem:[#allocation3 + $0x170] sm:$0xff] %vm3390, %v3341
        %3415 = vst.msk [vmem:[#allocation3 + $0x180] sm:$0xff] %vm3390, %v3343
        %3416 = vst.msk [vmem:[#allocation3 + $0x190] sm:$0xff] %vm3390, %v3345
        %3417 = vst.msk [vmem:[#allocation3 + $0x1a0] sm:$0xff] %vm3390, %v3347
        %3418 = vst.msk [vmem:[#allocation3 + $0x1b0] sm:$0xff] %vm3390, %v3349
        %3419 = vst.msk [vmem:[#allocation3 + $0x1c0] sm:$0xff] %vm3390, %v3351
        %3420 = vst.msk [vmem:[#allocation3 + $0x1d0] sm:$0xff] %vm3390, %v3353
        %3421 = vst.msk [vmem:[#allocation3 + $0x1e0] sm:$0xff] %vm3390, %v3355
        %3422 = vst.msk [vmem:[#allocation3 + $0x1f0] sm:$0xff] %vm3390, %v3357
        %v3423 = vld [vmem:[%s445 + $0x1] sm:$0xff]
        %v3424 = vld [vmem:[%s445 + $0x9] sm:$0xff]
        %v3425 = vld [vmem:[%s445 + $0x19] sm:$0xff]
        %v3426 = vld [vmem:[%s445 + $0x21] sm:$0xff]
        %v3427 = vld [vmem:[%s445 + $0x31] sm:$0xff]
        %v3428 = vld [vmem:[%s445 + $0x39] sm:$0xff]
        %v3429 = vld [vmem:[%s445 + $0x49] sm:$0xff]
        %v3430 = vld [vmem:[%s445 + $0x51] sm:$0xff]
        %v3431 = vld [vmem:[%s445 + $0x61] sm:$0xff]
        %v3432 = vld [vmem:[%s445 + $0x69] sm:$0xff]
        %v3433 = vld [vmem:[%s445 + $0x79] sm:$0xff]
        %v3434 = vld [vmem:[%s445 + $0x81] sm:$0xff]
        %v3435 = vld [vmem:[%s445 + $0x91] sm:$0xff]
        %v3436 = vld [vmem:[%s445 + $0x99] sm:$0xff]
        %v3437 = vld [vmem:[%s445 + $0xa9] sm:$0xff]
        %v3438 = vld [vmem:[%s445 + $0xb1] sm:$0xff]
        %v3439 = vld [vmem:[%s445 + $0xc1] sm:$0xff]
        %v3440 = vld [vmem:[%s445 + $0xc9] sm:$0xff]
        %v3441 = vld [vmem:[%s445 + $0xd9] sm:$0xff]
        %v3442 = vld [vmem:[%s445 + $0xe1] sm:$0xff]
        %v3443 = vld [vmem:[%s445 + $0xf1] sm:$0xff]
        %v3444 = vld [vmem:[%s445 + $0xf9] sm:$0xff]
        %v3445 = vld [vmem:[%s445 + $0x109] sm:$0xff]
        %v3446 = vld [vmem:[%s445 + $0x111] sm:$0xff]
        %v3447 = vld [vmem:[%s445 + $0x121] sm:$0xff]
        %v3448 = vld [vmem:[%s445 + $0x129] sm:$0xff]
        %v3449 = vld [vmem:[%s445 + $0x139] sm:$0xff]
        %v3450 = vld [vmem:[%s445 + $0x141] sm:$0xff]
        %v3451 = vld [vmem:[%s445 + $0x151] sm:$0xff]
        %v3452 = vld [vmem:[%s445 + $0x159] sm:$0xff]
        %v3453 = vld [vmem:[%s445 + $0x169] sm:$0xff]
        %v3454 = vld [vmem:[%s445 + $0x171] sm:$0xff]
        %3487 = vrot.lane.b32.xlu0 %v3423, 64
        %v3488 = vpop.permute.xlu0 %3487
        %3489 = vrot.lane.b32.xlu0 %v3424, 64
        %v3490 = vpop.permute.xlu0 %3489
        %3491 = vrot.lane.b32.xlu0 %v3425, 64
        %v3492 = vpop.permute.xlu0 %3491
        %3493 = vrot.lane.b32.xlu0 %v3426, 64
        %v3494 = vpop.permute.xlu0 %3493
        %3495 = vrot.lane.b32.xlu0 %v3427, 64
        %v3496 = vpop.permute.xlu0 %3495
        %3497 = vrot.lane.b32.xlu0 %v3428, 64
        %v3498 = vpop.permute.xlu0 %3497
        %3499 = vrot.lane.b32.xlu0 %v3429, 64
        %v3500 = vpop.permute.xlu0 %3499
        %3501 = vrot.lane.b32.xlu0 %v3430, 64
        %v3502 = vpop.permute.xlu0 %3501
        %3503 = vrot.lane.b32.xlu0 %v3431, 64
        %v3504 = vpop.permute.xlu0 %3503
        %3505 = vrot.lane.b32.xlu0 %v3432, 64
        %v3506 = vpop.permute.xlu0 %3505
        %3507 = vrot.lane.b32.xlu0 %v3433, 64
        %v3508 = vpop.permute.xlu0 %3507
        %3509 = vrot.lane.b32.xlu0 %v3434, 64
        %v3510 = vpop.permute.xlu0 %3509
        %3511 = vrot.lane.b32.xlu0 %v3435, 64
        %v3512 = vpop.permute.xlu0 %3511
        %3513 = vrot.lane.b32.xlu0 %v3436, 64
        %v3514 = vpop.permute.xlu0 %3513
        %3515 = vrot.lane.b32.xlu0 %v3437, 64
        %v3516 = vpop.permute.xlu0 %3515
        %3517 = vrot.lane.b32.xlu0 %v3438, 64
        %v3518 = vpop.permute.xlu0 %3517
        %3519 = vrot.lane.b32.xlu0 %v3439, 64
        %v3520 = vpop.permute.xlu0 %3519
        %3521 = vrot.lane.b32.xlu0 %v3440, 64
        %v3522 = vpop.permute.xlu0 %3521
        %3523 = vrot.lane.b32.xlu0 %v3441, 64
        %v3524 = vpop.permute.xlu0 %3523
        %3525 = vrot.lane.b32.xlu0 %v3442, 64
        %v3526 = vpop.permute.xlu0 %3525
        %3527 = vrot.lane.b32.xlu0 %v3443, 64
        %v3528 = vpop.permute.xlu0 %3527
        %3529 = vrot.lane.b32.xlu0 %v3444, 64
        %v3530 = vpop.permute.xlu0 %3529
        %3531 = vrot.lane.b32.xlu0 %v3445, 64
        %v3532 = vpop.permute.xlu0 %3531
        %3533 = vrot.lane.b32.xlu0 %v3446, 64
        %v3534 = vpop.permute.xlu0 %3533
        %3535 = vrot.lane.b32.xlu0 %v3447, 64
        %v3536 = vpop.permute.xlu0 %3535
        %3537 = vrot.lane.b32.xlu0 %v3448, 64
        %v3538 = vpop.permute.xlu0 %3537
        %3539 = vrot.lane.b32.xlu0 %v3449, 64
        %v3540 = vpop.permute.xlu0 %3539
        %3541 = vrot.lane.b32.xlu0 %v3450, 64
        %v3542 = vpop.permute.xlu0 %3541
        %3543 = vrot.lane.b32.xlu0 %v3451, 64
        %v3544 = vpop.permute.xlu0 %3543
        %3545 = vrot.lane.b32.xlu0 %v3452, 64
        %v3546 = vpop.permute.xlu0 %3545
        %3547 = vrot.lane.b32.xlu0 %v3453, 64
        %v3548 = vpop.permute.xlu0 %3547
        %3549 = vrot.lane.b32.xlu0 %v3454, 64
        %v3550 = vpop.permute.xlu0 %3549
        %vm3583 = vcmask 622112
        %3584 = vst.msk [vmem:[#allocation3] sm:$0xff] %vm3583, %v3488
        %3585 = vst.msk [vmem:[#allocation3 + $0x10] sm:$0xff] %vm3583, %v3490
        %3586 = vst.msk [vmem:[#allocation3 + $0x20] sm:$0xff] %vm3583, %v3492
        %3587 = vst.msk [vmem:[#allocation3 + $0x30] sm:$0xff] %vm3583, %v3494
        %3588 = vst.msk [vmem:[#allocation3 + $0x40] sm:$0xff] %vm3583, %v3496
        %3589 = vst.msk [vmem:[#allocation3 + $0x50] sm:$0xff] %vm3583, %v3498
        %3590 = vst.msk [vmem:[#allocation3 + $0x60] sm:$0xff] %vm3583, %v3500
        %3591 = vst.msk [vmem:[#allocation3 + $0x70] sm:$0xff] %vm3583, %v3502
        %3592 = vst.msk [vmem:[#allocation3 + $0x80] sm:$0xff] %vm3583, %v3504
        %3593 = vst.msk [vmem:[#allocation3 + $0x90] sm:$0xff] %vm3583, %v3506
        %3594 = vst.msk [vmem:[#allocation3 + $0xa0] sm:$0xff] %vm3583, %v3508
        %3595 = vst.msk [vmem:[#allocation3 + $0xb0] sm:$0xff] %vm3583, %v3510
        %3596 = vst.msk [vmem:[#allocation3 + $0xc0] sm:$0xff] %vm3583, %v3512
        %3597 = vst.msk [vmem:[#allocation3 + $0xd0] sm:$0xff] %vm3583, %v3514
        %3598 = vst.msk [vmem:[#allocation3 + $0xe0] sm:$0xff] %vm3583, %v3516
        %3599 = vst.msk [vmem:[#allocation3 + $0xf0] sm:$0xff] %vm3583, %v3518
        %3600 = vst.msk [vmem:[#allocation3 + $0x100] sm:$0xff] %vm3583, %v3520
        %3601 = vst.msk [vmem:[#allocation3 + $0x110] sm:$0xff] %vm3583, %v3522
        %3602 = vst.msk [vmem:[#allocation3 + $0x120] sm:$0xff] %vm3583, %v3524
        %3603 = vst.msk [vmem:[#allocation3 + $0x130] sm:$0xff] %vm3583, %v3526
        %3604 = vst.msk [vmem:[#allocation3 + $0x140] sm:$0xff] %vm3583, %v3528
        %3605 = vst.msk [vmem:[#allocation3 + $0x150] sm:$0xff] %vm3583, %v3530
        %3606 = vst.msk [vmem:[#allocation3 + $0x160] sm:$0xff] %vm3583, %v3532
        %3607 = vst.msk [vmem:[#allocation3 + $0x170] sm:$0xff] %vm3583, %v3534
        %3608 = vst.msk [vmem:[#allocation3 + $0x180] sm:$0xff] %vm3583, %v3536
        %3609 = vst.msk [vmem:[#allocation3 + $0x190] sm:$0xff] %vm3583, %v3538
        %3610 = vst.msk [vmem:[#allocation3 + $0x1a0] sm:$0xff] %vm3583, %v3540
        %3611 = vst.msk [vmem:[#allocation3 + $0x1b0] sm:$0xff] %vm3583, %v3542
        %3612 = vst.msk [vmem:[#allocation3 + $0x1c0] sm:$0xff] %vm3583, %v3544
        %3613 = vst.msk [vmem:[#allocation3 + $0x1d0] sm:$0xff] %vm3583, %v3546
        %3614 = vst.msk [vmem:[#allocation3 + $0x1e0] sm:$0xff] %vm3583, %v3548
        %3615 = vst.msk [vmem:[#allocation3 + $0x1f0] sm:$0xff] %vm3583, %v3550
        %v3616 = vld [vmem:[%s445 + $0x2] sm:$0xff]
        %v3617 = vld [vmem:[%s445 + $0xa] sm:$0xff]
        %v3618 = vld [vmem:[%s445 + $0x1a] sm:$0xff]
        %v3619 = vld [vmem:[%s445 + $0x22] sm:$0xff]
        %v3620 = vld [vmem:[%s445 + $0x32] sm:$0xff]
        %v3621 = vld [vmem:[%s445 + $0x3a] sm:$0xff]
        %v3622 = vld [vmem:[%s445 + $0x4a] sm:$0xff]
        %v3623 = vld [vmem:[%s445 + $0x52] sm:$0xff]
        %v3624 = vld [vmem:[%s445 + $0x62] sm:$0xff]
        %v3625 = vld [vmem:[%s445 + $0x6a] sm:$0xff]
        %v3626 = vld [vmem:[%s445 + $0x7a] sm:$0xff]
        %v3627 = vld [vmem:[%s445 + $0x82] sm:$0xff]
        %v3628 = vld [vmem:[%s445 + $0x92] sm:$0xff]
        %v3629 = vld [vmem:[%s445 + $0x9a] sm:$0xff]
        %v3630 = vld [vmem:[%s445 + $0xaa] sm:$0xff]
        %v3631 = vld [vmem:[%s445 + $0xb2] sm:$0xff]
        %v3632 = vld [vmem:[%s445 + $0xc2] sm:$0xff]
        %v3633 = vld [vmem:[%s445 + $0xca] sm:$0xff]
        %v3634 = vld [vmem:[%s445 + $0xda] sm:$0xff]
        %v3635 = vld [vmem:[%s445 + $0xe2] sm:$0xff]
        %v3636 = vld [vmem:[%s445 + $0xf2] sm:$0xff]
        %v3637 = vld [vmem:[%s445 + $0xfa] sm:$0xff]
        %v3638 = vld [vmem:[%s445 + $0x10a] sm:$0xff]
        %v3639 = vld [vmem:[%s445 + $0x112] sm:$0xff]
        %v3640 = vld [vmem:[%s445 + $0x122] sm:$0xff]
        %v3641 = vld [vmem:[%s445 + $0x12a] sm:$0xff]
        %v3642 = vld [vmem:[%s445 + $0x13a] sm:$0xff]
        %v3643 = vld [vmem:[%s445 + $0x142] sm:$0xff]
        %v3644 = vld [vmem:[%s445 + $0x152] sm:$0xff]
        %v3645 = vld [vmem:[%s445 + $0x15a] sm:$0xff]
        %v3646 = vld [vmem:[%s445 + $0x16a] sm:$0xff]
        %v3647 = vld [vmem:[%s445 + $0x172] sm:$0xff]
        %3680 = vrot.lane.b32.xlu0 %v3616, 72
        %v3681 = vpop.permute.xlu0 %3680
        %3682 = vrot.lane.b32.xlu0 %v3617, 72
        %v3683 = vpop.permute.xlu0 %3682
        %3684 = vrot.lane.b32.xlu0 %v3618, 72
        %v3685 = vpop.permute.xlu0 %3684
        %3686 = vrot.lane.b32.xlu0 %v3619, 72
        %v3687 = vpop.permute.xlu0 %3686
        %3688 = vrot.lane.b32.xlu0 %v3620, 72
        %v3689 = vpop.permute.xlu0 %3688
        %3690 = vrot.lane.b32.xlu0 %v3621, 72
        %v3691 = vpop.permute.xlu0 %3690
        %3692 = vrot.lane.b32.xlu0 %v3622, 72
        %v3693 = vpop.permute.xlu0 %3692
        %3694 = vrot.lane.b32.xlu0 %v3623, 72
        %v3695 = vpop.permute.xlu0 %3694
        %3696 = vrot.lane.b32.xlu0 %v3624, 72
        %v3697 = vpop.permute.xlu0 %3696
        %3698 = vrot.lane.b32.xlu0 %v3625, 72
        %v3699 = vpop.permute.xlu0 %3698
        %3700 = vrot.lane.b32.xlu0 %v3626, 72
        %v3701 = vpop.permute.xlu0 %3700
        %3702 = vrot.lane.b32.xlu0 %v3627, 72
        %v3703 = vpop.permute.xlu0 %3702
        %3704 = vrot.lane.b32.xlu0 %v3628, 72
        %v3705 = vpop.permute.xlu0 %3704
        %3706 = vrot.lane.b32.xlu0 %v3629, 72
        %v3707 = vpop.permute.xlu0 %3706
        %3708 = vrot.lane.b32.xlu0 %v3630, 72
        %v3709 = vpop.permute.xlu0 %3708
        %3710 = vrot.lane.b32.xlu0 %v3631, 72
        %v3711 = vpop.permute.xlu0 %3710
        %3712 = vrot.lane.b32.xlu0 %v3632, 72
        %v3713 = vpop.permute.xlu0 %3712
        %3714 = vrot.lane.b32.xlu0 %v3633, 72
        %v3715 = vpop.permute.xlu0 %3714
        %3716 = vrot.lane.b32.xlu0 %v3634, 72
        %v3717 = vpop.permute.xlu0 %3716
        %3718 = vrot.lane.b32.xlu0 %v3635, 72
        %v3719 = vpop.permute.xlu0 %3718
        %3720 = vrot.lane.b32.xlu0 %v3636, 72
        %v3721 = vpop.permute.xlu0 %3720
        %3722 = vrot.lane.b32.xlu0 %v3637, 72
        %v3723 = vpop.permute.xlu0 %3722
        %3724 = vrot.lane.b32.xlu0 %v3638, 72
        %v3725 = vpop.permute.xlu0 %3724
        %3726 = vrot.lane.b32.xlu0 %v3639, 72
        %v3727 = vpop.permute.xlu0 %3726
        %3728 = vrot.lane.b32.xlu0 %v3640, 72
        %v3729 = vpop.permute.xlu0 %3728
        %3730 = vrot.lane.b32.xlu0 %v3641, 72
        %v3731 = vpop.permute.xlu0 %3730
        %3732 = vrot.lane.b32.xlu0 %v3642, 72
        %v3733 = vpop.permute.xlu0 %3732
        %3734 = vrot.lane.b32.xlu0 %v3643, 72
        %v3735 = vpop.permute.xlu0 %3734
        %3736 = vrot.lane.b32.xlu0 %v3644, 72
        %v3737 = vpop.permute.xlu0 %3736
        %3738 = vrot.lane.b32.xlu0 %v3645, 72
        %v3739 = vpop.permute.xlu0 %3738
        %3740 = vrot.lane.b32.xlu0 %v3646, 72
        %v3741 = vpop.permute.xlu0 %3740
        %3742 = vrot.lane.b32.xlu0 %v3647, 72
        %v3743 = vpop.permute.xlu0 %3742
        %vm3776 = vcmask 687712
        %3777 = vst.msk [vmem:[#allocation3] sm:$0xff] %vm3776, %v3681
        %3778 = vst.msk [vmem:[#allocation3 + $0x10] sm:$0xff] %vm3776, %v3683
        %3779 = vst.msk [vmem:[#allocation3 + $0x20] sm:$0xff] %vm3776, %v3685
        %3780 = vst.msk [vmem:[#allocation3 + $0x30] sm:$0xff] %vm3776, %v3687
        %3781 = vst.msk [vmem:[#allocation3 + $0x40] sm:$0xff] %vm3776, %v3689
        %3782 = vst.msk [vmem:[#allocation3 + $0x50] sm:$0xff] %vm3776, %v3691
        %3783 = vst.msk [vmem:[#allocation3 + $0x60] sm:$0xff] %vm3776, %v3693
        %3784 = vst.msk [vmem:[#allocation3 + $0x70] sm:$0xff] %vm3776, %v3695
        %3785 = vst.msk [vmem:[#allocation3 + $0x80] sm:$0xff] %vm3776, %v3697
        %3786 = vst.msk [vmem:[#allocation3 + $0x90] sm:$0xff] %vm3776, %v3699
        %3787 = vst.msk [vmem:[#allocation3 + $0xa0] sm:$0xff] %vm3776, %v3701
        %3788 = vst.msk [vmem:[#allocation3 + $0xb0] sm:$0xff] %vm3776, %v3703
        %3789 = vst.msk [vmem:[#allocation3 + $0xc0] sm:$0xff] %vm3776, %v3705
        %3790 = vst.msk [vmem:[#allocation3 + $0xd0] sm:$0xff] %vm3776, %v3707
        %3791 = vst.msk [vmem:[#allocation3 + $0xe0] sm:$0xff] %vm3776, %v3709
        %3792 = vst.msk [vmem:[#allocation3 + $0xf0] sm:$0xff] %vm3776, %v3711
        %3793 = vst.msk [vmem:[#allocation3 + $0x100] sm:$0xff] %vm3776, %v3713
        %3794 = vst.msk [vmem:[#allocation3 + $0x110] sm:$0xff] %vm3776, %v3715
        %3795 = vst.msk [vmem:[#allocation3 + $0x120] sm:$0xff] %vm3776, %v3717
        %3796 = vst.msk [vmem:[#allocation3 + $0x130] sm:$0xff] %vm3776, %v3719
        %3797 = vst.msk [vmem:[#allocation3 + $0x140] sm:$0xff] %vm3776, %v3721
        %3798 = vst.msk [vmem:[#allocation3 + $0x150] sm:$0xff] %vm3776, %v3723
        %3799 = vst.msk [vmem:[#allocation3 + $0x160] sm:$0xff] %vm3776, %v3725
        %3800 = vst.msk [vmem:[#allocation3 + $0x170] sm:$0xff] %vm3776, %v3727
        %3801 = vst.msk [vmem:[#allocation3 + $0x180] sm:$0xff] %vm3776, %v3729
        %3802 = vst.msk [vmem:[#allocation3 + $0x190] sm:$0xff] %vm3776, %v3731
        %3803 = vst.msk [vmem:[#allocation3 + $0x1a0] sm:$0xff] %vm3776, %v3733
        %3804 = vst.msk [vmem:[#allocation3 + $0x1b0] sm:$0xff] %vm3776, %v3735
        %3805 = vst.msk [vmem:[#allocation3 + $0x1c0] sm:$0xff] %vm3776, %v3737
        %3806 = vst.msk [vmem:[#allocation3 + $0x1d0] sm:$0xff] %vm3776, %v3739
        %3807 = vst.msk [vmem:[#allocation3 + $0x1e0] sm:$0xff] %vm3776, %v3741
        %3808 = vst.msk [vmem:[#allocation3 + $0x1f0] sm:$0xff] %vm3776, %v3743
        %v3809 = vld [vmem:[%s1508] sm:$0xff]
        %v3810 = vld [vmem:[%s1508 + $0x8] sm:$0xff]
        %v3811 = vld [vmem:[%s1508 + $0x18] sm:$0xff]
        %v3812 = vld [vmem:[%s1508 + $0x20] sm:$0xff]
        %v3813 = vld [vmem:[%s1508 + $0x30] sm:$0xff]
        %v3814 = vld [vmem:[%s1508 + $0x38] sm:$0xff]
        %v3815 = vld [vmem:[%s1508 + $0x48] sm:$0xff]
        %v3816 = vld [vmem:[%s1508 + $0x50] sm:$0xff]
        %v3817 = vld [vmem:[%s1508 + $0x60] sm:$0xff]
        %v3818 = vld [vmem:[%s1508 + $0x68] sm:$0xff]
        %v3819 = vld [vmem:[%s1508 + $0x78] sm:$0xff]
        %v3820 = vld [vmem:[%s1508 + $0x80] sm:$0xff]
        %v3821 = vld [vmem:[%s1508 + $0x90] sm:$0xff]
        %v3822 = vld [vmem:[%s1508 + $0x98] sm:$0xff]
        %v3823 = vld [vmem:[%s1508 + $0xa8] sm:$0xff]
        %v3824 = vld [vmem:[%s1508 + $0xb0] sm:$0xff]
        %v3825 = vld [vmem:[%s1508 + $0xc0] sm:$0xff]
        %v3826 = vld [vmem:[%s1508 + $0xc8] sm:$0xff]
        %v3827 = vld [vmem:[%s1508 + $0xd8] sm:$0xff]
        %v3828 = vld [vmem:[%s1508 + $0xe0] sm:$0xff]
        %v3829 = vld [vmem:[%s1508 + $0xf0] sm:$0xff]
        %v3830 = vld [vmem:[%s1508 + $0xf8] sm:$0xff]
        %v3831 = vld [vmem:[%s1508 + $0x108] sm:$0xff]
        %v3832 = vld [vmem:[%s1508 + $0x110] sm:$0xff]
        %v3833 = vld [vmem:[%s1508 + $0x120] sm:$0xff]
        %v3834 = vld [vmem:[%s1508 + $0x128] sm:$0xff]
        %v3835 = vld [vmem:[%s1508 + $0x138] sm:$0xff]
        %v3836 = vld [vmem:[%s1508 + $0x140] sm:$0xff]
        %v3837 = vld [vmem:[%s1508 + $0x150] sm:$0xff]
        %v3838 = vld [vmem:[%s1508 + $0x158] sm:$0xff]
        %v3839 = vld [vmem:[%s1508 + $0x168] sm:$0xff]
        %v3840 = vld [vmem:[%s1508 + $0x170] sm:$0xff]
        %3873 = vrot.lane.b32.xlu0 %v3809, 80
        %v3874 = vpop.permute.xlu0 %3873
        %3875 = vrot.lane.b32.xlu0 %v3810, 80
        %v3876 = vpop.permute.xlu0 %3875
        %3877 = vrot.lane.b32.xlu0 %v3811, 80
        %v3878 = vpop.permute.xlu0 %3877
        %3879 = vrot.lane.b32.xlu0 %v3812, 80
        %v3880 = vpop.permute.xlu0 %3879
        %3881 = vrot.lane.b32.xlu0 %v3813, 80
        %v3882 = vpop.permute.xlu0 %3881
        %3883 = vrot.lane.b32.xlu0 %v3814, 80
        %v3884 = vpop.permute.xlu0 %3883
        %3885 = vrot.lane.b32.xlu0 %v3815, 80
        %v3886 = vpop.permute.xlu0 %3885
        %3887 = vrot.lane.b32.xlu0 %v3816, 80
        %v3888 = vpop.permute.xlu0 %3887
        %3889 = vrot.lane.b32.xlu0 %v3817, 80
        %v3890 = vpop.permute.xlu0 %3889
        %3891 = vrot.lane.b32.xlu0 %v3818, 80
        %v3892 = vpop.permute.xlu0 %3891
        %3893 = vrot.lane.b32.xlu0 %v3819, 80
        %v3894 = vpop.permute.xlu0 %3893
        %3895 = vrot.lane.b32.xlu0 %v3820, 80
        %v3896 = vpop.permute.xlu0 %3895
        %3897 = vrot.lane.b32.xlu0 %v3821, 80
        %v3898 = vpop.permute.xlu0 %3897
        %3899 = vrot.lane.b32.xlu0 %v3822, 80
        %v3900 = vpop.permute.xlu0 %3899
        %3901 = vrot.lane.b32.xlu0 %v3823, 80
        %v3902 = vpop.permute.xlu0 %3901
        %3903 = vrot.lane.b32.xlu0 %v3824, 80
        %v3904 = vpop.permute.xlu0 %3903
        %3905 = vrot.lane.b32.xlu0 %v3825, 80
        %v3906 = vpop.permute.xlu0 %3905
        %3907 = vrot.lane.b32.xlu0 %v3826, 80
        %v3908 = vpop.permute.xlu0 %3907
        %3909 = vrot.lane.b32.xlu0 %v3827, 80
        %v3910 = vpop.permute.xlu0 %3909
        %3911 = vrot.lane.b32.xlu0 %v3828, 80
        %v3912 = vpop.permute.xlu0 %3911
        %3913 = vrot.lane.b32.xlu0 %v3829, 80
        %v3914 = vpop.permute.xlu0 %3913
        %3915 = vrot.lane.b32.xlu0 %v3830, 80
        %v3916 = vpop.permute.xlu0 %3915
        %3917 = vrot.lane.b32.xlu0 %v3831, 80
        %v3918 = vpop.permute.xlu0 %3917
        %3919 = vrot.lane.b32.xlu0 %v3832, 80
        %v3920 = vpop.permute.xlu0 %3919
        %3921 = vrot.lane.b32.xlu0 %v3833, 80
        %v3922 = vpop.permute.xlu0 %3921
        %3923 = vrot.lane.b32.xlu0 %v3834, 80
        %v3924 = vpop.permute.xlu0 %3923
        %3925 = vrot.lane.b32.xlu0 %v3835, 80
        %v3926 = vpop.permute.xlu0 %3925
        %3927 = vrot.lane.b32.xlu0 %v3836, 80
        %v3928 = vpop.permute.xlu0 %3927
        %3929 = vrot.lane.b32.xlu0 %v3837, 80
        %v3930 = vpop.permute.xlu0 %3929
        %3931 = vrot.lane.b32.xlu0 %v3838, 80
        %v3932 = vpop.permute.xlu0 %3931
        %3933 = vrot.lane.b32.xlu0 %v3839, 80
        %v3934 = vpop.permute.xlu0 %3933
        %3935 = vrot.lane.b32.xlu0 %v3840, 80
        %v3936 = vpop.permute.xlu0 %3935
        %vm3969 = vcmask 753312
        %3970 = vst.msk [vmem:[#allocation3] sm:$0xff] %vm3969, %v3874
        %3971 = vst.msk [vmem:[#allocation3 + $0x10] sm:$0xff] %vm3969, %v3876
        %3972 = vst.msk [vmem:[#allocation3 + $0x20] sm:$0xff] %vm3969, %v3878
        %3973 = vst.msk [vmem:[#allocation3 + $0x30] sm:$0xff] %vm3969, %v3880
        %3974 = vst.msk [vmem:[#allocation3 + $0x40] sm:$0xff] %vm3969, %v3882
        %3975 = vst.msk [vmem:[#allocation3 + $0x50] sm:$0xff] %vm3969, %v3884
        %3976 = vst.msk [vmem:[#allocation3 + $0x60] sm:$0xff] %vm3969, %v3886
        %3977 = vst.msk [vmem:[#allocation3 + $0x70] sm:$0xff] %vm3969, %v3888
        %3978 = vst.msk [vmem:[#allocation3 + $0x80] sm:$0xff] %vm3969, %v3890
        %3979 = vst.msk [vmem:[#allocation3 + $0x90] sm:$0xff] %vm3969, %v3892
        %3980 = vst.msk [vmem:[#allocation3 + $0xa0] sm:$0xff] %vm3969, %v3894
        %3981 = vst.msk [vmem:[#allocation3 + $0xb0] sm:$0xff] %vm3969, %v3896
        %3982 = vst.msk [vmem:[#allocation3 + $0xc0] sm:$0xff] %vm3969, %v3898
        %3983 = vst.msk [vmem:[#allocation3 + $0xd0] sm:$0xff] %vm3969, %v3900
        %3984 = vst.msk [vmem:[#allocation3 + $0xe0] sm:$0xff] %vm3969, %v3902
        %3985 = vst.msk [vmem:[#allocation3 + $0xf0] sm:$0xff] %vm3969, %v3904
        %3986 = vst.msk [vmem:[#allocation3 + $0x100] sm:$0xff] %vm3969, %v3906
        %3987 = vst.msk [vmem:[#allocation3 + $0x110] sm:$0xff] %vm3969, %v3908
        %3988 = vst.msk [vmem:[#allocation3 + $0x120] sm:$0xff] %vm3969, %v3910
        %3989 = vst.msk [vmem:[#allocation3 + $0x130] sm:$0xff] %vm3969, %v3912
        %3990 = vst.msk [vmem:[#allocation3 + $0x140] sm:$0xff] %vm3969, %v3914
        %3991 = vst.msk [vmem:[#allocation3 + $0x150] sm:$0xff] %vm3969, %v3916
        %3992 = vst.msk [vmem:[#allocation3 + $0x160] sm:$0xff] %vm3969, %v3918
        %3993 = vst.msk [vmem:[#allocation3 + $0x170] sm:$0xff] %vm3969, %v3920
        %3994 = vst.msk [vmem:[#allocation3 + $0x180] sm:$0xff] %vm3969, %v3922
        %3995 = vst.msk [vmem:[#allocation3 + $0x190] sm:$0xff] %vm3969, %v3924
        %3996 = vst.msk [vmem:[#allocation3 + $0x1a0] sm:$0xff] %vm3969, %v3926
        %3997 = vst.msk [vmem:[#allocation3 + $0x1b0] sm:$0xff] %vm3969, %v3928
        %3998 = vst.msk [vmem:[#allocation3 + $0x1c0] sm:$0xff] %vm3969, %v3930
        %3999 = vst.msk [vmem:[#allocation3 + $0x1d0] sm:$0xff] %vm3969, %v3932
        %4000 = vst.msk [vmem:[#allocation3 + $0x1e0] sm:$0xff] %vm3969, %v3934
        %4001 = vst.msk [vmem:[#allocation3 + $0x1f0] sm:$0xff] %vm3969, %v3936
        %v4002 = vld [vmem:[%s1508 + $0x1] sm:$0xff]
        %v4003 = vld [vmem:[%s1508 + $0x9] sm:$0xff]
        %v4004 = vld [vmem:[%s1508 + $0x19] sm:$0xff]
        %v4005 = vld [vmem:[%s1508 + $0x21] sm:$0xff]
        %v4006 = vld [vmem:[%s1508 + $0x31] sm:$0xff]
        %v4007 = vld [vmem:[%s1508 + $0x39] sm:$0xff]
        %v4008 = vld [vmem:[%s1508 + $0x49] sm:$0xff]
        %v4009 = vld [vmem:[%s1508 + $0x51] sm:$0xff]
        %v4010 = vld [vmem:[%s1508 + $0x61] sm:$0xff]
        %v4011 = vld [vmem:[%s1508 + $0x69] sm:$0xff]
        %v4012 = vld [vmem:[%s1508 + $0x79] sm:$0xff]
        %v4013 = vld [vmem:[%s1508 + $0x81] sm:$0xff]
        %v4014 = vld [vmem:[%s1508 + $0x91] sm:$0xff]
        %v4015 = vld [vmem:[%s1508 + $0x99] sm:$0xff]
        %v4016 = vld [vmem:[%s1508 + $0xa9] sm:$0xff]
        %v4017 = vld [vmem:[%s1508 + $0xb1] sm:$0xff]
        %v4018 = vld [vmem:[%s1508 + $0xc1] sm:$0xff]
        %v4019 = vld [vmem:[%s1508 + $0xc9] sm:$0xff]
        %v4020 = vld [vmem:[%s1508 + $0xd9] sm:$0xff]
        %v4021 = vld [vmem:[%s1508 + $0xe1] sm:$0xff]
        %v4022 = vld [vmem:[%s1508 + $0xf1] sm:$0xff]
        %v4023 = vld [vmem:[%s1508 + $0xf9] sm:$0xff]
        %v4024 = vld [vmem:[%s1508 + $0x109] sm:$0xff]
        %v4025 = vld [vmem:[%s1508 + $0x111] sm:$0xff]
        %v4026 = vld [vmem:[%s1508 + $0x121] sm:$0xff]
        %v4027 = vld [vmem:[%s1508 + $0x129] sm:$0xff]
        %v4028 = vld [vmem:[%s1508 + $0x139] sm:$0xff]
        %v4029 = vld [vmem:[%s1508 + $0x141] sm:$0xff]
        %v4030 = vld [vmem:[%s1508 + $0x151] sm:$0xff]
        %v4031 = vld [vmem:[%s1508 + $0x159] sm:$0xff]
        %v4032 = vld [vmem:[%s1508 + $0x169] sm:$0xff]
        %v4033 = vld [vmem:[%s1508 + $0x171] sm:$0xff]
        %4066 = vrot.lane.b32.xlu0 %v4002, 88
        %v4067 = vpop.permute.xlu0 %4066
        %4068 = vrot.lane.b32.xlu0 %v4003, 88
        %v4069 = vpop.permute.xlu0 %4068
        %4070 = vrot.lane.b32.xlu0 %v4004, 88
        %v4071 = vpop.permute.xlu0 %4070
        %4072 = vrot.lane.b32.xlu0 %v4005, 88
        %v4073 = vpop.permute.xlu0 %4072
        %4074 = vrot.lane.b32.xlu0 %v4006, 88
        %v4075 = vpop.permute.xlu0 %4074
        %4076 = vrot.lane.b32.xlu0 %v4007, 88
        %v4077 = vpop.permute.xlu0 %4076
        %4078 = vrot.lane.b32.xlu0 %v4008, 88
        %v4079 = vpop.permute.xlu0 %4078
        %4080 = vrot.lane.b32.xlu0 %v4009, 88
        %v4081 = vpop.permute.xlu0 %4080
        %4082 = vrot.lane.b32.xlu0 %v4010, 88
        %v4083 = vpop.permute.xlu0 %4082
        %4084 = vrot.lane.b32.xlu0 %v4011, 88
        %v4085 = vpop.permute.xlu0 %4084
        %4086 = vrot.lane.b32.xlu0 %v4012, 88
        %v4087 = vpop.permute.xlu0 %4086
        %4088 = vrot.lane.b32.xlu0 %v4013, 88
        %v4089 = vpop.permute.xlu0 %4088
        %4090 = vrot.lane.b32.xlu0 %v4014, 88
        %v4091 = vpop.permute.xlu0 %4090
        %4092 = vrot.lane.b32.xlu0 %v4015, 88
        %v4093 = vpop.permute.xlu0 %4092
        %4094 = vrot.lane.b32.xlu0 %v4016, 88
        %v4095 = vpop.permute.xlu0 %4094
        %4096 = vrot.lane.b32.xlu0 %v4017, 88
        %v4097 = vpop.permute.xlu0 %4096
        %4098 = vrot.lane.b32.xlu0 %v4018, 88
        %v4099 = vpop.permute.xlu0 %4098
        %4100 = vrot.lane.b32.xlu0 %v4019, 88
        %v4101 = vpop.permute.xlu0 %4100
        %4102 = vrot.lane.b32.xlu0 %v4020, 88
        %v4103 = vpop.permute.xlu0 %4102
        %4104 = vrot.lane.b32.xlu0 %v4021, 88
        %v4105 = vpop.permute.xlu0 %4104
        %4106 = vrot.lane.b32.xlu0 %v4022, 88
        %v4107 = vpop.permute.xlu0 %4106
        %4108 = vrot.lane.b32.xlu0 %v4023, 88
        %v4109 = vpop.permute.xlu0 %4108
        %4110 = vrot.lane.b32.xlu0 %v4024, 88
        %v4111 = vpop.permute.xlu0 %4110
        %4112 = vrot.lane.b32.xlu0 %v4025, 88
        %v4113 = vpop.permute.xlu0 %4112
        %4114 = vrot.lane.b32.xlu0 %v4026, 88
        %v4115 = vpop.permute.xlu0 %4114
        %4116 = vrot.lane.b32.xlu0 %v4027, 88
        %v4117 = vpop.permute.xlu0 %4116
        %4118 = vrot.lane.b32.xlu0 %v4028, 88
        %v4119 = vpop.permute.xlu0 %4118
        %4120 = vrot.lane.b32.xlu0 %v4029, 88
        %v4121 = vpop.permute.xlu0 %4120
        %4122 = vrot.lane.b32.xlu0 %v4030, 88
        %v4123 = vpop.permute.xlu0 %4122
        %4124 = vrot.lane.b32.xlu0 %v4031, 88
        %v4125 = vpop.permute.xlu0 %4124
        %4126 = vrot.lane.b32.xlu0 %v4032, 88
        %v4127 = vpop.permute.xlu0 %4126
        %4128 = vrot.lane.b32.xlu0 %v4033, 88
        %v4129 = vpop.permute.xlu0 %4128
        %vm4162 = vcmask 818912
        %4163 = vst.msk [vmem:[#allocation3] sm:$0xff] %vm4162, %v4067
        %4164 = vst.msk [vmem:[#allocation3 + $0x10] sm:$0xff] %vm4162, %v4069
        %4165 = vst.msk [vmem:[#allocation3 + $0x20] sm:$0xff] %vm4162, %v4071
        %4166 = vst.msk [vmem:[#allocation3 + $0x30] sm:$0xff] %vm4162, %v4073
        %4167 = vst.msk [vmem:[#allocation3 + $0x40] sm:$0xff] %vm4162, %v4075
        %4168 = vst.msk [vmem:[#allocation3 + $0x50] sm:$0xff] %vm4162, %v4077
        %4169 = vst.msk [vmem:[#allocation3 + $0x60] sm:$0xff] %vm4162, %v4079
        %4170 = vst.msk [vmem:[#allocation3 + $0x70] sm:$0xff] %vm4162, %v4081
        %4171 = vst.msk [vmem:[#allocation3 + $0x80] sm:$0xff] %vm4162, %v4083
        %4172 = vst.msk [vmem:[#allocation3 + $0x90] sm:$0xff] %vm4162, %v4085
        %4173 = vst.msk [vmem:[#allocation3 + $0xa0] sm:$0xff] %vm4162, %v4087
        %4174 = vst.msk [vmem:[#allocation3 + $0xb0] sm:$0xff] %vm4162, %v4089
        %4175 = vst.msk [vmem:[#allocation3 + $0xc0] sm:$0xff] %vm4162, %v4091
        %4176 = vst.msk [vmem:[#allocation3 + $0xd0] sm:$0xff] %vm4162, %v4093
        %4177 = vst.msk [vmem:[#allocation3 + $0xe0] sm:$0xff] %vm4162, %v4095
        %4178 = vst.msk [vmem:[#allocation3 + $0xf0] sm:$0xff] %vm4162, %v4097
        %4179 = vst.msk [vmem:[#allocation3 + $0x100] sm:$0xff] %vm4162, %v4099
        %4180 = vst.msk [vmem:[#allocation3 + $0x110] sm:$0xff] %vm4162, %v4101
        %4181 = vst.msk [vmem:[#allocation3 + $0x120] sm:$0xff] %vm4162, %v4103
        %4182 = vst.msk [vmem:[#allocation3 + $0x130] sm:$0xff] %vm4162, %v4105
        %4183 = vst.msk [vmem:[#allocation3 + $0x140] sm:$0xff] %vm4162, %v4107
        %4184 = vst.msk [vmem:[#allocation3 + $0x150] sm:$0xff] %vm4162, %v4109
        %4185 = vst.msk [vmem:[#allocation3 + $0x160] sm:$0xff] %vm4162, %v4111
        %4186 = vst.msk [vmem:[#allocation3 + $0x170] sm:$0xff] %vm4162, %v4113
        %4187 = vst.msk [vmem:[#allocation3 + $0x180] sm:$0xff] %vm4162, %v4115
        %4188 = vst.msk [vmem:[#allocation3 + $0x190] sm:$0xff] %vm4162, %v4117
        %4189 = vst.msk [vmem:[#allocation3 + $0x1a0] sm:$0xff] %vm4162, %v4119
        %4190 = vst.msk [vmem:[#allocation3 + $0x1b0] sm:$0xff] %vm4162, %v4121
        %4191 = vst.msk [vmem:[#allocation3 + $0x1c0] sm:$0xff] %vm4162, %v4123
        %4192 = vst.msk [vmem:[#allocation3 + $0x1d0] sm:$0xff] %vm4162, %v4125
        %4193 = vst.msk [vmem:[#allocation3 + $0x1e0] sm:$0xff] %vm4162, %v4127
        %4194 = vst.msk [vmem:[#allocation3 + $0x1f0] sm:$0xff] %vm4162, %v4129
        %v4195 = vld [vmem:[%s1508 + $0x2] sm:$0xff]
        %v4196 = vld [vmem:[%s1508 + $0xa] sm:$0xff]
        %v4197 = vld [vmem:[%s1508 + $0x1a] sm:$0xff]
        %v4198 = vld [vmem:[%s1508 + $0x22] sm:$0xff]
        %v4199 = vld [vmem:[%s1508 + $0x32] sm:$0xff]
        %v4200 = vld [vmem:[%s1508 + $0x3a] sm:$0xff]
        %v4201 = vld [vmem:[%s1508 + $0x4a] sm:$0xff]
        %v4202 = vld [vmem:[%s1508 + $0x52] sm:$0xff]
        %v4203 = vld [vmem:[%s1508 + $0x62] sm:$0xff]
        %v4204 = vld [vmem:[%s1508 + $0x6a] sm:$0xff]
        %v4205 = vld [vmem:[%s1508 + $0x7a] sm:$0xff]
        %v4206 = vld [vmem:[%s1508 + $0x82] sm:$0xff]
        %v4207 = vld [vmem:[%s1508 + $0x92] sm:$0xff]
        %v4208 = vld [vmem:[%s1508 + $0x9a] sm:$0xff]
        %v4209 = vld [vmem:[%s1508 + $0xaa] sm:$0xff]
        %v4210 = vld [vmem:[%s1508 + $0xb2] sm:$0xff]
        %v4211 = vld [vmem:[%s1508 + $0xc2] sm:$0xff]
        %v4212 = vld [vmem:[%s1508 + $0xca] sm:$0xff]
        %v4213 = vld [vmem:[%s1508 + $0xda] sm:$0xff]
        %v4214 = vld [vmem:[%s1508 + $0xe2] sm:$0xff]
        %v4215 = vld [vmem:[%s1508 + $0xf2] sm:$0xff]
        %v4216 = vld [vmem:[%s1508 + $0xfa] sm:$0xff]
        %v4217 = vld [vmem:[%s1508 + $0x10a] sm:$0xff]
        %v4218 = vld [vmem:[%s1508 + $0x112] sm:$0xff]
        %v4219 = vld [vmem:[%s1508 + $0x122] sm:$0xff]
        %v4220 = vld [vmem:[%s1508 + $0x12a] sm:$0xff]
        %v4221 = vld [vmem:[%s1508 + $0x13a] sm:$0xff]
        %v4222 = vld [vmem:[%s1508 + $0x142] sm:$0xff]
        %v4223 = vld [vmem:[%s1508 + $0x152] sm:$0xff]
        %v4224 = vld [vmem:[%s1508 + $0x15a] sm:$0xff]
        %v4225 = vld [vmem:[%s1508 + $0x16a] sm:$0xff]
        %v4226 = vld [vmem:[%s1508 + $0x172] sm:$0xff]
        %4259 = vrot.lane.b32.xlu0 %v4195, 96
        %v4260 = vpop.permute.xlu0 %4259
        %4261 = vrot.lane.b32.xlu0 %v4196, 96
        %v4262 = vpop.permute.xlu0 %4261
        %4263 = vrot.lane.b32.xlu0 %v4197, 96
        %v4264 = vpop.permute.xlu0 %4263
        %4265 = vrot.lane.b32.xlu0 %v4198, 96
        %v4266 = vpop.permute.xlu0 %4265
        %4267 = vrot.lane.b32.xlu0 %v4199, 96
        %v4268 = vpop.permute.xlu0 %4267
        %4269 = vrot.lane.b32.xlu0 %v4200, 96
        %v4270 = vpop.permute.xlu0 %4269
        %4271 = vrot.lane.b32.xlu0 %v4201, 96
        %v4272 = vpop.permute.xlu0 %4271
        %4273 = vrot.lane.b32.xlu0 %v4202, 96
        %v4274 = vpop.permute.xlu0 %4273
        %4275 = vrot.lane.b32.xlu0 %v4203, 96
        %v4276 = vpop.permute.xlu0 %4275
        %4277 = vrot.lane.b32.xlu0 %v4204, 96
        %v4278 = vpop.permute.xlu0 %4277
        %4279 = vrot.lane.b32.xlu0 %v4205, 96
        %v4280 = vpop.permute.xlu0 %4279
        %4281 = vrot.lane.b32.xlu0 %v4206, 96
        %v4282 = vpop.permute.xlu0 %4281
        %4283 = vrot.lane.b32.xlu0 %v4207, 96
        %v4284 = vpop.permute.xlu0 %4283
        %4285 = vrot.lane.b32.xlu0 %v4208, 96
        %v4286 = vpop.permute.xlu0 %4285
        %4287 = vrot.lane.b32.xlu0 %v4209, 96
        %v4288 = vpop.permute.xlu0 %4287
        %4289 = vrot.lane.b32.xlu0 %v4210, 96
        %v4290 = vpop.permute.xlu0 %4289
        %4291 = vrot.lane.b32.xlu0 %v4211, 96
        %v4292 = vpop.permute.xlu0 %4291
        %4293 = vrot.lane.b32.xlu0 %v4212, 96
        %v4294 = vpop.permute.xlu0 %4293
        %4295 = vrot.lane.b32.xlu0 %v4213, 96
        %v4296 = vpop.permute.xlu0 %4295
        %4297 = vrot.lane.b32.xlu0 %v4214, 96
        %v4298 = vpop.permute.xlu0 %4297
        %4299 = vrot.lane.b32.xlu0 %v4215, 96
        %v4300 = vpop.permute.xlu0 %4299
        %4301 = vrot.lane.b32.xlu0 %v4216, 96
        %v4302 = vpop.permute.xlu0 %4301
        %4303 = vrot.lane.b32.xlu0 %v4217, 96
        %v4304 = vpop.permute.xlu0 %4303
        %4305 = vrot.lane.b32.xlu0 %v4218, 96
        %v4306 = vpop.permute.xlu0 %4305
        %4307 = vrot.lane.b32.xlu0 %v4219, 96
        %v4308 = vpop.permute.xlu0 %4307
        %4309 = vrot.lane.b32.xlu0 %v4220, 96
        %v4310 = vpop.permute.xlu0 %4309
        %4311 = vrot.lane.b32.xlu0 %v4221, 96
        %v4312 = vpop.permute.xlu0 %4311
        %4313 = vrot.lane.b32.xlu0 %v4222, 96
        %v4314 = vpop.permute.xlu0 %4313
        %4315 = vrot.lane.b32.xlu0 %v4223, 96
        %v4316 = vpop.permute.xlu0 %4315
        %4317 = vrot.lane.b32.xlu0 %v4224, 96
        %v4318 = vpop.permute.xlu0 %4317
        %4319 = vrot.lane.b32.xlu0 %v4225, 96
        %v4320 = vpop.permute.xlu0 %4319
        %4321 = vrot.lane.b32.xlu0 %v4226, 96
        %v4322 = vpop.permute.xlu0 %4321
        %vm4355 = vcmask 884512
        %4356 = vst.msk [vmem:[#allocation3] sm:$0xff] %vm4355, %v4260
        %4357 = vst.msk [vmem:[#allocation3 + $0x10] sm:$0xff] %vm4355, %v4262
        %4358 = vst.msk [vmem:[#allocation3 + $0x20] sm:$0xff] %vm4355, %v4264
        %4359 = vst.msk [vmem:[#allocation3 + $0x30] sm:$0xff] %vm4355, %v4266
        %4360 = vst.msk [vmem:[#allocation3 + $0x40] sm:$0xff] %vm4355, %v4268
        %4361 = vst.msk [vmem:[#allocation3 + $0x50] sm:$0xff] %vm4355, %v4270
        %4362 = vst.msk [vmem:[#allocation3 + $0x60] sm:$0xff] %vm4355, %v4272
        %4363 = vst.msk [vmem:[#allocation3 + $0x70] sm:$0xff] %vm4355, %v4274
        %4364 = vst.msk [vmem:[#allocation3 + $0x80] sm:$0xff] %vm4355, %v4276
        %4365 = vst.msk [vmem:[#allocation3 + $0x90] sm:$0xff] %vm4355, %v4278
        %4366 = vst.msk [vmem:[#allocation3 + $0xa0] sm:$0xff] %vm4355, %v4280
        %4367 = vst.msk [vmem:[#allocation3 + $0xb0] sm:$0xff] %vm4355, %v4282
        %4368 = vst.msk [vmem:[#allocation3 + $0xc0] sm:$0xff] %vm4355, %v4284
        %4369 = vst.msk [vmem:[#allocation3 + $0xd0] sm:$0xff] %vm4355, %v4286
        %4370 = vst.msk [vmem:[#allocation3 + $0xe0] sm:$0xff] %vm4355, %v4288
        %4371 = vst.msk [vmem:[#allocation3 + $0xf0] sm:$0xff] %vm4355, %v4290
        %4372 = vst.msk [vmem:[#allocation3 + $0x100] sm:$0xff] %vm4355, %v4292
        %4373 = vst.msk [vmem:[#allocation3 + $0x110] sm:$0xff] %vm4355, %v4294
        %4374 = vst.msk [vmem:[#allocation3 + $0x120] sm:$0xff] %vm4355, %v4296
        %4375 = vst.msk [vmem:[#allocation3 + $0x130] sm:$0xff] %vm4355, %v4298
        %4376 = vst.msk [vmem:[#allocation3 + $0x140] sm:$0xff] %vm4355, %v4300
        %4377 = vst.msk [vmem:[#allocation3 + $0x150] sm:$0xff] %vm4355, %v4302
        %4378 = vst.msk [vmem:[#allocation3 + $0x160] sm:$0xff] %vm4355, %v4304
        %4379 = vst.msk [vmem:[#allocation3 + $0x170] sm:$0xff] %vm4355, %v4306
        %4380 = vst.msk [vmem:[#allocation3 + $0x180] sm:$0xff] %vm4355, %v4308
        %4381 = vst.msk [vmem:[#allocation3 + $0x190] sm:$0xff] %vm4355, %v4310
        %4382 = vst.msk [vmem:[#allocation3 + $0x1a0] sm:$0xff] %vm4355, %v4312
        %4383 = vst.msk [vmem:[#allocation3 + $0x1b0] sm:$0xff] %vm4355, %v4314
        %4384 = vst.msk [vmem:[#allocation3 + $0x1c0] sm:$0xff] %vm4355, %v4316
        %4385 = vst.msk [vmem:[#allocation3 + $0x1d0] sm:$0xff] %vm4355, %v4318
        %4386 = vst.msk [vmem:[#allocation3 + $0x1e0] sm:$0xff] %vm4355, %v4320
        %4387 = vst.msk [vmem:[#allocation3 + $0x1f0] sm:$0xff] %vm4355, %v4322
        %v4388 = vld [vmem:[#allocation3] sm:$0xff]
        %v4389 = vld [vmem:[#allocation3 + $0x10] sm:$0xff]
        %v4390 = vld [vmem:[#allocation3 + $0x20] sm:$0xff]
        %v4391 = vld [vmem:[#allocation3 + $0x30] sm:$0xff]
        %v4392 = vld [vmem:[#allocation3 + $0x40] sm:$0xff]
        %v4393 = vld [vmem:[#allocation3 + $0x50] sm:$0xff]
        %v4394 = vld [vmem:[#allocation3 + $0x60] sm:$0xff]
        %v4395 = vld [vmem:[#allocation3 + $0x70] sm:$0xff]
        %v4396 = vld [vmem:[#allocation3 + $0x80] sm:$0xff]
        %v4397 = vld [vmem:[#allocation3 + $0x90] sm:$0xff]
        %v4398 = vld [vmem:[#allocation3 + $0xa0] sm:$0xff]
        %v4399 = vld [vmem:[#allocation3 + $0xb0] sm:$0xff]
        %v4400 = vld [vmem:[#allocation3 + $0xc0] sm:$0xff]
        %v4401 = vld [vmem:[#allocation3 + $0xd0] sm:$0xff]
        %v4402 = vld [vmem:[#allocation3 + $0xe0] sm:$0xff]
        %v4403 = vld [vmem:[#allocation3 + $0xf0] sm:$0xff]
        %v4404 = vld [vmem:[#allocation3 + $0x100] sm:$0xff]
        %v4405 = vld [vmem:[#allocation3 + $0x110] sm:$0xff]
        %v4406 = vld [vmem:[#allocation3 + $0x120] sm:$0xff]
        %v4407 = vld [vmem:[#allocation3 + $0x130] sm:$0xff]
        %v4408 = vld [vmem:[#allocation3 + $0x140] sm:$0xff]
        %v4409 = vld [vmem:[#allocation3 + $0x150] sm:$0xff]
        %v4410 = vld [vmem:[#allocation3 + $0x160] sm:$0xff]
        %v4411 = vld [vmem:[#allocation3 + $0x170] sm:$0xff]
        %v4412 = vld [vmem:[#allocation3 + $0x180] sm:$0xff]
        %v4413 = vld [vmem:[#allocation3 + $0x190] sm:$0xff]
        %v4414 = vld [vmem:[#allocation3 + $0x1a0] sm:$0xff]
        %v4415 = vld [vmem:[#allocation3 + $0x1b0] sm:$0xff]
        %v4416 = vld [vmem:[#allocation3 + $0x1c0] sm:$0xff]
        %v4417 = vld [vmem:[#allocation3 + $0x1d0] sm:$0xff]
        %v4418 = vld [vmem:[#allocation3 + $0x1e0] sm:$0xff]
        %v4419 = vld [vmem:[#allocation3 + $0x1f0] sm:$0xff]
        %v4420 = vld [vmem:[%s2] sm:$0xff]
        %v4421 = vld [vmem:[%s2 + $0x8] sm:$0xff]
        %v4422 = vld [vmem:[%s2 + $0x10] sm:$0xff]
        %v4423 = vld [vmem:[%s2 + $0x18] sm:$0xff]
        %v4424 = vld [vmem:[%s2 + $0x20] sm:$0xff]
        %v4425 = vld [vmem:[%s2 + $0x28] sm:$0xff]
        %v4426 = vld [vmem:[%s2 + $0x30] sm:$0xff]
        %v4427 = vld [vmem:[%s2 + $0x38] sm:$0xff]
        %v4428 = vld [vmem:[%s2 + $0x40] sm:$0xff]
        %v4429 = vld [vmem:[%s2 + $0x48] sm:$0xff]
        %v4430 = vld [vmem:[%s2 + $0x50] sm:$0xff]
        %v4431 = vld [vmem:[%s2 + $0x58] sm:$0xff]
        %v4432 = vld [vmem:[%s2 + $0x60] sm:$0xff]
        %v4433 = vld [vmem:[%s2 + $0x68] sm:$0xf]
        %v4434 = vld [vmem:[%s6] sm:$0x1]
        %v4436 = vlaneseq
        %v4437 = vshrl.u32 %v4436, 7
        %v4438 = vsub.s32 0, %v4437
        %v4439 = vrot.slane %v4434, %v4438
        %vm4441 = vcmask 883712
        %v4443 = vsel %vm4441, %v4388, 0
        %v4446 = vsel %vm4441, %v4389, 0
        %v4449 = vsel %vm4441, %v4390, 0
        %v4452 = vsel %vm4441, %v4391, 0
        %v4455 = vsel %vm4441, %v4392, 0
        %v4458 = vsel %vm4441, %v4393, 0
        %v4461 = vsel %vm4441, %v4394, 0
        %v4464 = vsel %vm4441, %v4395, 0
        %v4467 = vsel %vm4441, %v4396, 0
        %v4470 = vsel %vm4441, %v4397, 0
        %v4473 = vsel %vm4441, %v4398, 0
        %v4476 = vsel %vm4441, %v4399, 0
        %v4479 = vsel %vm4441, %v4400, 0
        %v4482 = vsel %vm4441, %v4401, 0
        %v4485 = vsel %vm4441, %v4402, 0
        %v4488 = vsel %vm4441, %v4403, 0
        %v4491 = vsel %vm4441, %v4404, 0
        %v4494 = vsel %vm4441, %v4405, 0
        %v4497 = vsel %vm4441, %v4406, 0
        %v4500 = vsel %vm4441, %v4407, 0
        %v4503 = vsel %vm4441, %v4408, 0
        %v4506 = vsel %vm4441, %v4409, 0
        %v4509 = vsel %vm4441, %v4410, 0
        %v4512 = vsel %vm4441, %v4411, 0
        %v4515 = vsel %vm4441, %v4412, 0
        %v4518 = vsel %vm4441, %v4413, 0
        %v4521 = vsel %vm4441, %v4414, 0
        %v4524 = vsel %vm4441, %v4415, 0
        %v4527 = vsel %vm4441, %v4416, 0
        %v4530 = vsel %vm4441, %v4417, 0
        %v4533 = vsel %vm4441, %v4418, 0
        %v4536 = vsel %vm4441, %v4419, 0
        %v4539 = vsel %vm2229, %v4433, 0
        %4541 = vmatprep.subr.mxu0 0.0
        %4542 = vmatpush1.msra.mxu0 %v4420
        %4543 = vmatprep.subr.mxu0 0.0
        %4544 = vmatpush1.msra.mxu0 %v4421
        %4545 = vmatprep.subr.mxu0 0.0
        %4546 = vmatpush1.msra.mxu0 %v4422
        %4547 = vmatprep.subr.mxu0 0.0
        %4548 = vmatpush1.msra.mxu0 %v4423
        %4549 = vmatprep.subr.mxu0 0.0
        %4550 = vmatpush1.msra.mxu0 %v4424
        %4551 = vmatprep.subr.mxu0 0.0
        %4552 = vmatpush1.msra.mxu0 %v4425
        %4553 = vmatprep.subr.mxu0 0.0
        %4554 = vmatpush1.msra.mxu0 %v4426
        %4555 = vmatprep.subr.mxu0 0.0
        %4556 = vmatpush1.msra.mxu0 %v4427
        %4557 = vmatprep.subr.mxu0 0.0
        %4558 = vmatpush1.msra.mxu0 %v4428
        %4559 = vmatprep.subr.mxu0 0.0
        %4560 = vmatpush1.msra.mxu0 %v4429
        %4561 = vmatprep.subr.mxu0 0.0
        %4562 = vmatpush1.msra.mxu0 %v4430
        %4563 = vmatprep.subr.mxu0 0.0
        %4564 = vmatpush1.msra.mxu0 %v4431
        %4565 = vmatprep.subr.mxu0 0.0
        %4566 = vmatpush1.msra.mxu0 %v4432
        %4567 = vmatprep.subr.mxu0 0.0
        %4568 = vmatpush1.msra.mxu0 %v4539
        %4569 = vmatprep.subr.mxu0 0.0
        %4570 = vmatpush1.msra.mxu0 0.0
        %4571 = vmatprep.subr.mxu0 0.0
        %4572 = vmatpush1.msra.mxu0 0.0
        %4573 = vmatprep.subr.mxu0 0.0
        %4574 = vmatpush1.msra.mxu0 0.0
        %4575 = vmatprep.subr.mxu0 0.0
        %4576 = vmatpush1.msra.mxu0 0.0
        %4577 = vmatprep.subr.mxu0 0.0
        %4578 = vmatpush1.msra.mxu0 0.0
        %4579 = vmatprep.subr.mxu0 0.0
        %4580 = vmatpush1.msra.mxu0 0.0
        %4581 = vmatprep.subr.mxu0 0.0
        %4582 = vmatpush1.msra.mxu0 0.0
        %4583 = vmatprep.subr.mxu0 0.0
        %4584 = vmatpush1.msra.mxu0 0.0
        %4585 = vmatprep.subr.mxu0 0.0
        %4586 = vmatpush1.msra.mxu0 0.0
        %4587 = vmatprep.subr.mxu0 0.0
        %4588 = vmatpush1.msra.mxu0 0.0
        %4589 = vmatprep.subr.mxu0 0.0
        %4590 = vmatpush1.msra.mxu0 0.0
        %4591 = vmatprep.subr.mxu0 0.0
        %4592 = vmatpush1.msra.mxu0 0.0
        %4593 = vmatprep.subr.mxu0 0.0
        %4594 = vmatpush1.msra.mxu0 0.0
        %4595 = vmatprep.subr.mxu0 0.0
        %4596 = vmatpush1.msra.mxu0 0.0
        %4597 = vmatprep.subr.mxu0 0.0
        %4598 = vmatpush1.msra.mxu0 0.0
        %4599 = vmatprep.subr.mxu0 0.0
        %4600 = vmatpush1.msra.mxu0 0.0
        %4601 = vmatprep.subr.mxu0 0.0
        %4602 = vmatpush1.msra.mxu0 0.0
        %4603 = vmatprep.subr.mxu0 0.0
        %4604 = vmatpush1.msra.mxu0 0.0
        %4605 = vmatprep.mubr.f32.mxu0 0.0
        %4606 = vmatmul.mubr.f32.gmra.mrb[0].mxu0 %v4443
        %v4607 = vpop.f32.mrb[0].mxu0
        %v4608 = vadd.f32 %v4439, %v4607
        %v4609 = vpop.f32.mrb[0].mxu0
        %4610 = vmatprep.mubr.f32.mxu0 0.0
        %4611 = vmatmul.mubr.f32.gmra.mrb[0].mxu0 %v4446
        %v4612 = vpop.f32.mrb[0].mxu0
        %v4613 = vadd.f32 %v4439, %v4612
        %v4614 = vpop.f32.mrb[0].mxu0
        %4615 = vmatprep.mubr.f32.mxu0 0.0
        %4616 = vmatmul.mubr.f32.gmra.mrb[0].mxu0 %v4449
        %v4617 = vpop.f32.mrb[0].mxu0
        %v4618 = vadd.f32 %v4439, %v4617
        %v4619 = vpop.f32.mrb[0].mxu0
        %4620 = vmatprep.mubr.f32.mxu0 0.0
        %4621 = vmatmul.mubr.f32.gmra.mrb[0].mxu0 %v4452
        %v4622 = vpop.f32.mrb[0].mxu0
        %v4623 = vadd.f32 %v4439, %v4622
        %v4624 = vpop.f32.mrb[0].mxu0
        %4625 = vmatprep.mubr.f32.mxu0 0.0
        %4626 = vmatmul.mubr.f32.gmra.mrb[0].mxu0 %v4455
        %v4627 = vpop.f32.mrb[0].mxu0
        %v4628 = vadd.f32 %v4439, %v4627
        %v4629 = vpop.f32.mrb[0].mxu0
        %4630 = vmatprep.mubr.f32.mxu0 0.0
        %4631 = vmatmul.mubr.f32.gmra.mrb[0].mxu0 %v4458
        %v4632 = vpop.f32.mrb[0].mxu0
        %v4633 = vadd.f32 %v4439, %v4632
        %v4634 = vpop.f32.mrb[0].mxu0
        %4635 = vmatprep.mubr.f32.mxu0 0.0
        %4636 = vmatmul.mubr.f32.gmra.mrb[0].mxu0 %v4461
        %v4637 = vpop.f32.mrb[0].mxu0
        %v4638 = vadd.f32 %v4439, %v4637
        %v4639 = vpop.f32.mrb[0].mxu0
        %4640 = vmatprep.mubr.f32.mxu0 0.0
        %4641 = vmatmul.mubr.f32.gmra.mrb[0].mxu0 %v4464
        %v4642 = vpop.f32.mrb[0].mxu0
        %v4643 = vadd.f32 %v4439, %v4642
        %v4644 = vpop.f32.mrb[0].mxu0
        %4645 = vmatprep.mubr.f32.mxu0 0.0
        %4646 = vmatmul.mubr.f32.gmra.mrb[0].mxu0 %v4467
        %v4647 = vpop.f32.mrb[0].mxu0
        %v4648 = vadd.f32 %v4439, %v4647
        %v4649 = vpop.f32.mrb[0].mxu0
        %4650 = vmatprep.mubr.f32.mxu0 0.0
        %4651 = vmatmul.mubr.f32.gmra.mrb[0].mxu0 %v4470
        %v4652 = vpop.f32.mrb[0].mxu0
        %v4653 = vadd.f32 %v4439, %v4652
        %v4654 = vpop.f32.mrb[0].mxu0
        %4655 = vmatprep.mubr.f32.mxu0 0.0
        %4656 = vmatmul.mubr.f32.gmra.mrb[0].mxu0 %v4473
        %v4657 = vpop.f32.mrb[0].mxu0
        %v4658 = vadd.f32 %v4439, %v4657
        %v4659 = vpop.f32.mrb[0].mxu0
        %4660 = vmatprep.mubr.f32.mxu0 0.0
        %4661 = vmatmul.mubr.f32.gmra.mrb[0].mxu0 %v4476
        %v4662 = vpop.f32.mrb[0].mxu0
        %v4663 = vadd.f32 %v4439, %v4662
        %v4664 = vpop.f32.mrb[0].mxu0
        %4665 = vmatprep.mubr.f32.mxu0 0.0
        %4666 = vmatmul.mubr.f32.gmra.mrb[0].mxu0 %v4479
        %v4667 = vpop.f32.mrb[0].mxu0
        %v4668 = vadd.f32 %v4439, %v4667
        %v4669 = vpop.f32.mrb[0].mxu0
        %4670 = vmatprep.mubr.f32.mxu0 0.0
        %4671 = vmatmul.mubr.f32.gmra.mrb[0].mxu0 %v4482
        %v4672 = vpop.f32.mrb[0].mxu0
        %v4673 = vadd.f32 %v4439, %v4672
        %v4674 = vpop.f32.mrb[0].mxu0
        %4675 = vmatprep.mubr.f32.mxu0 0.0
        %4676 = vmatmul.mubr.f32.gmra.mrb[0].mxu0 %v4485
        %v4677 = vpop.f32.mrb[0].mxu0
        %v4678 = vadd.f32 %v4439, %v4677
        %v4679 = vpop.f32.mrb[0].mxu0
        %4680 = vmatprep.mubr.f32.mxu0 0.0
        %4681 = vmatmul.mubr.f32.gmra.mrb[0].mxu0 %v4488
        %v4682 = vpop.f32.mrb[0].mxu0
        %v4683 = vadd.f32 %v4439, %v4682
        %v4684 = vpop.f32.mrb[0].mxu0
        %4685 = vmatprep.mubr.f32.mxu0 0.0
        %4686 = vmatmul.mubr.f32.gmra.mrb[0].mxu0 %v4491
        %v4687 = vpop.f32.mrb[0].mxu0
        %v4688 = vadd.f32 %v4439, %v4687
        %v4689 = vpop.f32.mrb[0].mxu0
        %4690 = vmatprep.mubr.f32.mxu0 0.0
        %4691 = vmatmul.mubr.f32.gmra.mrb[0].mxu0 %v4494
        %v4692 = vpop.f32.mrb[0].mxu0
        %v4693 = vadd.f32 %v4439, %v4692
        %v4694 = vpop.f32.mrb[0].mxu0
        %4695 = vmatprep.mubr.f32.mxu0 0.0
        %4696 = vmatmul.mubr.f32.gmra.mrb[0].mxu0 %v4497
        %v4697 = vpop.f32.mrb[0].mxu0
        %v4698 = vadd.f32 %v4439, %v4697
        %v4699 = vpop.f32.mrb[0].mxu0
        %4700 = vmatprep.mubr.f32.mxu0 0.0
        %4701 = vmatmul.mubr.f32.gmra.mrb[0].mxu0 %v4500
        %v4702 = vpop.f32.mrb[0].mxu0
        %v4703 = vadd.f32 %v4439, %v4702
        %v4704 = vpop.f32.mrb[0].mxu0
        %4705 = vmatprep.mubr.f32.mxu0 0.0
        %4706 = vmatmul.mubr.f32.gmra.mrb[0].mxu0 %v4503
        %v4707 = vpop.f32.mrb[0].mxu0
        %v4708 = vadd.f32 %v4439, %v4707
        %v4709 = vpop.f32.mrb[0].mxu0
        %4710 = vmatprep.mubr.f32.mxu0 0.0
        %4711 = vmatmul.mubr.f32.gmra.mrb[0].mxu0 %v4506
        %v4712 = vpop.f32.mrb[0].mxu0
        %v4713 = vadd.f32 %v4439, %v4712
        %v4714 = vpop.f32.mrb[0].mxu0
        %4715 = vmatprep.mubr.f32.mxu0 0.0
        %4716 = vmatmul.mubr.f32.gmra.mrb[0].mxu0 %v4509
        %v4717 = vpop.f32.mrb[0].mxu0
        %v4718 = vadd.f32 %v4439, %v4717
        %v4719 = vpop.f32.mrb[0].mxu0
        %4720 = vmatprep.mubr.f32.mxu0 0.0
        %4721 = vmatmul.mubr.f32.gmra.mrb[0].mxu0 %v4512
        %v4722 = vpop.f32.mrb[0].mxu0
        %v4723 = vadd.f32 %v4439, %v4722
        %v4724 = vpop.f32.mrb[0].mxu0
        %4725 = vmatprep.mubr.f32.mxu0 0.0
        %4726 = vmatmul.mubr.f32.gmra.mrb[0].mxu0 %v4515
        %v4727 = vpop.f32.mrb[0].mxu0
        %v4728 = vadd.f32 %v4439, %v4727
        %v4729 = vpop.f32.mrb[0].mxu0
        %4730 = vmatprep.mubr.f32.mxu0 0.0
        %4731 = vmatmul.mubr.f32.gmra.mrb[0].mxu0 %v4518
        %v4732 = vpop.f32.mrb[0].mxu0
        %v4733 = vadd.f32 %v4439, %v4732
        %v4734 = vpop.f32.mrb[0].mxu0
        %4735 = vmatprep.mubr.f32.mxu0 0.0
        %4736 = vmatmul.mubr.f32.gmra.mrb[0].mxu0 %v4521
        %v4737 = vpop.f32.mrb[0].mxu0
        %v4738 = vadd.f32 %v4439, %v4737
        %v4739 = vpop.f32.mrb[0].mxu0
        %4740 = vmatprep.mubr.f32.mxu0 0.0
        %4741 = vmatmul.mubr.f32.gmra.mrb[0].mxu0 %v4524
        %v4742 = vpop.f32.mrb[0].mxu0
        %v4743 = vadd.f32 %v4439, %v4742
        %v4744 = vpop.f32.mrb[0].mxu0
        %4745 = vmatprep.mubr.f32.mxu0 0.0
        %4746 = vmatmul.mubr.f32.gmra.mrb[0].mxu0 %v4527
        %v4747 = vpop.f32.mrb[0].mxu0
        %v4748 = vadd.f32 %v4439, %v4747
        %v4749 = vpop.f32.mrb[0].mxu0
        %4750 = vmatprep.mubr.f32.mxu0 0.0
        %4751 = vmatmul.mubr.f32.gmra.mrb[0].mxu0 %v4530
        %v4752 = vpop.f32.mrb[0].mxu0
        %v4753 = vadd.f32 %v4439, %v4752
        %v4754 = vpop.f32.mrb[0].mxu0
        %4755 = vmatprep.mubr.f32.mxu0 0.0
        %4756 = vmatmul.mubr.f32.gmra.mrb[0].mxu0 %v4533
        %v4757 = vpop.f32.mrb[0].mxu0
        %v4758 = vadd.f32 %v4439, %v4757
        %v4759 = vpop.f32.mrb[0].mxu0
        %4760 = vmatprep.mubr.f32.mxu0 0.0
        %4761 = vmatmul.mubr.f32.gmra.mrb[0].mxu0 %v4536
        %v4762 = vpop.f32.mrb[0].mxu0
        %v4763 = vadd.f32 %v4439, %v4762
        %v4764 = vpop.f32.mrb[0].mxu0
        %4765 = vdwg.mxu0
        %v4766 = vmax.f32 %v4608, 0.0
        %v4767 = vmax.f32 %v4613, 0.0
        %v4768 = vmax.f32 %v4618, 0.0
        %v4769 = vmax.f32 %v4623, 0.0
        %v4770 = vmax.f32 %v4628, 0.0
        %v4771 = vmax.f32 %v4633, 0.0
        %v4772 = vmax.f32 %v4638, 0.0
        %v4773 = vmax.f32 %v4643, 0.0
        %v4774 = vmax.f32 %v4648, 0.0
        %v4775 = vmax.f32 %v4653, 0.0
        %v4776 = vmax.f32 %v4658, 0.0
        %v4777 = vmax.f32 %v4663, 0.0
        %v4778 = vmax.f32 %v4668, 0.0
        %v4779 = vmax.f32 %v4673, 0.0
        %v4780 = vmax.f32 %v4678, 0.0
        %v4781 = vmax.f32 %v4683, 0.0
        %v4782 = vmax.f32 %v4688, 0.0
        %v4783 = vmax.f32 %v4693, 0.0
        %v4784 = vmax.f32 %v4698, 0.0
        %v4785 = vmax.f32 %v4703, 0.0
        %v4786 = vmax.f32 %v4708, 0.0
        %v4787 = vmax.f32 %v4713, 0.0
        %v4788 = vmax.f32 %v4718, 0.0
        %v4789 = vmax.f32 %v4723, 0.0
        %v4790 = vmax.f32 %v4728, 0.0
        %v4791 = vmax.f32 %v4733, 0.0
        %v4792 = vmax.f32 %v4738, 0.0
        %v4793 = vmax.f32 %v4743, 0.0
        %v4794 = vmax.f32 %v4748, 0.0
        %v4795 = vmax.f32 %v4753, 0.0
        %v4796 = vmax.f32 %v4758, 0.0
        %v4797 = vmax.f32 %v4763, 0.0
        %4830 = vrot.lane.b32.xlu0 %v4766, 12
        %v4831 = vpop.permute.xlu0 %4830
        %4832 = vrot.lane.b32.xlu0 %v4767, 12
        %v4833 = vpop.permute.xlu0 %4832
        %4834 = vrot.lane.b32.xlu0 %v4768, 12
        %v4835 = vpop.permute.xlu0 %4834
        %4836 = vrot.lane.b32.xlu0 %v4769, 12
        %v4837 = vpop.permute.xlu0 %4836
        %4838 = vrot.lane.b32.xlu0 %v4770, 12
        %v4839 = vpop.permute.xlu0 %4838
        %4840 = vrot.lane.b32.xlu0 %v4771, 12
        %v4841 = vpop.permute.xlu0 %4840
        %4842 = vrot.lane.b32.xlu0 %v4772, 12
        %v4843 = vpop.permute.xlu0 %4842
        %4844 = vrot.lane.b32.xlu0 %v4773, 12
        %v4845 = vpop.permute.xlu0 %4844
        %4846 = vrot.lane.b32.xlu0 %v4774, 12
        %v4847 = vpop.permute.xlu0 %4846
        %4848 = vrot.lane.b32.xlu0 %v4775, 12
        %v4849 = vpop.permute.xlu0 %4848
        %4850 = vrot.lane.b32.xlu0 %v4776, 12
        %v4851 = vpop.permute.xlu0 %4850
        %4852 = vrot.lane.b32.xlu0 %v4777, 12
        %v4853 = vpop.permute.xlu0 %4852
        %4854 = vrot.lane.b32.xlu0 %v4778, 12
        %v4855 = vpop.permute.xlu0 %4854
        %4856 = vrot.lane.b32.xlu0 %v4779, 12
        %v4857 = vpop.permute.xlu0 %4856
        %4858 = vrot.lane.b32.xlu0 %v4780, 12
        %v4859 = vpop.permute.xlu0 %4858
        %4860 = vrot.lane.b32.xlu0 %v4781, 12
        %v4861 = vpop.permute.xlu0 %4860
        %4862 = vrot.lane.b32.xlu0 %v4782, 12
        %v4863 = vpop.permute.xlu0 %4862
        %4864 = vrot.lane.b32.xlu0 %v4783, 12
        %v4865 = vpop.permute.xlu0 %4864
        %4866 = vrot.lane.b32.xlu0 %v4784, 12
        %v4867 = vpop.permute.xlu0 %4866
        %4868 = vrot.lane.b32.xlu0 %v4785, 12
        %v4869 = vpop.permute.xlu0 %4868
        %4870 = vrot.lane.b32.xlu0 %v4786, 12
        %v4871 = vpop.permute.xlu0 %4870
        %4872 = vrot.lane.b32.xlu0 %v4787, 12
        %v4873 = vpop.permute.xlu0 %4872
        %4874 = vrot.lane.b32.xlu0 %v4788, 12
        %v4875 = vpop.permute.xlu0 %4874
        %4876 = vrot.lane.b32.xlu0 %v4789, 12
        %v4877 = vpop.permute.xlu0 %4876
        %4878 = vrot.lane.b32.xlu0 %v4790, 12
        %v4879 = vpop.permute.xlu0 %4878
        %4880 = vrot.lane.b32.xlu0 %v4791, 12
        %v4881 = vpop.permute.xlu0 %4880
        %4882 = vrot.lane.b32.xlu0 %v4792, 12
        %v4883 = vpop.permute.xlu0 %4882
        %4884 = vrot.lane.b32.xlu0 %v4793, 12
        %v4885 = vpop.permute.xlu0 %4884
        %4886 = vrot.lane.b32.xlu0 %v4794, 12
        %v4887 = vpop.permute.xlu0 %4886
        %4888 = vrot.lane.b32.xlu0 %v4795, 12
        %v4889 = vpop.permute.xlu0 %4888
        %4890 = vrot.lane.b32.xlu0 %v4796, 12
        %v4891 = vpop.permute.xlu0 %4890
        %4892 = vrot.lane.b32.xlu0 %v4797, 12
        %v4893 = vpop.permute.xlu0 %4892
        %vm4926 = vcmask 162912
        %4927 = vst.msk [vmem:[%s445 + $0x1] sm:$0xff] %vm4926, %v4831
        %4928 = vst.msk [vmem:[%s445 + $0x9] sm:$0xff] %vm4926, %v4833
        %4929 = vst.msk [vmem:[%s445 + $0x19] sm:$0xff] %vm4926, %v4835
        %4930 = vst.msk [vmem:[%s445 + $0x21] sm:$0xff] %vm4926, %v4837
        %4931 = vst.msk [vmem:[%s445 + $0x31] sm:$0xff] %vm4926, %v4839
        %4932 = vst.msk [vmem:[%s445 + $0x39] sm:$0xff] %vm4926, %v4841
        %4933 = vst.msk [vmem:[%s445 + $0x49] sm:$0xff] %vm4926, %v4843
        %4934 = vst.msk [vmem:[%s445 + $0x51] sm:$0xff] %vm4926, %v4845
        %4935 = vst.msk [vmem:[%s445 + $0x61] sm:$0xff] %vm4926, %v4847
        %4936 = vst.msk [vmem:[%s445 + $0x69] sm:$0xff] %vm4926, %v4849
        %4937 = vst.msk [vmem:[%s445 + $0x79] sm:$0xff] %vm4926, %v4851
        %4938 = vst.msk [vmem:[%s445 + $0x81] sm:$0xff] %vm4926, %v4853
        %4939 = vst.msk [vmem:[%s445 + $0x91] sm:$0xff] %vm4926, %v4855
        %4940 = vst.msk [vmem:[%s445 + $0x99] sm:$0xff] %vm4926, %v4857
        %4941 = vst.msk [vmem:[%s445 + $0xa9] sm:$0xff] %vm4926, %v4859
        %4942 = vst.msk [vmem:[%s445 + $0xb1] sm:$0xff] %vm4926, %v4861
        %4943 = vst.msk [vmem:[%s445 + $0xc1] sm:$0xff] %vm4926, %v4863
        %4944 = vst.msk [vmem:[%s445 + $0xc9] sm:$0xff] %vm4926, %v4865
        %4945 = vst.msk [vmem:[%s445 + $0xd9] sm:$0xff] %vm4926, %v4867
        %4946 = vst.msk [vmem:[%s445 + $0xe1] sm:$0xff] %vm4926, %v4869
        %4947 = vst.msk [vmem:[%s445 + $0xf1] sm:$0xff] %vm4926, %v4871
        %4948 = vst.msk [vmem:[%s445 + $0xf9] sm:$0xff] %vm4926, %v4873
        %4949 = vst.msk [vmem:[%s445 + $0x109] sm:$0xff] %vm4926, %v4875
        %4950 = vst.msk [vmem:[%s445 + $0x111] sm:$0xff] %vm4926, %v4877
        %4951 = vst.msk [vmem:[%s445 + $0x121] sm:$0xff] %vm4926, %v4879
        %4952 = vst.msk [vmem:[%s445 + $0x129] sm:$0xff] %vm4926, %v4881
        %4953 = vst.msk [vmem:[%s445 + $0x139] sm:$0xff] %vm4926, %v4883
        %4954 = vst.msk [vmem:[%s445 + $0x141] sm:$0xff] %vm4926, %v4885
        %4955 = vst.msk [vmem:[%s445 + $0x151] sm:$0xff] %vm4926, %v4887
        %4956 = vst.msk [vmem:[%s445 + $0x159] sm:$0xff] %vm4926, %v4889
        %4957 = vst.msk [vmem:[%s445 + $0x169] sm:$0xff] %vm4926, %v4891
        %4958 = vst.msk [vmem:[%s445 + $0x171] sm:$0xff] %vm4926, %v4893
        %v4959 = vld [vmem:[#allocation2] sm:$0xff]
        %v4960 = vld [vmem:[#allocation2 + $0x8] sm:$0xff]
        %v4961 = vld [vmem:[#allocation2 + $0x18] sm:$0xff]
        %v4962 = vld [vmem:[#allocation2 + $0x20] sm:$0xff]
        %v4963 = vld [vmem:[#allocation2 + $0x30] sm:$0xff]
        %v4964 = vld [vmem:[#allocation2 + $0x38] sm:$0xff]
        %v4965 = vld [vmem:[#allocation2 + $0x48] sm:$0xff]
        %v4966 = vld [vmem:[#allocation2 + $0x50] sm:$0xff]
        %v4967 = vld [vmem:[#allocation2 + $0x60] sm:$0xff]
        %v4968 = vld [vmem:[#allocation2 + $0x68] sm:$0xff]
        %v4969 = vld [vmem:[#allocation2 + $0x78] sm:$0xff]
        %v4970 = vld [vmem:[#allocation2 + $0x80] sm:$0xff]
        %v4971 = vld [vmem:[#allocation2 + $0x90] sm:$0xff]
        %v4972 = vld [vmem:[#allocation2 + $0x98] sm:$0xff]
        %v4973 = vld [vmem:[#allocation2 + $0xa8] sm:$0xff]
        %v4974 = vld [vmem:[#allocation2 + $0xb0] sm:$0xff]
        %v4975 = vld [vmem:[#allocation2 + $0xc0] sm:$0xff]
        %v4976 = vld [vmem:[#allocation2 + $0xc8] sm:$0xff]
        %v4977 = vld [vmem:[#allocation2 + $0xd8] sm:$0xff]
        %v4978 = vld [vmem:[#allocation2 + $0xe0] sm:$0xff]
        %v4979 = vld [vmem:[#allocation2 + $0xf0] sm:$0xff]
        %v4980 = vld [vmem:[#allocation2 + $0xf8] sm:$0xff]
        %v4981 = vld [vmem:[#allocation2 + $0x108] sm:$0xff]
        %v4982 = vld [vmem:[#allocation2 + $0x110] sm:$0xff]
        %v4983 = vld [vmem:[#allocation2 + $0x120] sm:$0xff]
        %v4984 = vld [vmem:[#allocation2 + $0x128] sm:$0xff]
        %v4985 = vld [vmem:[#allocation2 + $0x138] sm:$0xff]
        %v4986 = vld [vmem:[#allocation2 + $0x140] sm:$0xff]
        %v4987 = vld [vmem:[#allocation2 + $0x150] sm:$0xff]
        %v4988 = vld [vmem:[#allocation2 + $0x158] sm:$0xff]
        %v4989 = vld [vmem:[#allocation2 + $0x168] sm:$0xff]
        %v4990 = vld [vmem:[#allocation2 + $0x170] sm:$0xff]
        %5023 = vrot.lane.b32.xlu0 %v4959, 96
        %v5024 = vpop.permute.xlu0 %5023
        %5025 = vrot.lane.b32.xlu0 %v4960, 96
        %v5026 = vpop.permute.xlu0 %5025
        %5027 = vrot.lane.b32.xlu0 %v4961, 96
        %v5028 = vpop.permute.xlu0 %5027
        %5029 = vrot.lane.b32.xlu0 %v4962, 96
        %v5030 = vpop.permute.xlu0 %5029
        %5031 = vrot.lane.b32.xlu0 %v4963, 96
        %v5032 = vpop.permute.xlu0 %5031
        %5033 = vrot.lane.b32.xlu0 %v4964, 96
        %v5034 = vpop.permute.xlu0 %5033
        %5035 = vrot.lane.b32.xlu0 %v4965, 96
        %v5036 = vpop.permute.xlu0 %5035
        %5037 = vrot.lane.b32.xlu0 %v4966, 96
        %v5038 = vpop.permute.xlu0 %5037
        %5039 = vrot.lane.b32.xlu0 %v4967, 96
        %v5040 = vpop.permute.xlu0 %5039
        %5041 = vrot.lane.b32.xlu0 %v4968, 96
        %v5042 = vpop.permute.xlu0 %5041
        %5043 = vrot.lane.b32.xlu0 %v4969, 96
        %v5044 = vpop.permute.xlu0 %5043
        %5045 = vrot.lane.b32.xlu0 %v4970, 96
        %v5046 = vpop.permute.xlu0 %5045
        %5047 = vrot.lane.b32.xlu0 %v4971, 96
        %v5048 = vpop.permute.xlu0 %5047
        %5049 = vrot.lane.b32.xlu0 %v4972, 96
        %v5050 = vpop.permute.xlu0 %5049
        %5051 = vrot.lane.b32.xlu0 %v4973, 96
        %v5052 = vpop.permute.xlu0 %5051
        %5053 = vrot.lane.b32.xlu0 %v4974, 96
        %v5054 = vpop.permute.xlu0 %5053
        %5055 = vrot.lane.b32.xlu0 %v4975, 96
        %v5056 = vpop.permute.xlu0 %5055
        %5057 = vrot.lane.b32.xlu0 %v4976, 96
        %v5058 = vpop.permute.xlu0 %5057
        %5059 = vrot.lane.b32.xlu0 %v4977, 96
        %v5060 = vpop.permute.xlu0 %5059
        %5061 = vrot.lane.b32.xlu0 %v4978, 96
        %v5062 = vpop.permute.xlu0 %5061
        %5063 = vrot.lane.b32.xlu0 %v4979, 96
        %v5064 = vpop.permute.xlu0 %5063
        %5065 = vrot.lane.b32.xlu0 %v4980, 96
        %v5066 = vpop.permute.xlu0 %5065
        %5067 = vrot.lane.b32.xlu0 %v4981, 96
        %v5068 = vpop.permute.xlu0 %5067
        %5069 = vrot.lane.b32.xlu0 %v4982, 96
        %v5070 = vpop.permute.xlu0 %5069
        %5071 = vrot.lane.b32.xlu0 %v4983, 96
        %v5072 = vpop.permute.xlu0 %5071
        %5073 = vrot.lane.b32.xlu0 %v4984, 96
        %v5074 = vpop.permute.xlu0 %5073
        %5075 = vrot.lane.b32.xlu0 %v4985, 96
        %v5076 = vpop.permute.xlu0 %5075
        %5077 = vrot.lane.b32.xlu0 %v4986, 96
        %v5078 = vpop.permute.xlu0 %5077
        %5079 = vrot.lane.b32.xlu0 %v4987, 96
        %v5080 = vpop.permute.xlu0 %5079
        %5081 = vrot.lane.b32.xlu0 %v4988, 96
        %v5082 = vpop.permute.xlu0 %5081
        %5083 = vrot.lane.b32.xlu0 %v4989, 96
        %v5084 = vpop.permute.xlu0 %5083
        %5085 = vrot.lane.b32.xlu0 %v4990, 96
        %v5086 = vpop.permute.xlu0 %5085
        %vm5119 = vcmask 950112
        %5120 = vst.msk [vmem:[#allocation3] sm:$0xff] %vm5119, %v5024
        %5121 = vst.msk [vmem:[#allocation3 + $0x10] sm:$0xff] %vm5119, %v5026
        %5122 = vst.msk [vmem:[#allocation3 + $0x20] sm:$0xff] %vm5119, %v5028
        %5123 = vst.msk [vmem:[#allocation3 + $0x30] sm:$0xff] %vm5119, %v5030
        %5124 = vst.msk [vmem:[#allocation3 + $0x40] sm:$0xff] %vm5119, %v5032
        %5125 = vst.msk [vmem:[#allocation3 + $0x50] sm:$0xff] %vm5119, %v5034
        %5126 = vst.msk [vmem:[#allocation3 + $0x60] sm:$0xff] %vm5119, %v5036
        %5127 = vst.msk [vmem:[#allocation3 + $0x70] sm:$0xff] %vm5119, %v5038
        %5128 = vst.msk [vmem:[#allocation3 + $0x80] sm:$0xff] %vm5119, %v5040
        %5129 = vst.msk [vmem:[#allocation3 + $0x90] sm:$0xff] %vm5119, %v5042
        %5130 = vst.msk [vmem:[#allocation3 + $0xa0] sm:$0xff] %vm5119, %v5044
        %5131 = vst.msk [vmem:[#allocation3 + $0xb0] sm:$0xff] %vm5119, %v5046
        %5132 = vst.msk [vmem:[#allocation3 + $0xc0] sm:$0xff] %vm5119, %v5048
        %5133 = vst.msk [vmem:[#allocation3 + $0xd0] sm:$0xff] %vm5119, %v5050
        %5134 = vst.msk [vmem:[#allocation3 + $0xe0] sm:$0xff] %vm5119, %v5052
        %5135 = vst.msk [vmem:[#allocation3 + $0xf0] sm:$0xff] %vm5119, %v5054
        %5136 = vst.msk [vmem:[#allocation3 + $0x100] sm:$0xff] %vm5119, %v5056
        %5137 = vst.msk [vmem:[#allocation3 + $0x110] sm:$0xff] %vm5119, %v5058
        %5138 = vst.msk [vmem:[#allocation3 + $0x120] sm:$0xff] %vm5119, %v5060
        %5139 = vst.msk [vmem:[#allocation3 + $0x130] sm:$0xff] %vm5119, %v5062
        %5140 = vst.msk [vmem:[#allocation3 + $0x140] sm:$0xff] %vm5119, %v5064
        %5141 = vst.msk [vmem:[#allocation3 + $0x150] sm:$0xff] %vm5119, %v5066
        %5142 = vst.msk [vmem:[#allocation3 + $0x160] sm:$0xff] %vm5119, %v5068
        %5143 = vst.msk [vmem:[#allocation3 + $0x170] sm:$0xff] %vm5119, %v5070
        %5144 = vst.msk [vmem:[#allocation3 + $0x180] sm:$0xff] %vm5119, %v5072
        %5145 = vst.msk [vmem:[#allocation3 + $0x190] sm:$0xff] %vm5119, %v5074
        %5146 = vst.msk [vmem:[#allocation3 + $0x1a0] sm:$0xff] %vm5119, %v5076
        %5147 = vst.msk [vmem:[#allocation3 + $0x1b0] sm:$0xff] %vm5119, %v5078
        %5148 = vst.msk [vmem:[#allocation3 + $0x1c0] sm:$0xff] %vm5119, %v5080
        %5149 = vst.msk [vmem:[#allocation3 + $0x1d0] sm:$0xff] %vm5119, %v5082
        %5150 = vst.msk [vmem:[#allocation3 + $0x1e0] sm:$0xff] %vm5119, %v5084
        %5151 = vst.msk [vmem:[#allocation3 + $0x1f0] sm:$0xff] %vm5119, %v5086
        %v5152 = vld [vmem:[#allocation2 + $0x1] sm:$0xff]
        %v5153 = vld [vmem:[#allocation2 + $0x9] sm:$0xff]
        %v5154 = vld [vmem:[#allocation2 + $0x19] sm:$0xff]
        %v5155 = vld [vmem:[#allocation2 + $0x21] sm:$0xff]
        %v5156 = vld [vmem:[#allocation2 + $0x31] sm:$0xff]
        %v5157 = vld [vmem:[#allocation2 + $0x39] sm:$0xff]
        %v5158 = vld [vmem:[#allocation2 + $0x49] sm:$0xff]
        %v5159 = vld [vmem:[#allocation2 + $0x51] sm:$0xff]
        %v5160 = vld [vmem:[#allocation2 + $0x61] sm:$0xff]
        %v5161 = vld [vmem:[#allocation2 + $0x69] sm:$0xff]
        %v5162 = vld [vmem:[#allocation2 + $0x79] sm:$0xff]
        %v5163 = vld [vmem:[#allocation2 + $0x81] sm:$0xff]
        %v5164 = vld [vmem:[#allocation2 + $0x91] sm:$0xff]
        %v5165 = vld [vmem:[#allocation2 + $0x99] sm:$0xff]
        %v5166 = vld [vmem:[#allocation2 + $0xa9] sm:$0xff]
        %v5167 = vld [vmem:[#allocation2 + $0xb1] sm:$0xff]
        %v5168 = vld [vmem:[#allocation2 + $0xc1] sm:$0xff]
        %v5169 = vld [vmem:[#allocation2 + $0xc9] sm:$0xff]
        %v5170 = vld [vmem:[#allocation2 + $0xd9] sm:$0xff]
        %v5171 = vld [vmem:[#allocation2 + $0xe1] sm:$0xff]
        %v5172 = vld [vmem:[#allocation2 + $0xf1] sm:$0xff]
        %v5173 = vld [vmem:[#allocation2 + $0xf9] sm:$0xff]
        %v5174 = vld [vmem:[#allocation2 + $0x109] sm:$0xff]
        %v5175 = vld [vmem:[#allocation2 + $0x111] sm:$0xff]
        %v5176 = vld [vmem:[#allocation2 + $0x121] sm:$0xff]
        %v5177 = vld [vmem:[#allocation2 + $0x129] sm:$0xff]
        %v5178 = vld [vmem:[#allocation2 + $0x139] sm:$0xff]
        %v5179 = vld [vmem:[#allocation2 + $0x141] sm:$0xff]
        %v5180 = vld [vmem:[#allocation2 + $0x151] sm:$0xff]
        %v5181 = vld [vmem:[#allocation2 + $0x159] sm:$0xff]
        %v5182 = vld [vmem:[#allocation2 + $0x169] sm:$0xff]
        %v5183 = vld [vmem:[#allocation2 + $0x171] sm:$0xff]
        %5216 = vrot.lane.b32.xlu0 %v5152, 104
        %v5217 = vpop.permute.xlu0 %5216
        %5218 = vrot.lane.b32.xlu0 %v5153, 104
        %v5219 = vpop.permute.xlu0 %5218
        %5220 = vrot.lane.b32.xlu0 %v5154, 104
        %v5221 = vpop.permute.xlu0 %5220
        %5222 = vrot.lane.b32.xlu0 %v5155, 104
        %v5223 = vpop.permute.xlu0 %5222
        %5224 = vrot.lane.b32.xlu0 %v5156, 104
        %v5225 = vpop.permute.xlu0 %5224
        %5226 = vrot.lane.b32.xlu0 %v5157, 104
        %v5227 = vpop.permute.xlu0 %5226
        %5228 = vrot.lane.b32.xlu0 %v5158, 104
        %v5229 = vpop.permute.xlu0 %5228
        %5230 = vrot.lane.b32.xlu0 %v5159, 104
        %v5231 = vpop.permute.xlu0 %5230
        %5232 = vrot.lane.b32.xlu0 %v5160, 104
        %v5233 = vpop.permute.xlu0 %5232
        %5234 = vrot.lane.b32.xlu0 %v5161, 104
        %v5235 = vpop.permute.xlu0 %5234
        %5236 = vrot.lane.b32.xlu0 %v5162, 104
        %v5237 = vpop.permute.xlu0 %5236
        %5238 = vrot.lane.b32.xlu0 %v5163, 104
        %v5239 = vpop.permute.xlu0 %5238
        %5240 = vrot.lane.b32.xlu0 %v5164, 104
        %v5241 = vpop.permute.xlu0 %5240
        %5242 = vrot.lane.b32.xlu0 %v5165, 104
        %v5243 = vpop.permute.xlu0 %5242
        %5244 = vrot.lane.b32.xlu0 %v5166, 104
        %v5245 = vpop.permute.xlu0 %5244
        %5246 = vrot.lane.b32.xlu0 %v5167, 104
        %v5247 = vpop.permute.xlu0 %5246
        %5248 = vrot.lane.b32.xlu0 %v5168, 104
        %v5249 = vpop.permute.xlu0 %5248
        %5250 = vrot.lane.b32.xlu0 %v5169, 104
        %v5251 = vpop.permute.xlu0 %5250
        %5252 = vrot.lane.b32.xlu0 %v5170, 104
        %v5253 = vpop.permute.xlu0 %5252
        %5254 = vrot.lane.b32.xlu0 %v5171, 104
        %v5255 = vpop.permute.xlu0 %5254
        %5256 = vrot.lane.b32.xlu0 %v5172, 104
        %v5257 = vpop.permute.xlu0 %5256
        %5258 = vrot.lane.b32.xlu0 %v5173, 104
        %v5259 = vpop.permute.xlu0 %5258
        %5260 = vrot.lane.b32.xlu0 %v5174, 104
        %v5261 = vpop.permute.xlu0 %5260
        %5262 = vrot.lane.b32.xlu0 %v5175, 104
        %v5263 = vpop.permute.xlu0 %5262
        %5264 = vrot.lane.b32.xlu0 %v5176, 104
        %v5265 = vpop.permute.xlu0 %5264
        %5266 = vrot.lane.b32.xlu0 %v5177, 104
        %v5267 = vpop.permute.xlu0 %5266
        %5268 = vrot.lane.b32.xlu0 %v5178, 104
        %v5269 = vpop.permute.xlu0 %5268
        %5270 = vrot.lane.b32.xlu0 %v5179, 104
        %v5271 = vpop.permute.xlu0 %5270
        %5272 = vrot.lane.b32.xlu0 %v5180, 104
        %v5273 = vpop.permute.xlu0 %5272
        %5274 = vrot.lane.b32.xlu0 %v5181, 104
        %v5275 = vpop.permute.xlu0 %5274
        %5276 = vrot.lane.b32.xlu0 %v5182, 104
        %v5277 = vpop.permute.xlu0 %5276
        %5278 = vrot.lane.b32.xlu0 %v5183, 104
        %v5279 = vpop.permute.xlu0 %5278
        %vm5312 = vcmask 1015712
        %5313 = vst.msk [vmem:[#allocation3] sm:$0xff] %vm5312, %v5217
        %5314 = vst.msk [vmem:[#allocation3 + $0x10] sm:$0xff] %vm5312, %v5219
        %5315 = vst.msk [vmem:[#allocation3 + $0x20] sm:$0xff] %vm5312, %v5221
        %5316 = vst.msk [vmem:[#allocation3 + $0x30] sm:$0xff] %vm5312, %v5223
        %5317 = vst.msk [vmem:[#allocation3 + $0x40] sm:$0xff] %vm5312, %v5225
        %5318 = vst.msk [vmem:[#allocation3 + $0x50] sm:$0xff] %vm5312, %v5227
        %5319 = vst.msk [vmem:[#allocation3 + $0x60] sm:$0xff] %vm5312, %v5229
        %5320 = vst.msk [vmem:[#allocation3 + $0x70] sm:$0xff] %vm5312, %v5231
        %5321 = vst.msk [vmem:[#allocation3 + $0x80] sm:$0xff] %vm5312, %v5233
        %5322 = vst.msk [vmem:[#allocation3 + $0x90] sm:$0xff] %vm5312, %v5235
        %5323 = vst.msk [vmem:[#allocation3 + $0xa0] sm:$0xff] %vm5312, %v5237
        %5324 = vst.msk [vmem:[#allocation3 + $0xb0] sm:$0xff] %vm5312, %v5239
        %5325 = vst.msk [vmem:[#allocation3 + $0xc0] sm:$0xff] %vm5312, %v5241
        %5326 = vst.msk [vmem:[#allocation3 + $0xd0] sm:$0xff] %vm5312, %v5243
        %5327 = vst.msk [vmem:[#allocation3 + $0xe0] sm:$0xff] %vm5312, %v5245
        %5328 = vst.msk [vmem:[#allocation3 + $0xf0] sm:$0xff] %vm5312, %v5247
        %5329 = vst.msk [vmem:[#allocation3 + $0x100] sm:$0xff] %vm5312, %v5249
        %5330 = vst.msk [vmem:[#allocation3 + $0x110] sm:$0xff] %vm5312, %v5251
        %5331 = vst.msk [vmem:[#allocation3 + $0x120] sm:$0xff] %vm5312, %v5253
        %5332 = vst.msk [vmem:[#allocation3 + $0x130] sm:$0xff] %vm5312, %v5255
        %5333 = vst.msk [vmem:[#allocation3 + $0x140] sm:$0xff] %vm5312, %v5257
        %5334 = vst.msk [vmem:[#allocation3 + $0x150] sm:$0xff] %vm5312, %v5259
        %5335 = vst.msk [vmem:[#allocation3 + $0x160] sm:$0xff] %vm5312, %v5261
        %5336 = vst.msk [vmem:[#allocation3 + $0x170] sm:$0xff] %vm5312, %v5263
        %5337 = vst.msk [vmem:[#allocation3 + $0x180] sm:$0xff] %vm5312, %v5265
        %5338 = vst.msk [vmem:[#allocation3 + $0x190] sm:$0xff] %vm5312, %v5267
        %5339 = vst.msk [vmem:[#allocation3 + $0x1a0] sm:$0xff] %vm5312, %v5269
        %5340 = vst.msk [vmem:[#allocation3 + $0x1b0] sm:$0xff] %vm5312, %v5271
        %5341 = vst.msk [vmem:[#allocation3 + $0x1c0] sm:$0xff] %vm5312, %v5273
        %5342 = vst.msk [vmem:[#allocation3 + $0x1d0] sm:$0xff] %vm5312, %v5275
        %5343 = vst.msk [vmem:[#allocation3 + $0x1e0] sm:$0xff] %vm5312, %v5277
        %5344 = vst.msk [vmem:[#allocation3 + $0x1f0] sm:$0xff] %vm5312, %v5279
        %v5345 = vld [vmem:[#allocation2 + $0x2] sm:$0xff]
        %v5346 = vld [vmem:[#allocation2 + $0xa] sm:$0xff]
        %v5347 = vld [vmem:[#allocation2 + $0x1a] sm:$0xff]
        %v5348 = vld [vmem:[#allocation2 + $0x22] sm:$0xff]
        %v5349 = vld [vmem:[#allocation2 + $0x32] sm:$0xff]
        %v5350 = vld [vmem:[#allocation2 + $0x3a] sm:$0xff]
        %v5351 = vld [vmem:[#allocation2 + $0x4a] sm:$0xff]
        %v5352 = vld [vmem:[#allocation2 + $0x52] sm:$0xff]
        %v5353 = vld [vmem:[#allocation2 + $0x62] sm:$0xff]
        %v5354 = vld [vmem:[#allocation2 + $0x6a] sm:$0xff]
        %v5355 = vld [vmem:[#allocation2 + $0x7a] sm:$0xff]
        %v5356 = vld [vmem:[#allocation2 + $0x82] sm:$0xff]
        %v5357 = vld [vmem:[#allocation2 + $0x92] sm:$0xff]
        %v5358 = vld [vmem:[#allocation2 + $0x9a] sm:$0xff]
        %v5359 = vld [vmem:[#allocation2 + $0xaa] sm:$0xff]
        %v5360 = vld [vmem:[#allocation2 + $0xb2] sm:$0xff]
        %v5361 = vld [vmem:[#allocation2 + $0xc2] sm:$0xff]
        %v5362 = vld [vmem:[#allocation2 + $0xca] sm:$0xff]
        %v5363 = vld [vmem:[#allocation2 + $0xda] sm:$0xff]
        %v5364 = vld [vmem:[#allocation2 + $0xe2] sm:$0xff]
        %v5365 = vld [vmem:[#allocation2 + $0xf2] sm:$0xff]
        %v5366 = vld [vmem:[#allocation2 + $0xfa] sm:$0xff]
        %v5367 = vld [vmem:[#allocation2 + $0x10a] sm:$0xff]
        %v5368 = vld [vmem:[#allocation2 + $0x112] sm:$0xff]
        %v5369 = vld [vmem:[#allocation2 + $0x122] sm:$0xff]
        %v5370 = vld [vmem:[#allocation2 + $0x12a] sm:$0xff]
        %v5371 = vld [vmem:[#allocation2 + $0x13a] sm:$0xff]
        %v5372 = vld [vmem:[#allocation2 + $0x142] sm:$0xff]
        %v5373 = vld [vmem:[#allocation2 + $0x152] sm:$0xff]
        %v5374 = vld [vmem:[#allocation2 + $0x15a] sm:$0xff]
        %v5375 = vld [vmem:[#allocation2 + $0x16a] sm:$0xff]
        %v5376 = vld [vmem:[#allocation2 + $0x172] sm:$0xff]
        %5409 = vrot.lane.b32.xlu0 %v5345, 112
        %v5410 = vpop.permute.xlu0 %5409
        %5411 = vrot.lane.b32.xlu0 %v5346, 112
        %v5412 = vpop.permute.xlu0 %5411
        %5413 = vrot.lane.b32.xlu0 %v5347, 112
        %v5414 = vpop.permute.xlu0 %5413
        %5415 = vrot.lane.b32.xlu0 %v5348, 112
        %v5416 = vpop.permute.xlu0 %5415
        %5417 = vrot.lane.b32.xlu0 %v5349, 112
        %v5418 = vpop.permute.xlu0 %5417
        %5419 = vrot.lane.b32.xlu0 %v5350, 112
        %v5420 = vpop.permute.xlu0 %5419
        %5421 = vrot.lane.b32.xlu0 %v5351, 112
        %v5422 = vpop.permute.xlu0 %5421
        %5423 = vrot.lane.b32.xlu0 %v5352, 112
        %v5424 = vpop.permute.xlu0 %5423
        %5425 = vrot.lane.b32.xlu0 %v5353, 112
        %v5426 = vpop.permute.xlu0 %5425
        %5427 = vrot.lane.b32.xlu0 %v5354, 112
        %v5428 = vpop.permute.xlu0 %5427
        %5429 = vrot.lane.b32.xlu0 %v5355, 112
        %v5430 = vpop.permute.xlu0 %5429
        %5431 = vrot.lane.b32.xlu0 %v5356, 112
        %v5432 = vpop.permute.xlu0 %5431
        %5433 = vrot.lane.b32.xlu0 %v5357, 112
        %v5434 = vpop.permute.xlu0 %5433
        %5435 = vrot.lane.b32.xlu0 %v5358, 112
        %v5436 = vpop.permute.xlu0 %5435
        %5437 = vrot.lane.b32.xlu0 %v5359, 112
        %v5438 = vpop.permute.xlu0 %5437
        %5439 = vrot.lane.b32.xlu0 %v5360, 112
        %v5440 = vpop.permute.xlu0 %5439
        %5441 = vrot.lane.b32.xlu0 %v5361, 112
        %v5442 = vpop.permute.xlu0 %5441
        %5443 = vrot.lane.b32.xlu0 %v5362, 112
        %v5444 = vpop.permute.xlu0 %5443
        %5445 = vrot.lane.b32.xlu0 %v5363, 112
        %v5446 = vpop.permute.xlu0 %5445
        %5447 = vrot.lane.b32.xlu0 %v5364, 112
        %v5448 = vpop.permute.xlu0 %5447
        %5449 = vrot.lane.b32.xlu0 %v5365, 112
        %v5450 = vpop.permute.xlu0 %5449
        %5451 = vrot.lane.b32.xlu0 %v5366, 112
        %v5452 = vpop.permute.xlu0 %5451
        %5453 = vrot.lane.b32.xlu0 %v5367, 112
        %v5454 = vpop.permute.xlu0 %5453
        %5455 = vrot.lane.b32.xlu0 %v5368, 112
        %v5456 = vpop.permute.xlu0 %5455
        %5457 = vrot.lane.b32.xlu0 %v5369, 112
        %v5458 = vpop.permute.xlu0 %5457
        %5459 = vrot.lane.b32.xlu0 %v5370, 112
        %v5460 = vpop.permute.xlu0 %5459
        %5461 = vrot.lane.b32.xlu0 %v5371, 112
        %v5462 = vpop.permute.xlu0 %5461
        %5463 = vrot.lane.b32.xlu0 %v5372, 112
        %v5464 = vpop.permute.xlu0 %5463
        %5465 = vrot.lane.b32.xlu0 %v5373, 112
        %v5466 = vpop.permute.xlu0 %5465
        %5467 = vrot.lane.b32.xlu0 %v5374, 112
        %v5468 = vpop.permute.xlu0 %5467
        %5469 = vrot.lane.b32.xlu0 %v5375, 112
        %v5470 = vpop.permute.xlu0 %5469
        %5471 = vrot.lane.b32.xlu0 %v5376, 112
        %v5472 = vpop.permute.xlu0 %5471
        %vm5505 = vcmask 1048544
        %5506 = vst.msk [vmem:[#allocation3] sm:$0xff] %vm5505, %v5410
        %5507 = vst.msk [vmem:[#allocation3 + $0x8] sm:$0xff] %vm446, %v5410
        %5508 = vst.msk [vmem:[#allocation3 + $0x10] sm:$0xff] %vm5505, %v5412
        %5509 = vst.msk [vmem:[#allocation3 + $0x18] sm:$0xff] %vm446, %v5412
        %5510 = vst.msk [vmem:[#allocation3 + $0x20] sm:$0xff] %vm5505, %v5414
        %5511 = vst.msk [vmem:[#allocation3 + $0x28] sm:$0xff] %vm446, %v5414
        %5512 = vst.msk [vmem:[#allocation3 + $0x30] sm:$0xff] %vm5505, %v5416
        %5513 = vst.msk [vmem:[#allocation3 + $0x38] sm:$0xff] %vm446, %v5416
        %5514 = vst.msk [vmem:[#allocation3 + $0x40] sm:$0xff] %vm5505, %v5418
        %5515 = vst.msk [vmem:[#allocation3 + $0x48] sm:$0xff] %vm446, %v5418
        %5516 = vst.msk [vmem:[#allocation3 + $0x50] sm:$0xff] %vm5505, %v5420
        %5517 = vst.msk [vmem:[#allocation3 + $0x58] sm:$0xff] %vm446, %v5420
        %5518 = vst.msk [vmem:[#allocation3 + $0x60] sm:$0xff] %vm5505, %v5422
        %5519 = vst.msk [vmem:[#allocation3 + $0x68] sm:$0xff] %vm446, %v5422
        %5520 = vst.msk [vmem:[#allocation3 + $0x70] sm:$0xff] %vm5505, %v5424
        %5521 = vst.msk [vmem:[#allocation3 + $0x78] sm:$0xff] %vm446, %v5424
        %5522 = vst.msk [vmem:[#allocation3 + $0x80] sm:$0xff] %vm5505, %v5426
        %5523 = vst.msk [vmem:[#allocation3 + $0x88] sm:$0xff] %vm446, %v5426
        %5524 = vst.msk [vmem:[#allocation3 + $0x90] sm:$0xff] %vm5505, %v5428
        %5525 = vst.msk [vmem:[#allocation3 + $0x98] sm:$0xff] %vm446, %v5428
        %5526 = vst.msk [vmem:[#allocation3 + $0xa0] sm:$0xff] %vm5505, %v5430
        %5527 = vst.msk [vmem:[#allocation3 + $0xa8] sm:$0xff] %vm446, %v5430
        %5528 = vst.msk [vmem:[#allocation3 + $0xb0] sm:$0xff] %vm5505, %v5432
        %5529 = vst.msk [vmem:[#allocation3 + $0xb8] sm:$0xff] %vm446, %v5432
        %5530 = vst.msk [vmem:[#allocation3 + $0xc0] sm:$0xff] %vm5505, %v5434
        %5531 = vst.msk [vmem:[#allocation3 + $0xc8] sm:$0xff] %vm446, %v5434
        %5532 = vst.msk [vmem:[#allocation3 + $0xd0] sm:$0xff] %vm5505, %v5436
        %5533 = vst.msk [vmem:[#allocation3 + $0xd8] sm:$0xff] %vm446, %v5436
        %5534 = vst.msk [vmem:[#allocation3 + $0xe0] sm:$0xff] %vm5505, %v5438
        %5535 = vst.msk [vmem:[#allocation3 + $0xe8] sm:$0xff] %vm446, %v5438
        %5536 = vst.msk [vmem:[#allocation3 + $0xf0] sm:$0xff] %vm5505, %v5440
        %5537 = vst.msk [vmem:[#allocation3 + $0xf8] sm:$0xff] %vm446, %v5440
        %5538 = vst.msk [vmem:[#allocation3 + $0x100] sm:$0xff] %vm5505, %v5442
        %5539 = vst.msk [vmem:[#allocation3 + $0x108] sm:$0xff] %vm446, %v5442
        %5540 = vst.msk [vmem:[#allocation3 + $0x110] sm:$0xff] %vm5505, %v5444
        %5541 = vst.msk [vmem:[#allocation3 + $0x118] sm:$0xff] %vm446, %v5444
        %5542 = vst.msk [vmem:[#allocation3 + $0x120] sm:$0xff] %vm5505, %v5446
        %5543 = vst.msk [vmem:[#allocation3 + $0x128] sm:$0xff] %vm446, %v5446
        %5544 = vst.msk [vmem:[#allocation3 + $0x130] sm:$0xff] %vm5505, %v5448
        %5545 = vst.msk [vmem:[#allocation3 + $0x138] sm:$0xff] %vm446, %v5448
        %5546 = vst.msk [vmem:[#allocation3 + $0x140] sm:$0xff] %vm5505, %v5450
        %5547 = vst.msk [vmem:[#allocation3 + $0x148] sm:$0xff] %vm446, %v5450
        %5548 = vst.msk [vmem:[#allocation3 + $0x150] sm:$0xff] %vm5505, %v5452
        %5549 = vst.msk [vmem:[#allocation3 + $0x158] sm:$0xff] %vm446, %v5452
        %5550 = vst.msk [vmem:[#allocation3 + $0x160] sm:$0xff] %vm5505, %v5454
        %5551 = vst.msk [vmem:[#allocation3 + $0x168] sm:$0xff] %vm446, %v5454
        %5552 = vst.msk [vmem:[#allocation3 + $0x170] sm:$0xff] %vm5505, %v5456
        %5553 = vst.msk [vmem:[#allocation3 + $0x178] sm:$0xff] %vm446, %v5456
        %5554 = vst.msk [vmem:[#allocation3 + $0x180] sm:$0xff] %vm5505, %v5458
        %5555 = vst.msk [vmem:[#allocation3 + $0x188] sm:$0xff] %vm446, %v5458
        %5556 = vst.msk [vmem:[#allocation3 + $0x190] sm:$0xff] %vm5505, %v5460
        %5557 = vst.msk [vmem:[#allocation3 + $0x198] sm:$0xff] %vm446, %v5460
        %5558 = vst.msk [vmem:[#allocation3 + $0x1a0] sm:$0xff] %vm5505, %v5462
        %5559 = vst.msk [vmem:[#allocation3 + $0x1a8] sm:$0xff] %vm446, %v5462
        %5560 = vst.msk [vmem:[#allocation3 + $0x1b0] sm:$0xff] %vm5505, %v5464
        %5561 = vst.msk [vmem:[#allocation3 + $0x1b8] sm:$0xff] %vm446, %v5464
        %5562 = vst.msk [vmem:[#allocation3 + $0x1c0] sm:$0xff] %vm5505, %v5466
        %5563 = vst.msk [vmem:[#allocation3 + $0x1c8] sm:$0xff] %vm446, %v5466
        %5564 = vst.msk [vmem:[#allocation3 + $0x1d0] sm:$0xff] %vm5505, %v5468
        %5565 = vst.msk [vmem:[#allocation3 + $0x1d8] sm:$0xff] %vm446, %v5468
        %5566 = vst.msk [vmem:[#allocation3 + $0x1e0] sm:$0xff] %vm5505, %v5470
        %5567 = vst.msk [vmem:[#allocation3 + $0x1e8] sm:$0xff] %vm446, %v5470
        %5568 = vst.msk [vmem:[#allocation3 + $0x1f0] sm:$0xff] %vm5505, %v5472
        %5569 = vst.msk [vmem:[#allocation3 + $0x1f8] sm:$0xff] %vm446, %v5472
        %v5570 = vld [vmem:[%s445] sm:$0xff]
        %v5571 = vld [vmem:[%s445 + $0x8] sm:$0xff]
        %v5572 = vld [vmem:[%s445 + $0x18] sm:$0xff]
        %v5573 = vld [vmem:[%s445 + $0x20] sm:$0xff]
        %v5574 = vld [vmem:[%s445 + $0x30] sm:$0xff]
        %v5575 = vld [vmem:[%s445 + $0x38] sm:$0xff]
        %v5576 = vld [vmem:[%s445 + $0x48] sm:$0xff]
        %v5577 = vld [vmem:[%s445 + $0x50] sm:$0xff]
        %v5578 = vld [vmem:[%s445 + $0x60] sm:$0xff]
        %v5579 = vld [vmem:[%s445 + $0x68] sm:$0xff]
        %v5580 = vld [vmem:[%s445 + $0x78] sm:$0xff]
        %v5581 = vld [vmem:[%s445 + $0x80] sm:$0xff]
        %v5582 = vld [vmem:[%s445 + $0x90] sm:$0xff]
        %v5583 = vld [vmem:[%s445 + $0x98] sm:$0xff]
        %v5584 = vld [vmem:[%s445 + $0xa8] sm:$0xff]
        %v5585 = vld [vmem:[%s445 + $0xb0] sm:$0xff]
        %v5586 = vld [vmem:[%s445 + $0xc0] sm:$0xff]
        %v5587 = vld [vmem:[%s445 + $0xc8] sm:$0xff]
        %v5588 = vld [vmem:[%s445 + $0xd8] sm:$0xff]
        %v5589 = vld [vmem:[%s445 + $0xe0] sm:$0xff]
        %v5590 = vld [vmem:[%s445 + $0xf0] sm:$0xff]
        %v5591 = vld [vmem:[%s445 + $0xf8] sm:$0xff]
        %v5592 = vld [vmem:[%s445 + $0x108] sm:$0xff]
        %v5593 = vld [vmem:[%s445 + $0x110] sm:$0xff]
        %v5594 = vld [vmem:[%s445 + $0x120] sm:$0xff]
        %v5595 = vld [vmem:[%s445 + $0x128] sm:$0xff]
        %v5596 = vld [vmem:[%s445 + $0x138] sm:$0xff]
        %v5597 = vld [vmem:[%s445 + $0x140] sm:$0xff]
        %v5598 = vld [vmem:[%s445 + $0x150] sm:$0xff]
        %v5599 = vld [vmem:[%s445 + $0x158] sm:$0xff]
        %v5600 = vld [vmem:[%s445 + $0x168] sm:$0xff]
        %v5601 = vld [vmem:[%s445 + $0x170] sm:$0xff]
        %5634 = vrot.lane.b32.xlu0 %v5570, 120
        %v5635 = vpop.permute.xlu0 %5634
        %5636 = vrot.lane.b32.xlu0 %v5571, 120
        %v5637 = vpop.permute.xlu0 %5636
        %5638 = vrot.lane.b32.xlu0 %v5572, 120
        %v5639 = vpop.permute.xlu0 %5638
        %5640 = vrot.lane.b32.xlu0 %v5573, 120
        %v5641 = vpop.permute.xlu0 %5640
        %5642 = vrot.lane.b32.xlu0 %v5574, 120
        %v5643 = vpop.permute.xlu0 %5642
        %5644 = vrot.lane.b32.xlu0 %v5575, 120
        %v5645 = vpop.permute.xlu0 %5644
        %5646 = vrot.lane.b32.xlu0 %v5576, 120
        %v5647 = vpop.permute.xlu0 %5646
        %5648 = vrot.lane.b32.xlu0 %v5577, 120
        %v5649 = vpop.permute.xlu0 %5648
        %5650 = vrot.lane.b32.xlu0 %v5578, 120
        %v5651 = vpop.permute.xlu0 %5650
        %5652 = vrot.lane.b32.xlu0 %v5579, 120
        %v5653 = vpop.permute.xlu0 %5652
        %5654 = vrot.lane.b32.xlu0 %v5580, 120
        %v5655 = vpop.permute.xlu0 %5654
        %5656 = vrot.lane.b32.xlu0 %v5581, 120
        %v5657 = vpop.permute.xlu0 %5656
        %5658 = vrot.lane.b32.xlu0 %v5582, 120
        %v5659 = vpop.permute.xlu0 %5658
        %5660 = vrot.lane.b32.xlu0 %v5583, 120
        %v5661 = vpop.permute.xlu0 %5660
        %5662 = vrot.lane.b32.xlu0 %v5584, 120
        %v5663 = vpop.permute.xlu0 %5662
        %5664 = vrot.lane.b32.xlu0 %v5585, 120
        %v5665 = vpop.permute.xlu0 %5664
        %5666 = vrot.lane.b32.xlu0 %v5586, 120
        %v5667 = vpop.permute.xlu0 %5666
        %5668 = vrot.lane.b32.xlu0 %v5587, 120
        %v5669 = vpop.permute.xlu0 %5668
        %5670 = vrot.lane.b32.xlu0 %v5588, 120
        %v5671 = vpop.permute.xlu0 %5670
        %5672 = vrot.lane.b32.xlu0 %v5589, 120
        %v5673 = vpop.permute.xlu0 %5672
        %5674 = vrot.lane.b32.xlu0 %v5590, 120
        %v5675 = vpop.permute.xlu0 %5674
        %5676 = vrot.lane.b32.xlu0 %v5591, 120
        %v5677 = vpop.permute.xlu0 %5676
        %5678 = vrot.lane.b32.xlu0 %v5592, 120
        %v5679 = vpop.permute.xlu0 %5678
        %5680 = vrot.lane.b32.xlu0 %v5593, 120
        %v5681 = vpop.permute.xlu0 %5680
        %5682 = vrot.lane.b32.xlu0 %v5594, 120
        %v5683 = vpop.permute.xlu0 %5682
        %5684 = vrot.lane.b32.xlu0 %v5595, 120
        %v5685 = vpop.permute.xlu0 %5684
        %5686 = vrot.lane.b32.xlu0 %v5596, 120
        %v5687 = vpop.permute.xlu0 %5686
        %5688 = vrot.lane.b32.xlu0 %v5597, 120
        %v5689 = vpop.permute.xlu0 %5688
        %5690 = vrot.lane.b32.xlu0 %v5598, 120
        %v5691 = vpop.permute.xlu0 %5690
        %5692 = vrot.lane.b32.xlu0 %v5599, 120
        %v5693 = vpop.permute.xlu0 %5692
        %5694 = vrot.lane.b32.xlu0 %v5600, 120
        %v5695 = vpop.permute.xlu0 %5694
        %5696 = vrot.lane.b32.xlu0 %v5601, 120
        %v5697 = vpop.permute.xlu0 %5696
        %5730 = vst.msk [vmem:[#allocation3 + $0x8] sm:$0xff] %vm2618, %v5635
        %5731 = vst.msk [vmem:[#allocation3 + $0x18] sm:$0xff] %vm2618, %v5637
        %5732 = vst.msk [vmem:[#allocation3 + $0x28] sm:$0xff] %vm2618, %v5639
        %5733 = vst.msk [vmem:[#allocation3 + $0x38] sm:$0xff] %vm2618, %v5641
        %5734 = vst.msk [vmem:[#allocation3 + $0x48] sm:$0xff] %vm2618, %v5643
        %5735 = vst.msk [vmem:[#allocation3 + $0x58] sm:$0xff] %vm2618, %v5645
        %5736 = vst.msk [vmem:[#allocation3 + $0x68] sm:$0xff] %vm2618, %v5647
        %5737 = vst.msk [vmem:[#allocation3 + $0x78] sm:$0xff] %vm2618, %v5649
        %5738 = vst.msk [vmem:[#allocation3 + $0x88] sm:$0xff] %vm2618, %v5651
        %5739 = vst.msk [vmem:[#allocation3 + $0x98] sm:$0xff] %vm2618, %v5653
        %5740 = vst.msk [vmem:[#allocation3 + $0xa8] sm:$0xff] %vm2618, %v5655
        %5741 = vst.msk [vmem:[#allocation3 + $0xb8] sm:$0xff] %vm2618, %v5657
        %5742 = vst.msk [vmem:[#allocation3 + $0xc8] sm:$0xff] %vm2618, %v5659
        %5743 = vst.msk [vmem:[#allocation3 + $0xd8] sm:$0xff] %vm2618, %v5661
        %5744 = vst.msk [vmem:[#allocation3 + $0xe8] sm:$0xff] %vm2618, %v5663
        %5745 = vst.msk [vmem:[#allocation3 + $0xf8] sm:$0xff] %vm2618, %v5665
        %5746 = vst.msk [vmem:[#allocation3 + $0x108] sm:$0xff] %vm2618, %v5667
        %5747 = vst.msk [vmem:[#allocation3 + $0x118] sm:$0xff] %vm2618, %v5669
        %5748 = vst.msk [vmem:[#allocation3 + $0x128] sm:$0xff] %vm2618, %v5671
        %5749 = vst.msk [vmem:[#allocation3 + $0x138] sm:$0xff] %vm2618, %v5673
        %5750 = vst.msk [vmem:[#allocation3 + $0x148] sm:$0xff] %vm2618, %v5675
        %5751 = vst.msk [vmem:[#allocation3 + $0x158] sm:$0xff] %vm2618, %v5677
        %5752 = vst.msk [vmem:[#allocation3 + $0x168] sm:$0xff] %vm2618, %v5679
        %5753 = vst.msk [vmem:[#allocation3 + $0x178] sm:$0xff] %vm2618, %v5681
        %5754 = vst.msk [vmem:[#allocation3 + $0x188] sm:$0xff] %vm2618, %v5683
        %5755 = vst.msk [vmem:[#allocation3 + $0x198] sm:$0xff] %vm2618, %v5685
        %5756 = vst.msk [vmem:[#allocation3 + $0x1a8] sm:$0xff] %vm2618, %v5687
        %5757 = vst.msk [vmem:[#allocation3 + $0x1b8] sm:$0xff] %vm2618, %v5689
        %5758 = vst.msk [vmem:[#allocation3 + $0x1c8] sm:$0xff] %vm2618, %v5691
        %5759 = vst.msk [vmem:[#allocation3 + $0x1d8] sm:$0xff] %vm2618, %v5693
        %5760 = vst.msk [vmem:[#allocation3 + $0x1e8] sm:$0xff] %vm2618, %v5695
        %5761 = vst.msk [vmem:[#allocation3 + $0x1f8] sm:$0xff] %vm2618, %v5697
        %v5762 = vld [vmem:[%s445 + $0x1] sm:$0xff]
        %v5763 = vld [vmem:[%s445 + $0x9] sm:$0xff]
        %v5764 = vld [vmem:[%s445 + $0x19] sm:$0xff]
        %v5765 = vld [vmem:[%s445 + $0x21] sm:$0xff]
        %v5766 = vld [vmem:[%s445 + $0x31] sm:$0xff]
        %v5767 = vld [vmem:[%s445 + $0x39] sm:$0xff]
        %v5768 = vld [vmem:[%s445 + $0x49] sm:$0xff]
        %v5769 = vld [vmem:[%s445 + $0x51] sm:$0xff]
        %v5770 = vld [vmem:[%s445 + $0x61] sm:$0xff]
        %v5771 = vld [vmem:[%s445 + $0x69] sm:$0xff]
        %v5772 = vld [vmem:[%s445 + $0x79] sm:$0xff]
        %v5773 = vld [vmem:[%s445 + $0x81] sm:$0xff]
        %v5774 = vld [vmem:[%s445 + $0x91] sm:$0xff]
        %v5775 = vld [vmem:[%s445 + $0x99] sm:$0xff]
        %v5776 = vld [vmem:[%s445 + $0xa9] sm:$0xff]
        %v5777 = vld [vmem:[%s445 + $0xb1] sm:$0xff]
        %v5778 = vld [vmem:[%s445 + $0xc1] sm:$0xff]
        %v5779 = vld [vmem:[%s445 + $0xc9] sm:$0xff]
        %v5780 = vld [vmem:[%s445 + $0xd9] sm:$0xff]
        %v5781 = vld [vmem:[%s445 + $0xe1] sm:$0xff]
        %v5782 = vld [vmem:[%s445 + $0xf1] sm:$0xff]
        %v5783 = vld [vmem:[%s445 + $0xf9] sm:$0xff]
        %v5784 = vld [vmem:[%s445 + $0x109] sm:$0xff]
        %v5785 = vld [vmem:[%s445 + $0x111] sm:$0xff]
        %v5786 = vld [vmem:[%s445 + $0x121] sm:$0xff]
        %v5787 = vld [vmem:[%s445 + $0x129] sm:$0xff]
        %v5788 = vld [vmem:[%s445 + $0x139] sm:$0xff]
        %v5789 = vld [vmem:[%s445 + $0x141] sm:$0xff]
        %v5790 = vld [vmem:[%s445 + $0x151] sm:$0xff]
        %v5791 = vld [vmem:[%s445 + $0x159] sm:$0xff]
        %v5792 = vld [vmem:[%s445 + $0x169] sm:$0xff]
        %v5793 = vld [vmem:[%s445 + $0x171] sm:$0xff]
        %5794 = vst.msk [vmem:[#allocation3 + $0x8] sm:$0xff] %vm4926, %v5762
        %5795 = vst.msk [vmem:[#allocation3 + $0x18] sm:$0xff] %vm4926, %v5763
        %5796 = vst.msk [vmem:[#allocation3 + $0x28] sm:$0xff] %vm4926, %v5764
        %5797 = vst.msk [vmem:[#allocation3 + $0x38] sm:$0xff] %vm4926, %v5765
        %5798 = vst.msk [vmem:[#allocation3 + $0x48] sm:$0xff] %vm4926, %v5766
        %5799 = vst.msk [vmem:[#allocation3 + $0x58] sm:$0xff] %vm4926, %v5767
        %5800 = vst.msk [vmem:[#allocation3 + $0x68] sm:$0xff] %vm4926, %v5768
        %5801 = vst.msk [vmem:[#allocation3 + $0x78] sm:$0xff] %vm4926, %v5769
        %5802 = vst.msk [vmem:[#allocation3 + $0x88] sm:$0xff] %vm4926, %v5770
        %5803 = vst.msk [vmem:[#allocation3 + $0x98] sm:$0xff] %vm4926, %v5771
        %5804 = vst.msk [vmem:[#allocation3 + $0xa8] sm:$0xff] %vm4926, %v5772
        %5805 = vst.msk [vmem:[#allocation3 + $0xb8] sm:$0xff] %vm4926, %v5773
        %5806 = vst.msk [vmem:[#allocation3 + $0xc8] sm:$0xff] %vm4926, %v5774
        %5807 = vst.msk [vmem:[#allocation3 + $0xd8] sm:$0xff] %vm4926, %v5775
        %5808 = vst.msk [vmem:[#allocation3 + $0xe8] sm:$0xff] %vm4926, %v5776
        %5809 = vst.msk [vmem:[#allocation3 + $0xf8] sm:$0xff] %vm4926, %v5777
        %5810 = vst.msk [vmem:[#allocation3 + $0x108] sm:$0xff] %vm4926, %v5778
        %5811 = vst.msk [vmem:[#allocation3 + $0x118] sm:$0xff] %vm4926, %v5779
        %5812 = vst.msk [vmem:[#allocation3 + $0x128] sm:$0xff] %vm4926, %v5780
        %5813 = vst.msk [vmem:[#allocation3 + $0x138] sm:$0xff] %vm4926, %v5781
        %5814 = vst.msk [vmem:[#allocation3 + $0x148] sm:$0xff] %vm4926, %v5782
        %5815 = vst.msk [vmem:[#allocation3 + $0x158] sm:$0xff] %vm4926, %v5783
        %5816 = vst.msk [vmem:[#allocation3 + $0x168] sm:$0xff] %vm4926, %v5784
        %5817 = vst.msk [vmem:[#allocation3 + $0x178] sm:$0xff] %vm4926, %v5785
        %5818 = vst.msk [vmem:[#allocation3 + $0x188] sm:$0xff] %vm4926, %v5786
        %5819 = vst.msk [vmem:[#allocation3 + $0x198] sm:$0xff] %vm4926, %v5787
        %5820 = vst.msk [vmem:[#allocation3 + $0x1a8] sm:$0xff] %vm4926, %v5788
        %5821 = vst.msk [vmem:[#allocation3 + $0x1b8] sm:$0xff] %vm4926, %v5789
        %5822 = vst.msk [vmem:[#allocation3 + $0x1c8] sm:$0xff] %vm4926, %v5790
        %5823 = vst.msk [vmem:[#allocation3 + $0x1d8] sm:$0xff] %vm4926, %v5791
        %5824 = vst.msk [vmem:[#allocation3 + $0x1e8] sm:$0xff] %vm4926, %v5792
        %5825 = vst.msk [vmem:[#allocation3 + $0x1f8] sm:$0xff] %vm4926, %v5793
        %v5826 = vld [vmem:[%s445 + $0x2] sm:$0xff]
        %v5827 = vld [vmem:[%s445 + $0xa] sm:$0xff]
        %v5828 = vld [vmem:[%s445 + $0x1a] sm:$0xff]
        %v5829 = vld [vmem:[%s445 + $0x22] sm:$0xff]
        %v5830 = vld [vmem:[%s445 + $0x32] sm:$0xff]
        %v5831 = vld [vmem:[%s445 + $0x3a] sm:$0xff]
        %v5832 = vld [vmem:[%s445 + $0x4a] sm:$0xff]
        %v5833 = vld [vmem:[%s445 + $0x52] sm:$0xff]
        %v5834 = vld [vmem:[%s445 + $0x62] sm:$0xff]
        %v5835 = vld [vmem:[%s445 + $0x6a] sm:$0xff]
        %v5836 = vld [vmem:[%s445 + $0x7a] sm:$0xff]
        %v5837 = vld [vmem:[%s445 + $0x82] sm:$0xff]
        %v5838 = vld [vmem:[%s445 + $0x92] sm:$0xff]
        %v5839 = vld [vmem:[%s445 + $0x9a] sm:$0xff]
        %v5840 = vld [vmem:[%s445 + $0xaa] sm:$0xff]
        %v5841 = vld [vmem:[%s445 + $0xb2] sm:$0xff]
        %v5842 = vld [vmem:[%s445 + $0xc2] sm:$0xff]
        %v5843 = vld [vmem:[%s445 + $0xca] sm:$0xff]
        %v5844 = vld [vmem:[%s445 + $0xda] sm:$0xff]
        %v5845 = vld [vmem:[%s445 + $0xe2] sm:$0xff]
        %v5846 = vld [vmem:[%s445 + $0xf2] sm:$0xff]
        %v5847 = vld [vmem:[%s445 + $0xfa] sm:$0xff]
        %v5848 = vld [vmem:[%s445 + $0x10a] sm:$0xff]
        %v5849 = vld [vmem:[%s445 + $0x112] sm:$0xff]
        %v5850 = vld [vmem:[%s445 + $0x122] sm:$0xff]
        %v5851 = vld [vmem:[%s445 + $0x12a] sm:$0xff]
        %v5852 = vld [vmem:[%s445 + $0x13a] sm:$0xff]
        %v5853 = vld [vmem:[%s445 + $0x142] sm:$0xff]
        %v5854 = vld [vmem:[%s445 + $0x152] sm:$0xff]
        %v5855 = vld [vmem:[%s445 + $0x15a] sm:$0xff]
        %v5856 = vld [vmem:[%s445 + $0x16a] sm:$0xff]
        %v5857 = vld [vmem:[%s445 + $0x172] sm:$0xff]
        %5890 = vrot.lane.b32.xlu0 %v5826, 8
        %v5891 = vpop.permute.xlu0 %5890
        %5892 = vrot.lane.b32.xlu0 %v5827, 8
        %v5893 = vpop.permute.xlu0 %5892
        %5894 = vrot.lane.b32.xlu0 %v5828, 8
        %v5895 = vpop.permute.xlu0 %5894
        %5896 = vrot.lane.b32.xlu0 %v5829, 8
        %v5897 = vpop.permute.xlu0 %5896
        %5898 = vrot.lane.b32.xlu0 %v5830, 8
        %v5899 = vpop.permute.xlu0 %5898
        %5900 = vrot.lane.b32.xlu0 %v5831, 8
        %v5901 = vpop.permute.xlu0 %5900
        %5902 = vrot.lane.b32.xlu0 %v5832, 8
        %v5903 = vpop.permute.xlu0 %5902
        %5904 = vrot.lane.b32.xlu0 %v5833, 8
        %v5905 = vpop.permute.xlu0 %5904
        %5906 = vrot.lane.b32.xlu0 %v5834, 8
        %v5907 = vpop.permute.xlu0 %5906
        %5908 = vrot.lane.b32.xlu0 %v5835, 8
        %v5909 = vpop.permute.xlu0 %5908
        %5910 = vrot.lane.b32.xlu0 %v5836, 8
        %v5911 = vpop.permute.xlu0 %5910
        %5912 = vrot.lane.b32.xlu0 %v5837, 8
        %v5913 = vpop.permute.xlu0 %5912
        %5914 = vrot.lane.b32.xlu0 %v5838, 8
        %v5915 = vpop.permute.xlu0 %5914
        %5916 = vrot.lane.b32.xlu0 %v5839, 8
        %v5917 = vpop.permute.xlu0 %5916
        %5918 = vrot.lane.b32.xlu0 %v5840, 8
        %v5919 = vpop.permute.xlu0 %5918
        %5920 = vrot.lane.b32.xlu0 %v5841, 8
        %v5921 = vpop.permute.xlu0 %5920
        %5922 = vrot.lane.b32.xlu0 %v5842, 8
        %v5923 = vpop.permute.xlu0 %5922
        %5924 = vrot.lane.b32.xlu0 %v5843, 8
        %v5925 = vpop.permute.xlu0 %5924
        %5926 = vrot.lane.b32.xlu0 %v5844, 8
        %v5927 = vpop.permute.xlu0 %5926
        %5928 = vrot.lane.b32.xlu0 %v5845, 8
        %v5929 = vpop.permute.xlu0 %5928
        %5930 = vrot.lane.b32.xlu0 %v5846, 8
        %v5931 = vpop.permute.xlu0 %5930
        %5932 = vrot.lane.b32.xlu0 %v5847, 8
        %v5933 = vpop.permute.xlu0 %5932
        %5934 = vrot.lane.b32.xlu0 %v5848, 8
        %v5935 = vpop.permute.xlu0 %5934
        %5936 = vrot.lane.b32.xlu0 %v5849, 8
        %v5937 = vpop.permute.xlu0 %5936
        %5938 = vrot.lane.b32.xlu0 %v5850, 8
        %v5939 = vpop.permute.xlu0 %5938
        %5940 = vrot.lane.b32.xlu0 %v5851, 8
        %v5941 = vpop.permute.xlu0 %5940
        %5942 = vrot.lane.b32.xlu0 %v5852, 8
        %v5943 = vpop.permute.xlu0 %5942
        %5944 = vrot.lane.b32.xlu0 %v5853, 8
        %v5945 = vpop.permute.xlu0 %5944
        %5946 = vrot.lane.b32.xlu0 %v5854, 8
        %v5947 = vpop.permute.xlu0 %5946
        %5948 = vrot.lane.b32.xlu0 %v5855, 8
        %v5949 = vpop.permute.xlu0 %5948
        %5950 = vrot.lane.b32.xlu0 %v5856, 8
        %v5951 = vpop.permute.xlu0 %5950
        %5952 = vrot.lane.b32.xlu0 %v5857, 8
        %v5953 = vpop.permute.xlu0 %5952
        %vm5986 = vcmask 228512
        %5987 = vst.msk [vmem:[#allocation3 + $0x8] sm:$0xff] %vm5986, %v5891
        %5988 = vst.msk [vmem:[#allocation3 + $0x18] sm:$0xff] %vm5986, %v5893
        %5989 = vst.msk [vmem:[#allocation3 + $0x28] sm:$0xff] %vm5986, %v5895
        %5990 = vst.msk [vmem:[#allocation3 + $0x38] sm:$0xff] %vm5986, %v5897
        %5991 = vst.msk [vmem:[#allocation3 + $0x48] sm:$0xff] %vm5986, %v5899
        %5992 = vst.msk [vmem:[#allocation3 + $0x58] sm:$0xff] %vm5986, %v5901
        %5993 = vst.msk [vmem:[#allocation3 + $0x68] sm:$0xff] %vm5986, %v5903
        %5994 = vst.msk [vmem:[#allocation3 + $0x78] sm:$0xff] %vm5986, %v5905
        %5995 = vst.msk [vmem:[#allocation3 + $0x88] sm:$0xff] %vm5986, %v5907
        %5996 = vst.msk [vmem:[#allocation3 + $0x98] sm:$0xff] %vm5986, %v5909
        %5997 = vst.msk [vmem:[#allocation3 + $0xa8] sm:$0xff] %vm5986, %v5911
        %5998 = vst.msk [vmem:[#allocation3 + $0xb8] sm:$0xff] %vm5986, %v5913
        %5999 = vst.msk [vmem:[#allocation3 + $0xc8] sm:$0xff] %vm5986, %v5915
        %6000 = vst.msk [vmem:[#allocation3 + $0xd8] sm:$0xff] %vm5986, %v5917
        %6001 = vst.msk [vmem:[#allocation3 + $0xe8] sm:$0xff] %vm5986, %v5919
        %6002 = vst.msk [vmem:[#allocation3 + $0xf8] sm:$0xff] %vm5986, %v5921
        %6003 = vst.msk [vmem:[#allocation3 + $0x108] sm:$0xff] %vm5986, %v5923
        %6004 = vst.msk [vmem:[#allocation3 + $0x118] sm:$0xff] %vm5986, %v5925
        %6005 = vst.msk [vmem:[#allocation3 + $0x128] sm:$0xff] %vm5986, %v5927
        %6006 = vst.msk [vmem:[#allocation3 + $0x138] sm:$0xff] %vm5986, %v5929
        %6007 = vst.msk [vmem:[#allocation3 + $0x148] sm:$0xff] %vm5986, %v5931
        %6008 = vst.msk [vmem:[#allocation3 + $0x158] sm:$0xff] %vm5986, %v5933
        %6009 = vst.msk [vmem:[#allocation3 + $0x168] sm:$0xff] %vm5986, %v5935
        %6010 = vst.msk [vmem:[#allocation3 + $0x178] sm:$0xff] %vm5986, %v5937
        %6011 = vst.msk [vmem:[#allocation3 + $0x188] sm:$0xff] %vm5986, %v5939
        %6012 = vst.msk [vmem:[#allocation3 + $0x198] sm:$0xff] %vm5986, %v5941
        %6013 = vst.msk [vmem:[#allocation3 + $0x1a8] sm:$0xff] %vm5986, %v5943
        %6014 = vst.msk [vmem:[#allocation3 + $0x1b8] sm:$0xff] %vm5986, %v5945
        %6015 = vst.msk [vmem:[#allocation3 + $0x1c8] sm:$0xff] %vm5986, %v5947
        %6016 = vst.msk [vmem:[#allocation3 + $0x1d8] sm:$0xff] %vm5986, %v5949
        %6017 = vst.msk [vmem:[#allocation3 + $0x1e8] sm:$0xff] %vm5986, %v5951
        %6018 = vst.msk [vmem:[#allocation3 + $0x1f8] sm:$0xff] %vm5986, %v5953
        %v6019 = vld [vmem:[%s1508] sm:$0xff]
        %v6020 = vld [vmem:[%s1508 + $0x8] sm:$0xff]
        %v6021 = vld [vmem:[%s1508 + $0x18] sm:$0xff]
        %v6022 = vld [vmem:[%s1508 + $0x20] sm:$0xff]
        %v6023 = vld [vmem:[%s1508 + $0x30] sm:$0xff]
        %v6024 = vld [vmem:[%s1508 + $0x38] sm:$0xff]
        %v6025 = vld [vmem:[%s1508 + $0x48] sm:$0xff]
        %v6026 = vld [vmem:[%s1508 + $0x50] sm:$0xff]
        %v6027 = vld [vmem:[%s1508 + $0x60] sm:$0xff]
        %v6028 = vld [vmem:[%s1508 + $0x68] sm:$0xff]
        %v6029 = vld [vmem:[%s1508 + $0x78] sm:$0xff]
        %v6030 = vld [vmem:[%s1508 + $0x80] sm:$0xff]
        %v6031 = vld [vmem:[%s1508 + $0x90] sm:$0xff]
        %v6032 = vld [vmem:[%s1508 + $0x98] sm:$0xff]
        %v6033 = vld [vmem:[%s1508 + $0xa8] sm:$0xff]
        %v6034 = vld [vmem:[%s1508 + $0xb0] sm:$0xff]
        %v6035 = vld [vmem:[%s1508 + $0xc0] sm:$0xff]
        %v6036 = vld [vmem:[%s1508 + $0xc8] sm:$0xff]
        %v6037 = vld [vmem:[%s1508 + $0xd8] sm:$0xff]
        %v6038 = vld [vmem:[%s1508 + $0xe0] sm:$0xff]
        %v6039 = vld [vmem:[%s1508 + $0xf0] sm:$0xff]
        %v6040 = vld [vmem:[%s1508 + $0xf8] sm:$0xff]
        %v6041 = vld [vmem:[%s1508 + $0x108] sm:$0xff]
        %v6042 = vld [vmem:[%s1508 + $0x110] sm:$0xff]
        %v6043 = vld [vmem:[%s1508 + $0x120] sm:$0xff]
        %v6044 = vld [vmem:[%s1508 + $0x128] sm:$0xff]
        %v6045 = vld [vmem:[%s1508 + $0x138] sm:$0xff]
        %v6046 = vld [vmem:[%s1508 + $0x140] sm:$0xff]
        %v6047 = vld [vmem:[%s1508 + $0x150] sm:$0xff]
        %v6048 = vld [vmem:[%s1508 + $0x158] sm:$0xff]
        %v6049 = vld [vmem:[%s1508 + $0x168] sm:$0xff]
        %v6050 = vld [vmem:[%s1508 + $0x170] sm:$0xff]
        %6083 = vrot.lane.b32.xlu0 %v6019, 16
        %v6084 = vpop.permute.xlu0 %6083
        %6085 = vrot.lane.b32.xlu0 %v6020, 16
        %v6086 = vpop.permute.xlu0 %6085
        %6087 = vrot.lane.b32.xlu0 %v6021, 16
        %v6088 = vpop.permute.xlu0 %6087
        %6089 = vrot.lane.b32.xlu0 %v6022, 16
        %v6090 = vpop.permute.xlu0 %6089
        %6091 = vrot.lane.b32.xlu0 %v6023, 16
        %v6092 = vpop.permute.xlu0 %6091
        %6093 = vrot.lane.b32.xlu0 %v6024, 16
        %v6094 = vpop.permute.xlu0 %6093
        %6095 = vrot.lane.b32.xlu0 %v6025, 16
        %v6096 = vpop.permute.xlu0 %6095
        %6097 = vrot.lane.b32.xlu0 %v6026, 16
        %v6098 = vpop.permute.xlu0 %6097
        %6099 = vrot.lane.b32.xlu0 %v6027, 16
        %v6100 = vpop.permute.xlu0 %6099
        %6101 = vrot.lane.b32.xlu0 %v6028, 16
        %v6102 = vpop.permute.xlu0 %6101
        %6103 = vrot.lane.b32.xlu0 %v6029, 16
        %v6104 = vpop.permute.xlu0 %6103
        %6105 = vrot.lane.b32.xlu0 %v6030, 16
        %v6106 = vpop.permute.xlu0 %6105
        %6107 = vrot.lane.b32.xlu0 %v6031, 16
        %v6108 = vpop.permute.xlu0 %6107
        %6109 = vrot.lane.b32.xlu0 %v6032, 16
        %v6110 = vpop.permute.xlu0 %6109
        %6111 = vrot.lane.b32.xlu0 %v6033, 16
        %v6112 = vpop.permute.xlu0 %6111
        %6113 = vrot.lane.b32.xlu0 %v6034, 16
        %v6114 = vpop.permute.xlu0 %6113
        %6115 = vrot.lane.b32.xlu0 %v6035, 16
        %v6116 = vpop.permute.xlu0 %6115
        %6117 = vrot.lane.b32.xlu0 %v6036, 16
        %v6118 = vpop.permute.xlu0 %6117
        %6119 = vrot.lane.b32.xlu0 %v6037, 16
        %v6120 = vpop.permute.xlu0 %6119
        %6121 = vrot.lane.b32.xlu0 %v6038, 16
        %v6122 = vpop.permute.xlu0 %6121
        %6123 = vrot.lane.b32.xlu0 %v6039, 16
        %v6124 = vpop.permute.xlu0 %6123
        %6125 = vrot.lane.b32.xlu0 %v6040, 16
        %v6126 = vpop.permute.xlu0 %6125
        %6127 = vrot.lane.b32.xlu0 %v6041, 16
        %v6128 = vpop.permute.xlu0 %6127
        %6129 = vrot.lane.b32.xlu0 %v6042, 16
        %v6130 = vpop.permute.xlu0 %6129
        %6131 = vrot.lane.b32.xlu0 %v6043, 16
        %v6132 = vpop.permute.xlu0 %6131
        %6133 = vrot.lane.b32.xlu0 %v6044, 16
        %v6134 = vpop.permute.xlu0 %6133
        %6135 = vrot.lane.b32.xlu0 %v6045, 16
        %v6136 = vpop.permute.xlu0 %6135
        %6137 = vrot.lane.b32.xlu0 %v6046, 16
        %v6138 = vpop.permute.xlu0 %6137
        %6139 = vrot.lane.b32.xlu0 %v6047, 16
        %v6140 = vpop.permute.xlu0 %6139
        %6141 = vrot.lane.b32.xlu0 %v6048, 16
        %v6142 = vpop.permute.xlu0 %6141
        %6143 = vrot.lane.b32.xlu0 %v6049, 16
        %v6144 = vpop.permute.xlu0 %6143
        %6145 = vrot.lane.b32.xlu0 %v6050, 16
        %v6146 = vpop.permute.xlu0 %6145
        %vm6179 = vcmask 294112
        %6180 = vst.msk [vmem:[#allocation3 + $0x8] sm:$0xff] %vm6179, %v6084
        %6181 = vst.msk [vmem:[#allocation3 + $0x18] sm:$0xff] %vm6179, %v6086
        %6182 = vst.msk [vmem:[#allocation3 + $0x28] sm:$0xff] %vm6179, %v6088
        %6183 = vst.msk [vmem:[#allocation3 + $0x38] sm:$0xff] %vm6179, %v6090
        %6184 = vst.msk [vmem:[#allocation3 + $0x48] sm:$0xff] %vm6179, %v6092
        %6185 = vst.msk [vmem:[#allocation3 + $0x58] sm:$0xff] %vm6179, %v6094
        %6186 = vst.msk [vmem:[#allocation3 + $0x68] sm:$0xff] %vm6179, %v6096
        %6187 = vst.msk [vmem:[#allocation3 + $0x78] sm:$0xff] %vm6179, %v6098
        %6188 = vst.msk [vmem:[#allocation3 + $0x88] sm:$0xff] %vm6179, %v6100
        %6189 = vst.msk [vmem:[#allocation3 + $0x98] sm:$0xff] %vm6179, %v6102
        %6190 = vst.msk [vmem:[#allocation3 + $0xa8] sm:$0xff] %vm6179, %v6104
        %6191 = vst.msk [vmem:[#allocation3 + $0xb8] sm:$0xff] %vm6179, %v6106
        %6192 = vst.msk [vmem:[#allocation3 + $0xc8] sm:$0xff] %vm6179, %v6108
        %6193 = vst.msk [vmem:[#allocation3 + $0xd8] sm:$0xff] %vm6179, %v6110
        %6194 = vst.msk [vmem:[#allocation3 + $0xe8] sm:$0xff] %vm6179, %v6112
        %6195 = vst.msk [vmem:[#allocation3 + $0xf8] sm:$0xff] %vm6179, %v6114
        %6196 = vst.msk [vmem:[#allocation3 + $0x108] sm:$0xff] %vm6179, %v6116
        %6197 = vst.msk [vmem:[#allocation3 + $0x118] sm:$0xff] %vm6179, %v6118
        %6198 = vst.msk [vmem:[#allocation3 + $0x128] sm:$0xff] %vm6179, %v6120
        %6199 = vst.msk [vmem:[#allocation3 + $0x138] sm:$0xff] %vm6179, %v6122
        %6200 = vst.msk [vmem:[#allocation3 + $0x148] sm:$0xff] %vm6179, %v6124
        %6201 = vst.msk [vmem:[#allocation3 + $0x158] sm:$0xff] %vm6179, %v6126
        %6202 = vst.msk [vmem:[#allocation3 + $0x168] sm:$0xff] %vm6179, %v6128
        %6203 = vst.msk [vmem:[#allocation3 + $0x178] sm:$0xff] %vm6179, %v6130
        %6204 = vst.msk [vmem:[#allocation3 + $0x188] sm:$0xff] %vm6179, %v6132
        %6205 = vst.msk [vmem:[#allocation3 + $0x198] sm:$0xff] %vm6179, %v6134
        %6206 = vst.msk [vmem:[#allocation3 + $0x1a8] sm:$0xff] %vm6179, %v6136
        %6207 = vst.msk [vmem:[#allocation3 + $0x1b8] sm:$0xff] %vm6179, %v6138
        %6208 = vst.msk [vmem:[#allocation3 + $0x1c8] sm:$0xff] %vm6179, %v6140
        %6209 = vst.msk [vmem:[#allocation3 + $0x1d8] sm:$0xff] %vm6179, %v6142
        %6210 = vst.msk [vmem:[#allocation3 + $0x1e8] sm:$0xff] %vm6179, %v6144
        %6211 = vst.msk [vmem:[#allocation3 + $0x1f8] sm:$0xff] %vm6179, %v6146
        %v6212 = vld [vmem:[%s1508 + $0x1] sm:$0xff]
        %v6213 = vld [vmem:[%s1508 + $0x9] sm:$0xff]
        %v6214 = vld [vmem:[%s1508 + $0x19] sm:$0xff]
        %v6215 = vld [vmem:[%s1508 + $0x21] sm:$0xff]
        %v6216 = vld [vmem:[%s1508 + $0x31] sm:$0xff]
        %v6217 = vld [vmem:[%s1508 + $0x39] sm:$0xff]
        %v6218 = vld [vmem:[%s1508 + $0x49] sm:$0xff]
        %v6219 = vld [vmem:[%s1508 + $0x51] sm:$0xff]
        %v6220 = vld [vmem:[%s1508 + $0x61] sm:$0xff]
        %v6221 = vld [vmem:[%s1508 + $0x69] sm:$0xff]
        %v6222 = vld [vmem:[%s1508 + $0x79] sm:$0xff]
        %v6223 = vld [vmem:[%s1508 + $0x81] sm:$0xff]
        %v6224 = vld [vmem:[%s1508 + $0x91] sm:$0xff]
        %v6225 = vld [vmem:[%s1508 + $0x99] sm:$0xff]
        %v6226 = vld [vmem:[%s1508 + $0xa9] sm:$0xff]
        %v6227 = vld [vmem:[%s1508 + $0xb1] sm:$0xff]
        %v6228 = vld [vmem:[%s1508 + $0xc1] sm:$0xff]
        %v6229 = vld [vmem:[%s1508 + $0xc9] sm:$0xff]
        %v6230 = vld [vmem:[%s1508 + $0xd9] sm:$0xff]
        %v6231 = vld [vmem:[%s1508 + $0xe1] sm:$0xff]
        %v6232 = vld [vmem:[%s1508 + $0xf1] sm:$0xff]
        %v6233 = vld [vmem:[%s1508 + $0xf9] sm:$0xff]
        %v6234 = vld [vmem:[%s1508 + $0x109] sm:$0xff]
        %v6235 = vld [vmem:[%s1508 + $0x111] sm:$0xff]
        %v6236 = vld [vmem:[%s1508 + $0x121] sm:$0xff]
        %v6237 = vld [vmem:[%s1508 + $0x129] sm:$0xff]
        %v6238 = vld [vmem:[%s1508 + $0x139] sm:$0xff]
        %v6239 = vld [vmem:[%s1508 + $0x141] sm:$0xff]
        %v6240 = vld [vmem:[%s1508 + $0x151] sm:$0xff]
        %v6241 = vld [vmem:[%s1508 + $0x159] sm:$0xff]
        %v6242 = vld [vmem:[%s1508 + $0x169] sm:$0xff]
        %v6243 = vld [vmem:[%s1508 + $0x171] sm:$0xff]
        %6276 = vrot.lane.b32.xlu0 %v6212, 24
        %v6277 = vpop.permute.xlu0 %6276
        %6278 = vrot.lane.b32.xlu0 %v6213, 24
        %v6279 = vpop.permute.xlu0 %6278
        %6280 = vrot.lane.b32.xlu0 %v6214, 24
        %v6281 = vpop.permute.xlu0 %6280
        %6282 = vrot.lane.b32.xlu0 %v6215, 24
        %v6283 = vpop.permute.xlu0 %6282
        %6284 = vrot.lane.b32.xlu0 %v6216, 24
        %v6285 = vpop.permute.xlu0 %6284
        %6286 = vrot.lane.b32.xlu0 %v6217, 24
        %v6287 = vpop.permute.xlu0 %6286
        %6288 = vrot.lane.b32.xlu0 %v6218, 24
        %v6289 = vpop.permute.xlu0 %6288
        %6290 = vrot.lane.b32.xlu0 %v6219, 24
        %v6291 = vpop.permute.xlu0 %6290
        %6292 = vrot.lane.b32.xlu0 %v6220, 24
        %v6293 = vpop.permute.xlu0 %6292
        %6294 = vrot.lane.b32.xlu0 %v6221, 24
        %v6295 = vpop.permute.xlu0 %6294
        %6296 = vrot.lane.b32.xlu0 %v6222, 24
        %v6297 = vpop.permute.xlu0 %6296
        %6298 = vrot.lane.b32.xlu0 %v6223, 24
        %v6299 = vpop.permute.xlu0 %6298
        %6300 = vrot.lane.b32.xlu0 %v6224, 24
        %v6301 = vpop.permute.xlu0 %6300
        %6302 = vrot.lane.b32.xlu0 %v6225, 24
        %v6303 = vpop.permute.xlu0 %6302
        %6304 = vrot.lane.b32.xlu0 %v6226, 24
        %v6305 = vpop.permute.xlu0 %6304
        %6306 = vrot.lane.b32.xlu0 %v6227, 24
        %v6307 = vpop.permute.xlu0 %6306
        %6308 = vrot.lane.b32.xlu0 %v6228, 24
        %v6309 = vpop.permute.xlu0 %6308
        %6310 = vrot.lane.b32.xlu0 %v6229, 24
        %v6311 = vpop.permute.xlu0 %6310
        %6312 = vrot.lane.b32.xlu0 %v6230, 24
        %v6313 = vpop.permute.xlu0 %6312
        %6314 = vrot.lane.b32.xlu0 %v6231, 24
        %v6315 = vpop.permute.xlu0 %6314
        %6316 = vrot.lane.b32.xlu0 %v6232, 24
        %v6317 = vpop.permute.xlu0 %6316
        %6318 = vrot.lane.b32.xlu0 %v6233, 24
        %v6319 = vpop.permute.xlu0 %6318
        %6320 = vrot.lane.b32.xlu0 %v6234, 24
        %v6321 = vpop.permute.xlu0 %6320
        %6322 = vrot.lane.b32.xlu0 %v6235, 24
        %v6323 = vpop.permute.xlu0 %6322
        %6324 = vrot.lane.b32.xlu0 %v6236, 24
        %v6325 = vpop.permute.xlu0 %6324
        %6326 = vrot.lane.b32.xlu0 %v6237, 24
        %v6327 = vpop.permute.xlu0 %6326
        %6328 = vrot.lane.b32.xlu0 %v6238, 24
        %v6329 = vpop.permute.xlu0 %6328
        %6330 = vrot.lane.b32.xlu0 %v6239, 24
        %v6331 = vpop.permute.xlu0 %6330
        %6332 = vrot.lane.b32.xlu0 %v6240, 24
        %v6333 = vpop.permute.xlu0 %6332
        %6334 = vrot.lane.b32.xlu0 %v6241, 24
        %v6335 = vpop.permute.xlu0 %6334
        %6336 = vrot.lane.b32.xlu0 %v6242, 24
        %v6337 = vpop.permute.xlu0 %6336
        %6338 = vrot.lane.b32.xlu0 %v6243, 24
        %v6339 = vpop.permute.xlu0 %6338
        %6372 = vst.msk [vmem:[#allocation3 + $0x8] sm:$0xff] %vm2811, %v6277
        %6373 = vst.msk [vmem:[#allocation3 + $0x18] sm:$0xff] %vm2811, %v6279
        %6374 = vst.msk [vmem:[#allocation3 + $0x28] sm:$0xff] %vm2811, %v6281
        %6375 = vst.msk [vmem:[#allocation3 + $0x38] sm:$0xff] %vm2811, %v6283
        %6376 = vst.msk [vmem:[#allocation3 + $0x48] sm:$0xff] %vm2811, %v6285
        %6377 = vst.msk [vmem:[#allocation3 + $0x58] sm:$0xff] %vm2811, %v6287
        %6378 = vst.msk [vmem:[#allocation3 + $0x68] sm:$0xff] %vm2811, %v6289
        %6379 = vst.msk [vmem:[#allocation3 + $0x78] sm:$0xff] %vm2811, %v6291
        %6380 = vst.msk [vmem:[#allocation3 + $0x88] sm:$0xff] %vm2811, %v6293
        %6381 = vst.msk [vmem:[#allocation3 + $0x98] sm:$0xff] %vm2811, %v6295
        %6382 = vst.msk [vmem:[#allocation3 + $0xa8] sm:$0xff] %vm2811, %v6297
        %6383 = vst.msk [vmem:[#allocation3 + $0xb8] sm:$0xff] %vm2811, %v6299
        %6384 = vst.msk [vmem:[#allocation3 + $0xc8] sm:$0xff] %vm2811, %v6301
        %6385 = vst.msk [vmem:[#allocation3 + $0xd8] sm:$0xff] %vm2811, %v6303
        %6386 = vst.msk [vmem:[#allocation3 + $0xe8] sm:$0xff] %vm2811, %v6305
        %6387 = vst.msk [vmem:[#allocation3 + $0xf8] sm:$0xff] %vm2811, %v6307
        %6388 = vst.msk [vmem:[#allocation3 + $0x108] sm:$0xff] %vm2811, %v6309
        %6389 = vst.msk [vmem:[#allocation3 + $0x118] sm:$0xff] %vm2811, %v6311
        %6390 = vst.msk [vmem:[#allocation3 + $0x128] sm:$0xff] %vm2811, %v6313
        %6391 = vst.msk [vmem:[#allocation3 + $0x138] sm:$0xff] %vm2811, %v6315
        %6392 = vst.msk [vmem:[#allocation3 + $0x148] sm:$0xff] %vm2811, %v6317
        %6393 = vst.msk [vmem:[#allocation3 + $0x158] sm:$0xff] %vm2811, %v6319
        %6394 = vst.msk [vmem:[#allocation3 + $0x168] sm:$0xff] %vm2811, %v6321
        %6395 = vst.msk [vmem:[#allocation3 + $0x178] sm:$0xff] %vm2811, %v6323
        %6396 = vst.msk [vmem:[#allocation3 + $0x188] sm:$0xff] %vm2811, %v6325
        %6397 = vst.msk [vmem:[#allocation3 + $0x198] sm:$0xff] %vm2811, %v6327
        %6398 = vst.msk [vmem:[#allocation3 + $0x1a8] sm:$0xff] %vm2811, %v6329
        %6399 = vst.msk [vmem:[#allocation3 + $0x1b8] sm:$0xff] %vm2811, %v6331
        %6400 = vst.msk [vmem:[#allocation3 + $0x1c8] sm:$0xff] %vm2811, %v6333
        %6401 = vst.msk [vmem:[#allocation3 + $0x1d8] sm:$0xff] %vm2811, %v6335
        %6402 = vst.msk [vmem:[#allocation3 + $0x1e8] sm:$0xff] %vm2811, %v6337
        %6403 = vst.msk [vmem:[#allocation3 + $0x1f8] sm:$0xff] %vm2811, %v6339
        %v6404 = vld [vmem:[%s1508 + $0x2] sm:$0xff]
        %v6405 = vld [vmem:[%s1508 + $0xa] sm:$0xff]
        %v6406 = vld [vmem:[%s1508 + $0x1a] sm:$0xff]
        %v6407 = vld [vmem:[%s1508 + $0x22] sm:$0xff]
        %v6408 = vld [vmem:[%s1508 + $0x32] sm:$0xff]
        %v6409 = vld [vmem:[%s1508 + $0x3a] sm:$0xff]
        %v6410 = vld [vmem:[%s1508 + $0x4a] sm:$0xff]
        %v6411 = vld [vmem:[%s1508 + $0x52] sm:$0xff]
        %v6412 = vld [vmem:[%s1508 + $0x62] sm:$0xff]
        %v6413 = vld [vmem:[%s1508 + $0x6a] sm:$0xff]
        %v6414 = vld [vmem:[%s1508 + $0x7a] sm:$0xff]
        %v6415 = vld [vmem:[%s1508 + $0x82] sm:$0xff]
        %v6416 = vld [vmem:[%s1508 + $0x92] sm:$0xff]
        %v6417 = vld [vmem:[%s1508 + $0x9a] sm:$0xff]
        %v6418 = vld [vmem:[%s1508 + $0xaa] sm:$0xff]
        %v6419 = vld [vmem:[%s1508 + $0xb2] sm:$0xff]
        %v6420 = vld [vmem:[%s1508 + $0xc2] sm:$0xff]
        %v6421 = vld [vmem:[%s1508 + $0xca] sm:$0xff]
        %v6422 = vld [vmem:[%s1508 + $0xda] sm:$0xff]
        %v6423 = vld [vmem:[%s1508 + $0xe2] sm:$0xff]
        %v6424 = vld [vmem:[%s1508 + $0xf2] sm:$0xff]
        %v6425 = vld [vmem:[%s1508 + $0xfa] sm:$0xff]
        %v6426 = vld [vmem:[%s1508 + $0x10a] sm:$0xff]
        %v6427 = vld [vmem:[%s1508 + $0x112] sm:$0xff]
        %v6428 = vld [vmem:[%s1508 + $0x122] sm:$0xff]
        %v6429 = vld [vmem:[%s1508 + $0x12a] sm:$0xff]
        %v6430 = vld [vmem:[%s1508 + $0x13a] sm:$0xff]
        %v6431 = vld [vmem:[%s1508 + $0x142] sm:$0xff]
        %v6432 = vld [vmem:[%s1508 + $0x152] sm:$0xff]
        %v6433 = vld [vmem:[%s1508 + $0x15a] sm:$0xff]
        %v6434 = vld [vmem:[%s1508 + $0x16a] sm:$0xff]
        %v6435 = vld [vmem:[%s1508 + $0x172] sm:$0xff]
        %6468 = vrot.lane.b32.xlu0 %v6404, 32
        %v6469 = vpop.permute.xlu0 %6468
        %6470 = vrot.lane.b32.xlu0 %v6405, 32
        %v6471 = vpop.permute.xlu0 %6470
        %6472 = vrot.lane.b32.xlu0 %v6406, 32
        %v6473 = vpop.permute.xlu0 %6472
        %6474 = vrot.lane.b32.xlu0 %v6407, 32
        %v6475 = vpop.permute.xlu0 %6474
        %6476 = vrot.lane.b32.xlu0 %v6408, 32
        %v6477 = vpop.permute.xlu0 %6476
        %6478 = vrot.lane.b32.xlu0 %v6409, 32
        %v6479 = vpop.permute.xlu0 %6478
        %6480 = vrot.lane.b32.xlu0 %v6410, 32
        %v6481 = vpop.permute.xlu0 %6480
        %6482 = vrot.lane.b32.xlu0 %v6411, 32
        %v6483 = vpop.permute.xlu0 %6482
        %6484 = vrot.lane.b32.xlu0 %v6412, 32
        %v6485 = vpop.permute.xlu0 %6484
        %6486 = vrot.lane.b32.xlu0 %v6413, 32
        %v6487 = vpop.permute.xlu0 %6486
        %6488 = vrot.lane.b32.xlu0 %v6414, 32
        %v6489 = vpop.permute.xlu0 %6488
        %6490 = vrot.lane.b32.xlu0 %v6415, 32
        %v6491 = vpop.permute.xlu0 %6490
        %6492 = vrot.lane.b32.xlu0 %v6416, 32
        %v6493 = vpop.permute.xlu0 %6492
        %6494 = vrot.lane.b32.xlu0 %v6417, 32
        %v6495 = vpop.permute.xlu0 %6494
        %6496 = vrot.lane.b32.xlu0 %v6418, 32
        %v6497 = vpop.permute.xlu0 %6496
        %6498 = vrot.lane.b32.xlu0 %v6419, 32
        %v6499 = vpop.permute.xlu0 %6498
        %6500 = vrot.lane.b32.xlu0 %v6420, 32
        %v6501 = vpop.permute.xlu0 %6500
        %6502 = vrot.lane.b32.xlu0 %v6421, 32
        %v6503 = vpop.permute.xlu0 %6502
        %6504 = vrot.lane.b32.xlu0 %v6422, 32
        %v6505 = vpop.permute.xlu0 %6504
        %6506 = vrot.lane.b32.xlu0 %v6423, 32
        %v6507 = vpop.permute.xlu0 %6506
        %6508 = vrot.lane.b32.xlu0 %v6424, 32
        %v6509 = vpop.permute.xlu0 %6508
        %6510 = vrot.lane.b32.xlu0 %v6425, 32
        %v6511 = vpop.permute.xlu0 %6510
        %6512 = vrot.lane.b32.xlu0 %v6426, 32
        %v6513 = vpop.permute.xlu0 %6512
        %6514 = vrot.lane.b32.xlu0 %v6427, 32
        %v6515 = vpop.permute.xlu0 %6514
        %6516 = vrot.lane.b32.xlu0 %v6428, 32
        %v6517 = vpop.permute.xlu0 %6516
        %6518 = vrot.lane.b32.xlu0 %v6429, 32
        %v6519 = vpop.permute.xlu0 %6518
        %6520 = vrot.lane.b32.xlu0 %v6430, 32
        %v6521 = vpop.permute.xlu0 %6520
        %6522 = vrot.lane.b32.xlu0 %v6431, 32
        %v6523 = vpop.permute.xlu0 %6522
        %6524 = vrot.lane.b32.xlu0 %v6432, 32
        %v6525 = vpop.permute.xlu0 %6524
        %6526 = vrot.lane.b32.xlu0 %v6433, 32
        %v6527 = vpop.permute.xlu0 %6526
        %6528 = vrot.lane.b32.xlu0 %v6434, 32
        %v6529 = vpop.permute.xlu0 %6528
        %6530 = vrot.lane.b32.xlu0 %v6435, 32
        %v6531 = vpop.permute.xlu0 %6530
        %6564 = vst.msk [vmem:[#allocation3 + $0x8] sm:$0xff] %vm3004, %v6469
        %6565 = vst.msk [vmem:[#allocation3 + $0x18] sm:$0xff] %vm3004, %v6471
        %6566 = vst.msk [vmem:[#allocation3 + $0x28] sm:$0xff] %vm3004, %v6473
        %6567 = vst.msk [vmem:[#allocation3 + $0x38] sm:$0xff] %vm3004, %v6475
        %6568 = vst.msk [vmem:[#allocation3 + $0x48] sm:$0xff] %vm3004, %v6477
        %6569 = vst.msk [vmem:[#allocation3 + $0x58] sm:$0xff] %vm3004, %v6479
        %6570 = vst.msk [vmem:[#allocation3 + $0x68] sm:$0xff] %vm3004, %v6481
        %6571 = vst.msk [vmem:[#allocation3 + $0x78] sm:$0xff] %vm3004, %v6483
        %6572 = vst.msk [vmem:[#allocation3 + $0x88] sm:$0xff] %vm3004, %v6485
        %6573 = vst.msk [vmem:[#allocation3 + $0x98] sm:$0xff] %vm3004, %v6487
        %6574 = vst.msk [vmem:[#allocation3 + $0xa8] sm:$0xff] %vm3004, %v6489
        %6575 = vst.msk [vmem:[#allocation3 + $0xb8] sm:$0xff] %vm3004, %v6491
        %6576 = vst.msk [vmem:[#allocation3 + $0xc8] sm:$0xff] %vm3004, %v6493
        %6577 = vst.msk [vmem:[#allocation3 + $0xd8] sm:$0xff] %vm3004, %v6495
        %6578 = vst.msk [vmem:[#allocation3 + $0xe8] sm:$0xff] %vm3004, %v6497
        %6579 = vst.msk [vmem:[#allocation3 + $0xf8] sm:$0xff] %vm3004, %v6499
        %6580 = vst.msk [vmem:[#allocation3 + $0x108] sm:$0xff] %vm3004, %v6501
        %6581 = vst.msk [vmem:[#allocation3 + $0x118] sm:$0xff] %vm3004, %v6503
        %6582 = vst.msk [vmem:[#allocation3 + $0x128] sm:$0xff] %vm3004, %v6505
        %6583 = vst.msk [vmem:[#allocation3 + $0x138] sm:$0xff] %vm3004, %v6507
        %6584 = vst.msk [vmem:[#allocation3 + $0x148] sm:$0xff] %vm3004, %v6509
        %6585 = vst.msk [vmem:[#allocation3 + $0x158] sm:$0xff] %vm3004, %v6511
        %6586 = vst.msk [vmem:[#allocation3 + $0x168] sm:$0xff] %vm3004, %v6513
        %6587 = vst.msk [vmem:[#allocation3 + $0x178] sm:$0xff] %vm3004, %v6515
        %6588 = vst.msk [vmem:[#allocation3 + $0x188] sm:$0xff] %vm3004, %v6517
        %6589 = vst.msk [vmem:[#allocation3 + $0x198] sm:$0xff] %vm3004, %v6519
        %6590 = vst.msk [vmem:[#allocation3 + $0x1a8] sm:$0xff] %vm3004, %v6521
        %6591 = vst.msk [vmem:[#allocation3 + $0x1b8] sm:$0xff] %vm3004, %v6523
        %6592 = vst.msk [vmem:[#allocation3 + $0x1c8] sm:$0xff] %vm3004, %v6525
        %6593 = vst.msk [vmem:[#allocation3 + $0x1d8] sm:$0xff] %vm3004, %v6527
        %6594 = vst.msk [vmem:[#allocation3 + $0x1e8] sm:$0xff] %vm3004, %v6529
        %6595 = vst.msk [vmem:[#allocation3 + $0x1f8] sm:$0xff] %vm3004, %v6531
        %v6596 = vld [vmem:[#allocation3] sm:$0xff]
        %v6597 = vld [vmem:[#allocation3 + $0x8] sm:$0xff]
        %v6598 = vld [vmem:[#allocation3 + $0x10] sm:$0xff]
        %v6599 = vld [vmem:[#allocation3 + $0x18] sm:$0xff]
        %v6600 = vld [vmem:[#allocation3 + $0x20] sm:$0xff]
        %v6601 = vld [vmem:[#allocation3 + $0x28] sm:$0xff]
        %v6602 = vld [vmem:[#allocation3 + $0x30] sm:$0xff]
        %v6603 = vld [vmem:[#allocation3 + $0x38] sm:$0xff]
        %v6604 = vld [vmem:[#allocation3 + $0x40] sm:$0xff]
        %v6605 = vld [vmem:[#allocation3 + $0x48] sm:$0xff]
        %v6606 = vld [vmem:[#allocation3 + $0x50] sm:$0xff]
        %v6607 = vld [vmem:[#allocation3 + $0x58] sm:$0xff]
        %v6608 = vld [vmem:[#allocation3 + $0x60] sm:$0xff]
        %v6609 = vld [vmem:[#allocation3 + $0x68] sm:$0xff]
        %v6610 = vld [vmem:[#allocation3 + $0x70] sm:$0xff]
        %v6611 = vld [vmem:[#allocation3 + $0x78] sm:$0xff]
        %v6612 = vld [vmem:[#allocation3 + $0x80] sm:$0xff]
        %v6613 = vld [vmem:[#allocation3 + $0x88] sm:$0xff]
        %v6614 = vld [vmem:[#allocation3 + $0x90] sm:$0xff]
        %v6615 = vld [vmem:[#allocation3 + $0x98] sm:$0xff]
        %v6616 = vld [vmem:[#allocation3 + $0xa0] sm:$0xff]
        %v6617 = vld [vmem:[#allocation3 + $0xa8] sm:$0xff]
        %v6618 = vld [vmem:[#allocation3 + $0xb0] sm:$0xff]
        %v6619 = vld [vmem:[#allocation3 + $0xb8] sm:$0xff]
        %v6620 = vld [vmem:[#allocation3 + $0xc0] sm:$0xff]
        %v6621 = vld [vmem:[#allocation3 + $0xc8] sm:$0xff]
        %v6622 = vld [vmem:[#allocation3 + $0xd0] sm:$0xff]
        %v6623 = vld [vmem:[#allocation3 + $0xd8] sm:$0xff]
        %v6624 = vld [vmem:[#allocation3 + $0xe0] sm:$0xff]
        %v6625 = vld [vmem:[#allocation3 + $0xe8] sm:$0xff]
        %v6626 = vld [vmem:[#allocation3 + $0xf0] sm:$0xff]
        %v6627 = vld [vmem:[#allocation3 + $0xf8] sm:$0xff]
        %v6628 = vld [vmem:[#allocation3 + $0x100] sm:$0xff]
        %v6629 = vld [vmem:[#allocation3 + $0x108] sm:$0xff]
        %v6630 = vld [vmem:[#allocation3 + $0x110] sm:$0xff]
        %v6631 = vld [vmem:[#allocation3 + $0x118] sm:$0xff]
        %v6632 = vld [vmem:[#allocation3 + $0x120] sm:$0xff]
        %v6633 = vld [vmem:[#allocation3 + $0x128] sm:$0xff]
        %v6634 = vld [vmem:[#allocation3 + $0x130] sm:$0xff]
        %v6635 = vld [vmem:[#allocation3 + $0x138] sm:$0xff]
        %v6636 = vld [vmem:[#allocation3 + $0x140] sm:$0xff]
        %v6637 = vld [vmem:[#allocation3 + $0x148] sm:$0xff]
        %v6638 = vld [vmem:[#allocation3 + $0x150] sm:$0xff]
        %v6639 = vld [vmem:[#allocation3 + $0x158] sm:$0xff]
        %v6640 = vld [vmem:[#allocation3 + $0x160] sm:$0xff]
        %v6641 = vld [vmem:[#allocation3 + $0x168] sm:$0xff]
        %v6642 = vld [vmem:[#allocation3 + $0x170] sm:$0xff]
        %v6643 = vld [vmem:[#allocation3 + $0x178] sm:$0xff]
        %v6644 = vld [vmem:[#allocation3 + $0x180] sm:$0xff]
        %v6645 = vld [vmem:[#allocation3 + $0x188] sm:$0xff]
        %v6646 = vld [vmem:[#allocation3 + $0x190] sm:$0xff]
        %v6647 = vld [vmem:[#allocation3 + $0x198] sm:$0xff]
        %v6648 = vld [vmem:[#allocation3 + $0x1a0] sm:$0xff]
        %v6649 = vld [vmem:[#allocation3 + $0x1a8] sm:$0xff]
        %v6650 = vld [vmem:[#allocation3 + $0x1b0] sm:$0xff]
        %v6651 = vld [vmem:[#allocation3 + $0x1b8] sm:$0xff]
        %v6652 = vld [vmem:[#allocation3 + $0x1c0] sm:$0xff]
        %v6653 = vld [vmem:[#allocation3 + $0x1c8] sm:$0xff]
        %v6654 = vld [vmem:[#allocation3 + $0x1d0] sm:$0xff]
        %v6655 = vld [vmem:[#allocation3 + $0x1d8] sm:$0xff]
        %v6656 = vld [vmem:[#allocation3 + $0x1e0] sm:$0xff]
        %v6657 = vld [vmem:[#allocation3 + $0x1e8] sm:$0xff]
        %v6658 = vld [vmem:[#allocation3 + $0x1f0] sm:$0xff]
        %v6659 = vld [vmem:[#allocation3 + $0x1f8] sm:$0xff]
        %v6660 = vld [vmem:[%s3] sm:$0xff]
        %v6661 = vld [vmem:[%s3 + $0x8] sm:$0xff]
        %v6662 = vld [vmem:[%s3 + $0x10] sm:$0xff]
        %v6663 = vld [vmem:[%s3 + $0x18] sm:$0xff]
        %v6664 = vld [vmem:[%s3 + $0x20] sm:$0xff]
        %v6665 = vld [vmem:[%s3 + $0x28] sm:$0xff]
        %v6666 = vld [vmem:[%s3 + $0x30] sm:$0xff]
        %v6667 = vld [vmem:[%s3 + $0x38] sm:$0xff]
        %v6668 = vld [vmem:[%s3 + $0x40] sm:$0xff]
        %v6669 = vld [vmem:[%s3 + $0x48] sm:$0xff]
        %v6670 = vld [vmem:[%s3 + $0x50] sm:$0xff]
        %v6671 = vld [vmem:[%s3 + $0x58] sm:$0xff]
        %v6672 = vld [vmem:[%s3 + $0x60] sm:$0xff]
        %v6673 = vld [vmem:[%s3 + $0x68] sm:$0xff]
        %v6674 = vld [vmem:[%s3 + $0x70] sm:$0xff]
        %v6675 = vld [vmem:[%s3 + $0x78] sm:$0xff]
        %v6676 = vld [vmem:[%s3 + $0x80] sm:$0xff]
        %v6677 = vld [vmem:[%s3 + $0x88] sm:$0xff]
        %v6678 = vld [vmem:[%s3 + $0x90] sm:$0xff]
        %v6679 = vld [vmem:[%s3 + $0x98] sm:$0xff]
        %v6680 = vld [vmem:[%s3 + $0xa0] sm:$0xff]
        %v6681 = vld [vmem:[%s3 + $0xa8] sm:$0xff]
        %v6682 = vld [vmem:[%s3 + $0xb0] sm:$0xf]
        %v6683 = vld [vmem:[%s7] sm:$0x1]
        %v6685 = vlaneseq
        %v6686 = vshrl.u32 %v6685, 7
        %v6687 = vsub.s32 0, %v6686
        %v6688 = vrot.slane %v6683, %v6687
        %vm6690 = vcmask 424960
        %v6692 = vsel %vm6690, %v6597, 0
        %v6695 = vsel %vm6690, %v6599, 0
        %v6698 = vsel %vm6690, %v6601, 0
        %v6701 = vsel %vm6690, %v6603, 0
        %v6704 = vsel %vm6690, %v6605, 0
        %v6707 = vsel %vm6690, %v6607, 0
        %v6710 = vsel %vm6690, %v6609, 0
        %v6713 = vsel %vm6690, %v6611, 0
        %v6716 = vsel %vm6690, %v6613, 0
        %v6719 = vsel %vm6690, %v6615, 0
        %v6722 = vsel %vm6690, %v6617, 0
        %v6725 = vsel %vm6690, %v6619, 0
        %v6728 = vsel %vm6690, %v6621, 0
        %v6731 = vsel %vm6690, %v6623, 0
        %v6734 = vsel %vm6690, %v6625, 0
        %v6737 = vsel %vm6690, %v6627, 0
        %v6740 = vsel %vm6690, %v6629, 0
        %v6743 = vsel %vm6690, %v6631, 0
        %v6746 = vsel %vm6690, %v6633, 0
        %v6749 = vsel %vm6690, %v6635, 0
        %v6752 = vsel %vm6690, %v6637, 0
        %v6755 = vsel %vm6690, %v6639, 0
        %v6758 = vsel %vm6690, %v6641, 0
        %v6761 = vsel %vm6690, %v6643, 0
        %v6764 = vsel %vm6690, %v6645, 0
        %v6767 = vsel %vm6690, %v6647, 0
        %v6770 = vsel %vm6690, %v6649, 0
        %v6773 = vsel %vm6690, %v6651, 0
        %v6776 = vsel %vm6690, %v6653, 0
        %v6779 = vsel %vm6690, %v6655, 0
        %v6782 = vsel %vm6690, %v6657, 0
        %v6785 = vsel %vm6690, %v6659, 0
        %v6788 = vsel %vm2229, %v6682, 0
        %6790 = vmatprep.subr.mxu0 0.0
        %6791 = vmatpush1.msra.mxu0 %v6660
        %6792 = vmatprep.subr.mxu0 0.0
        %6793 = vmatpush1.msra.mxu0 %v6661
        %6794 = vmatprep.subr.mxu0 0.0
        %6795 = vmatpush1.msra.mxu0 %v6662
        %6796 = vmatprep.subr.mxu0 0.0
        %6797 = vmatpush1.msra.mxu0 %v6663
        %6798 = vmatprep.subr.mxu0 0.0
        %6799 = vmatpush1.msra.mxu0 %v6664
        %6800 = vmatprep.subr.mxu0 0.0
        %6801 = vmatpush1.msra.mxu0 %v6665
        %6802 = vmatprep.subr.mxu0 0.0
        %6803 = vmatpush1.msra.mxu0 %v6666
        %6804 = vmatprep.subr.mxu0 0.0
        %6805 = vmatpush1.msra.mxu0 %v6667
        %6806 = vmatprep.subr.mxu0 0.0
        %6807 = vmatpush1.msra.mxu0 %v6668
        %6808 = vmatprep.subr.mxu0 0.0
        %6809 = vmatpush1.msra.mxu0 %v6669
        %6810 = vmatprep.subr.mxu0 0.0
        %6811 = vmatpush1.msra.mxu0 %v6670
        %6812 = vmatprep.subr.mxu0 0.0
        %6813 = vmatpush1.msra.mxu0 %v6671
        %6814 = vmatprep.subr.mxu0 0.0
        %6815 = vmatpush1.msra.mxu0 %v6672
        %6816 = vmatprep.subr.mxu0 0.0
        %6817 = vmatpush1.msra.mxu0 %v6673
        %6818 = vmatprep.subr.mxu0 0.0
        %6819 = vmatpush1.msra.mxu0 %v6674
        %6820 = vmatprep.subr.mxu0 0.0
        %6821 = vmatpush1.msra.mxu0 %v6675
        %6822 = vmatprep.subr.mxu0 0.0
        %6823 = vmatpush1.msra.mxu0 %v6676
        %6824 = vmatprep.subr.mxu0 0.0
        %6825 = vmatpush1.msra.mxu0 %v6677
        %6826 = vmatprep.subr.mxu0 0.0
        %6827 = vmatpush1.msra.mxu0 %v6678
        %6828 = vmatprep.subr.mxu0 0.0
        %6829 = vmatpush1.msra.mxu0 %v6679
        %6830 = vmatprep.subr.mxu0 0.0
        %6831 = vmatpush1.msra.mxu0 %v6680
        %6832 = vmatprep.subr.mxu0 0.0
        %6833 = vmatpush1.msra.mxu0 %v6681
        %6834 = vmatprep.subr.mxu0 0.0
        %6835 = vmatpush1.msra.mxu0 %v6788
        %6836 = vmatprep.subr.mxu0 0.0
        %6837 = vmatpush1.msra.mxu0 0.0
        %6838 = vmatprep.subr.mxu0 0.0
        %6839 = vmatpush1.msra.mxu0 0.0
        %6840 = vmatprep.subr.mxu0 0.0
        %6841 = vmatpush1.msra.mxu0 0.0
        %6842 = vmatprep.subr.mxu0 0.0
        %6843 = vmatpush1.msra.mxu0 0.0
        %6844 = vmatprep.subr.mxu0 0.0
        %6845 = vmatpush1.msra.mxu0 0.0
        %6846 = vmatprep.subr.mxu0 0.0
        %6847 = vmatpush1.msra.mxu0 0.0
        %6848 = vmatprep.subr.mxu0 0.0
        %6849 = vmatpush1.msra.mxu0 0.0
        %6850 = vmatprep.subr.mxu0 0.0
        %6851 = vmatpush1.msra.mxu0 0.0
        %6852 = vmatprep.subr.mxu0 0.0
        %6853 = vmatpush1.msra.mxu0 0.0
        %6854 = vmatprep.mubr.f32.mxu0 %v6692
        %6855 = vmatmul.mubr.f32.gmra.mrb[0].mxu0 %v6596
        %v6856 = vpop.f32.mrb[0].mxu0
        %v6857 = vadd.f32 %v6688, %v6856
        %v6858 = vpop.f32.mrb[0].mxu0
        %6859 = vmatprep.mubr.f32.mxu0 %v6695
        %6860 = vmatmul.mubr.f32.gmra.mrb[0].mxu0 %v6598
        %v6861 = vpop.f32.mrb[0].mxu0
        %v6862 = vadd.f32 %v6688, %v6861
        %v6863 = vpop.f32.mrb[0].mxu0
        %6864 = vmatprep.mubr.f32.mxu0 %v6698
        %6865 = vmatmul.mubr.f32.gmra.mrb[0].mxu0 %v6600
        %v6866 = vpop.f32.mrb[0].mxu0
        %v6867 = vadd.f32 %v6688, %v6866
        %v6868 = vpop.f32.mrb[0].mxu0
        %6869 = vmatprep.mubr.f32.mxu0 %v6701
        %6870 = vmatmul.mubr.f32.gmra.mrb[0].mxu0 %v6602
        %v6871 = vpop.f32.mrb[0].mxu0
        %v6872 = vadd.f32 %v6688, %v6871
        %v6873 = vpop.f32.mrb[0].mxu0
        %6874 = vmatprep.mubr.f32.mxu0 %v6704
        %6875 = vmatmul.mubr.f32.gmra.mrb[0].mxu0 %v6604
        %v6876 = vpop.f32.mrb[0].mxu0
        %v6877 = vadd.f32 %v6688, %v6876
        %v6878 = vpop.f32.mrb[0].mxu0
        %6879 = vmatprep.mubr.f32.mxu0 %v6707
        %6880 = vmatmul.mubr.f32.gmra.mrb[0].mxu0 %v6606
        %v6881 = vpop.f32.mrb[0].mxu0
        %v6882 = vadd.f32 %v6688, %v6881
        %v6883 = vpop.f32.mrb[0].mxu0
        %6884 = vmatprep.mubr.f32.mxu0 %v6710
        %6885 = vmatmul.mubr.f32.gmra.mrb[0].mxu0 %v6608
        %v6886 = vpop.f32.mrb[0].mxu0
        %v6887 = vadd.f32 %v6688, %v6886
        %v6888 = vpop.f32.mrb[0].mxu0
        %6889 = vmatprep.mubr.f32.mxu0 %v6713
        %6890 = vmatmul.mubr.f32.gmra.mrb[0].mxu0 %v6610
        %v6891 = vpop.f32.mrb[0].mxu0
        %v6892 = vadd.f32 %v6688, %v6891
        %v6893 = vpop.f32.mrb[0].mxu0
        %6894 = vmatprep.mubr.f32.mxu0 %v6716
        %6895 = vmatmul.mubr.f32.gmra.mrb[0].mxu0 %v6612
        %v6896 = vpop.f32.mrb[0].mxu0
        %v6897 = vadd.f32 %v6688, %v6896
        %v6898 = vpop.f32.mrb[0].mxu0
        %6899 = vmatprep.mubr.f32.mxu0 %v6719
        %6900 = vmatmul.mubr.f32.gmra.mrb[0].mxu0 %v6614
        %v6901 = vpop.f32.mrb[0].mxu0
        %v6902 = vadd.f32 %v6688, %v6901
        %v6903 = vpop.f32.mrb[0].mxu0
        %6904 = vmatprep.mubr.f32.mxu0 %v6722
        %6905 = vmatmul.mubr.f32.gmra.mrb[0].mxu0 %v6616
        %v6906 = vpop.f32.mrb[0].mxu0
        %v6907 = vadd.f32 %v6688, %v6906
        %v6908 = vpop.f32.mrb[0].mxu0
        %6909 = vmatprep.mubr.f32.mxu0 %v6725
        %6910 = vmatmul.mubr.f32.gmra.mrb[0].mxu0 %v6618
        %v6911 = vpop.f32.mrb[0].mxu0
        %v6912 = vadd.f32 %v6688, %v6911
        %v6913 = vpop.f32.mrb[0].mxu0
        %6914 = vmatprep.mubr.f32.mxu0 %v6728
        %6915 = vmatmul.mubr.f32.gmra.mrb[0].mxu0 %v6620
        %v6916 = vpop.f32.mrb[0].mxu0
        %v6917 = vadd.f32 %v6688, %v6916
        %v6918 = vpop.f32.mrb[0].mxu0
        %6919 = vmatprep.mubr.f32.mxu0 %v6731
        %6920 = vmatmul.mubr.f32.gmra.mrb[0].mxu0 %v6622
        %v6921 = vpop.f32.mrb[0].mxu0
        %v6922 = vadd.f32 %v6688, %v6921
        %v6923 = vpop.f32.mrb[0].mxu0
        %6924 = vmatprep.mubr.f32.mxu0 %v6734
        %6925 = vmatmul.mubr.f32.gmra.mrb[0].mxu0 %v6624
        %v6926 = vpop.f32.mrb[0].mxu0
        %v6927 = vadd.f32 %v6688, %v6926
        %v6928 = vpop.f32.mrb[0].mxu0
        %6929 = vmatprep.mubr.f32.mxu0 %v6737
        %6930 = vmatmul.mubr.f32.gmra.mrb[0].mxu0 %v6626
        %v6931 = vpop.f32.mrb[0].mxu0
        %v6932 = vadd.f32 %v6688, %v6931
        %v6933 = vpop.f32.mrb[0].mxu0
        %6934 = vmatprep.mubr.f32.mxu0 %v6740
        %6935 = vmatmul.mubr.f32.gmra.mrb[0].mxu0 %v6628
        %v6936 = vpop.f32.mrb[0].mxu0
        %v6937 = vadd.f32 %v6688, %v6936
        %v6938 = vpop.f32.mrb[0].mxu0
        %6939 = vmatprep.mubr.f32.mxu0 %v6743
        %6940 = vmatmul.mubr.f32.gmra.mrb[0].mxu0 %v6630
        %v6941 = vpop.f32.mrb[0].mxu0
        %v6942 = vadd.f32 %v6688, %v6941
        %v6943 = vpop.f32.mrb[0].mxu0
        %6944 = vmatprep.mubr.f32.mxu0 %v6746
        %6945 = vmatmul.mubr.f32.gmra.mrb[0].mxu0 %v6632
        %v6946 = vpop.f32.mrb[0].mxu0
        %v6947 = vadd.f32 %v6688, %v6946
        %v6948 = vpop.f32.mrb[0].mxu0
        %6949 = vmatprep.mubr.f32.mxu0 %v6749
        %6950 = vmatmul.mubr.f32.gmra.mrb[0].mxu0 %v6634
        %v6951 = vpop.f32.mrb[0].mxu0
        %v6952 = vadd.f32 %v6688, %v6951
        %v6953 = vpop.f32.mrb[0].mxu0
        %6954 = vmatprep.mubr.f32.mxu0 %v6752
        %6955 = vmatmul.mubr.f32.gmra.mrb[0].mxu0 %v6636
        %v6956 = vpop.f32.mrb[0].mxu0
        %v6957 = vadd.f32 %v6688, %v6956
        %v6958 = vpop.f32.mrb[0].mxu0
        %6959 = vmatprep.mubr.f32.mxu0 %v6755
        %6960 = vmatmul.mubr.f32.gmra.mrb[0].mxu0 %v6638
        %v6961 = vpop.f32.mrb[0].mxu0
        %v6962 = vadd.f32 %v6688, %v6961
        %v6963 = vpop.f32.mrb[0].mxu0
        %6964 = vmatprep.mubr.f32.mxu0 %v6758
        %6965 = vmatmul.mubr.f32.gmra.mrb[0].mxu0 %v6640
        %v6966 = vpop.f32.mrb[0].mxu0
        %v6967 = vadd.f32 %v6688, %v6966
        %v6968 = vpop.f32.mrb[0].mxu0
        %6969 = vmatprep.mubr.f32.mxu0 %v6761
        %6970 = vmatmul.mubr.f32.gmra.mrb[0].mxu0 %v6642
        %v6971 = vpop.f32.mrb[0].mxu0
        %v6972 = vadd.f32 %v6688, %v6971
        %v6973 = vpop.f32.mrb[0].mxu0
        %6974 = vmatprep.mubr.f32.mxu0 %v6764
        %6975 = vmatmul.mubr.f32.gmra.mrb[0].mxu0 %v6644
        %v6976 = vpop.f32.mrb[0].mxu0
        %v6977 = vadd.f32 %v6688, %v6976
        %v6978 = vpop.f32.mrb[0].mxu0
        %6979 = vmatprep.mubr.f32.mxu0 %v6767
        %6980 = vmatmul.mubr.f32.gmra.mrb[0].mxu0 %v6646
        %v6981 = vpop.f32.mrb[0].mxu0
        %v6982 = vadd.f32 %v6688, %v6981
        %v6983 = vpop.f32.mrb[0].mxu0
        %6984 = vmatprep.mubr.f32.mxu0 %v6770
        %6985 = vmatmul.mubr.f32.gmra.mrb[0].mxu0 %v6648
        %v6986 = vpop.f32.mrb[0].mxu0
        %v6987 = vadd.f32 %v6688, %v6986
        %v6988 = vpop.f32.mrb[0].mxu0
        %6989 = vmatprep.mubr.f32.mxu0 %v6773
        %6990 = vmatmul.mubr.f32.gmra.mrb[0].mxu0 %v6650
        %v6991 = vpop.f32.mrb[0].mxu0
        %v6992 = vadd.f32 %v6688, %v6991
        %v6993 = vpop.f32.mrb[0].mxu0
        %6994 = vmatprep.mubr.f32.mxu0 %v6776
        %6995 = vmatmul.mubr.f32.gmra.mrb[0].mxu0 %v6652
        %v6996 = vpop.f32.mrb[0].mxu0
        %v6997 = vadd.f32 %v6688, %v6996
        %v6998 = vpop.f32.mrb[0].mxu0
        %6999 = vmatprep.mubr.f32.mxu0 %v6779
        %7000 = vmatmul.mubr.f32.gmra.mrb[0].mxu0 %v6654
        %v7001 = vpop.f32.mrb[0].mxu0
        %v7002 = vadd.f32 %v6688, %v7001
        %v7003 = vpop.f32.mrb[0].mxu0
        %7004 = vmatprep.mubr.f32.mxu0 %v6782
        %7005 = vmatmul.mubr.f32.gmra.mrb[0].mxu0 %v6656
        %v7006 = vpop.f32.mrb[0].mxu0
        %v7007 = vadd.f32 %v6688, %v7006
        %v7008 = vpop.f32.mrb[0].mxu0
        %7009 = vmatprep.mubr.f32.mxu0 %v6785
        %7010 = vmatmul.mubr.f32.gmra.mrb[0].mxu0 %v6658
        %v7011 = vpop.f32.mrb[0].mxu0
        %v7012 = vadd.f32 %v6688, %v7011
        %v7013 = vpop.f32.mrb[0].mxu0
        %7014 = vdwg.mxu0
        %v7015 = vmax.f32 %v6857, 0.0
        %v7016 = vmax.f32 %v6862, 0.0
        %v7017 = vmax.f32 %v6867, 0.0
        %v7018 = vmax.f32 %v6872, 0.0
        %v7019 = vmax.f32 %v6877, 0.0
        %v7020 = vmax.f32 %v6882, 0.0
        %v7021 = vmax.f32 %v6887, 0.0
        %v7022 = vmax.f32 %v6892, 0.0
        %v7023 = vmax.f32 %v6897, 0.0
        %v7024 = vmax.f32 %v6902, 0.0
        %v7025 = vmax.f32 %v6907, 0.0
        %v7026 = vmax.f32 %v6912, 0.0
        %v7027 = vmax.f32 %v6917, 0.0
        %v7028 = vmax.f32 %v6922, 0.0
        %v7029 = vmax.f32 %v6927, 0.0
        %v7030 = vmax.f32 %v6932, 0.0
        %v7031 = vmax.f32 %v6937, 0.0
        %v7032 = vmax.f32 %v6942, 0.0
        %v7033 = vmax.f32 %v6947, 0.0
        %v7034 = vmax.f32 %v6952, 0.0
        %v7035 = vmax.f32 %v6957, 0.0
        %v7036 = vmax.f32 %v6962, 0.0
        %v7037 = vmax.f32 %v6967, 0.0
        %v7038 = vmax.f32 %v6972, 0.0
        %v7039 = vmax.f32 %v6977, 0.0
        %v7040 = vmax.f32 %v6982, 0.0
        %v7041 = vmax.f32 %v6987, 0.0
        %v7042 = vmax.f32 %v6992, 0.0
        %v7043 = vmax.f32 %v6997, 0.0
        %v7044 = vmax.f32 %v7002, 0.0
        %v7045 = vmax.f32 %v7007, 0.0
        %v7046 = vmax.f32 %v7012, 0.0
        %7079 = vrot.lane.b32.xlu0 %v7015, 20
        %v7080 = vpop.permute.xlu0 %7079
        %7081 = vrot.lane.b32.xlu0 %v7016, 20
        %v7082 = vpop.permute.xlu0 %7081
        %7083 = vrot.lane.b32.xlu0 %v7017, 20
        %v7084 = vpop.permute.xlu0 %7083
        %7085 = vrot.lane.b32.xlu0 %v7018, 20
        %v7086 = vpop.permute.xlu0 %7085
        %7087 = vrot.lane.b32.xlu0 %v7019, 20
        %v7088 = vpop.permute.xlu0 %7087
        %7089 = vrot.lane.b32.xlu0 %v7020, 20
        %v7090 = vpop.permute.xlu0 %7089
        %7091 = vrot.lane.b32.xlu0 %v7021, 20
        %v7092 = vpop.permute.xlu0 %7091
        %7093 = vrot.lane.b32.xlu0 %v7022, 20
        %v7094 = vpop.permute.xlu0 %7093
        %7095 = vrot.lane.b32.xlu0 %v7023, 20
        %v7096 = vpop.permute.xlu0 %7095
        %7097 = vrot.lane.b32.xlu0 %v7024, 20
        %v7098 = vpop.permute.xlu0 %7097
        %7099 = vrot.lane.b32.xlu0 %v7025, 20
        %v7100 = vpop.permute.xlu0 %7099
        %7101 = vrot.lane.b32.xlu0 %v7026, 20
        %v7102 = vpop.permute.xlu0 %7101
        %7103 = vrot.lane.b32.xlu0 %v7027, 20
        %v7104 = vpop.permute.xlu0 %7103
        %7105 = vrot.lane.b32.xlu0 %v7028, 20
        %v7106 = vpop.permute.xlu0 %7105
        %7107 = vrot.lane.b32.xlu0 %v7029, 20
        %v7108 = vpop.permute.xlu0 %7107
        %7109 = vrot.lane.b32.xlu0 %v7030, 20
        %v7110 = vpop.permute.xlu0 %7109
        %7111 = vrot.lane.b32.xlu0 %v7031, 20
        %v7112 = vpop.permute.xlu0 %7111
        %7113 = vrot.lane.b32.xlu0 %v7032, 20
        %v7114 = vpop.permute.xlu0 %7113
        %7115 = vrot.lane.b32.xlu0 %v7033, 20
        %v7116 = vpop.permute.xlu0 %7115
        %7117 = vrot.lane.b32.xlu0 %v7034, 20
        %v7118 = vpop.permute.xlu0 %7117
        %7119 = vrot.lane.b32.xlu0 %v7035, 20
        %v7120 = vpop.permute.xlu0 %7119
        %7121 = vrot.lane.b32.xlu0 %v7036, 20
        %v7122 = vpop.permute.xlu0 %7121
        %7123 = vrot.lane.b32.xlu0 %v7037, 20
        %v7124 = vpop.permute.xlu0 %7123
        %7125 = vrot.lane.b32.xlu0 %v7038, 20
        %v7126 = vpop.permute.xlu0 %7125
        %7127 = vrot.lane.b32.xlu0 %v7039, 20
        %v7128 = vpop.permute.xlu0 %7127
        %7129 = vrot.lane.b32.xlu0 %v7040, 20
        %v7130 = vpop.permute.xlu0 %7129
        %7131 = vrot.lane.b32.xlu0 %v7041, 20
        %v7132 = vpop.permute.xlu0 %7131
        %7133 = vrot.lane.b32.xlu0 %v7042, 20
        %v7134 = vpop.permute.xlu0 %7133
        %7135 = vrot.lane.b32.xlu0 %v7043, 20
        %v7136 = vpop.permute.xlu0 %7135
        %7137 = vrot.lane.b32.xlu0 %v7044, 20
        %v7138 = vpop.permute.xlu0 %7137
        %7139 = vrot.lane.b32.xlu0 %v7045, 20
        %v7140 = vpop.permute.xlu0 %7139
        %7141 = vrot.lane.b32.xlu0 %v7046, 20
        %v7142 = vpop.permute.xlu0 %7141
        %7175 = vst.msk [vmem:[%s445 + $0x1] sm:$0xff] %vm5986, %v7080
        %7176 = vst.msk [vmem:[%s445 + $0x9] sm:$0xff] %vm5986, %v7082
        %7177 = vst.msk [vmem:[%s445 + $0x19] sm:$0xff] %vm5986, %v7084
        %7178 = vst.msk [vmem:[%s445 + $0x21] sm:$0xff] %vm5986, %v7086
        %7179 = vst.msk [vmem:[%s445 + $0x31] sm:$0xff] %vm5986, %v7088
        %7180 = vst.msk [vmem:[%s445 + $0x39] sm:$0xff] %vm5986, %v7090
        %7181 = vst.msk [vmem:[%s445 + $0x49] sm:$0xff] %vm5986, %v7092
        %7182 = vst.msk [vmem:[%s445 + $0x51] sm:$0xff] %vm5986, %v7094
        %7183 = vst.msk [vmem:[%s445 + $0x61] sm:$0xff] %vm5986, %v7096
        %7184 = vst.msk [vmem:[%s445 + $0x69] sm:$0xff] %vm5986, %v7098
        %7185 = vst.msk [vmem:[%s445 + $0x79] sm:$0xff] %vm5986, %v7100
        %7186 = vst.msk [vmem:[%s445 + $0x81] sm:$0xff] %vm5986, %v7102
        %7187 = vst.msk [vmem:[%s445 + $0x91] sm:$0xff] %vm5986, %v7104
        %7188 = vst.msk [vmem:[%s445 + $0x99] sm:$0xff] %vm5986, %v7106
        %7189 = vst.msk [vmem:[%s445 + $0xa9] sm:$0xff] %vm5986, %v7108
        %7190 = vst.msk [vmem:[%s445 + $0xb1] sm:$0xff] %vm5986, %v7110
        %7191 = vst.msk [vmem:[%s445 + $0xc1] sm:$0xff] %vm5986, %v7112
        %7192 = vst.msk [vmem:[%s445 + $0xc9] sm:$0xff] %vm5986, %v7114
        %7193 = vst.msk [vmem:[%s445 + $0xd9] sm:$0xff] %vm5986, %v7116
        %7194 = vst.msk [vmem:[%s445 + $0xe1] sm:$0xff] %vm5986, %v7118
        %7195 = vst.msk [vmem:[%s445 + $0xf1] sm:$0xff] %vm5986, %v7120
        %7196 = vst.msk [vmem:[%s445 + $0xf9] sm:$0xff] %vm5986, %v7122
        %7197 = vst.msk [vmem:[%s445 + $0x109] sm:$0xff] %vm5986, %v7124
        %7198 = vst.msk [vmem:[%s445 + $0x111] sm:$0xff] %vm5986, %v7126
        %7199 = vst.msk [vmem:[%s445 + $0x121] sm:$0xff] %vm5986, %v7128
        %7200 = vst.msk [vmem:[%s445 + $0x129] sm:$0xff] %vm5986, %v7130
        %7201 = vst.msk [vmem:[%s445 + $0x139] sm:$0xff] %vm5986, %v7132
        %7202 = vst.msk [vmem:[%s445 + $0x141] sm:$0xff] %vm5986, %v7134
        %7203 = vst.msk [vmem:[%s445 + $0x151] sm:$0xff] %vm5986, %v7136
        %7204 = vst.msk [vmem:[%s445 + $0x159] sm:$0xff] %vm5986, %v7138
        %7205 = vst.msk [vmem:[%s445 + $0x169] sm:$0xff] %vm5986, %v7140
        %7206 = vst.msk [vmem:[%s445 + $0x171] sm:$0xff] %vm5986, %v7142
        %v7207 = vld [vmem:[#allocation2] sm:$0xff]
        %v7208 = vld [vmem:[#allocation2 + $0x8] sm:$0xff]
        %v7209 = vld [vmem:[#allocation2 + $0x18] sm:$0xff]
        %v7210 = vld [vmem:[#allocation2 + $0x20] sm:$0xff]
        %v7211 = vld [vmem:[#allocation2 + $0x30] sm:$0xff]
        %v7212 = vld [vmem:[#allocation2 + $0x38] sm:$0xff]
        %v7213 = vld [vmem:[#allocation2 + $0x48] sm:$0xff]
        %v7214 = vld [vmem:[#allocation2 + $0x50] sm:$0xff]
        %v7215 = vld [vmem:[#allocation2 + $0x60] sm:$0xff]
        %v7216 = vld [vmem:[#allocation2 + $0x68] sm:$0xff]
        %v7217 = vld [vmem:[#allocation2 + $0x78] sm:$0xff]
        %v7218 = vld [vmem:[#allocation2 + $0x80] sm:$0xff]
        %v7219 = vld [vmem:[#allocation2 + $0x90] sm:$0xff]
        %v7220 = vld [vmem:[#allocation2 + $0x98] sm:$0xff]
        %v7221 = vld [vmem:[#allocation2 + $0xa8] sm:$0xff]
        %v7222 = vld [vmem:[#allocation2 + $0xb0] sm:$0xff]
        %v7223 = vld [vmem:[#allocation2 + $0xc0] sm:$0xff]
        %v7224 = vld [vmem:[#allocation2 + $0xc8] sm:$0xff]
        %v7225 = vld [vmem:[#allocation2 + $0xd8] sm:$0xff]
        %v7226 = vld [vmem:[#allocation2 + $0xe0] sm:$0xff]
        %v7227 = vld [vmem:[#allocation2 + $0xf0] sm:$0xff]
        %v7228 = vld [vmem:[#allocation2 + $0xf8] sm:$0xff]
        %v7229 = vld [vmem:[#allocation2 + $0x108] sm:$0xff]
        %v7230 = vld [vmem:[#allocation2 + $0x110] sm:$0xff]
        %v7231 = vld [vmem:[#allocation2 + $0x120] sm:$0xff]
        %v7232 = vld [vmem:[#allocation2 + $0x128] sm:$0xff]
        %v7233 = vld [vmem:[#allocation2 + $0x138] sm:$0xff]
        %v7234 = vld [vmem:[#allocation2 + $0x140] sm:$0xff]
        %v7235 = vld [vmem:[#allocation2 + $0x150] sm:$0xff]
        %v7236 = vld [vmem:[#allocation2 + $0x158] sm:$0xff]
        %v7237 = vld [vmem:[#allocation2 + $0x168] sm:$0xff]
        %v7238 = vld [vmem:[#allocation2 + $0x170] sm:$0xff]
        %7271 = vrot.lane.b32.xlu0 %v7207, 32
        %v7272 = vpop.permute.xlu0 %7271
        %7273 = vrot.lane.b32.xlu0 %v7208, 32
        %v7274 = vpop.permute.xlu0 %7273
        %7275 = vrot.lane.b32.xlu0 %v7209, 32
        %v7276 = vpop.permute.xlu0 %7275
        %7277 = vrot.lane.b32.xlu0 %v7210, 32
        %v7278 = vpop.permute.xlu0 %7277
        %7279 = vrot.lane.b32.xlu0 %v7211, 32
        %v7280 = vpop.permute.xlu0 %7279
        %7281 = vrot.lane.b32.xlu0 %v7212, 32
        %v7282 = vpop.permute.xlu0 %7281
        %7283 = vrot.lane.b32.xlu0 %v7213, 32
        %v7284 = vpop.permute.xlu0 %7283
        %7285 = vrot.lane.b32.xlu0 %v7214, 32
        %v7286 = vpop.permute.xlu0 %7285
        %7287 = vrot.lane.b32.xlu0 %v7215, 32
        %v7288 = vpop.permute.xlu0 %7287
        %7289 = vrot.lane.b32.xlu0 %v7216, 32
        %v7290 = vpop.permute.xlu0 %7289
        %7291 = vrot.lane.b32.xlu0 %v7217, 32
        %v7292 = vpop.permute.xlu0 %7291
        %7293 = vrot.lane.b32.xlu0 %v7218, 32
        %v7294 = vpop.permute.xlu0 %7293
        %7295 = vrot.lane.b32.xlu0 %v7219, 32
        %v7296 = vpop.permute.xlu0 %7295
        %7297 = vrot.lane.b32.xlu0 %v7220, 32
        %v7298 = vpop.permute.xlu0 %7297
        %7299 = vrot.lane.b32.xlu0 %v7221, 32
        %v7300 = vpop.permute.xlu0 %7299
        %7301 = vrot.lane.b32.xlu0 %v7222, 32
        %v7302 = vpop.permute.xlu0 %7301
        %7303 = vrot.lane.b32.xlu0 %v7223, 32
        %v7304 = vpop.permute.xlu0 %7303
        %7305 = vrot.lane.b32.xlu0 %v7224, 32
        %v7306 = vpop.permute.xlu0 %7305
        %7307 = vrot.lane.b32.xlu0 %v7225, 32
        %v7308 = vpop.permute.xlu0 %7307
        %7309 = vrot.lane.b32.xlu0 %v7226, 32
        %v7310 = vpop.permute.xlu0 %7309
        %7311 = vrot.lane.b32.xlu0 %v7227, 32
        %v7312 = vpop.permute.xlu0 %7311
        %7313 = vrot.lane.b32.xlu0 %v7228, 32
        %v7314 = vpop.permute.xlu0 %7313
        %7315 = vrot.lane.b32.xlu0 %v7229, 32
        %v7316 = vpop.permute.xlu0 %7315
        %7317 = vrot.lane.b32.xlu0 %v7230, 32
        %v7318 = vpop.permute.xlu0 %7317
        %7319 = vrot.lane.b32.xlu0 %v7231, 32
        %v7320 = vpop.permute.xlu0 %7319
        %7321 = vrot.lane.b32.xlu0 %v7232, 32
        %v7322 = vpop.permute.xlu0 %7321
        %7323 = vrot.lane.b32.xlu0 %v7233, 32
        %v7324 = vpop.permute.xlu0 %7323
        %7325 = vrot.lane.b32.xlu0 %v7234, 32
        %v7326 = vpop.permute.xlu0 %7325
        %7327 = vrot.lane.b32.xlu0 %v7235, 32
        %v7328 = vpop.permute.xlu0 %7327
        %7329 = vrot.lane.b32.xlu0 %v7236, 32
        %v7330 = vpop.permute.xlu0 %7329
        %7331 = vrot.lane.b32.xlu0 %v7237, 32
        %v7332 = vpop.permute.xlu0 %7331
        %7333 = vrot.lane.b32.xlu0 %v7238, 32
        %v7334 = vpop.permute.xlu0 %7333
        %7367 = vst.msk [vmem:[#allocation3 + $0x8] sm:$0xff] %vm3197, %v7272
        %7368 = vst.msk [vmem:[#allocation3 + $0x18] sm:$0xff] %vm3197, %v7274
        %7369 = vst.msk [vmem:[#allocation3 + $0x28] sm:$0xff] %vm3197, %v7276
        %7370 = vst.msk [vmem:[#allocation3 + $0x38] sm:$0xff] %vm3197, %v7278
        %7371 = vst.msk [vmem:[#allocation3 + $0x48] sm:$0xff] %vm3197, %v7280
        %7372 = vst.msk [vmem:[#allocation3 + $0x58] sm:$0xff] %vm3197, %v7282
        %7373 = vst.msk [vmem:[#allocation3 + $0x68] sm:$0xff] %vm3197, %v7284
        %7374 = vst.msk [vmem:[#allocation3 + $0x78] sm:$0xff] %vm3197, %v7286
        %7375 = vst.msk [vmem:[#allocation3 + $0x88] sm:$0xff] %vm3197, %v7288
        %7376 = vst.msk [vmem:[#allocation3 + $0x98] sm:$0xff] %vm3197, %v7290
        %7377 = vst.msk [vmem:[#allocation3 + $0xa8] sm:$0xff] %vm3197, %v7292
        %7378 = vst.msk [vmem:[#allocation3 + $0xb8] sm:$0xff] %vm3197, %v7294
        %7379 = vst.msk [vmem:[#allocation3 + $0xc8] sm:$0xff] %vm3197, %v7296
        %7380 = vst.msk [vmem:[#allocation3 + $0xd8] sm:$0xff] %vm3197, %v7298
        %7381 = vst.msk [vmem:[#allocation3 + $0xe8] sm:$0xff] %vm3197, %v7300
        %7382 = vst.msk [vmem:[#allocation3 + $0xf8] sm:$0xff] %vm3197, %v7302
        %7383 = vst.msk [vmem:[#allocation3 + $0x108] sm:$0xff] %vm3197, %v7304
        %7384 = vst.msk [vmem:[#allocation3 + $0x118] sm:$0xff] %vm3197, %v7306
        %7385 = vst.msk [vmem:[#allocation3 + $0x128] sm:$0xff] %vm3197, %v7308
        %7386 = vst.msk [vmem:[#allocation3 + $0x138] sm:$0xff] %vm3197, %v7310
        %7387 = vst.msk [vmem:[#allocation3 + $0x148] sm:$0xff] %vm3197, %v7312
        %7388 = vst.msk [vmem:[#allocation3 + $0x158] sm:$0xff] %vm3197, %v7314
        %7389 = vst.msk [vmem:[#allocation3 + $0x168] sm:$0xff] %vm3197, %v7316
        %7390 = vst.msk [vmem:[#allocation3 + $0x178] sm:$0xff] %vm3197, %v7318
        %7391 = vst.msk [vmem:[#allocation3 + $0x188] sm:$0xff] %vm3197, %v7320
        %7392 = vst.msk [vmem:[#allocation3 + $0x198] sm:$0xff] %vm3197, %v7322
        %7393 = vst.msk [vmem:[#allocation3 + $0x1a8] sm:$0xff] %vm3197, %v7324
        %7394 = vst.msk [vmem:[#allocation3 + $0x1b8] sm:$0xff] %vm3197, %v7326
        %7395 = vst.msk [vmem:[#allocation3 + $0x1c8] sm:$0xff] %vm3197, %v7328
        %7396 = vst.msk [vmem:[#allocation3 + $0x1d8] sm:$0xff] %vm3197, %v7330
        %7397 = vst.msk [vmem:[#allocation3 + $0x1e8] sm:$0xff] %vm3197, %v7332
        %7398 = vst.msk [vmem:[#allocation3 + $0x1f8] sm:$0xff] %vm3197, %v7334
        %v7399 = vld [vmem:[#allocation2 + $0x1] sm:$0xff]
        %v7400 = vld [vmem:[#allocation2 + $0x9] sm:$0xff]
        %v7401 = vld [vmem:[#allocation2 + $0x19] sm:$0xff]
        %v7402 = vld [vmem:[#allocation2 + $0x21] sm:$0xff]
        %v7403 = vld [vmem:[#allocation2 + $0x31] sm:$0xff]
        %v7404 = vld [vmem:[#allocation2 + $0x39] sm:$0xff]
        %v7405 = vld [vmem:[#allocation2 + $0x49] sm:$0xff]
        %v7406 = vld [vmem:[#allocation2 + $0x51] sm:$0xff]
        %v7407 = vld [vmem:[#allocation2 + $0x61] sm:$0xff]
        %v7408 = vld [vmem:[#allocation2 + $0x69] sm:$0xff]
        %v7409 = vld [vmem:[#allocation2 + $0x79] sm:$0xff]
        %v7410 = vld [vmem:[#allocation2 + $0x81] sm:$0xff]
        %v7411 = vld [vmem:[#allocation2 + $0x91] sm:$0xff]
        %v7412 = vld [vmem:[#allocation2 + $0x99] sm:$0xff]
        %v7413 = vld [vmem:[#allocation2 + $0xa9] sm:$0xff]
        %v7414 = vld [vmem:[#allocation2 + $0xb1] sm:$0xff]
        %v7415 = vld [vmem:[#allocation2 + $0xc1] sm:$0xff]
        %v7416 = vld [vmem:[#allocation2 + $0xc9] sm:$0xff]
        %v7417 = vld [vmem:[#allocation2 + $0xd9] sm:$0xff]
        %v7418 = vld [vmem:[#allocation2 + $0xe1] sm:$0xff]
        %v7419 = vld [vmem:[#allocation2 + $0xf1] sm:$0xff]
        %v7420 = vld [vmem:[#allocation2 + $0xf9] sm:$0xff]
        %v7421 = vld [vmem:[#allocation2 + $0x109] sm:$0xff]
        %v7422 = vld [vmem:[#allocation2 + $0x111] sm:$0xff]
        %v7423 = vld [vmem:[#allocation2 + $0x121] sm:$0xff]
        %v7424 = vld [vmem:[#allocation2 + $0x129] sm:$0xff]
        %v7425 = vld [vmem:[#allocation2 + $0x139] sm:$0xff]
        %v7426 = vld [vmem:[#allocation2 + $0x141] sm:$0xff]
        %v7427 = vld [vmem:[#allocation2 + $0x151] sm:$0xff]
        %v7428 = vld [vmem:[#allocation2 + $0x159] sm:$0xff]
        %v7429 = vld [vmem:[#allocation2 + $0x169] sm:$0xff]
        %v7430 = vld [vmem:[#allocation2 + $0x171] sm:$0xff]
        %7463 = vrot.lane.b32.xlu0 %v7399, 40
        %v7464 = vpop.permute.xlu0 %7463
        %7465 = vrot.lane.b32.xlu0 %v7400, 40
        %v7466 = vpop.permute.xlu0 %7465
        %7467 = vrot.lane.b32.xlu0 %v7401, 40
        %v7468 = vpop.permute.xlu0 %7467
        %7469 = vrot.lane.b32.xlu0 %v7402, 40
        %v7470 = vpop.permute.xlu0 %7469
        %7471 = vrot.lane.b32.xlu0 %v7403, 40
        %v7472 = vpop.permute.xlu0 %7471
        %7473 = vrot.lane.b32.xlu0 %v7404, 40
        %v7474 = vpop.permute.xlu0 %7473
        %7475 = vrot.lane.b32.xlu0 %v7405, 40
        %v7476 = vpop.permute.xlu0 %7475
        %7477 = vrot.lane.b32.xlu0 %v7406, 40
        %v7478 = vpop.permute.xlu0 %7477
        %7479 = vrot.lane.b32.xlu0 %v7407, 40
        %v7480 = vpop.permute.xlu0 %7479
        %7481 = vrot.lane.b32.xlu0 %v7408, 40
        %v7482 = vpop.permute.xlu0 %7481
        %7483 = vrot.lane.b32.xlu0 %v7409, 40
        %v7484 = vpop.permute.xlu0 %7483
        %7485 = vrot.lane.b32.xlu0 %v7410, 40
        %v7486 = vpop.permute.xlu0 %7485
        %7487 = vrot.lane.b32.xlu0 %v7411, 40
        %v7488 = vpop.permute.xlu0 %7487
        %7489 = vrot.lane.b32.xlu0 %v7412, 40
        %v7490 = vpop.permute.xlu0 %7489
        %7491 = vrot.lane.b32.xlu0 %v7413, 40
        %v7492 = vpop.permute.xlu0 %7491
        %7493 = vrot.lane.b32.xlu0 %v7414, 40
        %v7494 = vpop.permute.xlu0 %7493
        %7495 = vrot.lane.b32.xlu0 %v7415, 40
        %v7496 = vpop.permute.xlu0 %7495
        %7497 = vrot.lane.b32.xlu0 %v7416, 40
        %v7498 = vpop.permute.xlu0 %7497
        %7499 = vrot.lane.b32.xlu0 %v7417, 40
        %v7500 = vpop.permute.xlu0 %7499
        %7501 = vrot.lane.b32.xlu0 %v7418, 40
        %v7502 = vpop.permute.xlu0 %7501
        %7503 = vrot.lane.b32.xlu0 %v7419, 40
        %v7504 = vpop.permute.xlu0 %7503
        %7505 = vrot.lane.b32.xlu0 %v7420, 40
        %v7506 = vpop.permute.xlu0 %7505
        %7507 = vrot.lane.b32.xlu0 %v7421, 40
        %v7508 = vpop.permute.xlu0 %7507
        %7509 = vrot.lane.b32.xlu0 %v7422, 40
        %v7510 = vpop.permute.xlu0 %7509
        %7511 = vrot.lane.b32.xlu0 %v7423, 40
        %v7512 = vpop.permute.xlu0 %7511
        %7513 = vrot.lane.b32.xlu0 %v7424, 40
        %v7514 = vpop.permute.xlu0 %7513
        %7515 = vrot.lane.b32.xlu0 %v7425, 40
        %v7516 = vpop.permute.xlu0 %7515
        %7517 = vrot.lane.b32.xlu0 %v7426, 40
        %v7518 = vpop.permute.xlu0 %7517
        %7519 = vrot.lane.b32.xlu0 %v7427, 40
        %v7520 = vpop.permute.xlu0 %7519
        %7521 = vrot.lane.b32.xlu0 %v7428, 40
        %v7522 = vpop.permute.xlu0 %7521
        %7523 = vrot.lane.b32.xlu0 %v7429, 40
        %v7524 = vpop.permute.xlu0 %7523
        %7525 = vrot.lane.b32.xlu0 %v7430, 40
        %v7526 = vpop.permute.xlu0 %7525
        %7559 = vst.msk [vmem:[#allocation3 + $0x8] sm:$0xff] %vm3390, %v7464
        %7560 = vst.msk [vmem:[#allocation3 + $0x18] sm:$0xff] %vm3390, %v7466
        %7561 = vst.msk [vmem:[#allocation3 + $0x28] sm:$0xff] %vm3390, %v7468
        %7562 = vst.msk [vmem:[#allocation3 + $0x38] sm:$0xff] %vm3390, %v7470
        %7563 = vst.msk [vmem:[#allocation3 + $0x48] sm:$0xff] %vm3390, %v7472
        %7564 = vst.msk [vmem:[#allocation3 + $0x58] sm:$0xff] %vm3390, %v7474
        %7565 = vst.msk [vmem:[#allocation3 + $0x68] sm:$0xff] %vm3390, %v7476
        %7566 = vst.msk [vmem:[#allocation3 + $0x78] sm:$0xff] %vm3390, %v7478
        %7567 = vst.msk [vmem:[#allocation3 + $0x88] sm:$0xff] %vm3390, %v7480
        %7568 = vst.msk [vmem:[#allocation3 + $0x98] sm:$0xff] %vm3390, %v7482
        %7569 = vst.msk [vmem:[#allocation3 + $0xa8] sm:$0xff] %vm3390, %v7484
        %7570 = vst.msk [vmem:[#allocation3 + $0xb8] sm:$0xff] %vm3390, %v7486
        %7571 = vst.msk [vmem:[#allocation3 + $0xc8] sm:$0xff] %vm3390, %v7488
        %7572 = vst.msk [vmem:[#allocation3 + $0xd8] sm:$0xff] %vm3390, %v7490
        %7573 = vst.msk [vmem:[#allocation3 + $0xe8] sm:$0xff] %vm3390, %v7492
        %7574 = vst.msk [vmem:[#allocation3 + $0xf8] sm:$0xff] %vm3390, %v7494
        %7575 = vst.msk [vmem:[#allocation3 + $0x108] sm:$0xff] %vm3390, %v7496
        %7576 = vst.msk [vmem:[#allocation3 + $0x118] sm:$0xff] %vm3390, %v7498
        %7577 = vst.msk [vmem:[#allocation3 + $0x128] sm:$0xff] %vm3390, %v7500
        %7578 = vst.msk [vmem:[#allocation3 + $0x138] sm:$0xff] %vm3390, %v7502
        %7579 = vst.msk [vmem:[#allocation3 + $0x148] sm:$0xff] %vm3390, %v7504
        %7580 = vst.msk [vmem:[#allocation3 + $0x158] sm:$0xff] %vm3390, %v7506
        %7581 = vst.msk [vmem:[#allocation3 + $0x168] sm:$0xff] %vm3390, %v7508
        %7582 = vst.msk [vmem:[#allocation3 + $0x178] sm:$0xff] %vm3390, %v7510
        %7583 = vst.msk [vmem:[#allocation3 + $0x188] sm:$0xff] %vm3390, %v7512
        %7584 = vst.msk [vmem:[#allocation3 + $0x198] sm:$0xff] %vm3390, %v7514
        %7585 = vst.msk [vmem:[#allocation3 + $0x1a8] sm:$0xff] %vm3390, %v7516
        %7586 = vst.msk [vmem:[#allocation3 + $0x1b8] sm:$0xff] %vm3390, %v7518
        %7587 = vst.msk [vmem:[#allocation3 + $0x1c8] sm:$0xff] %vm3390, %v7520
        %7588 = vst.msk [vmem:[#allocation3 + $0x1d8] sm:$0xff] %vm3390, %v7522
        %7589 = vst.msk [vmem:[#allocation3 + $0x1e8] sm:$0xff] %vm3390, %v7524
        %7590 = vst.msk [vmem:[#allocation3 + $0x1f8] sm:$0xff] %vm3390, %v7526
        %v7591 = vld [vmem:[#allocation2 + $0x2] sm:$0xff]
        %v7592 = vld [vmem:[#allocation2 + $0xa] sm:$0xff]
        %v7593 = vld [vmem:[#allocation2 + $0x1a] sm:$0xff]
        %v7594 = vld [vmem:[#allocation2 + $0x22] sm:$0xff]
        %v7595 = vld [vmem:[#allocation2 + $0x32] sm:$0xff]
        %v7596 = vld [vmem:[#allocation2 + $0x3a] sm:$0xff]
        %v7597 = vld [vmem:[#allocation2 + $0x4a] sm:$0xff]
        %v7598 = vld [vmem:[#allocation2 + $0x52] sm:$0xff]
        %v7599 = vld [vmem:[#allocation2 + $0x62] sm:$0xff]
        %v7600 = vld [vmem:[#allocation2 + $0x6a] sm:$0xff]
        %v7601 = vld [vmem:[#allocation2 + $0x7a] sm:$0xff]
        %v7602 = vld [vmem:[#allocation2 + $0x82] sm:$0xff]
        %v7603 = vld [vmem:[#allocation2 + $0x92] sm:$0xff]
        %v7604 = vld [vmem:[#allocation2 + $0x9a] sm:$0xff]
        %v7605 = vld [vmem:[#allocation2 + $0xaa] sm:$0xff]
        %v7606 = vld [vmem:[#allocation2 + $0xb2] sm:$0xff]
        %v7607 = vld [vmem:[#allocation2 + $0xc2] sm:$0xff]
        %v7608 = vld [vmem:[#allocation2 + $0xca] sm:$0xff]
        %v7609 = vld [vmem:[#allocation2 + $0xda] sm:$0xff]
        %v7610 = vld [vmem:[#allocation2 + $0xe2] sm:$0xff]
        %v7611 = vld [vmem:[#allocation2 + $0xf2] sm:$0xff]
        %v7612 = vld [vmem:[#allocation2 + $0xfa] sm:$0xff]
        %v7613 = vld [vmem:[#allocation2 + $0x10a] sm:$0xff]
        %v7614 = vld [vmem:[#allocation2 + $0x112] sm:$0xff]
        %v7615 = vld [vmem:[#allocation2 + $0x122] sm:$0xff]
        %v7616 = vld [vmem:[#allocation2 + $0x12a] sm:$0xff]
        %v7617 = vld [vmem:[#allocation2 + $0x13a] sm:$0xff]
        %v7618 = vld [vmem:[#allocation2 + $0x142] sm:$0xff]
        %v7619 = vld [vmem:[#allocation2 + $0x152] sm:$0xff]
        %v7620 = vld [vmem:[#allocation2 + $0x15a] sm:$0xff]
        %v7621 = vld [vmem:[#allocation2 + $0x16a] sm:$0xff]
        %v7622 = vld [vmem:[#allocation2 + $0x172] sm:$0xff]
        %7655 = vrot.lane.b32.xlu0 %v7591, 48
        %v7656 = vpop.permute.xlu0 %7655
        %7657 = vrot.lane.b32.xlu0 %v7592, 48
        %v7658 = vpop.permute.xlu0 %7657
        %7659 = vrot.lane.b32.xlu0 %v7593, 48
        %v7660 = vpop.permute.xlu0 %7659
        %7661 = vrot.lane.b32.xlu0 %v7594, 48
        %v7662 = vpop.permute.xlu0 %7661
        %7663 = vrot.lane.b32.xlu0 %v7595, 48
        %v7664 = vpop.permute.xlu0 %7663
        %7665 = vrot.lane.b32.xlu0 %v7596, 48
        %v7666 = vpop.permute.xlu0 %7665
        %7667 = vrot.lane.b32.xlu0 %v7597, 48
        %v7668 = vpop.permute.xlu0 %7667
        %7669 = vrot.lane.b32.xlu0 %v7598, 48
        %v7670 = vpop.permute.xlu0 %7669
        %7671 = vrot.lane.b32.xlu0 %v7599, 48
        %v7672 = vpop.permute.xlu0 %7671
        %7673 = vrot.lane.b32.xlu0 %v7600, 48
        %v7674 = vpop.permute.xlu0 %7673
        %7675 = vrot.lane.b32.xlu0 %v7601, 48
        %v7676 = vpop.permute.xlu0 %7675
        %7677 = vrot.lane.b32.xlu0 %v7602, 48
        %v7678 = vpop.permute.xlu0 %7677
        %7679 = vrot.lane.b32.xlu0 %v7603, 48
        %v7680 = vpop.permute.xlu0 %7679
        %7681 = vrot.lane.b32.xlu0 %v7604, 48
        %v7682 = vpop.permute.xlu0 %7681
        %7683 = vrot.lane.b32.xlu0 %v7605, 48
        %v7684 = vpop.permute.xlu0 %7683
        %7685 = vrot.lane.b32.xlu0 %v7606, 48
        %v7686 = vpop.permute.xlu0 %7685
        %7687 = vrot.lane.b32.xlu0 %v7607, 48
        %v7688 = vpop.permute.xlu0 %7687
        %7689 = vrot.lane.b32.xlu0 %v7608, 48
        %v7690 = vpop.permute.xlu0 %7689
        %7691 = vrot.lane.b32.xlu0 %v7609, 48
        %v7692 = vpop.permute.xlu0 %7691
        %7693 = vrot.lane.b32.xlu0 %v7610, 48
        %v7694 = vpop.permute.xlu0 %7693
        %7695 = vrot.lane.b32.xlu0 %v7611, 48
        %v7696 = vpop.permute.xlu0 %7695
        %7697 = vrot.lane.b32.xlu0 %v7612, 48
        %v7698 = vpop.permute.xlu0 %7697
        %7699 = vrot.lane.b32.xlu0 %v7613, 48
        %v7700 = vpop.permute.xlu0 %7699
        %7701 = vrot.lane.b32.xlu0 %v7614, 48
        %v7702 = vpop.permute.xlu0 %7701
        %7703 = vrot.lane.b32.xlu0 %v7615, 48
        %v7704 = vpop.permute.xlu0 %7703
        %7705 = vrot.lane.b32.xlu0 %v7616, 48
        %v7706 = vpop.permute.xlu0 %7705
        %7707 = vrot.lane.b32.xlu0 %v7617, 48
        %v7708 = vpop.permute.xlu0 %7707
        %7709 = vrot.lane.b32.xlu0 %v7618, 48
        %v7710 = vpop.permute.xlu0 %7709
        %7711 = vrot.lane.b32.xlu0 %v7619, 48
        %v7712 = vpop.permute.xlu0 %7711
        %7713 = vrot.lane.b32.xlu0 %v7620, 48
        %v7714 = vpop.permute.xlu0 %7713
        %7715 = vrot.lane.b32.xlu0 %v7621, 48
        %v7716 = vpop.permute.xlu0 %7715
        %7717 = vrot.lane.b32.xlu0 %v7622, 48
        %v7718 = vpop.permute.xlu0 %7717
        %7751 = vst.msk [vmem:[#allocation3 + $0x8] sm:$0xff] %vm3583, %v7656
        %7752 = vst.msk [vmem:[#allocation3 + $0x18] sm:$0xff] %vm3583, %v7658
        %7753 = vst.msk [vmem:[#allocation3 + $0x28] sm:$0xff] %vm3583, %v7660
        %7754 = vst.msk [vmem:[#allocation3 + $0x38] sm:$0xff] %vm3583, %v7662
        %7755 = vst.msk [vmem:[#allocation3 + $0x48] sm:$0xff] %vm3583, %v7664
        %7756 = vst.msk [vmem:[#allocation3 + $0x58] sm:$0xff] %vm3583, %v7666
        %7757 = vst.msk [vmem:[#allocation3 + $0x68] sm:$0xff] %vm3583, %v7668
        %7758 = vst.msk [vmem:[#allocation3 + $0x78] sm:$0xff] %vm3583, %v7670
        %7759 = vst.msk [vmem:[#allocation3 + $0x88] sm:$0xff] %vm3583, %v7672
        %7760 = vst.msk [vmem:[#allocation3 + $0x98] sm:$0xff] %vm3583, %v7674
        %7761 = vst.msk [vmem:[#allocation3 + $0xa8] sm:$0xff] %vm3583, %v7676
        %7762 = vst.msk [vmem:[#allocation3 + $0xb8] sm:$0xff] %vm3583, %v7678
        %7763 = vst.msk [vmem:[#allocation3 + $0xc8] sm:$0xff] %vm3583, %v7680
        %7764 = vst.msk [vmem:[#allocation3 + $0xd8] sm:$0xff] %vm3583, %v7682
        %7765 = vst.msk [vmem:[#allocation3 + $0xe8] sm:$0xff] %vm3583, %v7684
        %7766 = vst.msk [vmem:[#allocation3 + $0xf8] sm:$0xff] %vm3583, %v7686
        %7767 = vst.msk [vmem:[#allocation3 + $0x108] sm:$0xff] %vm3583, %v7688
        %7768 = vst.msk [vmem:[#allocation3 + $0x118] sm:$0xff] %vm3583, %v7690
        %7769 = vst.msk [vmem:[#allocation3 + $0x128] sm:$0xff] %vm3583, %v7692
        %7770 = vst.msk [vmem:[#allocation3 + $0x138] sm:$0xff] %vm3583, %v7694
        %7771 = vst.msk [vmem:[#allocation3 + $0x148] sm:$0xff] %vm3583, %v7696
        %7772 = vst.msk [vmem:[#allocation3 + $0x158] sm:$0xff] %vm3583, %v7698
        %7773 = vst.msk [vmem:[#allocation3 + $0x168] sm:$0xff] %vm3583, %v7700
        %7774 = vst.msk [vmem:[#allocation3 + $0x178] sm:$0xff] %vm3583, %v7702
        %7775 = vst.msk [vmem:[#allocation3 + $0x188] sm:$0xff] %vm3583, %v7704
        %7776 = vst.msk [vmem:[#allocation3 + $0x198] sm:$0xff] %vm3583, %v7706
        %7777 = vst.msk [vmem:[#allocation3 + $0x1a8] sm:$0xff] %vm3583, %v7708
        %7778 = vst.msk [vmem:[#allocation3 + $0x1b8] sm:$0xff] %vm3583, %v7710
        %7779 = vst.msk [vmem:[#allocation3 + $0x1c8] sm:$0xff] %vm3583, %v7712
        %7780 = vst.msk [vmem:[#allocation3 + $0x1d8] sm:$0xff] %vm3583, %v7714
        %7781 = vst.msk [vmem:[#allocation3 + $0x1e8] sm:$0xff] %vm3583, %v7716
        %7782 = vst.msk [vmem:[#allocation3 + $0x1f8] sm:$0xff] %vm3583, %v7718
        %v7783 = vld [vmem:[%s445] sm:$0xff]
        %v7784 = vld [vmem:[%s445 + $0x8] sm:$0xff]
        %v7785 = vld [vmem:[%s445 + $0x18] sm:$0xff]
        %v7786 = vld [vmem:[%s445 + $0x20] sm:$0xff]
        %v7787 = vld [vmem:[%s445 + $0x30] sm:$0xff]
        %v7788 = vld [vmem:[%s445 + $0x38] sm:$0xff]
        %v7789 = vld [vmem:[%s445 + $0x48] sm:$0xff]
        %v7790 = vld [vmem:[%s445 + $0x50] sm:$0xff]
        %v7791 = vld [vmem:[%s445 + $0x60] sm:$0xff]
        %v7792 = vld [vmem:[%s445 + $0x68] sm:$0xff]
        %v7793 = vld [vmem:[%s445 + $0x78] sm:$0xff]
        %v7794 = vld [vmem:[%s445 + $0x80] sm:$0xff]
        %v7795 = vld [vmem:[%s445 + $0x90] sm:$0xff]
        %v7796 = vld [vmem:[%s445 + $0x98] sm:$0xff]
        %v7797 = vld [vmem:[%s445 + $0xa8] sm:$0xff]
        %v7798 = vld [vmem:[%s445 + $0xb0] sm:$0xff]
        %v7799 = vld [vmem:[%s445 + $0xc0] sm:$0xff]
        %v7800 = vld [vmem:[%s445 + $0xc8] sm:$0xff]
        %v7801 = vld [vmem:[%s445 + $0xd8] sm:$0xff]
        %v7802 = vld [vmem:[%s445 + $0xe0] sm:$0xff]
        %v7803 = vld [vmem:[%s445 + $0xf0] sm:$0xff]
        %v7804 = vld [vmem:[%s445 + $0xf8] sm:$0xff]
        %v7805 = vld [vmem:[%s445 + $0x108] sm:$0xff]
        %v7806 = vld [vmem:[%s445 + $0x110] sm:$0xff]
        %v7807 = vld [vmem:[%s445 + $0x120] sm:$0xff]
        %v7808 = vld [vmem:[%s445 + $0x128] sm:$0xff]
        %v7809 = vld [vmem:[%s445 + $0x138] sm:$0xff]
        %v7810 = vld [vmem:[%s445 + $0x140] sm:$0xff]
        %v7811 = vld [vmem:[%s445 + $0x150] sm:$0xff]
        %v7812 = vld [vmem:[%s445 + $0x158] sm:$0xff]
        %v7813 = vld [vmem:[%s445 + $0x168] sm:$0xff]
        %v7814 = vld [vmem:[%s445 + $0x170] sm:$0xff]
        %7847 = vrot.lane.b32.xlu0 %v7783, 56
        %v7848 = vpop.permute.xlu0 %7847
        %7849 = vrot.lane.b32.xlu0 %v7784, 56
        %v7850 = vpop.permute.xlu0 %7849
        %7851 = vrot.lane.b32.xlu0 %v7785, 56
        %v7852 = vpop.permute.xlu0 %7851
        %7853 = vrot.lane.b32.xlu0 %v7786, 56
        %v7854 = vpop.permute.xlu0 %7853
        %7855 = vrot.lane.b32.xlu0 %v7787, 56
        %v7856 = vpop.permute.xlu0 %7855
        %7857 = vrot.lane.b32.xlu0 %v7788, 56
        %v7858 = vpop.permute.xlu0 %7857
        %7859 = vrot.lane.b32.xlu0 %v7789, 56
        %v7860 = vpop.permute.xlu0 %7859
        %7861 = vrot.lane.b32.xlu0 %v7790, 56
        %v7862 = vpop.permute.xlu0 %7861
        %7863 = vrot.lane.b32.xlu0 %v7791, 56
        %v7864 = vpop.permute.xlu0 %7863
        %7865 = vrot.lane.b32.xlu0 %v7792, 56
        %v7866 = vpop.permute.xlu0 %7865
        %7867 = vrot.lane.b32.xlu0 %v7793, 56
        %v7868 = vpop.permute.xlu0 %7867
        %7869 = vrot.lane.b32.xlu0 %v7794, 56
        %v7870 = vpop.permute.xlu0 %7869
        %7871 = vrot.lane.b32.xlu0 %v7795, 56
        %v7872 = vpop.permute.xlu0 %7871
        %7873 = vrot.lane.b32.xlu0 %v7796, 56
        %v7874 = vpop.permute.xlu0 %7873
        %7875 = vrot.lane.b32.xlu0 %v7797, 56
        %v7876 = vpop.permute.xlu0 %7875
        %7877 = vrot.lane.b32.xlu0 %v7798, 56
        %v7878 = vpop.permute.xlu0 %7877
        %7879 = vrot.lane.b32.xlu0 %v7799, 56
        %v7880 = vpop.permute.xlu0 %7879
        %7881 = vrot.lane.b32.xlu0 %v7800, 56
        %v7882 = vpop.permute.xlu0 %7881
        %7883 = vrot.lane.b32.xlu0 %v7801, 56
        %v7884 = vpop.permute.xlu0 %7883
        %7885 = vrot.lane.b32.xlu0 %v7802, 56
        %v7886 = vpop.permute.xlu0 %7885
        %7887 = vrot.lane.b32.xlu0 %v7803, 56
        %v7888 = vpop.permute.xlu0 %7887
        %7889 = vrot.lane.b32.xlu0 %v7804, 56
        %v7890 = vpop.permute.xlu0 %7889
        %7891 = vrot.lane.b32.xlu0 %v7805, 56
        %v7892 = vpop.permute.xlu0 %7891
        %7893 = vrot.lane.b32.xlu0 %v7806, 56
        %v7894 = vpop.permute.xlu0 %7893
        %7895 = vrot.lane.b32.xlu0 %v7807, 56
        %v7896 = vpop.permute.xlu0 %7895
        %7897 = vrot.lane.b32.xlu0 %v7808, 56
        %v7898 = vpop.permute.xlu0 %7897
        %7899 = vrot.lane.b32.xlu0 %v7809, 56
        %v7900 = vpop.permute.xlu0 %7899
        %7901 = vrot.lane.b32.xlu0 %v7810, 56
        %v7902 = vpop.permute.xlu0 %7901
        %7903 = vrot.lane.b32.xlu0 %v7811, 56
        %v7904 = vpop.permute.xlu0 %7903
        %7905 = vrot.lane.b32.xlu0 %v7812, 56
        %v7906 = vpop.permute.xlu0 %7905
        %7907 = vrot.lane.b32.xlu0 %v7813, 56
        %v7908 = vpop.permute.xlu0 %7907
        %7909 = vrot.lane.b32.xlu0 %v7814, 56
        %v7910 = vpop.permute.xlu0 %7909
        %7943 = vst.msk [vmem:[#allocation3 + $0x8] sm:$0xff] %vm3776, %v7848
        %7944 = vst.msk [vmem:[#allocation3 + $0x18] sm:$0xff] %vm3776, %v7850
        %7945 = vst.msk [vmem:[#allocation3 + $0x28] sm:$0xff] %vm3776, %v7852
        %7946 = vst.msk [vmem:[#allocation3 + $0x38] sm:$0xff] %vm3776, %v7854
        %7947 = vst.msk [vmem:[#allocation3 + $0x48] sm:$0xff] %vm3776, %v7856
        %7948 = vst.msk [vmem:[#allocation3 + $0x58] sm:$0xff] %vm3776, %v7858
        %7949 = vst.msk [vmem:[#allocation3 + $0x68] sm:$0xff] %vm3776, %v7860
        %7950 = vst.msk [vmem:[#allocation3 + $0x78] sm:$0xff] %vm3776, %v7862
        %7951 = vst.msk [vmem:[#allocation3 + $0x88] sm:$0xff] %vm3776, %v7864
        %7952 = vst.msk [vmem:[#allocation3 + $0x98] sm:$0xff] %vm3776, %v7866
        %7953 = vst.msk [vmem:[#allocation3 + $0xa8] sm:$0xff] %vm3776, %v7868
        %7954 = vst.msk [vmem:[#allocation3 + $0xb8] sm:$0xff] %vm3776, %v7870
        %7955 = vst.msk [vmem:[#allocation3 + $0xc8] sm:$0xff] %vm3776, %v7872
        %7956 = vst.msk [vmem:[#allocation3 + $0xd8] sm:$0xff] %vm3776, %v7874
        %7957 = vst.msk [vmem:[#allocation3 + $0xe8] sm:$0xff] %vm3776, %v7876
        %7958 = vst.msk [vmem:[#allocation3 + $0xf8] sm:$0xff] %vm3776, %v7878
        %7959 = vst.msk [vmem:[#allocation3 + $0x108] sm:$0xff] %vm3776, %v7880
        %7960 = vst.msk [vmem:[#allocation3 + $0x118] sm:$0xff] %vm3776, %v7882
        %7961 = vst.msk [vmem:[#allocation3 + $0x128] sm:$0xff] %vm3776, %v7884
        %7962 = vst.msk [vmem:[#allocation3 + $0x138] sm:$0xff] %vm3776, %v7886
        %7963 = vst.msk [vmem:[#allocation3 + $0x148] sm:$0xff] %vm3776, %v7888
        %7964 = vst.msk [vmem:[#allocation3 + $0x158] sm:$0xff] %vm3776, %v7890
        %7965 = vst.msk [vmem:[#allocation3 + $0x168] sm:$0xff] %vm3776, %v7892
        %7966 = vst.msk [vmem:[#allocation3 + $0x178] sm:$0xff] %vm3776, %v7894
        %7967 = vst.msk [vmem:[#allocation3 + $0x188] sm:$0xff] %vm3776, %v7896
        %7968 = vst.msk [vmem:[#allocation3 + $0x198] sm:$0xff] %vm3776, %v7898
        %7969 = vst.msk [vmem:[#allocation3 + $0x1a8] sm:$0xff] %vm3776, %v7900
        %7970 = vst.msk [vmem:[#allocation3 + $0x1b8] sm:$0xff] %vm3776, %v7902
        %7971 = vst.msk [vmem:[#allocation3 + $0x1c8] sm:$0xff] %vm3776, %v7904
        %7972 = vst.msk [vmem:[#allocation3 + $0x1d8] sm:$0xff] %vm3776, %v7906
        %7973 = vst.msk [vmem:[#allocation3 + $0x1e8] sm:$0xff] %vm3776, %v7908
        %7974 = vst.msk [vmem:[#allocation3 + $0x1f8] sm:$0xff] %vm3776, %v7910
        %v7975 = vld [vmem:[%s445 + $0x1] sm:$0xff]
        %v7976 = vld [vmem:[%s445 + $0x9] sm:$0xff]
        %v7977 = vld [vmem:[%s445 + $0x19] sm:$0xff]
        %v7978 = vld [vmem:[%s445 + $0x21] sm:$0xff]
        %v7979 = vld [vmem:[%s445 + $0x31] sm:$0xff]
        %v7980 = vld [vmem:[%s445 + $0x39] sm:$0xff]
        %v7981 = vld [vmem:[%s445 + $0x49] sm:$0xff]
        %v7982 = vld [vmem:[%s445 + $0x51] sm:$0xff]
        %v7983 = vld [vmem:[%s445 + $0x61] sm:$0xff]
        %v7984 = vld [vmem:[%s445 + $0x69] sm:$0xff]
        %v7985 = vld [vmem:[%s445 + $0x79] sm:$0xff]
        %v7986 = vld [vmem:[%s445 + $0x81] sm:$0xff]
        %v7987 = vld [vmem:[%s445 + $0x91] sm:$0xff]
        %v7988 = vld [vmem:[%s445 + $0x99] sm:$0xff]
        %v7989 = vld [vmem:[%s445 + $0xa9] sm:$0xff]
        %v7990 = vld [vmem:[%s445 + $0xb1] sm:$0xff]
        %v7991 = vld [vmem:[%s445 + $0xc1] sm:$0xff]
        %v7992 = vld [vmem:[%s445 + $0xc9] sm:$0xff]
        %v7993 = vld [vmem:[%s445 + $0xd9] sm:$0xff]
        %v7994 = vld [vmem:[%s445 + $0xe1] sm:$0xff]
        %v7995 = vld [vmem:[%s445 + $0xf1] sm:$0xff]
        %v7996 = vld [vmem:[%s445 + $0xf9] sm:$0xff]
        %v7997 = vld [vmem:[%s445 + $0x109] sm:$0xff]
        %v7998 = vld [vmem:[%s445 + $0x111] sm:$0xff]
        %v7999 = vld [vmem:[%s445 + $0x121] sm:$0xff]
        %v8000 = vld [vmem:[%s445 + $0x129] sm:$0xff]
        %v8001 = vld [vmem:[%s445 + $0x139] sm:$0xff]
        %v8002 = vld [vmem:[%s445 + $0x141] sm:$0xff]
        %v8003 = vld [vmem:[%s445 + $0x151] sm:$0xff]
        %v8004 = vld [vmem:[%s445 + $0x159] sm:$0xff]
        %v8005 = vld [vmem:[%s445 + $0x169] sm:$0xff]
        %v8006 = vld [vmem:[%s445 + $0x171] sm:$0xff]
        %8039 = vrot.lane.b32.xlu0 %v7975, 64
        %v8040 = vpop.permute.xlu0 %8039
        %8041 = vrot.lane.b32.xlu0 %v7976, 64
        %v8042 = vpop.permute.xlu0 %8041
        %8043 = vrot.lane.b32.xlu0 %v7977, 64
        %v8044 = vpop.permute.xlu0 %8043
        %8045 = vrot.lane.b32.xlu0 %v7978, 64
        %v8046 = vpop.permute.xlu0 %8045
        %8047 = vrot.lane.b32.xlu0 %v7979, 64
        %v8048 = vpop.permute.xlu0 %8047
        %8049 = vrot.lane.b32.xlu0 %v7980, 64
        %v8050 = vpop.permute.xlu0 %8049
        %8051 = vrot.lane.b32.xlu0 %v7981, 64
        %v8052 = vpop.permute.xlu0 %8051
        %8053 = vrot.lane.b32.xlu0 %v7982, 64
        %v8054 = vpop.permute.xlu0 %8053
        %8055 = vrot.lane.b32.xlu0 %v7983, 64
        %v8056 = vpop.permute.xlu0 %8055
        %8057 = vrot.lane.b32.xlu0 %v7984, 64
        %v8058 = vpop.permute.xlu0 %8057
        %8059 = vrot.lane.b32.xlu0 %v7985, 64
        %v8060 = vpop.permute.xlu0 %8059
        %8061 = vrot.lane.b32.xlu0 %v7986, 64
        %v8062 = vpop.permute.xlu0 %8061
        %8063 = vrot.lane.b32.xlu0 %v7987, 64
        %v8064 = vpop.permute.xlu0 %8063
        %8065 = vrot.lane.b32.xlu0 %v7988, 64
        %v8066 = vpop.permute.xlu0 %8065
        %8067 = vrot.lane.b32.xlu0 %v7989, 64
        %v8068 = vpop.permute.xlu0 %8067
        %8069 = vrot.lane.b32.xlu0 %v7990, 64
        %v8070 = vpop.permute.xlu0 %8069
        %8071 = vrot.lane.b32.xlu0 %v7991, 64
        %v8072 = vpop.permute.xlu0 %8071
        %8073 = vrot.lane.b32.xlu0 %v7992, 64
        %v8074 = vpop.permute.xlu0 %8073
        %8075 = vrot.lane.b32.xlu0 %v7993, 64
        %v8076 = vpop.permute.xlu0 %8075
        %8077 = vrot.lane.b32.xlu0 %v7994, 64
        %v8078 = vpop.permute.xlu0 %8077
        %8079 = vrot.lane.b32.xlu0 %v7995, 64
        %v8080 = vpop.permute.xlu0 %8079
        %8081 = vrot.lane.b32.xlu0 %v7996, 64
        %v8082 = vpop.permute.xlu0 %8081
        %8083 = vrot.lane.b32.xlu0 %v7997, 64
        %v8084 = vpop.permute.xlu0 %8083
        %8085 = vrot.lane.b32.xlu0 %v7998, 64
        %v8086 = vpop.permute.xlu0 %8085
        %8087 = vrot.lane.b32.xlu0 %v7999, 64
        %v8088 = vpop.permute.xlu0 %8087
        %8089 = vrot.lane.b32.xlu0 %v8000, 64
        %v8090 = vpop.permute.xlu0 %8089
        %8091 = vrot.lane.b32.xlu0 %v8001, 64
        %v8092 = vpop.permute.xlu0 %8091
        %8093 = vrot.lane.b32.xlu0 %v8002, 64
        %v8094 = vpop.permute.xlu0 %8093
        %8095 = vrot.lane.b32.xlu0 %v8003, 64
        %v8096 = vpop.permute.xlu0 %8095
        %8097 = vrot.lane.b32.xlu0 %v8004, 64
        %v8098 = vpop.permute.xlu0 %8097
        %8099 = vrot.lane.b32.xlu0 %v8005, 64
        %v8100 = vpop.permute.xlu0 %8099
        %8101 = vrot.lane.b32.xlu0 %v8006, 64
        %v8102 = vpop.permute.xlu0 %8101
        %8135 = vst.msk [vmem:[#allocation3 + $0x8] sm:$0xff] %vm3969, %v8040
        %8136 = vst.msk [vmem:[#allocation3 + $0x18] sm:$0xff] %vm3969, %v8042
        %8137 = vst.msk [vmem:[#allocation3 + $0x28] sm:$0xff] %vm3969, %v8044
        %8138 = vst.msk [vmem:[#allocation3 + $0x38] sm:$0xff] %vm3969, %v8046
        %8139 = vst.msk [vmem:[#allocation3 + $0x48] sm:$0xff] %vm3969, %v8048
        %8140 = vst.msk [vmem:[#allocation3 + $0x58] sm:$0xff] %vm3969, %v8050
        %8141 = vst.msk [vmem:[#allocation3 + $0x68] sm:$0xff] %vm3969, %v8052
        %8142 = vst.msk [vmem:[#allocation3 + $0x78] sm:$0xff] %vm3969, %v8054
        %8143 = vst.msk [vmem:[#allocation3 + $0x88] sm:$0xff] %vm3969, %v8056
        %8144 = vst.msk [vmem:[#allocation3 + $0x98] sm:$0xff] %vm3969, %v8058
        %8145 = vst.msk [vmem:[#allocation3 + $0xa8] sm:$0xff] %vm3969, %v8060
        %8146 = vst.msk [vmem:[#allocation3 + $0xb8] sm:$0xff] %vm3969, %v8062
        %8147 = vst.msk [vmem:[#allocation3 + $0xc8] sm:$0xff] %vm3969, %v8064
        %8148 = vst.msk [vmem:[#allocation3 + $0xd8] sm:$0xff] %vm3969, %v8066
        %8149 = vst.msk [vmem:[#allocation3 + $0xe8] sm:$0xff] %vm3969, %v8068
        %8150 = vst.msk [vmem:[#allocation3 + $0xf8] sm:$0xff] %vm3969, %v8070
        %8151 = vst.msk [vmem:[#allocation3 + $0x108] sm:$0xff] %vm3969, %v8072
        %8152 = vst.msk [vmem:[#allocation3 + $0x118] sm:$0xff] %vm3969, %v8074
        %8153 = vst.msk [vmem:[#allocation3 + $0x128] sm:$0xff] %vm3969, %v8076
        %8154 = vst.msk [vmem:[#allocation3 + $0x138] sm:$0xff] %vm3969, %v8078
        %8155 = vst.msk [vmem:[#allocation3 + $0x148] sm:$0xff] %vm3969, %v8080
        %8156 = vst.msk [vmem:[#allocation3 + $0x158] sm:$0xff] %vm3969, %v8082
        %8157 = vst.msk [vmem:[#allocation3 + $0x168] sm:$0xff] %vm3969, %v8084
        %8158 = vst.msk [vmem:[#allocation3 + $0x178] sm:$0xff] %vm3969, %v8086
        %8159 = vst.msk [vmem:[#allocation3 + $0x188] sm:$0xff] %vm3969, %v8088
        %8160 = vst.msk [vmem:[#allocation3 + $0x198] sm:$0xff] %vm3969, %v8090
        %8161 = vst.msk [vmem:[#allocation3 + $0x1a8] sm:$0xff] %vm3969, %v8092
        %8162 = vst.msk [vmem:[#allocation3 + $0x1b8] sm:$0xff] %vm3969, %v8094
        %8163 = vst.msk [vmem:[#allocation3 + $0x1c8] sm:$0xff] %vm3969, %v8096
        %8164 = vst.msk [vmem:[#allocation3 + $0x1d8] sm:$0xff] %vm3969, %v8098
        %8165 = vst.msk [vmem:[#allocation3 + $0x1e8] sm:$0xff] %vm3969, %v8100
        %8166 = vst.msk [vmem:[#allocation3 + $0x1f8] sm:$0xff] %vm3969, %v8102
        %v8167 = vld [vmem:[%s445 + $0x2] sm:$0xff]
        %v8168 = vld [vmem:[%s445 + $0xa] sm:$0xff]
        %v8169 = vld [vmem:[%s445 + $0x1a] sm:$0xff]
        %v8170 = vld [vmem:[%s445 + $0x22] sm:$0xff]
        %v8171 = vld [vmem:[%s445 + $0x32] sm:$0xff]
        %v8172 = vld [vmem:[%s445 + $0x3a] sm:$0xff]
        %v8173 = vld [vmem:[%s445 + $0x4a] sm:$0xff]
        %v8174 = vld [vmem:[%s445 + $0x52] sm:$0xff]
        %v8175 = vld [vmem:[%s445 + $0x62] sm:$0xff]
        %v8176 = vld [vmem:[%s445 + $0x6a] sm:$0xff]
        %v8177 = vld [vmem:[%s445 + $0x7a] sm:$0xff]
        %v8178 = vld [vmem:[%s445 + $0x82] sm:$0xff]
        %v8179 = vld [vmem:[%s445 + $0x92] sm:$0xff]
        %v8180 = vld [vmem:[%s445 + $0x9a] sm:$0xff]
        %v8181 = vld [vmem:[%s445 + $0xaa] sm:$0xff]
        %v8182 = vld [vmem:[%s445 + $0xb2] sm:$0xff]
        %v8183 = vld [vmem:[%s445 + $0xc2] sm:$0xff]
        %v8184 = vld [vmem:[%s445 + $0xca] sm:$0xff]
        %v8185 = vld [vmem:[%s445 + $0xda] sm:$0xff]
        %v8186 = vld [vmem:[%s445 + $0xe2] sm:$0xff]
        %v8187 = vld [vmem:[%s445 + $0xf2] sm:$0xff]
        %v8188 = vld [vmem:[%s445 + $0xfa] sm:$0xff]
        %v8189 = vld [vmem:[%s445 + $0x10a] sm:$0xff]
        %v8190 = vld [vmem:[%s445 + $0x112] sm:$0xff]
        %v8191 = vld [vmem:[%s445 + $0x122] sm:$0xff]
        %v8192 = vld [vmem:[%s445 + $0x12a] sm:$0xff]
        %v8193 = vld [vmem:[%s445 + $0x13a] sm:$0xff]
        %v8194 = vld [vmem:[%s445 + $0x142] sm:$0xff]
        %v8195 = vld [vmem:[%s445 + $0x152] sm:$0xff]
        %v8196 = vld [vmem:[%s445 + $0x15a] sm:$0xff]
        %v8197 = vld [vmem:[%s445 + $0x16a] sm:$0xff]
        %v8198 = vld [vmem:[%s445 + $0x172] sm:$0xff]
        %8231 = vrot.lane.b32.xlu0 %v8167, 72
        %v8232 = vpop.permute.xlu0 %8231
        %8233 = vrot.lane.b32.xlu0 %v8168, 72
        %v8234 = vpop.permute.xlu0 %8233
        %8235 = vrot.lane.b32.xlu0 %v8169, 72
        %v8236 = vpop.permute.xlu0 %8235
        %8237 = vrot.lane.b32.xlu0 %v8170, 72
        %v8238 = vpop.permute.xlu0 %8237
        %8239 = vrot.lane.b32.xlu0 %v8171, 72
        %v8240 = vpop.permute.xlu0 %8239
        %8241 = vrot.lane.b32.xlu0 %v8172, 72
        %v8242 = vpop.permute.xlu0 %8241
        %8243 = vrot.lane.b32.xlu0 %v8173, 72
        %v8244 = vpop.permute.xlu0 %8243
        %8245 = vrot.lane.b32.xlu0 %v8174, 72
        %v8246 = vpop.permute.xlu0 %8245
        %8247 = vrot.lane.b32.xlu0 %v8175, 72
        %v8248 = vpop.permute.xlu0 %8247
        %8249 = vrot.lane.b32.xlu0 %v8176, 72
        %v8250 = vpop.permute.xlu0 %8249
        %8251 = vrot.lane.b32.xlu0 %v8177, 72
        %v8252 = vpop.permute.xlu0 %8251
        %8253 = vrot.lane.b32.xlu0 %v8178, 72
        %v8254 = vpop.permute.xlu0 %8253
        %8255 = vrot.lane.b32.xlu0 %v8179, 72
        %v8256 = vpop.permute.xlu0 %8255
        %8257 = vrot.lane.b32.xlu0 %v8180, 72
        %v8258 = vpop.permute.xlu0 %8257
        %8259 = vrot.lane.b32.xlu0 %v8181, 72
        %v8260 = vpop.permute.xlu0 %8259
        %8261 = vrot.lane.b32.xlu0 %v8182, 72
        %v8262 = vpop.permute.xlu0 %8261
        %8263 = vrot.lane.b32.xlu0 %v8183, 72
        %v8264 = vpop.permute.xlu0 %8263
        %8265 = vrot.lane.b32.xlu0 %v8184, 72
        %v8266 = vpop.permute.xlu0 %8265
        %8267 = vrot.lane.b32.xlu0 %v8185, 72
        %v8268 = vpop.permute.xlu0 %8267
        %8269 = vrot.lane.b32.xlu0 %v8186, 72
        %v8270 = vpop.permute.xlu0 %8269
        %8271 = vrot.lane.b32.xlu0 %v8187, 72
        %v8272 = vpop.permute.xlu0 %8271
        %8273 = vrot.lane.b32.xlu0 %v8188, 72
        %v8274 = vpop.permute.xlu0 %8273
        %8275 = vrot.lane.b32.xlu0 %v8189, 72
        %v8276 = vpop.permute.xlu0 %8275
        %8277 = vrot.lane.b32.xlu0 %v8190, 72
        %v8278 = vpop.permute.xlu0 %8277
        %8279 = vrot.lane.b32.xlu0 %v8191, 72
        %v8280 = vpop.permute.xlu0 %8279
        %8281 = vrot.lane.b32.xlu0 %v8192, 72
        %v8282 = vpop.permute.xlu0 %8281
        %8283 = vrot.lane.b32.xlu0 %v8193, 72
        %v8284 = vpop.permute.xlu0 %8283
        %8285 = vrot.lane.b32.xlu0 %v8194, 72
        %v8286 = vpop.permute.xlu0 %8285
        %8287 = vrot.lane.b32.xlu0 %v8195, 72
        %v8288 = vpop.permute.xlu0 %8287
        %8289 = vrot.lane.b32.xlu0 %v8196, 72
        %v8290 = vpop.permute.xlu0 %8289
        %8291 = vrot.lane.b32.xlu0 %v8197, 72
        %v8292 = vpop.permute.xlu0 %8291
        %8293 = vrot.lane.b32.xlu0 %v8198, 72
        %v8294 = vpop.permute.xlu0 %8293
        %8327 = vst.msk [vmem:[#allocation3 + $0x8] sm:$0xff] %vm4162, %v8232
        %8328 = vst.msk [vmem:[#allocation3 + $0x18] sm:$0xff] %vm4162, %v8234
        %8329 = vst.msk [vmem:[#allocation3 + $0x28] sm:$0xff] %vm4162, %v8236
        %8330 = vst.msk [vmem:[#allocation3 + $0x38] sm:$0xff] %vm4162, %v8238
        %8331 = vst.msk [vmem:[#allocation3 + $0x48] sm:$0xff] %vm4162, %v8240
        %8332 = vst.msk [vmem:[#allocation3 + $0x58] sm:$0xff] %vm4162, %v8242
        %8333 = vst.msk [vmem:[#allocation3 + $0x68] sm:$0xff] %vm4162, %v8244
        %8334 = vst.msk [vmem:[#allocation3 + $0x78] sm:$0xff] %vm4162, %v8246
        %8335 = vst.msk [vmem:[#allocation3 + $0x88] sm:$0xff] %vm4162, %v8248
        %8336 = vst.msk [vmem:[#allocation3 + $0x98] sm:$0xff] %vm4162, %v8250
        %8337 = vst.msk [vmem:[#allocation3 + $0xa8] sm:$0xff] %vm4162, %v8252
        %8338 = vst.msk [vmem:[#allocation3 + $0xb8] sm:$0xff] %vm4162, %v8254
        %8339 = vst.msk [vmem:[#allocation3 + $0xc8] sm:$0xff] %vm4162, %v8256
        %8340 = vst.msk [vmem:[#allocation3 + $0xd8] sm:$0xff] %vm4162, %v8258
        %8341 = vst.msk [vmem:[#allocation3 + $0xe8] sm:$0xff] %vm4162, %v8260
        %8342 = vst.msk [vmem:[#allocation3 + $0xf8] sm:$0xff] %vm4162, %v8262
        %8343 = vst.msk [vmem:[#allocation3 + $0x108] sm:$0xff] %vm4162, %v8264
        %8344 = vst.msk [vmem:[#allocation3 + $0x118] sm:$0xff] %vm4162, %v8266
        %8345 = vst.msk [vmem:[#allocation3 + $0x128] sm:$0xff] %vm4162, %v8268
        %8346 = vst.msk [vmem:[#allocation3 + $0x138] sm:$0xff] %vm4162, %v8270
        %8347 = vst.msk [vmem:[#allocation3 + $0x148] sm:$0xff] %vm4162, %v8272
        %8348 = vst.msk [vmem:[#allocation3 + $0x158] sm:$0xff] %vm4162, %v8274
        %8349 = vst.msk [vmem:[#allocation3 + $0x168] sm:$0xff] %vm4162, %v8276
        %8350 = vst.msk [vmem:[#allocation3 + $0x178] sm:$0xff] %vm4162, %v8278
        %8351 = vst.msk [vmem:[#allocation3 + $0x188] sm:$0xff] %vm4162, %v8280
        %8352 = vst.msk [vmem:[#allocation3 + $0x198] sm:$0xff] %vm4162, %v8282
        %8353 = vst.msk [vmem:[#allocation3 + $0x1a8] sm:$0xff] %vm4162, %v8284
        %8354 = vst.msk [vmem:[#allocation3 + $0x1b8] sm:$0xff] %vm4162, %v8286
        %8355 = vst.msk [vmem:[#allocation3 + $0x1c8] sm:$0xff] %vm4162, %v8288
        %8356 = vst.msk [vmem:[#allocation3 + $0x1d8] sm:$0xff] %vm4162, %v8290
        %8357 = vst.msk [vmem:[#allocation3 + $0x1e8] sm:$0xff] %vm4162, %v8292
        %8358 = vst.msk [vmem:[#allocation3 + $0x1f8] sm:$0xff] %vm4162, %v8294
        %v8359 = vld [vmem:[%s1508] sm:$0xff]
        %v8360 = vld [vmem:[%s1508 + $0x8] sm:$0xff]
        %v8361 = vld [vmem:[%s1508 + $0x18] sm:$0xff]
        %v8362 = vld [vmem:[%s1508 + $0x20] sm:$0xff]
        %v8363 = vld [vmem:[%s1508 + $0x30] sm:$0xff]
        %v8364 = vld [vmem:[%s1508 + $0x38] sm:$0xff]
        %v8365 = vld [vmem:[%s1508 + $0x48] sm:$0xff]
        %v8366 = vld [vmem:[%s1508 + $0x50] sm:$0xff]
        %v8367 = vld [vmem:[%s1508 + $0x60] sm:$0xff]
        %v8368 = vld [vmem:[%s1508 + $0x68] sm:$0xff]
        %v8369 = vld [vmem:[%s1508 + $0x78] sm:$0xff]
        %v8370 = vld [vmem:[%s1508 + $0x80] sm:$0xff]
        %v8371 = vld [vmem:[%s1508 + $0x90] sm:$0xff]
        %v8372 = vld [vmem:[%s1508 + $0x98] sm:$0xff]
        %v8373 = vld [vmem:[%s1508 + $0xa8] sm:$0xff]
        %v8374 = vld [vmem:[%s1508 + $0xb0] sm:$0xff]
        %v8375 = vld [vmem:[%s1508 + $0xc0] sm:$0xff]
        %v8376 = vld [vmem:[%s1508 + $0xc8] sm:$0xff]
        %v8377 = vld [vmem:[%s1508 + $0xd8] sm:$0xff]
        %v8378 = vld [vmem:[%s1508 + $0xe0] sm:$0xff]
        %v8379 = vld [vmem:[%s1508 + $0xf0] sm:$0xff]
        %v8380 = vld [vmem:[%s1508 + $0xf8] sm:$0xff]
        %v8381 = vld [vmem:[%s1508 + $0x108] sm:$0xff]
        %v8382 = vld [vmem:[%s1508 + $0x110] sm:$0xff]
        %v8383 = vld [vmem:[%s1508 + $0x120] sm:$0xff]
        %v8384 = vld [vmem:[%s1508 + $0x128] sm:$0xff]
        %v8385 = vld [vmem:[%s1508 + $0x138] sm:$0xff]
        %v8386 = vld [vmem:[%s1508 + $0x140] sm:$0xff]
        %v8387 = vld [vmem:[%s1508 + $0x150] sm:$0xff]
        %v8388 = vld [vmem:[%s1508 + $0x158] sm:$0xff]
        %v8389 = vld [vmem:[%s1508 + $0x168] sm:$0xff]
        %v8390 = vld [vmem:[%s1508 + $0x170] sm:$0xff]
        %8423 = vrot.lane.b32.xlu0 %v8359, 80
        %v8424 = vpop.permute.xlu0 %8423
        %8425 = vrot.lane.b32.xlu0 %v8360, 80
        %v8426 = vpop.permute.xlu0 %8425
        %8427 = vrot.lane.b32.xlu0 %v8361, 80
        %v8428 = vpop.permute.xlu0 %8427
        %8429 = vrot.lane.b32.xlu0 %v8362, 80
        %v8430 = vpop.permute.xlu0 %8429
        %8431 = vrot.lane.b32.xlu0 %v8363, 80
        %v8432 = vpop.permute.xlu0 %8431
        %8433 = vrot.lane.b32.xlu0 %v8364, 80
        %v8434 = vpop.permute.xlu0 %8433
        %8435 = vrot.lane.b32.xlu0 %v8365, 80
        %v8436 = vpop.permute.xlu0 %8435
        %8437 = vrot.lane.b32.xlu0 %v8366, 80
        %v8438 = vpop.permute.xlu0 %8437
        %8439 = vrot.lane.b32.xlu0 %v8367, 80
        %v8440 = vpop.permute.xlu0 %8439
        %8441 = vrot.lane.b32.xlu0 %v8368, 80
        %v8442 = vpop.permute.xlu0 %8441
        %8443 = vrot.lane.b32.xlu0 %v8369, 80
        %v8444 = vpop.permute.xlu0 %8443
        %8445 = vrot.lane.b32.xlu0 %v8370, 80
        %v8446 = vpop.permute.xlu0 %8445
        %8447 = vrot.lane.b32.xlu0 %v8371, 80
        %v8448 = vpop.permute.xlu0 %8447
        %8449 = vrot.lane.b32.xlu0 %v8372, 80
        %v8450 = vpop.permute.xlu0 %8449
        %8451 = vrot.lane.b32.xlu0 %v8373, 80
        %v8452 = vpop.permute.xlu0 %8451
        %8453 = vrot.lane.b32.xlu0 %v8374, 80
        %v8454 = vpop.permute.xlu0 %8453
        %8455 = vrot.lane.b32.xlu0 %v8375, 80
        %v8456 = vpop.permute.xlu0 %8455
        %8457 = vrot.lane.b32.xlu0 %v8376, 80
        %v8458 = vpop.permute.xlu0 %8457
        %8459 = vrot.lane.b32.xlu0 %v8377, 80
        %v8460 = vpop.permute.xlu0 %8459
        %8461 = vrot.lane.b32.xlu0 %v8378, 80
        %v8462 = vpop.permute.xlu0 %8461
        %8463 = vrot.lane.b32.xlu0 %v8379, 80
        %v8464 = vpop.permute.xlu0 %8463
        %8465 = vrot.lane.b32.xlu0 %v8380, 80
        %v8466 = vpop.permute.xlu0 %8465
        %8467 = vrot.lane.b32.xlu0 %v8381, 80
        %v8468 = vpop.permute.xlu0 %8467
        %8469 = vrot.lane.b32.xlu0 %v8382, 80
        %v8470 = vpop.permute.xlu0 %8469
        %8471 = vrot.lane.b32.xlu0 %v8383, 80
        %v8472 = vpop.permute.xlu0 %8471
        %8473 = vrot.lane.b32.xlu0 %v8384, 80
        %v8474 = vpop.permute.xlu0 %8473
        %8475 = vrot.lane.b32.xlu0 %v8385, 80
        %v8476 = vpop.permute.xlu0 %8475
        %8477 = vrot.lane.b32.xlu0 %v8386, 80
        %v8478 = vpop.permute.xlu0 %8477
        %8479 = vrot.lane.b32.xlu0 %v8387, 80
        %v8480 = vpop.permute.xlu0 %8479
        %8481 = vrot.lane.b32.xlu0 %v8388, 80
        %v8482 = vpop.permute.xlu0 %8481
        %8483 = vrot.lane.b32.xlu0 %v8389, 80
        %v8484 = vpop.permute.xlu0 %8483
        %8485 = vrot.lane.b32.xlu0 %v8390, 80
        %v8486 = vpop.permute.xlu0 %8485
        %8519 = vst.msk [vmem:[#allocation3 + $0x8] sm:$0xff] %vm4355, %v8424
        %8520 = vst.msk [vmem:[#allocation3 + $0x18] sm:$0xff] %vm4355, %v8426
        %8521 = vst.msk [vmem:[#allocation3 + $0x28] sm:$0xff] %vm4355, %v8428
        %8522 = vst.msk [vmem:[#allocation3 + $0x38] sm:$0xff] %vm4355, %v8430
        %8523 = vst.msk [vmem:[#allocation3 + $0x48] sm:$0xff] %vm4355, %v8432
        %8524 = vst.msk [vmem:[#allocation3 + $0x58] sm:$0xff] %vm4355, %v8434
        %8525 = vst.msk [vmem:[#allocation3 + $0x68] sm:$0xff] %vm4355, %v8436
        %8526 = vst.msk [vmem:[#allocation3 + $0x78] sm:$0xff] %vm4355, %v8438
        %8527 = vst.msk [vmem:[#allocation3 + $0x88] sm:$0xff] %vm4355, %v8440
        %8528 = vst.msk [vmem:[#allocation3 + $0x98] sm:$0xff] %vm4355, %v8442
        %8529 = vst.msk [vmem:[#allocation3 + $0xa8] sm:$0xff] %vm4355, %v8444
        %8530 = vst.msk [vmem:[#allocation3 + $0xb8] sm:$0xff] %vm4355, %v8446
        %8531 = vst.msk [vmem:[#allocation3 + $0xc8] sm:$0xff] %vm4355, %v8448
        %8532 = vst.msk [vmem:[#allocation3 + $0xd8] sm:$0xff] %vm4355, %v8450
        %8533 = vst.msk [vmem:[#allocation3 + $0xe8] sm:$0xff] %vm4355, %v8452
        %8534 = vst.msk [vmem:[#allocation3 + $0xf8] sm:$0xff] %vm4355, %v8454
        %8535 = vst.msk [vmem:[#allocation3 + $0x108] sm:$0xff] %vm4355, %v8456
        %8536 = vst.msk [vmem:[#allocation3 + $0x118] sm:$0xff] %vm4355, %v8458
        %8537 = vst.msk [vmem:[#allocation3 + $0x128] sm:$0xff] %vm4355, %v8460
        %8538 = vst.msk [vmem:[#allocation3 + $0x138] sm:$0xff] %vm4355, %v8462
        %8539 = vst.msk [vmem:[#allocation3 + $0x148] sm:$0xff] %vm4355, %v8464
        %8540 = vst.msk [vmem:[#allocation3 + $0x158] sm:$0xff] %vm4355, %v8466
        %8541 = vst.msk [vmem:[#allocation3 + $0x168] sm:$0xff] %vm4355, %v8468
        %8542 = vst.msk [vmem:[#allocation3 + $0x178] sm:$0xff] %vm4355, %v8470
        %8543 = vst.msk [vmem:[#allocation3 + $0x188] sm:$0xff] %vm4355, %v8472
        %8544 = vst.msk [vmem:[#allocation3 + $0x198] sm:$0xff] %vm4355, %v8474
        %8545 = vst.msk [vmem:[#allocation3 + $0x1a8] sm:$0xff] %vm4355, %v8476
        %8546 = vst.msk [vmem:[#allocation3 + $0x1b8] sm:$0xff] %vm4355, %v8478
        %8547 = vst.msk [vmem:[#allocation3 + $0x1c8] sm:$0xff] %vm4355, %v8480
        %8548 = vst.msk [vmem:[#allocation3 + $0x1d8] sm:$0xff] %vm4355, %v8482
        %8549 = vst.msk [vmem:[#allocation3 + $0x1e8] sm:$0xff] %vm4355, %v8484
        %8550 = vst.msk [vmem:[#allocation3 + $0x1f8] sm:$0xff] %vm4355, %v8486
        %v8551 = vld [vmem:[%s1508 + $0x1] sm:$0xff]
        %v8552 = vld [vmem:[%s1508 + $0x9] sm:$0xff]
        %v8553 = vld [vmem:[%s1508 + $0x19] sm:$0xff]
        %v8554 = vld [vmem:[%s1508 + $0x21] sm:$0xff]
        %v8555 = vld [vmem:[%s1508 + $0x31] sm:$0xff]
        %v8556 = vld [vmem:[%s1508 + $0x39] sm:$0xff]
        %v8557 = vld [vmem:[%s1508 + $0x49] sm:$0xff]
        %v8558 = vld [vmem:[%s1508 + $0x51] sm:$0xff]
        %v8559 = vld [vmem:[%s1508 + $0x61] sm:$0xff]
        %v8560 = vld [vmem:[%s1508 + $0x69] sm:$0xff]
        %v8561 = vld [vmem:[%s1508 + $0x79] sm:$0xff]
        %v8562 = vld [vmem:[%s1508 + $0x81] sm:$0xff]
        %v8563 = vld [vmem:[%s1508 + $0x91] sm:$0xff]
        %v8564 = vld [vmem:[%s1508 + $0x99] sm:$0xff]
        %v8565 = vld [vmem:[%s1508 + $0xa9] sm:$0xff]
        %v8566 = vld [vmem:[%s1508 + $0xb1] sm:$0xff]
        %v8567 = vld [vmem:[%s1508 + $0xc1] sm:$0xff]
        %v8568 = vld [vmem:[%s1508 + $0xc9] sm:$0xff]
        %v8569 = vld [vmem:[%s1508 + $0xd9] sm:$0xff]
        %v8570 = vld [vmem:[%s1508 + $0xe1] sm:$0xff]
        %v8571 = vld [vmem:[%s1508 + $0xf1] sm:$0xff]
        %v8572 = vld [vmem:[%s1508 + $0xf9] sm:$0xff]
        %v8573 = vld [vmem:[%s1508 + $0x109] sm:$0xff]
        %v8574 = vld [vmem:[%s1508 + $0x111] sm:$0xff]
        %v8575 = vld [vmem:[%s1508 + $0x121] sm:$0xff]
        %v8576 = vld [vmem:[%s1508 + $0x129] sm:$0xff]
        %v8577 = vld [vmem:[%s1508 + $0x139] sm:$0xff]
        %v8578 = vld [vmem:[%s1508 + $0x141] sm:$0xff]
        %v8579 = vld [vmem:[%s1508 + $0x151] sm:$0xff]
        %v8580 = vld [vmem:[%s1508 + $0x159] sm:$0xff]
        %v8581 = vld [vmem:[%s1508 + $0x169] sm:$0xff]
        %v8582 = vld [vmem:[%s1508 + $0x171] sm:$0xff]
        %8615 = vrot.lane.b32.xlu0 %v8551, 88
        %v8616 = vpop.permute.xlu0 %8615
        %8617 = vrot.lane.b32.xlu0 %v8552, 88
        %v8618 = vpop.permute.xlu0 %8617
        %8619 = vrot.lane.b32.xlu0 %v8553, 88
        %v8620 = vpop.permute.xlu0 %8619
        %8621 = vrot.lane.b32.xlu0 %v8554, 88
        %v8622 = vpop.permute.xlu0 %8621
        %8623 = vrot.lane.b32.xlu0 %v8555, 88
        %v8624 = vpop.permute.xlu0 %8623
        %8625 = vrot.lane.b32.xlu0 %v8556, 88
        %v8626 = vpop.permute.xlu0 %8625
        %8627 = vrot.lane.b32.xlu0 %v8557, 88
        %v8628 = vpop.permute.xlu0 %8627
        %8629 = vrot.lane.b32.xlu0 %v8558, 88
        %v8630 = vpop.permute.xlu0 %8629
        %8631 = vrot.lane.b32.xlu0 %v8559, 88
        %v8632 = vpop.permute.xlu0 %8631
        %8633 = vrot.lane.b32.xlu0 %v8560, 88
        %v8634 = vpop.permute.xlu0 %8633
        %8635 = vrot.lane.b32.xlu0 %v8561, 88
        %v8636 = vpop.permute.xlu0 %8635
        %8637 = vrot.lane.b32.xlu0 %v8562, 88
        %v8638 = vpop.permute.xlu0 %8637
        %8639 = vrot.lane.b32.xlu0 %v8563, 88
        %v8640 = vpop.permute.xlu0 %8639
        %8641 = vrot.lane.b32.xlu0 %v8564, 88
        %v8642 = vpop.permute.xlu0 %8641
        %8643 = vrot.lane.b32.xlu0 %v8565, 88
        %v8644 = vpop.permute.xlu0 %8643
        %8645 = vrot.lane.b32.xlu0 %v8566, 88
        %v8646 = vpop.permute.xlu0 %8645
        %8647 = vrot.lane.b32.xlu0 %v8567, 88
        %v8648 = vpop.permute.xlu0 %8647
        %8649 = vrot.lane.b32.xlu0 %v8568, 88
        %v8650 = vpop.permute.xlu0 %8649
        %8651 = vrot.lane.b32.xlu0 %v8569, 88
        %v8652 = vpop.permute.xlu0 %8651
        %8653 = vrot.lane.b32.xlu0 %v8570, 88
        %v8654 = vpop.permute.xlu0 %8653
        %8655 = vrot.lane.b32.xlu0 %v8571, 88
        %v8656 = vpop.permute.xlu0 %8655
        %8657 = vrot.lane.b32.xlu0 %v8572, 88
        %v8658 = vpop.permute.xlu0 %8657
        %8659 = vrot.lane.b32.xlu0 %v8573, 88
        %v8660 = vpop.permute.xlu0 %8659
        %8661 = vrot.lane.b32.xlu0 %v8574, 88
        %v8662 = vpop.permute.xlu0 %8661
        %8663 = vrot.lane.b32.xlu0 %v8575, 88
        %v8664 = vpop.permute.xlu0 %8663
        %8665 = vrot.lane.b32.xlu0 %v8576, 88
        %v8666 = vpop.permute.xlu0 %8665
        %8667 = vrot.lane.b32.xlu0 %v8577, 88
        %v8668 = vpop.permute.xlu0 %8667
        %8669 = vrot.lane.b32.xlu0 %v8578, 88
        %v8670 = vpop.permute.xlu0 %8669
        %8671 = vrot.lane.b32.xlu0 %v8579, 88
        %v8672 = vpop.permute.xlu0 %8671
        %8673 = vrot.lane.b32.xlu0 %v8580, 88
        %v8674 = vpop.permute.xlu0 %8673
        %8675 = vrot.lane.b32.xlu0 %v8581, 88
        %v8676 = vpop.permute.xlu0 %8675
        %8677 = vrot.lane.b32.xlu0 %v8582, 88
        %v8678 = vpop.permute.xlu0 %8677
        %8711 = vst.msk [vmem:[#allocation3 + $0x8] sm:$0xff] %vm5119, %v8616
        %8712 = vst.msk [vmem:[#allocation3 + $0x18] sm:$0xff] %vm5119, %v8618
        %8713 = vst.msk [vmem:[#allocation3 + $0x28] sm:$0xff] %vm5119, %v8620
        %8714 = vst.msk [vmem:[#allocation3 + $0x38] sm:$0xff] %vm5119, %v8622
        %8715 = vst.msk [vmem:[#allocation3 + $0x48] sm:$0xff] %vm5119, %v8624
        %8716 = vst.msk [vmem:[#allocation3 + $0x58] sm:$0xff] %vm5119, %v8626
        %8717 = vst.msk [vmem:[#allocation3 + $0x68] sm:$0xff] %vm5119, %v8628
        %8718 = vst.msk [vmem:[#allocation3 + $0x78] sm:$0xff] %vm5119, %v8630
        %8719 = vst.msk [vmem:[#allocation3 + $0x88] sm:$0xff] %vm5119, %v8632
        %8720 = vst.msk [vmem:[#allocation3 + $0x98] sm:$0xff] %vm5119, %v8634
        %8721 = vst.msk [vmem:[#allocation3 + $0xa8] sm:$0xff] %vm5119, %v8636
        %8722 = vst.msk [vmem:[#allocation3 + $0xb8] sm:$0xff] %vm5119, %v8638
        %8723 = vst.msk [vmem:[#allocation3 + $0xc8] sm:$0xff] %vm5119, %v8640
        %8724 = vst.msk [vmem:[#allocation3 + $0xd8] sm:$0xff] %vm5119, %v8642
        %8725 = vst.msk [vmem:[#allocation3 + $0xe8] sm:$0xff] %vm5119, %v8644
        %8726 = vst.msk [vmem:[#allocation3 + $0xf8] sm:$0xff] %vm5119, %v8646
        %8727 = vst.msk [vmem:[#allocation3 + $0x108] sm:$0xff] %vm5119, %v8648
        %8728 = vst.msk [vmem:[#allocation3 + $0x118] sm:$0xff] %vm5119, %v8650
        %8729 = vst.msk [vmem:[#allocation3 + $0x128] sm:$0xff] %vm5119, %v8652
        %8730 = vst.msk [vmem:[#allocation3 + $0x138] sm:$0xff] %vm5119, %v8654
        %8731 = vst.msk [vmem:[#allocation3 + $0x148] sm:$0xff] %vm5119, %v8656
        %8732 = vst.msk [vmem:[#allocation3 + $0x158] sm:$0xff] %vm5119, %v8658
        %8733 = vst.msk [vmem:[#allocation3 + $0x168] sm:$0xff] %vm5119, %v8660
        %8734 = vst.msk [vmem:[#allocation3 + $0x178] sm:$0xff] %vm5119, %v8662
        %8735 = vst.msk [vmem:[#allocation3 + $0x188] sm:$0xff] %vm5119, %v8664
        %8736 = vst.msk [vmem:[#allocation3 + $0x198] sm:$0xff] %vm5119, %v8666
        %8737 = vst.msk [vmem:[#allocation3 + $0x1a8] sm:$0xff] %vm5119, %v8668
        %8738 = vst.msk [vmem:[#allocation3 + $0x1b8] sm:$0xff] %vm5119, %v8670
        %8739 = vst.msk [vmem:[#allocation3 + $0x1c8] sm:$0xff] %vm5119, %v8672
        %8740 = vst.msk [vmem:[#allocation3 + $0x1d8] sm:$0xff] %vm5119, %v8674
        %8741 = vst.msk [vmem:[#allocation3 + $0x1e8] sm:$0xff] %vm5119, %v8676
        %8742 = vst.msk [vmem:[#allocation3 + $0x1f8] sm:$0xff] %vm5119, %v8678
        %v8743 = vld [vmem:[%s1508 + $0x2] sm:$0xff]
        %v8744 = vld [vmem:[%s1508 + $0xa] sm:$0xff]
        %v8745 = vld [vmem:[%s1508 + $0x1a] sm:$0xff]
        %v8746 = vld [vmem:[%s1508 + $0x22] sm:$0xff]
        %v8747 = vld [vmem:[%s1508 + $0x32] sm:$0xff]
        %v8748 = vld [vmem:[%s1508 + $0x3a] sm:$0xff]
        %v8749 = vld [vmem:[%s1508 + $0x4a] sm:$0xff]
        %v8750 = vld [vmem:[%s1508 + $0x52] sm:$0xff]
        %v8751 = vld [vmem:[%s1508 + $0x62] sm:$0xff]
        %v8752 = vld [vmem:[%s1508 + $0x6a] sm:$0xff]
        %v8753 = vld [vmem:[%s1508 + $0x7a] sm:$0xff]
        %v8754 = vld [vmem:[%s1508 + $0x82] sm:$0xff]
        %v8755 = vld [vmem:[%s1508 + $0x92] sm:$0xff]
        %v8756 = vld [vmem:[%s1508 + $0x9a] sm:$0xff]
        %v8757 = vld [vmem:[%s1508 + $0xaa] sm:$0xff]
        %v8758 = vld [vmem:[%s1508 + $0xb2] sm:$0xff]
        %v8759 = vld [vmem:[%s1508 + $0xc2] sm:$0xff]
        %v8760 = vld [vmem:[%s1508 + $0xca] sm:$0xff]
        %v8761 = vld [vmem:[%s1508 + $0xda] sm:$0xff]
        %v8762 = vld [vmem:[%s1508 + $0xe2] sm:$0xff]
        %v8763 = vld [vmem:[%s1508 + $0xf2] sm:$0xff]
        %v8764 = vld [vmem:[%s1508 + $0xfa] sm:$0xff]
        %v8765 = vld [vmem:[%s1508 + $0x10a] sm:$0xff]
        %v8766 = vld [vmem:[%s1508 + $0x112] sm:$0xff]
        %v8767 = vld [vmem:[%s1508 + $0x122] sm:$0xff]
        %v8768 = vld [vmem:[%s1508 + $0x12a] sm:$0xff]
        %v8769 = vld [vmem:[%s1508 + $0x13a] sm:$0xff]
        %v8770 = vld [vmem:[%s1508 + $0x142] sm:$0xff]
        %v8771 = vld [vmem:[%s1508 + $0x152] sm:$0xff]
        %v8772 = vld [vmem:[%s1508 + $0x15a] sm:$0xff]
        %v8773 = vld [vmem:[%s1508 + $0x16a] sm:$0xff]
        %v8774 = vld [vmem:[%s1508 + $0x172] sm:$0xff]
        %8807 = vrot.lane.b32.xlu0 %v8743, 96
        %v8808 = vpop.permute.xlu0 %8807
        %8809 = vrot.lane.b32.xlu0 %v8744, 96
        %v8810 = vpop.permute.xlu0 %8809
        %8811 = vrot.lane.b32.xlu0 %v8745, 96
        %v8812 = vpop.permute.xlu0 %8811
        %8813 = vrot.lane.b32.xlu0 %v8746, 96
        %v8814 = vpop.permute.xlu0 %8813
        %8815 = vrot.lane.b32.xlu0 %v8747, 96
        %v8816 = vpop.permute.xlu0 %8815
        %8817 = vrot.lane.b32.xlu0 %v8748, 96
        %v8818 = vpop.permute.xlu0 %8817
        %8819 = vrot.lane.b32.xlu0 %v8749, 96
        %v8820 = vpop.permute.xlu0 %8819
        %8821 = vrot.lane.b32.xlu0 %v8750, 96
        %v8822 = vpop.permute.xlu0 %8821
        %8823 = vrot.lane.b32.xlu0 %v8751, 96
        %v8824 = vpop.permute.xlu0 %8823
        %8825 = vrot.lane.b32.xlu0 %v8752, 96
        %v8826 = vpop.permute.xlu0 %8825
        %8827 = vrot.lane.b32.xlu0 %v8753, 96
        %v8828 = vpop.permute.xlu0 %8827
        %8829 = vrot.lane.b32.xlu0 %v8754, 96
        %v8830 = vpop.permute.xlu0 %8829
        %8831 = vrot.lane.b32.xlu0 %v8755, 96
        %v8832 = vpop.permute.xlu0 %8831
        %8833 = vrot.lane.b32.xlu0 %v8756, 96
        %v8834 = vpop.permute.xlu0 %8833
        %8835 = vrot.lane.b32.xlu0 %v8757, 96
        %v8836 = vpop.permute.xlu0 %8835
        %8837 = vrot.lane.b32.xlu0 %v8758, 96
        %v8838 = vpop.permute.xlu0 %8837
        %8839 = vrot.lane.b32.xlu0 %v8759, 96
        %v8840 = vpop.permute.xlu0 %8839
        %8841 = vrot.lane.b32.xlu0 %v8760, 96
        %v8842 = vpop.permute.xlu0 %8841
        %8843 = vrot.lane.b32.xlu0 %v8761, 96
        %v8844 = vpop.permute.xlu0 %8843
        %8845 = vrot.lane.b32.xlu0 %v8762, 96
        %v8846 = vpop.permute.xlu0 %8845
        %8847 = vrot.lane.b32.xlu0 %v8763, 96
        %v8848 = vpop.permute.xlu0 %8847
        %8849 = vrot.lane.b32.xlu0 %v8764, 96
        %v8850 = vpop.permute.xlu0 %8849
        %8851 = vrot.lane.b32.xlu0 %v8765, 96
        %v8852 = vpop.permute.xlu0 %8851
        %8853 = vrot.lane.b32.xlu0 %v8766, 96
        %v8854 = vpop.permute.xlu0 %8853
        %8855 = vrot.lane.b32.xlu0 %v8767, 96
        %v8856 = vpop.permute.xlu0 %8855
        %8857 = vrot.lane.b32.xlu0 %v8768, 96
        %v8858 = vpop.permute.xlu0 %8857
        %8859 = vrot.lane.b32.xlu0 %v8769, 96
        %v8860 = vpop.permute.xlu0 %8859
        %8861 = vrot.lane.b32.xlu0 %v8770, 96
        %v8862 = vpop.permute.xlu0 %8861
        %8863 = vrot.lane.b32.xlu0 %v8771, 96
        %v8864 = vpop.permute.xlu0 %8863
        %8865 = vrot.lane.b32.xlu0 %v8772, 96
        %v8866 = vpop.permute.xlu0 %8865
        %8867 = vrot.lane.b32.xlu0 %v8773, 96
        %v8868 = vpop.permute.xlu0 %8867
        %8869 = vrot.lane.b32.xlu0 %v8774, 96
        %v8870 = vpop.permute.xlu0 %8869
        %8903 = vst.msk [vmem:[#allocation3 + $0x8] sm:$0xff] %vm5312, %v8808
        %8904 = vst.msk [vmem:[#allocation3 + $0x18] sm:$0xff] %vm5312, %v8810
        %8905 = vst.msk [vmem:[#allocation3 + $0x28] sm:$0xff] %vm5312, %v8812
        %8906 = vst.msk [vmem:[#allocation3 + $0x38] sm:$0xff] %vm5312, %v8814
        %8907 = vst.msk [vmem:[#allocation3 + $0x48] sm:$0xff] %vm5312, %v8816
        %8908 = vst.msk [vmem:[#allocation3 + $0x58] sm:$0xff] %vm5312, %v8818
        %8909 = vst.msk [vmem:[#allocation3 + $0x68] sm:$0xff] %vm5312, %v8820
        %8910 = vst.msk [vmem:[#allocation3 + $0x78] sm:$0xff] %vm5312, %v8822
        %8911 = vst.msk [vmem:[#allocation3 + $0x88] sm:$0xff] %vm5312, %v8824
        %8912 = vst.msk [vmem:[#allocation3 + $0x98] sm:$0xff] %vm5312, %v8826
        %8913 = vst.msk [vmem:[#allocation3 + $0xa8] sm:$0xff] %vm5312, %v8828
        %8914 = vst.msk [vmem:[#allocation3 + $0xb8] sm:$0xff] %vm5312, %v8830
        %8915 = vst.msk [vmem:[#allocation3 + $0xc8] sm:$0xff] %vm5312, %v8832
        %8916 = vst.msk [vmem:[#allocation3 + $0xd8] sm:$0xff] %vm5312, %v8834
        %8917 = vst.msk [vmem:[#allocation3 + $0xe8] sm:$0xff] %vm5312, %v8836
        %8918 = vst.msk [vmem:[#allocation3 + $0xf8] sm:$0xff] %vm5312, %v8838
        %8919 = vst.msk [vmem:[#allocation3 + $0x108] sm:$0xff] %vm5312, %v8840
        %8920 = vst.msk [vmem:[#allocation3 + $0x118] sm:$0xff] %vm5312, %v8842
        %8921 = vst.msk [vmem:[#allocation3 + $0x128] sm:$0xff] %vm5312, %v8844
        %8922 = vst.msk [vmem:[#allocation3 + $0x138] sm:$0xff] %vm5312, %v8846
        %8923 = vst.msk [vmem:[#allocation3 + $0x148] sm:$0xff] %vm5312, %v8848
        %8924 = vst.msk [vmem:[#allocation3 + $0x158] sm:$0xff] %vm5312, %v8850
        %8925 = vst.msk [vmem:[#allocation3 + $0x168] sm:$0xff] %vm5312, %v8852
        %8926 = vst.msk [vmem:[#allocation3 + $0x178] sm:$0xff] %vm5312, %v8854
        %8927 = vst.msk [vmem:[#allocation3 + $0x188] sm:$0xff] %vm5312, %v8856
        %8928 = vst.msk [vmem:[#allocation3 + $0x198] sm:$0xff] %vm5312, %v8858
        %8929 = vst.msk [vmem:[#allocation3 + $0x1a8] sm:$0xff] %vm5312, %v8860
        %8930 = vst.msk [vmem:[#allocation3 + $0x1b8] sm:$0xff] %vm5312, %v8862
        %8931 = vst.msk [vmem:[#allocation3 + $0x1c8] sm:$0xff] %vm5312, %v8864
        %8932 = vst.msk [vmem:[#allocation3 + $0x1d8] sm:$0xff] %vm5312, %v8866
        %8933 = vst.msk [vmem:[#allocation3 + $0x1e8] sm:$0xff] %vm5312, %v8868
        %8934 = vst.msk [vmem:[#allocation3 + $0x1f8] sm:$0xff] %vm5312, %v8870
        %v8935 = vld [vmem:[#allocation3] sm:$0xff]
        %v8936 = vld [vmem:[#allocation3 + $0x8] sm:$0xff]
        %v8937 = vld [vmem:[#allocation3 + $0x10] sm:$0xff]
        %v8938 = vld [vmem:[#allocation3 + $0x18] sm:$0xff]
        %v8939 = vld [vmem:[#allocation3 + $0x20] sm:$0xff]
        %v8940 = vld [vmem:[#allocation3 + $0x28] sm:$0xff]
        %v8941 = vld [vmem:[#allocation3 + $0x30] sm:$0xff]
        %v8942 = vld [vmem:[#allocation3 + $0x38] sm:$0xff]
        %v8943 = vld [vmem:[#allocation3 + $0x40] sm:$0xff]
        %v8944 = vld [vmem:[#allocation3 + $0x48] sm:$0xff]
        %v8945 = vld [vmem:[#allocation3 + $0x50] sm:$0xff]
        %v8946 = vld [vmem:[#allocation3 + $0x58] sm:$0xff]
        %v8947 = vld [vmem:[#allocation3 + $0x60] sm:$0xff]
        %v8948 = vld [vmem:[#allocation3 + $0x68] sm:$0xff]
        %v8949 = vld [vmem:[#allocation3 + $0x70] sm:$0xff]
        %v8950 = vld [vmem:[#allocation3 + $0x78] sm:$0xff]
        %v8951 = vld [vmem:[#allocation3 + $0x80] sm:$0xff]
        %v8952 = vld [vmem:[#allocation3 + $0x88] sm:$0xff]
        %v8953 = vld [vmem:[#allocation3 + $0x90] sm:$0xff]
        %v8954 = vld [vmem:[#allocation3 + $0x98] sm:$0xff]
        %v8955 = vld [vmem:[#allocation3 + $0xa0] sm:$0xff]
        %v8956 = vld [vmem:[#allocation3 + $0xa8] sm:$0xff]
        %v8957 = vld [vmem:[#allocation3 + $0xb0] sm:$0xff]
        %v8958 = vld [vmem:[#allocation3 + $0xb8] sm:$0xff]
        %v8959 = vld [vmem:[#allocation3 + $0xc0] sm:$0xff]
        %v8960 = vld [vmem:[#allocation3 + $0xc8] sm:$0xff]
        %v8961 = vld [vmem:[#allocation3 + $0xd0] sm:$0xff]
        %v8962 = vld [vmem:[#allocation3 + $0xd8] sm:$0xff]
        %v8963 = vld [vmem:[#allocation3 + $0xe0] sm:$0xff]
        %v8964 = vld [vmem:[#allocation3 + $0xe8] sm:$0xff]
        %v8965 = vld [vmem:[#allocation3 + $0xf0] sm:$0xff]
        %v8966 = vld [vmem:[#allocation3 + $0xf8] sm:$0xff]
        %v8967 = vld [vmem:[#allocation3 + $0x100] sm:$0xff]
        %v8968 = vld [vmem:[#allocation3 + $0x108] sm:$0xff]
        %v8969 = vld [vmem:[#allocation3 + $0x110] sm:$0xff]
        %v8970 = vld [vmem:[#allocation3 + $0x118] sm:$0xff]
        %v8971 = vld [vmem:[#allocation3 + $0x120] sm:$0xff]
        %v8972 = vld [vmem:[#allocation3 + $0x128] sm:$0xff]
        %v8973 = vld [vmem:[#allocation3 + $0x130] sm:$0xff]
        %v8974 = vld [vmem:[#allocation3 + $0x138] sm:$0xff]
        %v8975 = vld [vmem:[#allocation3 + $0x140] sm:$0xff]
        %v8976 = vld [vmem:[#allocation3 + $0x148] sm:$0xff]
        %v8977 = vld [vmem:[#allocation3 + $0x150] sm:$0xff]
        %v8978 = vld [vmem:[#allocation3 + $0x158] sm:$0xff]
        %v8979 = vld [vmem:[#allocation3 + $0x160] sm:$0xff]
        %v8980 = vld [vmem:[#allocation3 + $0x168] sm:$0xff]
        %v8981 = vld [vmem:[#allocation3 + $0x170] sm:$0xff]
        %v8982 = vld [vmem:[#allocation3 + $0x178] sm:$0xff]
        %v8983 = vld [vmem:[#allocation3 + $0x180] sm:$0xff]
        %v8984 = vld [vmem:[#allocation3 + $0x188] sm:$0xff]
        %v8985 = vld [vmem:[#allocation3 + $0x190] sm:$0xff]
        %v8986 = vld [vmem:[#allocation3 + $0x198] sm:$0xff]
        %v8987 = vld [vmem:[#allocation3 + $0x1a0] sm:$0xff]
        %v8988 = vld [vmem:[#allocation3 + $0x1a8] sm:$0xff]
        %v8989 = vld [vmem:[#allocation3 + $0x1b0] sm:$0xff]
        %v8990 = vld [vmem:[#allocation3 + $0x1b8] sm:$0xff]
        %v8991 = vld [vmem:[#allocation3 + $0x1c0] sm:$0xff]
        %v8992 = vld [vmem:[#allocation3 + $0x1c8] sm:$0xff]
        %v8993 = vld [vmem:[#allocation3 + $0x1d0] sm:$0xff]
        %v8994 = vld [vmem:[#allocation3 + $0x1d8] sm:$0xff]
        %v8995 = vld [vmem:[#allocation3 + $0x1e0] sm:$0xff]
        %v8996 = vld [vmem:[#allocation3 + $0x1e8] sm:$0xff]
        %v8997 = vld [vmem:[#allocation3 + $0x1f0] sm:$0xff]
        %v8998 = vld [vmem:[#allocation3 + $0x1f8] sm:$0xff]
        %v8999 = vld [vmem:[%s4] sm:$0xff]
        %v9000 = vld [vmem:[%s4 + $0x8] sm:$0xff]
        %v9001 = vld [vmem:[%s4 + $0x10] sm:$0xff]
        %v9002 = vld [vmem:[%s4 + $0x18] sm:$0xff]
        %v9003 = vld [vmem:[%s4 + $0x20] sm:$0xff]
        %v9004 = vld [vmem:[%s4 + $0x28] sm:$0xff]
        %v9005 = vld [vmem:[%s4 + $0x30] sm:$0xff]
        %v9006 = vld [vmem:[%s4 + $0x38] sm:$0xff]
        %v9007 = vld [vmem:[%s4 + $0x40] sm:$0xff]
        %v9008 = vld [vmem:[%s4 + $0x48] sm:$0xff]
        %v9009 = vld [vmem:[%s4 + $0x50] sm:$0xff]
        %v9010 = vld [vmem:[%s4 + $0x58] sm:$0xff]
        %v9011 = vld [vmem:[%s4 + $0x60] sm:$0xff]
        %v9012 = vld [vmem:[%s4 + $0x68] sm:$0xff]
        %v9013 = vld [vmem:[%s4 + $0x70] sm:$0xff]
        %v9014 = vld [vmem:[%s4 + $0x78] sm:$0xff]
        %v9015 = vld [vmem:[%s4 + $0x80] sm:$0xff]
        %v9016 = vld [vmem:[%s4 + $0x88] sm:$0xff]
        %v9017 = vld [vmem:[%s4 + $0x90] sm:$0xff]
        %v9018 = vld [vmem:[%s4 + $0x98] sm:$0xff]
        %v9019 = vld [vmem:[%s4 + $0xa0] sm:$0xff]
        %v9020 = vld [vmem:[%s4 + $0xa8] sm:$0xff]
        %v9021 = vld [vmem:[%s4 + $0xb0] sm:$0xff]
        %v9022 = vld [vmem:[%s4 + $0xb8] sm:$0xff]
        %v9023 = vld [vmem:[%s4 + $0xc0] sm:$0xff]
        %v9024 = vld [vmem:[%s4 + $0xc8] sm:$0xff]
        %v9025 = vld [vmem:[%s4 + $0xd0] sm:$0xff]
        %v9026 = vld [vmem:[%s4 + $0xd8] sm:$0xff]
        %v9027 = vld [vmem:[%s4 + $0xe0] sm:$0xff]
        %v9028 = vld [vmem:[%s4 + $0xe8] sm:$0xff]
        %v9029 = vld [vmem:[%s4 + $0xf0] sm:$0xff]
        %v9030 = vld [vmem:[%s4 + $0xf8] sm:$0xf]
        %v9031 = vld [vmem:[%s8] sm:$0x1]
        %v9033 = vlaneseq
        %v9034 = vshrl.u32 %v9033, 7
        %v9035 = vsub.s32 0, %v9034
        %v9036 = vrot.slane %v9031, %v9035
        %vm9038 = vcmask 1014784
        %v9040 = vsel %vm9038, %v8936, 0
        %v9043 = vsel %vm9038, %v8938, 0
        %v9046 = vsel %vm9038, %v8940, 0
        %v9049 = vsel %vm9038, %v8942, 0
        %v9052 = vsel %vm9038, %v8944, 0
        %v9055 = vsel %vm9038, %v8946, 0
        %v9058 = vsel %vm9038, %v8948, 0
        %v9061 = vsel %vm9038, %v8950, 0
        %v9064 = vsel %vm9038, %v8952, 0
        %v9067 = vsel %vm9038, %v8954, 0
        %v9070 = vsel %vm9038, %v8956, 0
        %v9073 = vsel %vm9038, %v8958, 0
        %v9076 = vsel %vm9038, %v8960, 0
        %v9079 = vsel %vm9038, %v8962, 0
        %v9082 = vsel %vm9038, %v8964, 0
        %v9085 = vsel %vm9038, %v8966, 0
        %v9088 = vsel %vm9038, %v8968, 0
        %v9091 = vsel %vm9038, %v8970, 0
        %v9094 = vsel %vm9038, %v8972, 0
        %v9097 = vsel %vm9038, %v8974, 0
        %v9100 = vsel %vm9038, %v8976, 0
        %v9103 = vsel %vm9038, %v8978, 0
        %v9106 = vsel %vm9038, %v8980, 0
        %v9109 = vsel %vm9038, %v8982, 0
        %v9112 = vsel %vm9038, %v8984, 0
        %v9115 = vsel %vm9038, %v8986, 0
        %v9118 = vsel %vm9038, %v8988, 0
        %v9121 = vsel %vm9038, %v8990, 0
        %v9124 = vsel %vm9038, %v8992, 0
        %v9127 = vsel %vm9038, %v8994, 0
        %v9130 = vsel %vm9038, %v8996, 0
        %v9133 = vsel %vm9038, %v8998, 0
        %v9136 = vsel %vm2229, %v9030, 0
        %9138 = vmatprep.subr.mxu0 0.0
        %9139 = vmatpush1.msra.mxu0 %v8999
        %9140 = vmatprep.subr.mxu0 0.0
        %9141 = vmatpush1.msra.mxu0 %v9000
        %9142 = vmatprep.subr.mxu0 0.0
        %9143 = vmatpush1.msra.mxu0 %v9001
        %9144 = vmatprep.subr.mxu0 0.0
        %9145 = vmatpush1.msra.mxu0 %v9002
        %9146 = vmatprep.subr.mxu0 0.0
        %9147 = vmatpush1.msra.mxu0 %v9003
        %9148 = vmatprep.subr.mxu0 0.0
        %9149 = vmatpush1.msra.mxu0 %v9004
        %9150 = vmatprep.subr.mxu0 0.0
        %9151 = vmatpush1.msra.mxu0 %v9005
        %9152 = vmatprep.subr.mxu0 0.0
        %9153 = vmatpush1.msra.mxu0 %v9006
        %9154 = vmatprep.subr.mxu0 0.0
        %9155 = vmatpush1.msra.mxu0 %v9007
        %9156 = vmatprep.subr.mxu0 0.0
        %9157 = vmatpush1.msra.mxu0 %v9008
        %9158 = vmatprep.subr.mxu0 0.0
        %9159 = vmatpush1.msra.mxu0 %v9009
        %9160 = vmatprep.subr.mxu0 0.0
        %9161 = vmatpush1.msra.mxu0 %v9010
        %9162 = vmatprep.subr.mxu0 0.0
        %9163 = vmatpush1.msra.mxu0 %v9011
        %9164 = vmatprep.subr.mxu0 0.0
        %9165 = vmatpush1.msra.mxu0 %v9012
        %9166 = vmatprep.subr.mxu0 0.0
        %9167 = vmatpush1.msra.mxu0 %v9013
        %9168 = vmatprep.subr.mxu0 0.0
        %9169 = vmatpush1.msra.mxu0 %v9014
        %9170 = vmatprep.subr.mxu0 0.0
        %9171 = vmatpush1.msra.mxu0 %v9015
        %9172 = vmatprep.subr.mxu0 0.0
        %9173 = vmatpush1.msra.mxu0 %v9016
        %9174 = vmatprep.subr.mxu0 0.0
        %9175 = vmatpush1.msra.mxu0 %v9017
        %9176 = vmatprep.subr.mxu0 0.0
        %9177 = vmatpush1.msra.mxu0 %v9018
        %9178 = vmatprep.subr.mxu0 0.0
        %9179 = vmatpush1.msra.mxu0 %v9019
        %9180 = vmatprep.subr.mxu0 0.0
        %9181 = vmatpush1.msra.mxu0 %v9020
        %9182 = vmatprep.subr.mxu0 0.0
        %9183 = vmatpush1.msra.mxu0 %v9021
        %9184 = vmatprep.subr.mxu0 0.0
        %9185 = vmatpush1.msra.mxu0 %v9022
        %9186 = vmatprep.subr.mxu0 0.0
        %9187 = vmatpush1.msra.mxu0 %v9023
        %9188 = vmatprep.subr.mxu0 0.0
        %9189 = vmatpush1.msra.mxu0 %v9024
        %9190 = vmatprep.subr.mxu0 0.0
        %9191 = vmatpush1.msra.mxu0 %v9025
        %9192 = vmatprep.subr.mxu0 0.0
        %9193 = vmatpush1.msra.mxu0 %v9026
        %9194 = vmatprep.subr.mxu0 0.0
        %9195 = vmatpush1.msra.mxu0 %v9027
        %9196 = vmatprep.subr.mxu0 0.0
        %9197 = vmatpush1.msra.mxu0 %v9028
        %9198 = vmatprep.subr.mxu0 0.0
        %9199 = vmatpush1.msra.mxu0 %v9029
        %9200 = vmatprep.subr.mxu0 0.0
        %9201 = vmatpush1.msra.mxu0 %v9136
        %9202 = vmatprep.mubr.f32.mxu0 %v9040
        %9203 = vmatmul.mubr.f32.gmra.mrb[0].mxu0 %v8935
        %v9204 = vpop.f32.mrb[0].mxu0
        %v9205 = vadd.f32 %v9036, %v9204
        %v9206 = vpop.f32.mrb[0].mxu0
        %9207 = vmatprep.mubr.f32.mxu0 %v9043
        %9208 = vmatmul.mubr.f32.gmra.mrb[0].mxu0 %v8937
        %v9209 = vpop.f32.mrb[0].mxu0
        %v9210 = vadd.f32 %v9036, %v9209
        %v9211 = vpop.f32.mrb[0].mxu0
        %9212 = vmatprep.mubr.f32.mxu0 %v9046
        %9213 = vmatmul.mubr.f32.gmra.mrb[0].mxu0 %v8939
        %v9214 = vpop.f32.mrb[0].mxu0
        %v9215 = vadd.f32 %v9036, %v9214
        %v9216 = vpop.f32.mrb[0].mxu0
        %9217 = vmatprep.mubr.f32.mxu0 %v9049
        %9218 = vmatmul.mubr.f32.gmra.mrb[0].mxu0 %v8941
        %v9219 = vpop.f32.mrb[0].mxu0
        %v9220 = vadd.f32 %v9036, %v9219
        %v9221 = vpop.f32.mrb[0].mxu0
        %9222 = vmatprep.mubr.f32.mxu0 %v9052
        %9223 = vmatmul.mubr.f32.gmra.mrb[0].mxu0 %v8943
        %v9224 = vpop.f32.mrb[0].mxu0
        %v9225 = vadd.f32 %v9036, %v9224
        %v9226 = vpop.f32.mrb[0].mxu0
        %9227 = vmatprep.mubr.f32.mxu0 %v9055
        %9228 = vmatmul.mubr.f32.gmra.mrb[0].mxu0 %v8945
        %v9229 = vpop.f32.mrb[0].mxu0
        %v9230 = vadd.f32 %v9036, %v9229
        %v9231 = vpop.f32.mrb[0].mxu0
        %9232 = vmatprep.mubr.f32.mxu0 %v9058
        %9233 = vmatmul.mubr.f32.gmra.mrb[0].mxu0 %v8947
        %v9234 = vpop.f32.mrb[0].mxu0
        %v9235 = vadd.f32 %v9036, %v9234
        %v9236 = vpop.f32.mrb[0].mxu0
        %9237 = vmatprep.mubr.f32.mxu0 %v9061
        %9238 = vmatmul.mubr.f32.gmra.mrb[0].mxu0 %v8949
        %v9239 = vpop.f32.mrb[0].mxu0
        %v9240 = vadd.f32 %v9036, %v9239
        %v9241 = vpop.f32.mrb[0].mxu0
        %9242 = vmatprep.mubr.f32.mxu0 %v9064
        %9243 = vmatmul.mubr.f32.gmra.mrb[0].mxu0 %v8951
        %v9244 = vpop.f32.mrb[0].mxu0
        %v9245 = vadd.f32 %v9036, %v9244
        %v9246 = vpop.f32.mrb[0].mxu0
        %9247 = vmatprep.mubr.f32.mxu0 %v9067
        %9248 = vmatmul.mubr.f32.gmra.mrb[0].mxu0 %v8953
        %v9249 = vpop.f32.mrb[0].mxu0
        %v9250 = vadd.f32 %v9036, %v9249
        %v9251 = vpop.f32.mrb[0].mxu0
        %9252 = vmatprep.mubr.f32.mxu0 %v9070
        %9253 = vmatmul.mubr.f32.gmra.mrb[0].mxu0 %v8955
        %v9254 = vpop.f32.mrb[0].mxu0
        %v9255 = vadd.f32 %v9036, %v9254
        %v9256 = vpop.f32.mrb[0].mxu0
        %9257 = vmatprep.mubr.f32.mxu0 %v9073
        %9258 = vmatmul.mubr.f32.gmra.mrb[0].mxu0 %v8957
        %v9259 = vpop.f32.mrb[0].mxu0
        %v9260 = vadd.f32 %v9036, %v9259
        %v9261 = vpop.f32.mrb[0].mxu0
        %9262 = vmatprep.mubr.f32.mxu0 %v9076
        %9263 = vmatmul.mubr.f32.gmra.mrb[0].mxu0 %v8959
        %v9264 = vpop.f32.mrb[0].mxu0
        %v9265 = vadd.f32 %v9036, %v9264
        %v9266 = vpop.f32.mrb[0].mxu0
        %9267 = vmatprep.mubr.f32.mxu0 %v9079
        %9268 = vmatmul.mubr.f32.gmra.mrb[0].mxu0 %v8961
        %v9269 = vpop.f32.mrb[0].mxu0
        %v9270 = vadd.f32 %v9036, %v9269
        %v9271 = vpop.f32.mrb[0].mxu0
        %9272 = vmatprep.mubr.f32.mxu0 %v9082
        %9273 = vmatmul.mubr.f32.gmra.mrb[0].mxu0 %v8963
        %v9274 = vpop.f32.mrb[0].mxu0
        %v9275 = vadd.f32 %v9036, %v9274
        %v9276 = vpop.f32.mrb[0].mxu0
        %9277 = vmatprep.mubr.f32.mxu0 %v9085
        %9278 = vmatmul.mubr.f32.gmra.mrb[0].mxu0 %v8965
        %v9279 = vpop.f32.mrb[0].mxu0
        %v9280 = vadd.f32 %v9036, %v9279
        %v9281 = vpop.f32.mrb[0].mxu0
        %9282 = vmatprep.mubr.f32.mxu0 %v9088
        %9283 = vmatmul.mubr.f32.gmra.mrb[0].mxu0 %v8967
        %v9284 = vpop.f32.mrb[0].mxu0
        %v9285 = vadd.f32 %v9036, %v9284
        %v9286 = vpop.f32.mrb[0].mxu0
        %9287 = vmatprep.mubr.f32.mxu0 %v9091
        %9288 = vmatmul.mubr.f32.gmra.mrb[0].mxu0 %v8969
        %v9289 = vpop.f32.mrb[0].mxu0
        %v9290 = vadd.f32 %v9036, %v9289
        %v9291 = vpop.f32.mrb[0].mxu0
        %9292 = vmatprep.mubr.f32.mxu0 %v9094
        %9293 = vmatmul.mubr.f32.gmra.mrb[0].mxu0 %v8971
        %v9294 = vpop.f32.mrb[0].mxu0
        %v9295 = vadd.f32 %v9036, %v9294
        %v9296 = vpop.f32.mrb[0].mxu0
        %9297 = vmatprep.mubr.f32.mxu0 %v9097
        %9298 = vmatmul.mubr.f32.gmra.mrb[0].mxu0 %v8973
        %v9299 = vpop.f32.mrb[0].mxu0
        %v9300 = vadd.f32 %v9036, %v9299
        %v9301 = vpop.f32.mrb[0].mxu0
        %9302 = vmatprep.mubr.f32.mxu0 %v9100
        %9303 = vmatmul.mubr.f32.gmra.mrb[0].mxu0 %v8975
        %v9304 = vpop.f32.mrb[0].mxu0
        %v9305 = vadd.f32 %v9036, %v9304
        %v9306 = vpop.f32.mrb[0].mxu0
        %9307 = vmatprep.mubr.f32.mxu0 %v9103
        %9308 = vmatmul.mubr.f32.gmra.mrb[0].mxu0 %v8977
        %v9309 = vpop.f32.mrb[0].mxu0
        %v9310 = vadd.f32 %v9036, %v9309
        %v9311 = vpop.f32.mrb[0].mxu0
        %9312 = vmatprep.mubr.f32.mxu0 %v9106
        %9313 = vmatmul.mubr.f32.gmra.mrb[0].mxu0 %v8979
        %v9314 = vpop.f32.mrb[0].mxu0
        %v9315 = vadd.f32 %v9036, %v9314
        %v9316 = vpop.f32.mrb[0].mxu0
        %9317 = vmatprep.mubr.f32.mxu0 %v9109
        %9318 = vmatmul.mubr.f32.gmra.mrb[0].mxu0 %v8981
        %v9319 = vpop.f32.mrb[0].mxu0
        %v9320 = vadd.f32 %v9036, %v9319
        %v9321 = vpop.f32.mrb[0].mxu0
        %9322 = vmatprep.mubr.f32.mxu0 %v9112
        %9323 = vmatmul.mubr.f32.gmra.mrb[0].mxu0 %v8983
        %v9324 = vpop.f32.mrb[0].mxu0
        %v9325 = vadd.f32 %v9036, %v9324
        %v9326 = vpop.f32.mrb[0].mxu0
        %9327 = vmatprep.mubr.f32.mxu0 %v9115
        %9328 = vmatmul.mubr.f32.gmra.mrb[0].mxu0 %v8985
        %v9329 = vpop.f32.mrb[0].mxu0
        %v9330 = vadd.f32 %v9036, %v9329
        %v9331 = vpop.f32.mrb[0].mxu0
        %9332 = vmatprep.mubr.f32.mxu0 %v9118
        %9333 = vmatmul.mubr.f32.gmra.mrb[0].mxu0 %v8987
        %v9334 = vpop.f32.mrb[0].mxu0
        %v9335 = vadd.f32 %v9036, %v9334
        %v9336 = vpop.f32.mrb[0].mxu0
        %9337 = vmatprep.mubr.f32.mxu0 %v9121
        %9338 = vmatmul.mubr.f32.gmra.mrb[0].mxu0 %v8989
        %v9339 = vpop.f32.mrb[0].mxu0
        %v9340 = vadd.f32 %v9036, %v9339
        %v9341 = vpop.f32.mrb[0].mxu0
        %9342 = vmatprep.mubr.f32.mxu0 %v9124
        %9343 = vmatmul.mubr.f32.gmra.mrb[0].mxu0 %v8991
        %v9344 = vpop.f32.mrb[0].mxu0
        %v9345 = vadd.f32 %v9036, %v9344
        %v9346 = vpop.f32.mrb[0].mxu0
        %9347 = vmatprep.mubr.f32.mxu0 %v9127
        %9348 = vmatmul.mubr.f32.gmra.mrb[0].mxu0 %v8993
        %v9349 = vpop.f32.mrb[0].mxu0
        %v9350 = vadd.f32 %v9036, %v9349
        %v9351 = vpop.f32.mrb[0].mxu0
        %9352 = vmatprep.mubr.f32.mxu0 %v9130
        %9353 = vmatmul.mubr.f32.gmra.mrb[0].mxu0 %v8995
        %v9354 = vpop.f32.mrb[0].mxu0
        %v9355 = vadd.f32 %v9036, %v9354
        %v9356 = vpop.f32.mrb[0].mxu0
        %9357 = vmatprep.mubr.f32.mxu0 %v9133
        %9358 = vmatmul.mubr.f32.gmra.mrb[0].mxu0 %v8997
        %v9359 = vpop.f32.mrb[0].mxu0
        %v9360 = vadd.f32 %v9036, %v9359
        %v9361 = vpop.f32.mrb[0].mxu0
        %9362 = vdwg.mxu0
        %v9363 = vmul.f32 %v9205, 0.2
        %v9364 = vmul.f32 %v9210, 0.2
        %v9365 = vmul.f32 %v9215, 0.2
        %v9366 = vmul.f32 %v9220, 0.2
        %v9367 = vmul.f32 %v9225, 0.2
        %v9368 = vmul.f32 %v9230, 0.2
        %v9369 = vmul.f32 %v9235, 0.2
        %v9370 = vmul.f32 %v9240, 0.2
        %v9371 = vmul.f32 %v9245, 0.2
        %v9372 = vmul.f32 %v9250, 0.2
        %v9373 = vmul.f32 %v9255, 0.2
        %v9374 = vmul.f32 %v9260, 0.2
        %v9375 = vmul.f32 %v9265, 0.2
        %v9376 = vmul.f32 %v9270, 0.2
        %v9377 = vmul.f32 %v9275, 0.2
        %v9378 = vmul.f32 %v9280, 0.2
        %v9379 = vmul.f32 %v9285, 0.2
        %v9380 = vmul.f32 %v9290, 0.2
        %v9381 = vmul.f32 %v9295, 0.2
        %v9382 = vmul.f32 %v9300, 0.2
        %v9383 = vmul.f32 %v9305, 0.2
        %v9384 = vmul.f32 %v9310, 0.2
        %v9385 = vmul.f32 %v9315, 0.2
        %v9386 = vmul.f32 %v9320, 0.2
        %v9387 = vmul.f32 %v9325, 0.2
        %v9388 = vmul.f32 %v9330, 0.2
        %v9389 = vmul.f32 %v9335, 0.2
        %v9390 = vmul.f32 %v9340, 0.2
        %v9391 = vmul.f32 %v9345, 0.2
        %v9392 = vmul.f32 %v9350, 0.2
        %v9393 = vmul.f32 %v9355, 0.2
        %v9394 = vmul.f32 %v9360, 0.2
        %v9395 = vadd.f32 %v9363, %v397
        %v9396 = vadd.f32 %v9364, %v398
        %v9397 = vadd.f32 %v9365, %v399
        %v9398 = vadd.f32 %v9366, %v400
        %v9399 = vadd.f32 %v9367, %v401
        %v9400 = vadd.f32 %v9368, %v402
        %v9401 = vadd.f32 %v9369, %v403
        %v9402 = vadd.f32 %v9370, %v404
        %v9403 = vadd.f32 %v9371, %v405
        %v9404 = vadd.f32 %v9372, %v406
        %v9405 = vadd.f32 %v9373, %v407
        %v9406 = vadd.f32 %v9374, %v408
        %v9407 = vadd.f32 %v9375, %v409
        %v9408 = vadd.f32 %v9376, %v410
        %v9409 = vadd.f32 %v9377, %v411
        %v9410 = vadd.f32 %v9378, %v412
        %v9411 = vadd.f32 %v9379, %v429
        %v9412 = vadd.f32 %v9380, %v430
        %v9413 = vadd.f32 %v9381, %v431
        %v9414 = vadd.f32 %v9382, %v432
        %v9415 = vadd.f32 %v9383, %v433
        %v9416 = vadd.f32 %v9384, %v434
        %v9417 = vadd.f32 %v9385, %v435
        %v9418 = vadd.f32 %v9386, %v436
        %v9419 = vadd.f32 %v9387, %v437
        %v9420 = vadd.f32 %v9388, %v438
        %v9421 = vadd.f32 %v9389, %v439
        %v9422 = vadd.f32 %v9390, %v440
        %v9423 = vadd.f32 %v9391, %v441
        %v9424 = vadd.f32 %v9392, %v442
        %v9425 = vadd.f32 %v9393, %v443
        %v9426 = vadd.f32 %v9394, %v444
        %9427 = vxpose.xlu0.b32.start [1/16] %v9395, 128
        %9428 = vxpose.xlu0.b32.cont [2/16] %v9396, 128
        %9429 = vxpose.xlu0.b32.cont [3/16] %v9397, 128
        %9430 = vxpose.xlu0.b32.cont [4/16] %v9398, 128
        %9431 = vxpose.xlu0.b32.cont [5/16] %v9399, 128
        %9432 = vxpose.xlu0.b32.cont [6/16] %v9400, 128
        %9433 = vxpose.xlu0.b32.cont [7/16] %v9401, 128
        %9434 = vxpose.xlu0.b32.cont [8/16] %v9402, 128
        %9435 = vxpose.xlu0.b32.cont [9/16] %v9403, 128
        %9436 = vxpose.xlu0.b32.cont [10/16] %v9404, 128
        %9437 = vxpose.xlu0.b32.cont [11/16] %v9405, 128
        %9438 = vxpose.xlu0.b32.cont [12/16] %v9406, 128
        %9439 = vxpose.xlu0.b32.cont [13/16] %v9407, 128
        %9440 = vxpose.xlu0.b32.cont [14/16] %v9408, 128
        %9441 = vxpose.xlu0.b32.cont [15/16] %v9409, 128
        %9442 = vxpose.xlu0.b32.end [16/16] %v9410, 128
        %v9443 = vpop.trf.xlu0
        %v9444 = vpop.trf.xlu0
        %v9445 = vpop.trf.xlu0
        %v9446 = vpop.trf.xlu0
        %v9447 = vpop.trf.xlu0
        %v9448 = vpop.trf.xlu0
        %v9449 = vpop.trf.xlu0
        %v9450 = vpop.trf.xlu0
        %v9451 = vpop.trf.xlu0
        %v9452 = vpop.trf.xlu0
        %v9453 = vpop.trf.xlu0
        %v9454 = vpop.trf.xlu0
        %v9455 = vpop.trf.xlu0
        %v9456 = vpop.trf.xlu0
        %v9457 = vpop.trf.xlu0
        %v9458 = vpop.trf.xlu0
        %9459 = vxpose.xlu0.b32.start [1/16] %v9411, 128
        %9460 = vxpose.xlu0.b32.cont [2/16] %v9412, 128
        %9461 = vxpose.xlu0.b32.cont [3/16] %v9413, 128
        %9462 = vxpose.xlu0.b32.cont [4/16] %v9414, 128
        %9463 = vxpose.xlu0.b32.cont [5/16] %v9415, 128
        %9464 = vxpose.xlu0.b32.cont [6/16] %v9416, 128
        %9465 = vxpose.xlu0.b32.cont [7/16] %v9417, 128
        %9466 = vxpose.xlu0.b32.cont [8/16] %v9418, 128
        %9467 = vxpose.xlu0.b32.cont [9/16] %v9419, 128
        %9468 = vxpose.xlu0.b32.cont [10/16] %v9420, 128
        %9469 = vxpose.xlu0.b32.cont [11/16] %v9421, 128
        %9470 = vxpose.xlu0.b32.cont [12/16] %v9422, 128
        %9471 = vxpose.xlu0.b32.cont [13/16] %v9423, 128
        %9472 = vxpose.xlu0.b32.cont [14/16] %v9424, 128
        %9473 = vxpose.xlu0.b32.cont [15/16] %v9425, 128
        %9474 = vxpose.xlu0.b32.end [16/16] %v9426, 128
        %v9475 = vpop.trf.xlu0
        %v9476 = vpop.trf.xlu0
        %v9477 = vpop.trf.xlu0
        %v9478 = vpop.trf.xlu0
        %v9479 = vpop.trf.xlu0
        %v9480 = vpop.trf.xlu0
        %v9481 = vpop.trf.xlu0
        %v9482 = vpop.trf.xlu0
        %v9483 = vpop.trf.xlu0
        %v9484 = vpop.trf.xlu0
        %v9485 = vpop.trf.xlu0
        %v9486 = vpop.trf.xlu0
        %v9487 = vpop.trf.xlu0
        %v9488 = vpop.trf.xlu0
        %v9489 = vpop.trf.xlu0
        %v9490 = vpop.trf.xlu0
        %v9493 = vcombine.low %v9443, %v9475
        %9495 = vst [vmem:[%s325] sm:$0xff] %v9493
        %s9496 = sand.u32 %s225, 1
        %s9497 = scalar_lea.sflag [#allocation5], %s9496
        %s9498 = sand.u32 %s225, 1
        %s9499 = smul.addr %s9498, 8
        %s9500 = scalar_lea.vmem [#allocation4], %s9499
        // Predicated region
        $region57: #{tpu_custom_call.1} parent=55 // pred_check
          %p9501 = pneg %p235
        $region58: #{tpu_custom_call.1} parent=55 // pred_check_branch
          %9503 = sbr.rel (%p9501) target = $region60
        $region59: #{tpu_custom_call.1} parent=55 // pred_region
          %s9505 = ssub.s32 128, 128
          %9506 = vsyncadd %s9497, %s9505
          %s9507 = smul.addr %s23, 2
          %s9508 = smul.addr %s9507, 64
          %s9509 = scalar_lea.hbm %s9, %s9508
          %s9511 = sshll.u32 %s9500, 4
          %s9512 = int_to_ptr.vmem [resolvable:$true] %s9511
          %9514 = dma.vmem_to_hbm [thread:$0]  %s9512, 128, %s9509, %s9497
        $region60: #{tpu_custom_call.1} parent=55 // pred_fallthru
          _
      $region56: #{tpu_custom_call.1} parent=5 // pred_fallthru
        _
      %p9515 = scmp.le.s32.totalorder 2, %s18
      // Predicated region
      $region61: #{tpu_custom_call.1} parent=5 // pred_check
        %p9516 = pneg %p9515
      $region62: #{tpu_custom_call.1} parent=5 // pred_check_branch
        %9518 = sbr.rel (%p9516) target = $region64
      $region63: #{tpu_custom_call.1} parent=5 // pred_region
        %s9519 = ssub.s32 %s18, 2
        // Predicated region
        $region65: #{tpu_custom_call.1} parent=63 // pred_check
          %p9520 = pneg %p241
        $region66: #{tpu_custom_call.1} parent=63 // pred_check_branch
          %9522 = sbr.rel (%p9520) target = $region68
        $region67: #{tpu_custom_call.1} parent=63 // pred_region
          %s9523 = sand.u32 %s226, 1
          %s9524 = scalar_lea.sflag [#allocation5], %s9523
          %s9525 = sand.u32 %s226, 1
          %s9526 = smul.addr %s9525, 8
          %s9527 = scalar_lea.vmem [#allocation4], %s9526
          %9528 = dma.done %s9524, 128
        $region68: #{tpu_custom_call.1} parent=63 // pred_fallthru
          _
      $region64: #{tpu_custom_call.1} parent=5 // pred_fallthru
        _
    $region6: #{tpu_custom_call.1} parent=1 // loop_footer
      %s22 = sadd.s32 1, %s18
    $region7: #{tpu_custom_call.1} parent=1 // loop_footer_branch
      %17 = sbr.rel target = $region3
    $region8: #{tpu_custom_call.1} parent=1 // loop_exit
      _
    %9529 = vsyncpa [#allocation5], 1
    %s9530 = scalar_lea.sflag [#allocation5], 1
    %9531 = vsyncpa %s9530, 1

</llo_original>
